<compile_context>
chip_gen: v6e
topology: v6e:2x2x1
jax: 0.10.0
libtpu: 0.0.40
codegen_flags: <defaults>
</compile_context>

<pallas_src>
import jax
import jax.numpy as jnp
from jax.experimental import pallas as pl
from jax.experimental.pallas import tpu as pltpu

# ----------------------------- config (small synthetic ViT) -----------------------------
BATCH = 2
IN_CH = 3
IMG = 16
PATCH = 8
GRID_HW = IMG // PATCH          # 2
NUM_PATCHES = GRID_HW * GRID_HW  # 4
SEQ = NUM_PATCHES + 1            # 5  (CLS token + patches)
EMBED = 32                       # embed_dim  (self.outdim)
HEADS = 4
HEAD_DIM = EMBED // HEADS        # 8
DEPTH = 2
MLP_HIDDEN = 4 * EMBED           # 128
LN_EPS = 1e-6                    # DINOv2 uses LayerNorm(eps=1e-6)
PATCH_DIM = IN_CH * PATCH * PATCH
N_BLOCK_PARAMS = 14


# ----------------------------- in-kernel math helpers -----------------------------
def _layernorm(v, w, b):
    mu = jnp.mean(v, axis=-1, keepdims=True)
    var = jnp.mean(jnp.square(v - mu), axis=-1, keepdims=True)
    return (v - mu) * jax.lax.rsqrt(var + LN_EPS) * w + b


def _erf(x):
    # Abramowitz & Stegun 7.1.26 polynomial (|err| < 1.5e-7, i.e. ~f32 ulp):
    # matches PyTorch's exact-erf nn.GELU far better than the tanh form while
    # only using exp / compare / select ops that lower cleanly in Mosaic.
    p = jnp.float32(0.3275911)
    a1 = jnp.float32(0.254829592)
    a2 = jnp.float32(-0.284496736)
    a3 = jnp.float32(1.421413741)
    a4 = jnp.float32(-1.453152027)
    a5 = jnp.float32(1.061405429)
    ax = jnp.abs(x)
    t = 1.0 / (1.0 + p * ax)
    poly = ((((a5 * t + a4) * t + a3) * t + a2) * t + a1) * t
    y = 1.0 - poly * jnp.exp(-ax * ax)
    return jnp.where(x < 0.0, -y, y)


def _gelu_exact(x):
    return 0.5 * x * (1.0 + _erf(x * jnp.float32(0.7071067811865476)))


# ----------------------------- fused forward kernel -----------------------------
def _dino_fused_kernel(*refs):
    n_in = 7 + N_BLOCK_PARAMS * DEPTH
    patches_ref, pw_ref, pb_ref, cls_ref, pos_ref = refs[:5]
    blk_refs = refs[5:5 + N_BLOCK_PARAMS * DEPTH]
    lnw_ref, lnb_ref = refs[5 + N_BLOCK_PARAMS * DEPTH:n_in]
    o_ref = refs[n_in]          # (B, D) output: normalized CLS tokens
    x_scr = refs[n_in + 1]      # (B*S, D) VMEM activation slab

    bsz = o_ref.shape[0]
    scale = jnp.float32(HEAD_DIM ** -0.5)

    # --- patch embed (conv-as-matmul); tokens assembled straight into the VMEM slab ---
    emb = (jnp.dot(patches_ref[...], pw_ref[...], preferred_element_type=jnp.float32)
           + pb_ref[...])                                   # (B*NP, D)
    for b in range(bsz):
        base = b * SEQ
        x_scr[base:base + 1, :] = cls_ref[...] + pos_ref[0:1, :]
        x_scr[base + 1:base + SEQ, :] = (
            emb[b * NUM_PATCHES:(b + 1) * NUM_PATCHES, :] + pos_ref[1:SEQ, :])

    # --- transformer blocks: every row-wise matmul runs on the full (B*S, D) slab ---
    for layer in range(DEPTH):
        (ln1w, ln1b, wqkv, bqkv, wproj, bproj, g1,
         ln2w, ln2b, wfc1, bfc1, wfc2, bfc2, g2) = blk_refs[
            layer * N_BLOCK_PARAMS:(layer + 1) * N_BLOCK_PARAMS]

        # attention branch (pre-LN)
        x = x_scr[...]                                       # (B*S, D)
        h = _layernorm(x, ln1w[...], ln1b[...])
        qkv = (jnp.dot(h, wqkv[...], preferred_element_type=jnp.float32)
               + bqkv[...])                                  # (B*S, 3D)

        for b in range(bsz):                                 # static per-batch attention
            r0 = b * SEQ
            q = qkv[r0:r0 + SEQ, 0:EMBED]
            k = qkv[r0:r0 + SEQ, EMBED:2 * EMBED]
            v = qkv[r0:r0 + SEQ, 2 * EMBED:3 * EMBED]
            acc = jnp.zeros((SEQ, EMBED), jnp.float32)
            for hh in range(HEADS):                          # accumulate through proj:
                lo = hh * HEAD_DIM                           # no lane-direction concat
                qh = q[:, lo:lo + HEAD_DIM] * scale
                kh = k[:, lo:lo + HEAD_DIM]
                vh = v[:, lo:lo + HEAD_DIM]
                s = jax.lax.dot_general(qh, kh, (((1,), (1,)), ((), ())),
                                        preferred_element_type=jnp.float32)  # (S, S)
                m = jnp.max(s, axis=-1, keepdims=True)
                e = jnp.exp(s - m)
                p = e * pl.reciprocal(jnp.sum(e, axis=-1, keepdims=True), approx=True)
                ctx = jnp.dot(p, vh, preferred_element_type=jnp.float32)      # (S, Dh)
                acc = acc + jnp.dot(ctx, wproj[lo:lo + HEAD_DIM, :],
                                    preferred_element_type=jnp.float32)       # (S, D)
            # LayerScale + residual
            x_scr[r0:r0 + SEQ, :] = x[r0:r0 + SEQ, :] + g1[...] * (acc + bproj[...])

        # MLP branch (pre-LN)
        x = x_scr[...]
        h2 = _layernorm(x, ln2w[...], ln2b[...])
        h2 = jnp.dot(h2, wfc1[...], preferred_element_type=jnp.float32) + bfc1[...]
        h2 = _gelu_exact(h2)
        h2 = jnp.dot(h2, wfc2[...], preferred_element_type=jnp.float32) + bfc2[...]
        x_scr[...] = x + g2[...] * h2                        # LayerScale + residual

    # --- final LayerNorm on the CLS rows only; emit (B, D) directly ---
    x = x_scr[...]
    for b in range(bsz):
        cls_row = x[b * SEQ:b * SEQ + 1, :]
        o_ref[b:b + 1, :] = _layernorm(cls_row, lnw_ref[...], lnb_ref[...])


# ----------------------------- wrapper (single pallas_call, no grid) -----------------------------
def dino_v2_forward(x, params):
    B = x.shape[0]
    # non-overlapping patch extraction (stride == kernel == PATCH), matching
    # PyTorch conv weight layout (D, C, p, p): patch vectors ordered (C, p, p).
    patches = x.reshape(B, IN_CH, GRID_HW, PATCH, GRID_HW, PATCH)
    patches = patches.transpose(0, 2, 4, 1, 3, 5).reshape(B * NUM_PATCHES, PATCH_DIM)

    inputs = [patches, params["patch_w"], params["patch_b"],
              params["cls_token"], params["pos_embed"]]
    for blk in params["blocks"]:
        inputs.extend(blk)
    inputs.extend([params["ln_w"], params["ln_b"]])

    vmem_spec = pl.BlockSpec(memory_space=pltpu.MemorySpace.VMEM)
    return pl.pallas_call(
        _dino_fused_kernel,
        out_shape=jax.ShapeDtypeStruct((B, EMBED), jnp.float32),
        in_specs=[vmem_spec] * len(inputs),
        out_specs=vmem_spec,
        scratch_shapes=[pltpu.VMEM((B * SEQ, EMBED), jnp.float32)],
    )(*inputs)


# ----------------------------- parameters (deterministic, synthetic) -----------------------------
# TODO(synk): the PyTorch module loads pretrained weights via torch.hub; synthetic
# random weights are used here since no external data may be read.
def init_params(key):
    keys = iter(jax.random.split(key, 4 + DEPTH * 10))

    def nrm(shape, scale=0.02):
        return scale * jax.random.normal(next(keys), shape, dtype=jnp.float32)

    params = {
        # conv patch-embed weight (D, C, p, p) flattened to a (C*p*p, D) matmul weight
        "patch_w": nrm((PATCH_DIM, EMBED)),
        "patch_b": nrm((1, EMBED)),
        "cls_token": nrm((1, EMBED)),
        "pos_embed": nrm((SEQ, EMBED)),
        "ln_w": jnp.ones((1, EMBED), jnp.float32),
        "ln_b": jnp.zeros((1, EMBED), jnp.float32),
        "blocks": [],
    }
    for _ in range(DEPTH):
        blk = (
            jnp.ones((1, EMBED), jnp.float32),           # ln1 weight
            jnp.zeros((1, EMBED), jnp.float32),          # ln1 bias
            nrm((EMBED, 3 * EMBED)),                     # qkv weight
            nrm((1, 3 * EMBED)),                         # qkv bias
            nrm((EMBED, EMBED)),                         # attn proj weight
            nrm((1, EMBED)),                             # attn proj bias
            jnp.full((1, EMBED), 1e-5, jnp.float32),     # LayerScale gamma1
            jnp.ones((1, EMBED), jnp.float32),           # ln2 weight
            jnp.zeros((1, EMBED), jnp.float32),          # ln2 bias
            nrm((EMBED, MLP_HIDDEN)),                    # mlp fc1 weight
            nrm((1, MLP_HIDDEN)),                        # mlp fc1 bias
            nrm((MLP_HIDDEN, EMBED)),                    # mlp fc2 weight
            nrm((1, EMBED)),                             # mlp fc2 bias
            jnp.full((1, EMBED), 1e-5, jnp.float32),     # LayerScale gamma2
        )
        params["blocks"].append(blk)
    return params


if __name__ == "__main__":
    key = jax.random.PRNGKey(0)
    pkey, xkey = jax.random.split(key)
    params = init_params(pkey)

    # layout: NCHW, like PyTorch
    x = jax.random.normal(xkey, (BATCH, IN_CH, IMG, IMG), dtype=jnp.float32)

    fwd = jax.jit(dino_v2_forward)
    out = jax.block_until_ready(fwd(x, params))

    assert out.shape == (BATCH, EMBED), out.shape
    assert out.dtype == jnp.float32
    assert bool(jnp.all(jnp.isfinite(out)))
    print("KERNEL_OK")
</pallas_src>

<mosaic_0001>
module attributes {stable_mosaic.version = 11 : i64} {
  func.func @_dino_fused_kernel(%arg0: memref<8x192xf32, #tpu.memory_space<vmem>>, %arg1: memref<192x32xf32, #tpu.memory_space<vmem>>, %arg2: memref<1x32xf32, #tpu.memory_space<vmem>>, %arg3: memref<1x32xf32, #tpu.memory_space<vmem>>, %arg4: memref<5x32xf32, #tpu.memory_space<vmem>>, %arg5: memref<1x32xf32, #tpu.memory_space<vmem>>, %arg6: memref<1x32xf32, #tpu.memory_space<vmem>>, %arg7: memref<32x96xf32, #tpu.memory_space<vmem>>, %arg8: memref<1x96xf32, #tpu.memory_space<vmem>>, %arg9: memref<32x32xf32, #tpu.memory_space<vmem>>, %arg10: memref<1x32xf32, #tpu.memory_space<vmem>>, %arg11: memref<1x32xf32, #tpu.memory_space<vmem>>, %arg12: memref<1x32xf32, #tpu.memory_space<vmem>>, %arg13: memref<1x32xf32, #tpu.memory_space<vmem>>, %arg14: memref<32x128xf32, #tpu.memory_space<vmem>>, %arg15: memref<1x128xf32, #tpu.memory_space<vmem>>, %arg16: memref<128x32xf32, #tpu.memory_space<vmem>>, %arg17: memref<1x32xf32, #tpu.memory_space<vmem>>, %arg18: memref<1x32xf32, #tpu.memory_space<vmem>>, %arg19: memref<1x32xf32, #tpu.memory_space<vmem>>, %arg20: memref<1x32xf32, #tpu.memory_space<vmem>>, %arg21: memref<32x96xf32, #tpu.memory_space<vmem>>, %arg22: memref<1x96xf32, #tpu.memory_space<vmem>>, %arg23: memref<32x32xf32, #tpu.memory_space<vmem>>, %arg24: memref<1x32xf32, #tpu.memory_space<vmem>>, %arg25: memref<1x32xf32, #tpu.memory_space<vmem>>, %arg26: memref<1x32xf32, #tpu.memory_space<vmem>>, %arg27: memref<1x32xf32, #tpu.memory_space<vmem>>, %arg28: memref<32x128xf32, #tpu.memory_space<vmem>>, %arg29: memref<1x128xf32, #tpu.memory_space<vmem>>, %arg30: memref<128x32xf32, #tpu.memory_space<vmem>>, %arg31: memref<1x32xf32, #tpu.memory_space<vmem>>, %arg32: memref<1x32xf32, #tpu.memory_space<vmem>>, %arg33: memref<1x32xf32, #tpu.memory_space<vmem>>, %arg34: memref<1x32xf32, #tpu.memory_space<vmem>>, %arg35: memref<2x32xf32, #tpu.memory_space<vmem>>, %arg36: memref<10x32xf32, #tpu.memory_space<vmem>>) attributes {dimension_semantics = [], scalar_prefetch = 0 : i64, scratch_operands = 1 : i64, tpu.core_type = #tpu.core_type<tc>} {
    %c0 = arith.constant 0 : index
    %c0_0 = arith.constant 0 : index
    %0 = vector.load %arg0[%c0, %c0_0] : memref<8x192xf32, #tpu.memory_space<vmem>>, vector<8x192xf32>
    %c0_1 = arith.constant 0 : index
    %c0_2 = arith.constant 0 : index
    %1 = vector.load %arg1[%c0_1, %c0_2] : memref<192x32xf32, #tpu.memory_space<vmem>>, vector<192x32xf32>
    %cst = arith.constant dense<0.000000e+00> : vector<8x32xf32>
    %2 = tpu.matmul %0, %1, %cst {dimension_numbers = #tpu.dot_dimension_numbers<[1], [0], [0], [1], [0, 0, 1, 1], [], []>} : vector<8x192xf32>, vector<192x32xf32>, vector<8x32xf32> -> vector<8x32xf32>
    %c0_3 = arith.constant 0 : index
    %c0_4 = arith.constant 0 : index
    %3 = vector.load %arg2[%c0_3, %c0_4] : memref<1x32xf32, #tpu.memory_space<vmem>>, vector<1x32xf32>
    %4 = vector.broadcast %3 : vector<1x32xf32> to vector<8x32xf32>
    %5 = arith.addf %2, %4 : vector<8x32xf32>
    %c0_5 = arith.constant 0 : index
    %c0_6 = arith.constant 0 : index
    %6 = vector.load %arg3[%c0_5, %c0_6] : memref<1x32xf32, #tpu.memory_space<vmem>>, vector<1x32xf32>
    %c0_7 = arith.constant 0 : index
    %c0_8 = arith.constant 0 : index
    %7 = vector.load %arg4[%c0_7, %c0_8] : memref<5x32xf32, #tpu.memory_space<vmem>>, vector<1x32xf32>
    %8 = arith.addf %6, %7 : vector<1x32xf32>
    %c0_9 = arith.constant 0 : index
    %c0_10 = arith.constant 0 : index
    %9 = vector.load %arg36[%c0_9, %c0_10] : memref<10x32xf32, #tpu.memory_space<vmem>>, vector<1x32xf32>
    tpu.vector_store %arg36[%c0_9, %c0_10], %8 {strides = array<i32>} : memref<10x32xf32, #tpu.memory_space<vmem>>, vector<1x32xf32>,
    %10 = vector.extract_strided_slice %5 {offsets = [0, 0], sizes = [4, 32], strides = [1, 1]} : vector<8x32xf32> to vector<4x32xf32>
    %c1 = arith.constant 1 : index
    %c0_11 = arith.constant 0 : index
    %11 = vector.load %arg4[%c1, %c0_11] : memref<5x32xf32, #tpu.memory_space<vmem>>, vector<4x32xf32>
    %12 = arith.addf %10, %11 : vector<4x32xf32>
    %c1_12 = arith.constant 1 : index
    %c0_13 = arith.constant 0 : index
    %13 = vector.load %arg36[%c1_12, %c0_13] : memref<10x32xf32, #tpu.memory_space<vmem>>, vector<4x32xf32>
    tpu.vector_store %arg36[%c1_12, %c0_13], %12 {strides = array<i32>} : memref<10x32xf32, #tpu.memory_space<vmem>>, vector<4x32xf32>,
    %c0_14 = arith.constant 0 : index
    %c0_15 = arith.constant 0 : index
    %14 = vector.load %arg3[%c0_14, %c0_15] : memref<1x32xf32, #tpu.memory_space<vmem>>, vector<1x32xf32>
    %c0_16 = arith.constant 0 : index
    %c0_17 = arith.constant 0 : index
    %15 = vector.load %arg4[%c0_16, %c0_17] : memref<5x32xf32, #tpu.memory_space<vmem>>, vector<1x32xf32>
    %16 = arith.addf %14, %15 : vector<1x32xf32>
    %c5 = arith.constant 5 : index
    %c0_18 = arith.constant 0 : index
    %17 = vector.load %arg36[%c5, %c0_18] : memref<10x32xf32, #tpu.memory_space<vmem>>, vector<1x32xf32>
    tpu.vector_store %arg36[%c5, %c0_18], %16 {strides = array<i32>} : memref<10x32xf32, #tpu.memory_space<vmem>>, vector<1x32xf32>,
    %18 = vector.extract_strided_slice %5 {offsets = [4, 0], sizes = [4, 32], strides = [1, 1]} : vector<8x32xf32> to vector<4x32xf32>
    %c1_19 = arith.constant 1 : index
    %c0_20 = arith.constant 0 : index
    %19 = vector.load %arg4[%c1_19, %c0_20] : memref<5x32xf32, #tpu.memory_space<vmem>>, vector<4x32xf32>
    %20 = arith.addf %18, %19 : vector<4x32xf32>
    %c6 = arith.constant 6 : index
    %c0_21 = arith.constant 0 : index
    %21 = vector.load %arg36[%c6, %c0_21] : memref<10x32xf32, #tpu.memory_space<vmem>>, vector<4x32xf32>
    tpu.vector_store %arg36[%c6, %c0_21], %20 {strides = array<i32>} : memref<10x32xf32, #tpu.memory_space<vmem>>, vector<4x32xf32>,
    %c0_22 = arith.constant 0 : index
    %c0_23 = arith.constant 0 : index
    %22 = vector.load %arg36[%c0_22, %c0_23] : memref<10x32xf32, #tpu.memory_space<vmem>>, vector<10x32xf32>
    %c0_24 = arith.constant 0 : index
    %c0_25 = arith.constant 0 : index
    %23 = vector.load %arg5[%c0_24, %c0_25] : memref<1x32xf32, #tpu.memory_space<vmem>>, vector<1x32xf32>
    %c0_26 = arith.constant 0 : index
    %c0_27 = arith.constant 0 : index
    %24 = vector.load %arg6[%c0_26, %c0_27] : memref<1x32xf32, #tpu.memory_space<vmem>>, vector<1x32xf32>
    %cst_28 = arith.constant dense<0.000000e+00> : vector<10xf32>
    %25 = vector.multi_reduction <add>, %22, %cst_28 [1] : vector<10x32xf32> to vector<10xf32>
    %26 = vector.shape_cast %25 : vector<10xf32> to vector<10x1xf32>
    %cst_29 = arith.constant 3.200000e+01 : f32
    %27 = vector.broadcast %cst_29 : f32 to vector<10x1xf32>
    %28 = arith.divf %26, %27 : vector<10x1xf32>
    %29 = vector.broadcast %28 : vector<10x1xf32> to vector<10x32xf32>
    %30 = arith.subf %22, %29 : vector<10x32xf32>
    %31 = arith.mulf %30, %30 : vector<10x32xf32>
    %cst_30 = arith.constant dense<0.000000e+00> : vector<10xf32>
    %32 = vector.multi_reduction <add>, %31, %cst_30 [1] : vector<10x32xf32> to vector<10xf32>
    %33 = vector.shape_cast %32 : vector<10xf32> to vector<10x1xf32>
    %cst_31 = arith.constant 3.200000e+01 : f32
    %34 = vector.broadcast %cst_31 : f32 to vector<10x1xf32>
    %35 = arith.divf %33, %34 : vector<10x1xf32>
    %36 = vector.broadcast %28 : vector<10x1xf32> to vector<10x32xf32>
    %37 = arith.subf %22, %36 : vector<10x32xf32>
    %cst_32 = arith.constant 9.99999997E-7 : f32
    %38 = vector.broadcast %cst_32 : f32 to vector<10x1xf32>
    %39 = arith.addf %35, %38 : vector<10x1xf32>
    %40 = math.rsqrt %39 : vector<10x1xf32>
    %41 = vector.broadcast %40 : vector<10x1xf32> to vector<10x32xf32>
    %42 = arith.mulf %37, %41 : vector<10x32xf32>
    %43 = vector.broadcast %23 : vector<1x32xf32> to vector<10x32xf32>
    %44 = arith.mulf %42, %43 : vector<10x32xf32>
    %45 = vector.broadcast %24 : vector<1x32xf32> to vector<10x32xf32>
    %46 = arith.addf %44, %45 : vector<10x32xf32>
    %c0_33 = arith.constant 0 : index
    %c0_34 = arith.constant 0 : index
    %47 = vector.load %arg7[%c0_33, %c0_34] : memref<32x96xf32, #tpu.memory_space<vmem>>, vector<32x96xf32>
    %cst_35 = arith.constant dense<0.000000e+00> : vector<10x96xf32>
    %48 = tpu.matmul %46, %47, %cst_35 {dimension_numbers = #tpu.dot_dimension_numbers<[1], [0], [0], [1], [0, 0, 1, 1], [], []>} : vector<10x32xf32>, vector<32x96xf32>, vector<10x96xf32> -> vector<10x96xf32>
    %c0_36 = arith.constant 0 : index
    %c0_37 = arith.constant 0 : index
    %49 = vector.load %arg8[%c0_36, %c0_37] : memref<1x96xf32, #tpu.memory_space<vmem>>, vector<1x96xf32>
    %50 = vector.broadcast %49 : vector<1x96xf32> to vector<10x96xf32>
    %51 = arith.addf %48, %50 : vector<10x96xf32>
    %52 = vector.extract_strided_slice %51 {offsets = [0, 0], sizes = [5, 32], strides = [1, 1]} : vector<10x96xf32> to vector<5x32xf32>
    %53 = vector.extract_strided_slice %51 {offsets = [0, 32], sizes = [5, 32], strides = [1, 1]} : vector<10x96xf32> to vector<5x32xf32>
    %54 = vector.extract_strided_slice %51 {offsets = [0, 64], sizes = [5, 32], strides = [1, 1]} : vector<10x96xf32> to vector<5x32xf32>
    %cst_38 = arith.constant 0.000000e+00 : f32
    %55 = vector.broadcast %cst_38 : f32 to vector<5x32xf32>
    %56 = vector.extract_strided_slice %52 {offsets = [0, 0], sizes = [5, 8], strides = [1, 1]} : vector<5x32xf32> to vector<5x8xf32>
    %cst_39 = arith.constant 0.353553385 : f32
    %57 = vector.broadcast %cst_39 : f32 to vector<5x8xf32>
    %58 = arith.mulf %56, %57 : vector<5x8xf32>
    %59 = vector.extract_strided_slice %53 {offsets = [0, 0], sizes = [5, 8], strides = [1, 1]} : vector<5x32xf32> to vector<5x8xf32>
    %60 = vector.extract_strided_slice %54 {offsets = [0, 0], sizes = [5, 8], strides = [1, 1]} : vector<5x32xf32> to vector<5x8xf32>
    %cst_40 = arith.constant dense<0.000000e+00> : vector<5x5xf32>
    %61 = tpu.matmul %58, %59, %cst_40 {dimension_numbers = #tpu.dot_dimension_numbers<[1], [1], [0], [0], [0, 0, 1, 0], [], []>} : vector<5x8xf32>, vector<5x8xf32>, vector<5x5xf32> -> vector<5x5xf32>
    %cst_41 = arith.constant dense<0xFF800000> : vector<5xf32>
    %62 = vector.multi_reduction <maximumf>, %61, %cst_41 [1] : vector<5x5xf32> to vector<5xf32>
    %63 = vector.shape_cast %62 : vector<5xf32> to vector<5x1xf32>
    %64 = vector.broadcast %63 : vector<5x1xf32> to vector<5x5xf32>
    %65 = arith.subf %61, %64 : vector<5x5xf32>
    %66 = math.exp %65 : vector<5x5xf32>
    %cst_42 = arith.constant dense<0.000000e+00> : vector<5xf32>
    %67 = vector.multi_reduction <add>, %66, %cst_42 [1] : vector<5x5xf32> to vector<5xf32>
    %68 = vector.shape_cast %67 : vector<5xf32> to vector<5x1xf32>
    %69 = tpu.reciprocal %68 {approx = true} : vector<5x1xf32> -> vector<5x1xf32>
    %70 = vector.broadcast %69 : vector<5x1xf32> to vector<5x5xf32>
    %71 = arith.mulf %66, %70 : vector<5x5xf32>
    %cst_43 = arith.constant dense<0.000000e+00> : vector<5x8xf32>
    %72 = tpu.matmul %71, %60, %cst_43 {dimension_numbers = #tpu.dot_dimension_numbers<[1], [0], [0], [1], [0, 0, 1, 1], [], []>} : vector<5x5xf32>, vector<5x8xf32>, vector<5x8xf32> -> vector<5x8xf32>
    %c0_44 = arith.constant 0 : index
    %c0_45 = arith.constant 0 : index
    %73 = vector.load %arg9[%c0_44, %c0_45] : memref<32x32xf32, #tpu.memory_space<vmem>>, vector<8x32xf32>
    %cst_46 = arith.constant dense<0.000000e+00> : vector<5x32xf32>
    %74 = tpu.matmul %72, %73, %cst_46 {dimension_numbers = #tpu.dot_dimension_numbers<[1], [0], [0], [1], [0, 0, 1, 1], [], []>} : vector<5x8xf32>, vector<8x32xf32>, vector<5x32xf32> -> vector<5x32xf32>
    %75 = arith.addf %55, %74 : vector<5x32xf32>
    %76 = vector.extract_strided_slice %52 {offsets = [0, 8], sizes = [5, 8], strides = [1, 1]} : vector<5x32xf32> to vector<5x8xf32>
    %cst_47 = arith.constant 0.353553385 : f32
    %77 = vector.broadcast %cst_47 : f32 to vector<5x8xf32>
    %78 = arith.mulf %76, %77 : vector<5x8xf32>
    %79 = vector.extract_strided_slice %53 {offsets = [0, 8], sizes = [5, 8], strides = [1, 1]} : vector<5x32xf32> to vector<5x8xf32>
    %80 = vector.extract_strided_slice %54 {offsets = [0, 8], sizes = [5, 8], strides = [1, 1]} : vector<5x32xf32> to vector<5x8xf32>
    %cst_48 = arith.constant dense<0.000000e+00> : vector<5x5xf32>
    %81 = tpu.matmul %78, %79, %cst_48 {dimension_numbers = #tpu.dot_dimension_numbers<[1], [1], [0], [0], [0, 0, 1, 0], [], []>} : vector<5x8xf32>, vector<5x8xf32>, vector<5x5xf32> -> vector<5x5xf32>
    %cst_49 = arith.constant dense<0xFF800000> : vector<5xf32>
    %82 = vector.multi_reduction <maximumf>, %81, %cst_49 [1] : vector<5x5xf32> to vector<5xf32>
    %83 = vector.shape_cast %82 : vector<5xf32> to vector<5x1xf32>
    %84 = vector.broadcast %83 : vector<5x1xf32> to vector<5x5xf32>
    %85 = arith.subf %81, %84 : vector<5x5xf32>
    %86 = math.exp %85 : vector<5x5xf32>
    %cst_50 = arith.constant dense<0.000000e+00> : vector<5xf32>
    %87 = vector.multi_reduction <add>, %86, %cst_50 [1] : vector<5x5xf32> to vector<5xf32>
    %88 = vector.shape_cast %87 : vector<5xf32> to vector<5x1xf32>
    %89 = tpu.reciprocal %88 {approx = true} : vector<5x1xf32> -> vector<5x1xf32>
    %90 = vector.broadcast %89 : vector<5x1xf32> to vector<5x5xf32>
    %91 = arith.mulf %86, %90 : vector<5x5xf32>
    %cst_51 = arith.constant dense<0.000000e+00> : vector<5x8xf32>
    %92 = tpu.matmul %91, %80, %cst_51 {dimension_numbers = #tpu.dot_dimension_numbers<[1], [0], [0], [1], [0, 0, 1, 1], [], []>} : vector<5x5xf32>, vector<5x8xf32>, vector<5x8xf32> -> vector<5x8xf32>
    %c8 = arith.constant 8 : index
    %c0_52 = arith.constant 0 : index
    %93 = vector.load %arg9[%c8, %c0_52] : memref<32x32xf32, #tpu.memory_space<vmem>>, vector<8x32xf32>
    %cst_53 = arith.constant dense<0.000000e+00> : vector<5x32xf32>
    %94 = tpu.matmul %92, %93, %cst_53 {dimension_numbers = #tpu.dot_dimension_numbers<[1], [0], [0], [1], [0, 0, 1, 1], [], []>} : vector<5x8xf32>, vector<8x32xf32>, vector<5x32xf32> -> vector<5x32xf32>
    %95 = arith.addf %75, %94 : vector<5x32xf32>
    %96 = vector.extract_strided_slice %52 {offsets = [0, 16], sizes = [5, 8], strides = [1, 1]} : vector<5x32xf32> to vector<5x8xf32>
    %cst_54 = arith.constant 0.353553385 : f32
    %97 = vector.broadcast %cst_54 : f32 to vector<5x8xf32>
    %98 = arith.mulf %96, %97 : vector<5x8xf32>
    %99 = vector.extract_strided_slice %53 {offsets = [0, 16], sizes = [5, 8], strides = [1, 1]} : vector<5x32xf32> to vector<5x8xf32>
    %100 = vector.extract_strided_slice %54 {offsets = [0, 16], sizes = [5, 8], strides = [1, 1]} : vector<5x32xf32> to vector<5x8xf32>
    %cst_55 = arith.constant dense<0.000000e+00> : vector<5x5xf32>
    %101 = tpu.matmul %98, %99, %cst_55 {dimension_numbers = #tpu.dot_dimension_numbers<[1], [1], [0], [0], [0, 0, 1, 0], [], []>} : vector<5x8xf32>, vector<5x8xf32>, vector<5x5xf32> -> vector<5x5xf32>
    %cst_56 = arith.constant dense<0xFF800000> : vector<5xf32>
    %102 = vector.multi_reduction <maximumf>, %101, %cst_56 [1] : vector<5x5xf32> to vector<5xf32>
    %103 = vector.shape_cast %102 : vector<5xf32> to vector<5x1xf32>
    %104 = vector.broadcast %103 : vector<5x1xf32> to vector<5x5xf32>
    %105 = arith.subf %101, %104 : vector<5x5xf32>
    %106 = math.exp %105 : vector<5x5xf32>
    %cst_57 = arith.constant dense<0.000000e+00> : vector<5xf32>
    %107 = vector.multi_reduction <add>, %106, %cst_57 [1] : vector<5x5xf32> to vector<5xf32>
    %108 = vector.shape_cast %107 : vector<5xf32> to vector<5x1xf32>
    %109 = tpu.reciprocal %108 {approx = true} : vector<5x1xf32> -> vector<5x1xf32>
    %110 = vector.broadcast %109 : vector<5x1xf32> to vector<5x5xf32>
    %111 = arith.mulf %106, %110 : vector<5x5xf32>
    %cst_58 = arith.constant dense<0.000000e+00> : vector<5x8xf32>
    %112 = tpu.matmul %111, %100, %cst_58 {dimension_numbers = #tpu.dot_dimension_numbers<[1], [0], [0], [1], [0, 0, 1, 1], [], []>} : vector<5x5xf32>, vector<5x8xf32>, vector<5x8xf32> -> vector<5x8xf32>
    %c16 = arith.constant 16 : index
    %c0_59 = arith.constant 0 : index
    %113 = vector.load %arg9[%c16, %c0_59] : memref<32x32xf32, #tpu.memory_space<vmem>>, vector<8x32xf32>
    %cst_60 = arith.constant dense<0.000000e+00> : vector<5x32xf32>
    %114 = tpu.matmul %112, %113, %cst_60 {dimension_numbers = #tpu.dot_dimension_numbers<[1], [0], [0], [1], [0, 0, 1, 1], [], []>} : vector<5x8xf32>, vector<8x32xf32>, vector<5x32xf32> -> vector<5x32xf32>
    %115 = arith.addf %95, %114 : vector<5x32xf32>
    %116 = vector.extract_strided_slice %52 {offsets = [0, 24], sizes = [5, 8], strides = [1, 1]} : vector<5x32xf32> to vector<5x8xf32>
    %cst_61 = arith.constant 0.353553385 : f32
    %117 = vector.broadcast %cst_61 : f32 to vector<5x8xf32>
    %118 = arith.mulf %116, %117 : vector<5x8xf32>
    %119 = vector.extract_strided_slice %53 {offsets = [0, 24], sizes = [5, 8], strides = [1, 1]} : vector<5x32xf32> to vector<5x8xf32>
    %120 = vector.extract_strided_slice %54 {offsets = [0, 24], sizes = [5, 8], strides = [1, 1]} : vector<5x32xf32> to vector<5x8xf32>
    %cst_62 = arith.constant dense<0.000000e+00> : vector<5x5xf32>
    %121 = tpu.matmul %118, %119, %cst_62 {dimension_numbers = #tpu.dot_dimension_numbers<[1], [1], [0], [0], [0, 0, 1, 0], [], []>} : vector<5x8xf32>, vector<5x8xf32>, vector<5x5xf32> -> vector<5x5xf32>
    %cst_63 = arith.constant dense<0xFF800000> : vector<5xf32>
    %122 = vector.multi_reduction <maximumf>, %121, %cst_63 [1] : vector<5x5xf32> to vector<5xf32>
    %123 = vector.shape_cast %122 : vector<5xf32> to vector<5x1xf32>
    %124 = vector.broadcast %123 : vector<5x1xf32> to vector<5x5xf32>
    %125 = arith.subf %121, %124 : vector<5x5xf32>
    %126 = math.exp %125 : vector<5x5xf32>
    %cst_64 = arith.constant dense<0.000000e+00> : vector<5xf32>
    %127 = vector.multi_reduction <add>, %126, %cst_64 [1] : vector<5x5xf32> to vector<5xf32>
    %128 = vector.shape_cast %127 : vector<5xf32> to vector<5x1xf32>
    %129 = tpu.reciprocal %128 {approx = true} : vector<5x1xf32> -> vector<5x1xf32>
    %130 = vector.broadcast %129 : vector<5x1xf32> to vector<5x5xf32>
    %131 = arith.mulf %126, %130 : vector<5x5xf32>
    %cst_65 = arith.constant dense<0.000000e+00> : vector<5x8xf32>
    %132 = tpu.matmul %131, %120, %cst_65 {dimension_numbers = #tpu.dot_dimension_numbers<[1], [0], [0], [1], [0, 0, 1, 1], [], []>} : vector<5x5xf32>, vector<5x8xf32>, vector<5x8xf32> -> vector<5x8xf32>
    %c24 = arith.constant 24 : index
    %c0_66 = arith.constant 0 : index
    %133 = vector.load %arg9[%c24, %c0_66] : memref<32x32xf32, #tpu.memory_space<vmem>>, vector<8x32xf32>
    %cst_67 = arith.constant dense<0.000000e+00> : vector<5x32xf32>
    %134 = tpu.matmul %132, %133, %cst_67 {dimension_numbers = #tpu.dot_dimension_numbers<[1], [0], [0], [1], [0, 0, 1, 1], [], []>} : vector<5x8xf32>, vector<8x32xf32>, vector<5x32xf32> -> vector<5x32xf32>
    %135 = arith.addf %115, %134 : vector<5x32xf32>
    %136 = vector.extract_strided_slice %22 {offsets = [0, 0], sizes = [5, 32], strides = [1, 1]} : vector<10x32xf32> to vector<5x32xf32>
    %c0_68 = arith.constant 0 : index
    %c0_69 = arith.constant 0 : index
    %137 = vector.load %arg11[%c0_68, %c0_69] : memref<1x32xf32, #tpu.memory_space<vmem>>, vector<1x32xf32>
    %c0_70 = arith.constant 0 : index
    %c0_71 = arith.constant 0 : index
    %138 = vector.load %arg10[%c0_70, %c0_71] : memref<1x32xf32, #tpu.memory_space<vmem>>, vector<1x32xf32>
    %139 = vector.broadcast %138 : vector<1x32xf32> to vector<5x32xf32>
    %140 = arith.addf %135, %139 : vector<5x32xf32>
    %141 = vector.broadcast %137 : vector<1x32xf32> to vector<5x32xf32>
    %142 = arith.mulf %141, %140 : vector<5x32xf32>
    %143 = arith.addf %136, %142 : vector<5x32xf32>
    %c0_72 = arith.constant 0 : index
    %c0_73 = arith.constant 0 : index
    %144 = vector.load %arg36[%c0_72, %c0_73] : memref<10x32xf32, #tpu.memory_space<vmem>>, vector<5x32xf32>
    tpu.vector_store %arg36[%c0_72, %c0_73], %143 {strides = array<i32>} : memref<10x32xf32, #tpu.memory_space<vmem>>, vector<5x32xf32>,
    %145 = vector.extract_strided_slice %51 {offsets = [5, 0], sizes = [5, 32], strides = [1, 1]} : vector<10x96xf32> to vector<5x32xf32>
    %146 = vector.extract_strided_slice %51 {offsets = [5, 32], sizes = [5, 32], strides = [1, 1]} : vector<10x96xf32> to vector<5x32xf32>
    %147 = vector.extract_strided_slice %51 {offsets = [5, 64], sizes = [5, 32], strides = [1, 1]} : vector<10x96xf32> to vector<5x32xf32>
    %cst_74 = arith.constant 0.000000e+00 : f32
    %148 = vector.broadcast %cst_74 : f32 to vector<5x32xf32>
    %149 = vector.extract_strided_slice %145 {offsets = [0, 0], sizes = [5, 8], strides = [1, 1]} : vector<5x32xf32> to vector<5x8xf32>
    %cst_75 = arith.constant 0.353553385 : f32
    %150 = vector.broadcast %cst_75 : f32 to vector<5x8xf32>
    %151 = arith.mulf %149, %150 : vector<5x8xf32>
    %152 = vector.extract_strided_slice %146 {offsets = [0, 0], sizes = [5, 8], strides = [1, 1]} : vector<5x32xf32> to vector<5x8xf32>
    %153 = vector.extract_strided_slice %147 {offsets = [0, 0], sizes = [5, 8], strides = [1, 1]} : vector<5x32xf32> to vector<5x8xf32>
    %cst_76 = arith.constant dense<0.000000e+00> : vector<5x5xf32>
    %154 = tpu.matmul %151, %152, %cst_76 {dimension_numbers = #tpu.dot_dimension_numbers<[1], [1], [0], [0], [0, 0, 1, 0], [], []>} : vector<5x8xf32>, vector<5x8xf32>, vector<5x5xf32> -> vector<5x5xf32>
    %cst_77 = arith.constant dense<0xFF800000> : vector<5xf32>
    %155 = vector.multi_reduction <maximumf>, %154, %cst_77 [1] : vector<5x5xf32> to vector<5xf32>
    %156 = vector.shape_cast %155 : vector<5xf32> to vector<5x1xf32>
    %157 = vector.broadcast %156 : vector<5x1xf32> to vector<5x5xf32>
    %158 = arith.subf %154, %157 : vector<5x5xf32>
    %159 = math.exp %158 : vector<5x5xf32>
    %cst_78 = arith.constant dense<0.000000e+00> : vector<5xf32>
    %160 = vector.multi_reduction <add>, %159, %cst_78 [1] : vector<5x5xf32> to vector<5xf32>
    %161 = vector.shape_cast %160 : vector<5xf32> to vector<5x1xf32>
    %162 = tpu.reciprocal %161 {approx = true} : vector<5x1xf32> -> vector<5x1xf32>
    %163 = vector.broadcast %162 : vector<5x1xf32> to vector<5x5xf32>
    %164 = arith.mulf %159, %163 : vector<5x5xf32>
    %cst_79 = arith.constant dense<0.000000e+00> : vector<5x8xf32>
    %165 = tpu.matmul %164, %153, %cst_79 {dimension_numbers = #tpu.dot_dimension_numbers<[1], [0], [0], [1], [0, 0, 1, 1], [], []>} : vector<5x5xf32>, vector<5x8xf32>, vector<5x8xf32> -> vector<5x8xf32>
    %c0_80 = arith.constant 0 : index
    %c0_81 = arith.constant 0 : index
    %166 = vector.load %arg9[%c0_80, %c0_81] : memref<32x32xf32, #tpu.memory_space<vmem>>, vector<8x32xf32>
    %cst_82 = arith.constant dense<0.000000e+00> : vector<5x32xf32>
    %167 = tpu.matmul %165, %166, %cst_82 {dimension_numbers = #tpu.dot_dimension_numbers<[1], [0], [0], [1], [0, 0, 1, 1], [], []>} : vector<5x8xf32>, vector<8x32xf32>, vector<5x32xf32> -> vector<5x32xf32>
    %168 = arith.addf %148, %167 : vector<5x32xf32>
    %169 = vector.extract_strided_slice %145 {offsets = [0, 8], sizes = [5, 8], strides = [1, 1]} : vector<5x32xf32> to vector<5x8xf32>
    %cst_83 = arith.constant 0.353553385 : f32
    %170 = vector.broadcast %cst_83 : f32 to vector<5x8xf32>
    %171 = arith.mulf %169, %170 : vector<5x8xf32>
    %172 = vector.extract_strided_slice %146 {offsets = [0, 8], sizes = [5, 8], strides = [1, 1]} : vector<5x32xf32> to vector<5x8xf32>
    %173 = vector.extract_strided_slice %147 {offsets = [0, 8], sizes = [5, 8], strides = [1, 1]} : vector<5x32xf32> to vector<5x8xf32>
    %cst_84 = arith.constant dense<0.000000e+00> : vector<5x5xf32>
    %174 = tpu.matmul %171, %172, %cst_84 {dimension_numbers = #tpu.dot_dimension_numbers<[1], [1], [0], [0], [0, 0, 1, 0], [], []>} : vector<5x8xf32>, vector<5x8xf32>, vector<5x5xf32> -> vector<5x5xf32>
    %cst_85 = arith.constant dense<0xFF800000> : vector<5xf32>
    %175 = vector.multi_reduction <maximumf>, %174, %cst_85 [1] : vector<5x5xf32> to vector<5xf32>
    %176 = vector.shape_cast %175 : vector<5xf32> to vector<5x1xf32>
    %177 = vector.broadcast %176 : vector<5x1xf32> to vector<5x5xf32>
    %178 = arith.subf %174, %177 : vector<5x5xf32>
    %179 = math.exp %178 : vector<5x5xf32>
    %cst_86 = arith.constant dense<0.000000e+00> : vector<5xf32>
    %180 = vector.multi_reduction <add>, %179, %cst_86 [1] : vector<5x5xf32> to vector<5xf32>
    %181 = vector.shape_cast %180 : vector<5xf32> to vector<5x1xf32>
    %182 = tpu.reciprocal %181 {approx = true} : vector<5x1xf32> -> vector<5x1xf32>
    %183 = vector.broadcast %182 : vector<5x1xf32> to vector<5x5xf32>
    %184 = arith.mulf %179, %183 : vector<5x5xf32>
    %cst_87 = arith.constant dense<0.000000e+00> : vector<5x8xf32>
    %185 = tpu.matmul %184, %173, %cst_87 {dimension_numbers = #tpu.dot_dimension_numbers<[1], [0], [0], [1], [0, 0, 1, 1], [], []>} : vector<5x5xf32>, vector<5x8xf32>, vector<5x8xf32> -> vector<5x8xf32>
    %c8_88 = arith.constant 8 : index
    %c0_89 = arith.constant 0 : index
    %186 = vector.load %arg9[%c8_88, %c0_89] : memref<32x32xf32, #tpu.memory_space<vmem>>, vector<8x32xf32>
    %cst_90 = arith.constant dense<0.000000e+00> : vector<5x32xf32>
    %187 = tpu.matmul %185, %186, %cst_90 {dimension_numbers = #tpu.dot_dimension_numbers<[1], [0], [0], [1], [0, 0, 1, 1], [], []>} : vector<5x8xf32>, vector<8x32xf32>, vector<5x32xf32> -> vector<5x32xf32>
    %188 = arith.addf %168, %187 : vector<5x32xf32>
    %189 = vector.extract_strided_slice %145 {offsets = [0, 16], sizes = [5, 8], strides = [1, 1]} : vector<5x32xf32> to vector<5x8xf32>
    %cst_91 = arith.constant 0.353553385 : f32
    %190 = vector.broadcast %cst_91 : f32 to vector<5x8xf32>
    %191 = arith.mulf %189, %190 : vector<5x8xf32>
    %192 = vector.extract_strided_slice %146 {offsets = [0, 16], sizes = [5, 8], strides = [1, 1]} : vector<5x32xf32> to vector<5x8xf32>
    %193 = vector.extract_strided_slice %147 {offsets = [0, 16], sizes = [5, 8], strides = [1, 1]} : vector<5x32xf32> to vector<5x8xf32>
    %cst_92 = arith.constant dense<0.000000e+00> : vector<5x5xf32>
    %194 = tpu.matmul %191, %192, %cst_92 {dimension_numbers = #tpu.dot_dimension_numbers<[1], [1], [0], [0], [0, 0, 1, 0], [], []>} : vector<5x8xf32>, vector<5x8xf32>, vector<5x5xf32> -> vector<5x5xf32>
    %cst_93 = arith.constant dense<0xFF800000> : vector<5xf32>
    %195 = vector.multi_reduction <maximumf>, %194, %cst_93 [1] : vector<5x5xf32> to vector<5xf32>
    %196 = vector.shape_cast %195 : vector<5xf32> to vector<5x1xf32>
    %197 = vector.broadcast %196 : vector<5x1xf32> to vector<5x5xf32>
    %198 = arith.subf %194, %197 : vector<5x5xf32>
    %199 = math.exp %198 : vector<5x5xf32>
    %cst_94 = arith.constant dense<0.000000e+00> : vector<5xf32>
    %200 = vector.multi_reduction <add>, %199, %cst_94 [1] : vector<5x5xf32> to vector<5xf32>
    %201 = vector.shape_cast %200 : vector<5xf32> to vector<5x1xf32>
    %202 = tpu.reciprocal %201 {approx = true} : vector<5x1xf32> -> vector<5x1xf32>
    %203 = vector.broadcast %202 : vector<5x1xf32> to vector<5x5xf32>
    %204 = arith.mulf %199, %203 : vector<5x5xf32>
    %cst_95 = arith.constant dense<0.000000e+00> : vector<5x8xf32>
    %205 = tpu.matmul %204, %193, %cst_95 {dimension_numbers = #tpu.dot_dimension_numbers<[1], [0], [0], [1], [0, 0, 1, 1], [], []>} : vector<5x5xf32>, vector<5x8xf32>, vector<5x8xf32> -> vector<5x8xf32>
    %c16_96 = arith.constant 16 : index
    %c0_97 = arith.constant 0 : index
    %206 = vector.load %arg9[%c16_96, %c0_97] : memref<32x32xf32, #tpu.memory_space<vmem>>, vector<8x32xf32>
    %cst_98 = arith.constant dense<0.000000e+00> : vector<5x32xf32>
    %207 = tpu.matmul %205, %206, %cst_98 {dimension_numbers = #tpu.dot_dimension_numbers<[1], [0], [0], [1], [0, 0, 1, 1], [], []>} : vector<5x8xf32>, vector<8x32xf32>, vector<5x32xf32> -> vector<5x32xf32>
    %208 = arith.addf %188, %207 : vector<5x32xf32>
    %209 = vector.extract_strided_slice %145 {offsets = [0, 24], sizes = [5, 8], strides = [1, 1]} : vector<5x32xf32> to vector<5x8xf32>
    %cst_99 = arith.constant 0.353553385 : f32
    %210 = vector.broadcast %cst_99 : f32 to vector<5x8xf32>
    %211 = arith.mulf %209, %210 : vector<5x8xf32>
    %212 = vector.extract_strided_slice %146 {offsets = [0, 24], sizes = [5, 8], strides = [1, 1]} : vector<5x32xf32> to vector<5x8xf32>
    %213 = vector.extract_strided_slice %147 {offsets = [0, 24], sizes = [5, 8], strides = [1, 1]} : vector<5x32xf32> to vector<5x8xf32>
    %cst_100 = arith.constant dense<0.000000e+00> : vector<5x5xf32>
    %214 = tpu.matmul %211, %212, %cst_100 {dimension_numbers = #tpu.dot_dimension_numbers<[1], [1], [0], [0], [0, 0, 1, 0], [], []>} : vector<5x8xf32>, vector<5x8xf32>, vector<5x5xf32> -> vector<5x5xf32>
    %cst_101 = arith.constant dense<0xFF800000> : vector<5xf32>
    %215 = vector.multi_reduction <maximumf>, %214, %cst_101 [1] : vector<5x5xf32> to vector<5xf32>
    %216 = vector.shape_cast %215 : vector<5xf32> to vector<5x1xf32>
    %217 = vector.broadcast %216 : vector<5x1xf32> to vector<5x5xf32>
    %218 = arith.subf %214, %217 : vector<5x5xf32>
    %219 = math.exp %218 : vector<5x5xf32>
    %cst_102 = arith.constant dense<0.000000e+00> : vector<5xf32>
    %220 = vector.multi_reduction <add>, %219, %cst_102 [1] : vector<5x5xf32> to vector<5xf32>
    %221 = vector.shape_cast %220 : vector<5xf32> to vector<5x1xf32>
    %222 = tpu.reciprocal %221 {approx = true} : vector<5x1xf32> -> vector<5x1xf32>
    %223 = vector.broadcast %222 : vector<5x1xf32> to vector<5x5xf32>
    %224 = arith.mulf %219, %223 : vector<5x5xf32>
    %cst_103 = arith.constant dense<0.000000e+00> : vector<5x8xf32>
    %225 = tpu.matmul %224, %213, %cst_103 {dimension_numbers = #tpu.dot_dimension_numbers<[1], [0], [0], [1], [0, 0, 1, 1], [], []>} : vector<5x5xf32>, vector<5x8xf32>, vector<5x8xf32> -> vector<5x8xf32>
    %c24_104 = arith.constant 24 : index
    %c0_105 = arith.constant 0 : index
    %226 = vector.load %arg9[%c24_104, %c0_105] : memref<32x32xf32, #tpu.memory_space<vmem>>, vector<8x32xf32>
    %cst_106 = arith.constant dense<0.000000e+00> : vector<5x32xf32>
    %227 = tpu.matmul %225, %226, %cst_106 {dimension_numbers = #tpu.dot_dimension_numbers<[1], [0], [0], [1], [0, 0, 1, 1], [], []>} : vector<5x8xf32>, vector<8x32xf32>, vector<5x32xf32> -> vector<5x32xf32>
    %228 = arith.addf %208, %227 : vector<5x32xf32>
    %229 = vector.extract_strided_slice %22 {offsets = [5, 0], sizes = [5, 32], strides = [1, 1]} : vector<10x32xf32> to vector<5x32xf32>
    %c0_107 = arith.constant 0 : index
    %c0_108 = arith.constant 0 : index
    %230 = vector.load %arg11[%c0_107, %c0_108] : memref<1x32xf32, #tpu.memory_space<vmem>>, vector<1x32xf32>
    %c0_109 = arith.constant 0 : index
    %c0_110 = arith.constant 0 : index
    %231 = vector.load %arg10[%c0_109, %c0_110] : memref<1x32xf32, #tpu.memory_space<vmem>>, vector<1x32xf32>
    %232 = vector.broadcast %231 : vector<1x32xf32> to vector<5x32xf32>
    %233 = arith.addf %228, %232 : vector<5x32xf32>
    %234 = vector.broadcast %230 : vector<1x32xf32> to vector<5x32xf32>
    %235 = arith.mulf %234, %233 : vector<5x32xf32>
    %236 = arith.addf %229, %235 : vector<5x32xf32>
    %c5_111 = arith.constant 5 : index
    %c0_112 = arith.constant 0 : index
    %237 = vector.load %arg36[%c5_111, %c0_112] : memref<10x32xf32, #tpu.memory_space<vmem>>, vector<5x32xf32>
    tpu.vector_store %arg36[%c5_111, %c0_112], %236 {strides = array<i32>} : memref<10x32xf32, #tpu.memory_space<vmem>>, vector<5x32xf32>,
    %c0_113 = arith.constant 0 : index
    %c0_114 = arith.constant 0 : index
    %238 = vector.load %arg36[%c0_113, %c0_114] : memref<10x32xf32, #tpu.memory_space<vmem>>, vector<10x32xf32>
    %c0_115 = arith.constant 0 : index
    %c0_116 = arith.constant 0 : index
    %239 = vector.load %arg12[%c0_115, %c0_116] : memref<1x32xf32, #tpu.memory_space<vmem>>, vector<1x32xf32>
    %c0_117 = arith.constant 0 : index
    %c0_118 = arith.constant 0 : index
    %240 = vector.load %arg13[%c0_117, %c0_118] : memref<1x32xf32, #tpu.memory_space<vmem>>, vector<1x32xf32>
    %cst_119 = arith.constant dense<0.000000e+00> : vector<10xf32>
    %241 = vector.multi_reduction <add>, %238, %cst_119 [1] : vector<10x32xf32> to vector<10xf32>
    %242 = vector.shape_cast %241 : vector<10xf32> to vector<10x1xf32>
    %cst_120 = arith.constant 3.200000e+01 : f32
    %243 = vector.broadcast %cst_120 : f32 to vector<10x1xf32>
    %244 = arith.divf %242, %243 : vector<10x1xf32>
    %245 = vector.broadcast %244 : vector<10x1xf32> to vector<10x32xf32>
    %246 = arith.subf %238, %245 : vector<10x32xf32>
    %247 = arith.mulf %246, %246 : vector<10x32xf32>
    %cst_121 = arith.constant dense<0.000000e+00> : vector<10xf32>
    %248 = vector.multi_reduction <add>, %247, %cst_121 [1] : vector<10x32xf32> to vector<10xf32>
    %249 = vector.shape_cast %248 : vector<10xf32> to vector<10x1xf32>
    %cst_122 = arith.constant 3.200000e+01 : f32
    %250 = vector.broadcast %cst_122 : f32 to vector<10x1xf32>
    %251 = arith.divf %249, %250 : vector<10x1xf32>
    %252 = vector.broadcast %244 : vector<10x1xf32> to vector<10x32xf32>
    %253 = arith.subf %238, %252 : vector<10x32xf32>
    %cst_123 = arith.constant 9.99999997E-7 : f32
    %254 = vector.broadcast %cst_123 : f32 to vector<10x1xf32>
    %255 = arith.addf %251, %254 : vector<10x1xf32>
    %256 = math.rsqrt %255 : vector<10x1xf32>
    %257 = vector.broadcast %256 : vector<10x1xf32> to vector<10x32xf32>
    %258 = arith.mulf %253, %257 : vector<10x32xf32>
    %259 = vector.broadcast %239 : vector<1x32xf32> to vector<10x32xf32>
    %260 = arith.mulf %258, %259 : vector<10x32xf32>
    %261 = vector.broadcast %240 : vector<1x32xf32> to vector<10x32xf32>
    %262 = arith.addf %260, %261 : vector<10x32xf32>
    %c0_124 = arith.constant 0 : index
    %c0_125 = arith.constant 0 : index
    %263 = vector.load %arg14[%c0_124, %c0_125] : memref<32x128xf32, #tpu.memory_space<vmem>>, vector<32x128xf32>
    %cst_126 = arith.constant dense<0.000000e+00> : vector<10x128xf32>
    %264 = tpu.matmul %262, %263, %cst_126 {dimension_numbers = #tpu.dot_dimension_numbers<[1], [0], [0], [1], [0, 0, 1, 1], [], []>} : vector<10x32xf32>, vector<32x128xf32>, vector<10x128xf32> -> vector<10x128xf32>
    %c0_127 = arith.constant 0 : index
    %c0_128 = arith.constant 0 : index
    %265 = vector.load %arg15[%c0_127, %c0_128] : memref<1x128xf32, #tpu.memory_space<vmem>>, vector<1x128xf32>
    %266 = vector.broadcast %265 : vector<1x128xf32> to vector<10x128xf32>
    %267 = arith.addf %264, %266 : vector<10x128xf32>
    %cst_129 = arith.constant 5.000000e-01 : f32
    %268 = vector.broadcast %cst_129 : f32 to vector<10x128xf32>
    %269 = arith.mulf %268, %267 : vector<10x128xf32>
    %cst_130 = arith.constant 0.707106769 : f32
    %270 = vector.broadcast %cst_130 : f32 to vector<10x128xf32>
    %271 = arith.mulf %267, %270 : vector<10x128xf32>
    %272 = math.absf %271 : vector<10x128xf32>
    %cst_131 = arith.constant 0.327591091 : f32
    %273 = vector.broadcast %cst_131 : f32 to vector<10x128xf32>
    %274 = arith.mulf %273, %272 : vector<10x128xf32>
    %cst_132 = arith.constant 1.000000e+00 : f32
    %275 = vector.broadcast %cst_132 : f32 to vector<10x128xf32>
    %276 = arith.addf %275, %274 : vector<10x128xf32>
    %cst_133 = arith.constant 1.000000e+00 : f32
    %277 = vector.broadcast %cst_133 : f32 to vector<10x128xf32>
    %278 = arith.divf %277, %276 : vector<10x128xf32>
    %cst_134 = arith.constant 1.06140542 : f32
    %279 = vector.broadcast %cst_134 : f32 to vector<10x128xf32>
    %280 = arith.mulf %279, %278 : vector<10x128xf32>
    %cst_135 = arith.constant -1.45315206 : f32
    %281 = vector.broadcast %cst_135 : f32 to vector<10x128xf32>
    %282 = arith.addf %280, %281 : vector<10x128xf32>
    %283 = arith.mulf %282, %278 : vector<10x128xf32>
    %cst_136 = arith.constant 1.42141378 : f32
    %284 = vector.broadcast %cst_136 : f32 to vector<10x128xf32>
    %285 = arith.addf %283, %284 : vector<10x128xf32>
    %286 = arith.mulf %285, %278 : vector<10x128xf32>
    %cst_137 = arith.constant -0.284496725 : f32
    %287 = vector.broadcast %cst_137 : f32 to vector<10x128xf32>
    %288 = arith.addf %286, %287 : vector<10x128xf32>
    %289 = arith.mulf %288, %278 : vector<10x128xf32>
    %cst_138 = arith.constant 0.254829586 : f32
    %290 = vector.broadcast %cst_138 : f32 to vector<10x128xf32>
    %291 = arith.addf %289, %290 : vector<10x128xf32>
    %292 = arith.mulf %291, %278 : vector<10x128xf32>
    %cst_139 = arith.constant 0.000000e+00 : f32
    %293 = vector.broadcast %cst_139 : f32 to vector<10x128xf32>
    %294 = arith.subf %293, %272 : vector<10x128xf32>
    %295 = arith.mulf %294, %272 : vector<10x128xf32>
    %296 = math.exp %295 : vector<10x128xf32>
    %297 = arith.mulf %292, %296 : vector<10x128xf32>
    %cst_140 = arith.constant 1.000000e+00 : f32
    %298 = vector.broadcast %cst_140 : f32 to vector<10x128xf32>
    %299 = arith.subf %298, %297 : vector<10x128xf32>
    %cst_141 = arith.constant 0.000000e+00 : f32
    %300 = vector.broadcast %cst_141 : f32 to vector<10x128xf32>
    %301 = arith.cmpf olt, %271, %300 : vector<10x128xf32>
    %cst_142 = arith.constant 0.000000e+00 : f32
    %302 = vector.broadcast %cst_142 : f32 to vector<10x128xf32>
    %303 = arith.subf %302, %299 : vector<10x128xf32>
    %304 = arith.select %301, %303, %299 : vector<10x128xi1>, vector<10x128xf32>
    %cst_143 = arith.constant 1.000000e+00 : f32
    %305 = vector.broadcast %cst_143 : f32 to vector<10x128xf32>
    %306 = arith.addf %305, %304 : vector<10x128xf32>
    %307 = arith.mulf %269, %306 : vector<10x128xf32>
    %c0_144 = arith.constant 0 : index
    %c0_145 = arith.constant 0 : index
    %308 = vector.load %arg16[%c0_144, %c0_145] : memref<128x32xf32, #tpu.memory_space<vmem>>, vector<128x32xf32>
    %cst_146 = arith.constant dense<0.000000e+00> : vector<10x32xf32>
    %309 = tpu.matmul %307, %308, %cst_146 {dimension_numbers = #tpu.dot_dimension_numbers<[1], [0], [0], [1], [0, 0, 1, 1], [], []>} : vector<10x128xf32>, vector<128x32xf32>, vector<10x32xf32> -> vector<10x32xf32>
    %c0_147 = arith.constant 0 : index
    %c0_148 = arith.constant 0 : index
    %310 = vector.load %arg17[%c0_147, %c0_148] : memref<1x32xf32, #tpu.memory_space<vmem>>, vector<1x32xf32>
    %311 = vector.broadcast %310 : vector<1x32xf32> to vector<10x32xf32>
    %312 = arith.addf %309, %311 : vector<10x32xf32>
    %c0_149 = arith.constant 0 : index
    %c0_150 = arith.constant 0 : index
    %313 = vector.load %arg18[%c0_149, %c0_150] : memref<1x32xf32, #tpu.memory_space<vmem>>, vector<1x32xf32>
    %314 = vector.broadcast %313 : vector<1x32xf32> to vector<10x32xf32>
    %315 = arith.mulf %314, %312 : vector<10x32xf32>
    %316 = arith.addf %238, %315 : vector<10x32xf32>
    %c0_151 = arith.constant 0 : index
    %c0_152 = arith.constant 0 : index
    %317 = vector.load %arg36[%c0_151, %c0_152] : memref<10x32xf32, #tpu.memory_space<vmem>>, vector<10x32xf32>
    tpu.vector_store %arg36[%c0_151, %c0_152], %316 {strides = array<i32>} : memref<10x32xf32, #tpu.memory_space<vmem>>, vector<10x32xf32>,
    %c0_153 = arith.constant 0 : index
    %c0_154 = arith.constant 0 : index
    %318 = vector.load %arg36[%c0_153, %c0_154] : memref<10x32xf32, #tpu.memory_space<vmem>>, vector<10x32xf32>
    %c0_155 = arith.constant 0 : index
    %c0_156 = arith.constant 0 : index
    %319 = vector.load %arg19[%c0_155, %c0_156] : memref<1x32xf32, #tpu.memory_space<vmem>>, vector<1x32xf32>
    %c0_157 = arith.constant 0 : index
    %c0_158 = arith.constant 0 : index
    %320 = vector.load %arg20[%c0_157, %c0_158] : memref<1x32xf32, #tpu.memory_space<vmem>>, vector<1x32xf32>
    %cst_159 = arith.constant dense<0.000000e+00> : vector<10xf32>
    %321 = vector.multi_reduction <add>, %318, %cst_159 [1] : vector<10x32xf32> to vector<10xf32>
    %322 = vector.shape_cast %321 : vector<10xf32> to vector<10x1xf32>
    %cst_160 = arith.constant 3.200000e+01 : f32
    %323 = vector.broadcast %cst_160 : f32 to vector<10x1xf32>
    %324 = arith.divf %322, %323 : vector<10x1xf32>
    %325 = vector.broadcast %324 : vector<10x1xf32> to vector<10x32xf32>
    %326 = arith.subf %318, %325 : vector<10x32xf32>
    %327 = arith.mulf %326, %326 : vector<10x32xf32>
    %cst_161 = arith.constant dense<0.000000e+00> : vector<10xf32>
    %328 = vector.multi_reduction <add>, %327, %cst_161 [1] : vector<10x32xf32> to vector<10xf32>
    %329 = vector.shape_cast %328 : vector<10xf32> to vector<10x1xf32>
    %cst_162 = arith.constant 3.200000e+01 : f32
    %330 = vector.broadcast %cst_162 : f32 to vector<10x1xf32>
    %331 = arith.divf %329, %330 : vector<10x1xf32>
    %332 = vector.broadcast %324 : vector<10x1xf32> to vector<10x32xf32>
    %333 = arith.subf %318, %332 : vector<10x32xf32>
    %cst_163 = arith.constant 9.99999997E-7 : f32
    %334 = vector.broadcast %cst_163 : f32 to vector<10x1xf32>
    %335 = arith.addf %331, %334 : vector<10x1xf32>
    %336 = math.rsqrt %335 : vector<10x1xf32>
    %337 = vector.broadcast %336 : vector<10x1xf32> to vector<10x32xf32>
    %338 = arith.mulf %333, %337 : vector<10x32xf32>
    %339 = vector.broadcast %319 : vector<1x32xf32> to vector<10x32xf32>
    %340 = arith.mulf %338, %339 : vector<10x32xf32>
    %341 = vector.broadcast %320 : vector<1x32xf32> to vector<10x32xf32>
    %342 = arith.addf %340, %341 : vector<10x32xf32>
    %c0_164 = arith.constant 0 : index
    %c0_165 = arith.constant 0 : index
    %343 = vector.load %arg21[%c0_164, %c0_165] : memref<32x96xf32, #tpu.memory_space<vmem>>, vector<32x96xf32>
    %cst_166 = arith.constant dense<0.000000e+00> : vector<10x96xf32>
    %344 = tpu.matmul %342, %343, %cst_166 {dimension_numbers = #tpu.dot_dimension_numbers<[1], [0], [0], [1], [0, 0, 1, 1], [], []>} : vector<10x32xf32>, vector<32x96xf32>, vector<10x96xf32> -> vector<10x96xf32>
    %c0_167 = arith.constant 0 : index
    %c0_168 = arith.constant 0 : index
    %345 = vector.load %arg22[%c0_167, %c0_168] : memref<1x96xf32, #tpu.memory_space<vmem>>, vector<1x96xf32>
    %346 = vector.broadcast %345 : vector<1x96xf32> to vector<10x96xf32>
    %347 = arith.addf %344, %346 : vector<10x96xf32>
    %348 = vector.extract_strided_slice %347 {offsets = [0, 0], sizes = [5, 32], strides = [1, 1]} : vector<10x96xf32> to vector<5x32xf32>
    %349 = vector.extract_strided_slice %347 {offsets = [0, 32], sizes = [5, 32], strides = [1, 1]} : vector<10x96xf32> to vector<5x32xf32>
    %350 = vector.extract_strided_slice %347 {offsets = [0, 64], sizes = [5, 32], strides = [1, 1]} : vector<10x96xf32> to vector<5x32xf32>
    %cst_169 = arith.constant 0.000000e+00 : f32
    %351 = vector.broadcast %cst_169 : f32 to vector<5x32xf32>
    %352 = vector.extract_strided_slice %348 {offsets = [0, 0], sizes = [5, 8], strides = [1, 1]} : vector<5x32xf32> to vector<5x8xf32>
    %cst_170 = arith.constant 0.353553385 : f32
    %353 = vector.broadcast %cst_170 : f32 to vector<5x8xf32>
    %354 = arith.mulf %352, %353 : vector<5x8xf32>
    %355 = vector.extract_strided_slice %349 {offsets = [0, 0], sizes = [5, 8], strides = [1, 1]} : vector<5x32xf32> to vector<5x8xf32>
    %356 = vector.extract_strided_slice %350 {offsets = [0, 0], sizes = [5, 8], strides = [1, 1]} : vector<5x32xf32> to vector<5x8xf32>
    %cst_171 = arith.constant dense<0.000000e+00> : vector<5x5xf32>
    %357 = tpu.matmul %354, %355, %cst_171 {dimension_numbers = #tpu.dot_dimension_numbers<[1], [1], [0], [0], [0, 0, 1, 0], [], []>} : vector<5x8xf32>, vector<5x8xf32>, vector<5x5xf32> -> vector<5x5xf32>
    %cst_172 = arith.constant dense<0xFF800000> : vector<5xf32>
    %358 = vector.multi_reduction <maximumf>, %357, %cst_172 [1] : vector<5x5xf32> to vector<5xf32>
    %359 = vector.shape_cast %358 : vector<5xf32> to vector<5x1xf32>
    %360 = vector.broadcast %359 : vector<5x1xf32> to vector<5x5xf32>
    %361 = arith.subf %357, %360 : vector<5x5xf32>
    %362 = math.exp %361 : vector<5x5xf32>
    %cst_173 = arith.constant dense<0.000000e+00> : vector<5xf32>
    %363 = vector.multi_reduction <add>, %362, %cst_173 [1] : vector<5x5xf32> to vector<5xf32>
    %364 = vector.shape_cast %363 : vector<5xf32> to vector<5x1xf32>
    %365 = tpu.reciprocal %364 {approx = true} : vector<5x1xf32> -> vector<5x1xf32>
    %366 = vector.broadcast %365 : vector<5x1xf32> to vector<5x5xf32>
    %367 = arith.mulf %362, %366 : vector<5x5xf32>
    %cst_174 = arith.constant dense<0.000000e+00> : vector<5x8xf32>
    %368 = tpu.matmul %367, %356, %cst_174 {dimension_numbers = #tpu.dot_dimension_numbers<[1], [0], [0], [1], [0, 0, 1, 1], [], []>} : vector<5x5xf32>, vector<5x8xf32>, vector<5x8xf32> -> vector<5x8xf32>
    %c0_175 = arith.constant 0 : index
    %c0_176 = arith.constant 0 : index
    %369 = vector.load %arg23[%c0_175, %c0_176] : memref<32x32xf32, #tpu.memory_space<vmem>>, vector<8x32xf32>
    %cst_177 = arith.constant dense<0.000000e+00> : vector<5x32xf32>
    %370 = tpu.matmul %368, %369, %cst_177 {dimension_numbers = #tpu.dot_dimension_numbers<[1], [0], [0], [1], [0, 0, 1, 1], [], []>} : vector<5x8xf32>, vector<8x32xf32>, vector<5x32xf32> -> vector<5x32xf32>
    %371 = arith.addf %351, %370 : vector<5x32xf32>
    %372 = vector.extract_strided_slice %348 {offsets = [0, 8], sizes = [5, 8], strides = [1, 1]} : vector<5x32xf32> to vector<5x8xf32>
    %cst_178 = arith.constant 0.353553385 : f32
    %373 = vector.broadcast %cst_178 : f32 to vector<5x8xf32>
    %374 = arith.mulf %372, %373 : vector<5x8xf32>
    %375 = vector.extract_strided_slice %349 {offsets = [0, 8], sizes = [5, 8], strides = [1, 1]} : vector<5x32xf32> to vector<5x8xf32>
    %376 = vector.extract_strided_slice %350 {offsets = [0, 8], sizes = [5, 8], strides = [1, 1]} : vector<5x32xf32> to vector<5x8xf32>
    %cst_179 = arith.constant dense<0.000000e+00> : vector<5x5xf32>
    %377 = tpu.matmul %374, %375, %cst_179 {dimension_numbers = #tpu.dot_dimension_numbers<[1], [1], [0], [0], [0, 0, 1, 0], [], []>} : vector<5x8xf32>, vector<5x8xf32>, vector<5x5xf32> -> vector<5x5xf32>
    %cst_180 = arith.constant dense<0xFF800000> : vector<5xf32>
    %378 = vector.multi_reduction <maximumf>, %377, %cst_180 [1] : vector<5x5xf32> to vector<5xf32>
    %379 = vector.shape_cast %378 : vector<5xf32> to vector<5x1xf32>
    %380 = vector.broadcast %379 : vector<5x1xf32> to vector<5x5xf32>
    %381 = arith.subf %377, %380 : vector<5x5xf32>
    %382 = math.exp %381 : vector<5x5xf32>
    %cst_181 = arith.constant dense<0.000000e+00> : vector<5xf32>
    %383 = vector.multi_reduction <add>, %382, %cst_181 [1] : vector<5x5xf32> to vector<5xf32>
    %384 = vector.shape_cast %383 : vector<5xf32> to vector<5x1xf32>
    %385 = tpu.reciprocal %384 {approx = true} : vector<5x1xf32> -> vector<5x1xf32>
    %386 = vector.broadcast %385 : vector<5x1xf32> to vector<5x5xf32>
    %387 = arith.mulf %382, %386 : vector<5x5xf32>
    %cst_182 = arith.constant dense<0.000000e+00> : vector<5x8xf32>
    %388 = tpu.matmul %387, %376, %cst_182 {dimension_numbers = #tpu.dot_dimension_numbers<[1], [0], [0], [1], [0, 0, 1, 1], [], []>} : vector<5x5xf32>, vector<5x8xf32>, vector<5x8xf32> -> vector<5x8xf32>
    %c8_183 = arith.constant 8 : index
    %c0_184 = arith.constant 0 : index
    %389 = vector.load %arg23[%c8_183, %c0_184] : memref<32x32xf32, #tpu.memory_space<vmem>>, vector<8x32xf32>
    %cst_185 = arith.constant dense<0.000000e+00> : vector<5x32xf32>
    %390 = tpu.matmul %388, %389, %cst_185 {dimension_numbers = #tpu.dot_dimension_numbers<[1], [0], [0], [1], [0, 0, 1, 1], [], []>} : vector<5x8xf32>, vector<8x32xf32>, vector<5x32xf32> -> vector<5x32xf32>
    %391 = arith.addf %371, %390 : vector<5x32xf32>
    %392 = vector.extract_strided_slice %348 {offsets = [0, 16], sizes = [5, 8], strides = [1, 1]} : vector<5x32xf32> to vector<5x8xf32>
    %cst_186 = arith.constant 0.353553385 : f32
    %393 = vector.broadcast %cst_186 : f32 to vector<5x8xf32>
    %394 = arith.mulf %392, %393 : vector<5x8xf32>
    %395 = vector.extract_strided_slice %349 {offsets = [0, 16], sizes = [5, 8], strides = [1, 1]} : vector<5x32xf32> to vector<5x8xf32>
    %396 = vector.extract_strided_slice %350 {offsets = [0, 16], sizes = [5, 8], strides = [1, 1]} : vector<5x32xf32> to vector<5x8xf32>
    %cst_187 = arith.constant dense<0.000000e+00> : vector<5x5xf32>
    %397 = tpu.matmul %394, %395, %cst_187 {dimension_numbers = #tpu.dot_dimension_numbers<[1], [1], [0], [0], [0, 0, 1, 0], [], []>} : vector<5x8xf32>, vector<5x8xf32>, vector<5x5xf32> -> vector<5x5xf32>
    %cst_188 = arith.constant dense<0xFF800000> : vector<5xf32>
    %398 = vector.multi_reduction <maximumf>, %397, %cst_188 [1] : vector<5x5xf32> to vector<5xf32>
    %399 = vector.shape_cast %398 : vector<5xf32> to vector<5x1xf32>
    %400 = vector.broadcast %399 : vector<5x1xf32> to vector<5x5xf32>
    %401 = arith.subf %397, %400 : vector<5x5xf32>
    %402 = math.exp %401 : vector<5x5xf32>
    %cst_189 = arith.constant dense<0.000000e+00> : vector<5xf32>
    %403 = vector.multi_reduction <add>, %402, %cst_189 [1] : vector<5x5xf32> to vector<5xf32>
    %404 = vector.shape_cast %403 : vector<5xf32> to vector<5x1xf32>
    %405 = tpu.reciprocal %404 {approx = true} : vector<5x1xf32> -> vector<5x1xf32>
    %406 = vector.broadcast %405 : vector<5x1xf32> to vector<5x5xf32>
    %407 = arith.mulf %402, %406 : vector<5x5xf32>
    %cst_190 = arith.constant dense<0.000000e+00> : vector<5x8xf32>
    %408 = tpu.matmul %407, %396, %cst_190 {dimension_numbers = #tpu.dot_dimension_numbers<[1], [0], [0], [1], [0, 0, 1, 1], [], []>} : vector<5x5xf32>, vector<5x8xf32>, vector<5x8xf32> -> vector<5x8xf32>
    %c16_191 = arith.constant 16 : index
    %c0_192 = arith.constant 0 : index
    %409 = vector.load %arg23[%c16_191, %c0_192] : memref<32x32xf32, #tpu.memory_space<vmem>>, vector<8x32xf32>
    %cst_193 = arith.constant dense<0.000000e+00> : vector<5x32xf32>
    %410 = tpu.matmul %408, %409, %cst_193 {dimension_numbers = #tpu.dot_dimension_numbers<[1], [0], [0], [1], [0, 0, 1, 1], [], []>} : vector<5x8xf32>, vector<8x32xf32>, vector<5x32xf32> -> vector<5x32xf32>
    %411 = arith.addf %391, %410 : vector<5x32xf32>
    %412 = vector.extract_strided_slice %348 {offsets = [0, 24], sizes = [5, 8], strides = [1, 1]} : vector<5x32xf32> to vector<5x8xf32>
    %cst_194 = arith.constant 0.353553385 : f32
    %413 = vector.broadcast %cst_194 : f32 to vector<5x8xf32>
    %414 = arith.mulf %412, %413 : vector<5x8xf32>
    %415 = vector.extract_strided_slice %349 {offsets = [0, 24], sizes = [5, 8], strides = [1, 1]} : vector<5x32xf32> to vector<5x8xf32>
    %416 = vector.extract_strided_slice %350 {offsets = [0, 24], sizes = [5, 8], strides = [1, 1]} : vector<5x32xf32> to vector<5x8xf32>
    %cst_195 = arith.constant dense<0.000000e+00> : vector<5x5xf32>
    %417 = tpu.matmul %414, %415, %cst_195 {dimension_numbers = #tpu.dot_dimension_numbers<[1], [1], [0], [0], [0, 0, 1, 0], [], []>} : vector<5x8xf32>, vector<5x8xf32>, vector<5x5xf32> -> vector<5x5xf32>
    %cst_196 = arith.constant dense<0xFF800000> : vector<5xf32>
    %418 = vector.multi_reduction <maximumf>, %417, %cst_196 [1] : vector<5x5xf32> to vector<5xf32>
    %419 = vector.shape_cast %418 : vector<5xf32> to vector<5x1xf32>
    %420 = vector.broadcast %419 : vector<5x1xf32> to vector<5x5xf32>
    %421 = arith.subf %417, %420 : vector<5x5xf32>
    %422 = math.exp %421 : vector<5x5xf32>
    %cst_197 = arith.constant dense<0.000000e+00> : vector<5xf32>
    %423 = vector.multi_reduction <add>, %422, %cst_197 [1] : vector<5x5xf32> to vector<5xf32>
    %424 = vector.shape_cast %423 : vector<5xf32> to vector<5x1xf32>
    %425 = tpu.reciprocal %424 {approx = true} : vector<5x1xf32> -> vector<5x1xf32>
    %426 = vector.broadcast %425 : vector<5x1xf32> to vector<5x5xf32>
    %427 = arith.mulf %422, %426 : vector<5x5xf32>
    %cst_198 = arith.constant dense<0.000000e+00> : vector<5x8xf32>
    %428 = tpu.matmul %427, %416, %cst_198 {dimension_numbers = #tpu.dot_dimension_numbers<[1], [0], [0], [1], [0, 0, 1, 1], [], []>} : vector<5x5xf32>, vector<5x8xf32>, vector<5x8xf32> -> vector<5x8xf32>
    %c24_199 = arith.constant 24 : index
    %c0_200 = arith.constant 0 : index
    %429 = vector.load %arg23[%c24_199, %c0_200] : memref<32x32xf32, #tpu.memory_space<vmem>>, vector<8x32xf32>
    %cst_201 = arith.constant dense<0.000000e+00> : vector<5x32xf32>
    %430 = tpu.matmul %428, %429, %cst_201 {dimension_numbers = #tpu.dot_dimension_numbers<[1], [0], [0], [1], [0, 0, 1, 1], [], []>} : vector<5x8xf32>, vector<8x32xf32>, vector<5x32xf32> -> vector<5x32xf32>
    %431 = arith.addf %411, %430 : vector<5x32xf32>
    %432 = vector.extract_strided_slice %318 {offsets = [0, 0], sizes = [5, 32], strides = [1, 1]} : vector<10x32xf32> to vector<5x32xf32>
    %c0_202 = arith.constant 0 : index
    %c0_203 = arith.constant 0 : index
    %433 = vector.load %arg25[%c0_202, %c0_203] : memref<1x32xf32, #tpu.memory_space<vmem>>, vector<1x32xf32>
    %c0_204 = arith.constant 0 : index
    %c0_205 = arith.constant 0 : index
    %434 = vector.load %arg24[%c0_204, %c0_205] : memref<1x32xf32, #tpu.memory_space<vmem>>, vector<1x32xf32>
    %435 = vector.broadcast %434 : vector<1x32xf32> to vector<5x32xf32>
    %436 = arith.addf %431, %435 : vector<5x32xf32>
    %437 = vector.broadcast %433 : vector<1x32xf32> to vector<5x32xf32>
    %438 = arith.mulf %437, %436 : vector<5x32xf32>
    %439 = arith.addf %432, %438 : vector<5x32xf32>
    %c0_206 = arith.constant 0 : index
    %c0_207 = arith.constant 0 : index
    %440 = vector.load %arg36[%c0_206, %c0_207] : memref<10x32xf32, #tpu.memory_space<vmem>>, vector<5x32xf32>
    tpu.vector_store %arg36[%c0_206, %c0_207], %439 {strides = array<i32>} : memref<10x32xf32, #tpu.memory_space<vmem>>, vector<5x32xf32>,
    %441 = vector.extract_strided_slice %347 {offsets = [5, 0], sizes = [5, 32], strides = [1, 1]} : vector<10x96xf32> to vector<5x32xf32>
    %442 = vector.extract_strided_slice %347 {offsets = [5, 32], sizes = [5, 32], strides = [1, 1]} : vector<10x96xf32> to vector<5x32xf32>
    %443 = vector.extract_strided_slice %347 {offsets = [5, 64], sizes = [5, 32], strides = [1, 1]} : vector<10x96xf32> to vector<5x32xf32>
    %cst_208 = arith.constant 0.000000e+00 : f32
    %444 = vector.broadcast %cst_208 : f32 to vector<5x32xf32>
    %445 = vector.extract_strided_slice %441 {offsets = [0, 0], sizes = [5, 8], strides = [1, 1]} : vector<5x32xf32> to vector<5x8xf32>
    %cst_209 = arith.constant 0.353553385 : f32
    %446 = vector.broadcast %cst_209 : f32 to vector<5x8xf32>
    %447 = arith.mulf %445, %446 : vector<5x8xf32>
    %448 = vector.extract_strided_slice %442 {offsets = [0, 0], sizes = [5, 8], strides = [1, 1]} : vector<5x32xf32> to vector<5x8xf32>
    %449 = vector.extract_strided_slice %443 {offsets = [0, 0], sizes = [5, 8], strides = [1, 1]} : vector<5x32xf32> to vector<5x8xf32>
    %cst_210 = arith.constant dense<0.000000e+00> : vector<5x5xf32>
    %450 = tpu.matmul %447, %448, %cst_210 {dimension_numbers = #tpu.dot_dimension_numbers<[1], [1], [0], [0], [0, 0, 1, 0], [], []>} : vector<5x8xf32>, vector<5x8xf32>, vector<5x5xf32> -> vector<5x5xf32>
    %cst_211 = arith.constant dense<0xFF800000> : vector<5xf32>
    %451 = vector.multi_reduction <maximumf>, %450, %cst_211 [1] : vector<5x5xf32> to vector<5xf32>
    %452 = vector.shape_cast %451 : vector<5xf32> to vector<5x1xf32>
    %453 = vector.broadcast %452 : vector<5x1xf32> to vector<5x5xf32>
    %454 = arith.subf %450, %453 : vector<5x5xf32>
    %455 = math.exp %454 : vector<5x5xf32>
    %cst_212 = arith.constant dense<0.000000e+00> : vector<5xf32>
    %456 = vector.multi_reduction <add>, %455, %cst_212 [1] : vector<5x5xf32> to vector<5xf32>
    %457 = vector.shape_cast %456 : vector<5xf32> to vector<5x1xf32>
    %458 = tpu.reciprocal %457 {approx = true} : vector<5x1xf32> -> vector<5x1xf32>
    %459 = vector.broadcast %458 : vector<5x1xf32> to vector<5x5xf32>
    %460 = arith.mulf %455, %459 : vector<5x5xf32>
    %cst_213 = arith.constant dense<0.000000e+00> : vector<5x8xf32>
    %461 = tpu.matmul %460, %449, %cst_213 {dimension_numbers = #tpu.dot_dimension_numbers<[1], [0], [0], [1], [0, 0, 1, 1], [], []>} : vector<5x5xf32>, vector<5x8xf32>, vector<5x8xf32> -> vector<5x8xf32>
    %c0_214 = arith.constant 0 : index
    %c0_215 = arith.constant 0 : index
    %462 = vector.load %arg23[%c0_214, %c0_215] : memref<32x32xf32, #tpu.memory_space<vmem>>, vector<8x32xf32>
    %cst_216 = arith.constant dense<0.000000e+00> : vector<5x32xf32>
    %463 = tpu.matmul %461, %462, %cst_216 {dimension_numbers = #tpu.dot_dimension_numbers<[1], [0], [0], [1], [0, 0, 1, 1], [], []>} : vector<5x8xf32>, vector<8x32xf32>, vector<5x32xf32> -> vector<5x32xf32>
    %464 = arith.addf %444, %463 : vector<5x32xf32>
    %465 = vector.extract_strided_slice %441 {offsets = [0, 8], sizes = [5, 8], strides = [1, 1]} : vector<5x32xf32> to vector<5x8xf32>
    %cst_217 = arith.constant 0.353553385 : f32
    %466 = vector.broadcast %cst_217 : f32 to vector<5x8xf32>
    %467 = arith.mulf %465, %466 : vector<5x8xf32>
    %468 = vector.extract_strided_slice %442 {offsets = [0, 8], sizes = [5, 8], strides = [1, 1]} : vector<5x32xf32> to vector<5x8xf32>
    %469 = vector.extract_strided_slice %443 {offsets = [0, 8], sizes = [5, 8], strides = [1, 1]} : vector<5x32xf32> to vector<5x8xf32>
    %cst_218 = arith.constant dense<0.000000e+00> : vector<5x5xf32>
    %470 = tpu.matmul %467, %468, %cst_218 {dimension_numbers = #tpu.dot_dimension_numbers<[1], [1], [0], [0], [0, 0, 1, 0], [], []>} : vector<5x8xf32>, vector<5x8xf32>, vector<5x5xf32> -> vector<5x5xf32>
    %cst_219 = arith.constant dense<0xFF800000> : vector<5xf32>
    %471 = vector.multi_reduction <maximumf>, %470, %cst_219 [1] : vector<5x5xf32> to vector<5xf32>
    %472 = vector.shape_cast %471 : vector<5xf32> to vector<5x1xf32>
    %473 = vector.broadcast %472 : vector<5x1xf32> to vector<5x5xf32>
    %474 = arith.subf %470, %473 : vector<5x5xf32>
    %475 = math.exp %474 : vector<5x5xf32>
    %cst_220 = arith.constant dense<0.000000e+00> : vector<5xf32>
    %476 = vector.multi_reduction <add>, %475, %cst_220 [1] : vector<5x5xf32> to vector<5xf32>
    %477 = vector.shape_cast %476 : vector<5xf32> to vector<5x1xf32>
    %478 = tpu.reciprocal %477 {approx = true} : vector<5x1xf32> -> vector<5x1xf32>
    %479 = vector.broadcast %478 : vector<5x1xf32> to vector<5x5xf32>
    %480 = arith.mulf %475, %479 : vector<5x5xf32>
    %cst_221 = arith.constant dense<0.000000e+00> : vector<5x8xf32>
    %481 = tpu.matmul %480, %469, %cst_221 {dimension_numbers = #tpu.dot_dimension_numbers<[1], [0], [0], [1], [0, 0, 1, 1], [], []>} : vector<5x5xf32>, vector<5x8xf32>, vector<5x8xf32> -> vector<5x8xf32>
    %c8_222 = arith.constant 8 : index
    %c0_223 = arith.constant 0 : index
    %482 = vector.load %arg23[%c8_222, %c0_223] : memref<32x32xf32, #tpu.memory_space<vmem>>, vector<8x32xf32>
    %cst_224 = arith.constant dense<0.000000e+00> : vector<5x32xf32>
    %483 = tpu.matmul %481, %482, %cst_224 {dimension_numbers = #tpu.dot_dimension_numbers<[1], [0], [0], [1], [0, 0, 1, 1], [], []>} : vector<5x8xf32>, vector<8x32xf32>, vector<5x32xf32> -> vector<5x32xf32>
    %484 = arith.addf %464, %483 : vector<5x32xf32>
    %485 = vector.extract_strided_slice %441 {offsets = [0, 16], sizes = [5, 8], strides = [1, 1]} : vector<5x32xf32> to vector<5x8xf32>
    %cst_225 = arith.constant 0.353553385 : f32
    %486 = vector.broadcast %cst_225 : f32 to vector<5x8xf32>
    %487 = arith.mulf %485, %486 : vector<5x8xf32>
    %488 = vector.extract_strided_slice %442 {offsets = [0, 16], sizes = [5, 8], strides = [1, 1]} : vector<5x32xf32> to vector<5x8xf32>
    %489 = vector.extract_strided_slice %443 {offsets = [0, 16], sizes = [5, 8], strides = [1, 1]} : vector<5x32xf32> to vector<5x8xf32>
    %cst_226 = arith.constant dense<0.000000e+00> : vector<5x5xf32>
    %490 = tpu.matmul %487, %488, %cst_226 {dimension_numbers = #tpu.dot_dimension_numbers<[1], [1], [0], [0], [0, 0, 1, 0], [], []>} : vector<5x8xf32>, vector<5x8xf32>, vector<5x5xf32> -> vector<5x5xf32>
    %cst_227 = arith.constant dense<0xFF800000> : vector<5xf32>
    %491 = vector.multi_reduction <maximumf>, %490, %cst_227 [1] : vector<5x5xf32> to vector<5xf32>
    %492 = vector.shape_cast %491 : vector<5xf32> to vector<5x1xf32>
    %493 = vector.broadcast %492 : vector<5x1xf32> to vector<5x5xf32>
    %494 = arith.subf %490, %493 : vector<5x5xf32>
    %495 = math.exp %494 : vector<5x5xf32>
    %cst_228 = arith.constant dense<0.000000e+00> : vector<5xf32>
    %496 = vector.multi_reduction <add>, %495, %cst_228 [1] : vector<5x5xf32> to vector<5xf32>
    %497 = vector.shape_cast %496 : vector<5xf32> to vector<5x1xf32>
    %498 = tpu.reciprocal %497 {approx = true} : vector<5x1xf32> -> vector<5x1xf32>
    %499 = vector.broadcast %498 : vector<5x1xf32> to vector<5x5xf32>
    %500 = arith.mulf %495, %499 : vector<5x5xf32>
    %cst_229 = arith.constant dense<0.000000e+00> : vector<5x8xf32>
    %501 = tpu.matmul %500, %489, %cst_229 {dimension_numbers = #tpu.dot_dimension_numbers<[1], [0], [0], [1], [0, 0, 1, 1], [], []>} : vector<5x5xf32>, vector<5x8xf32>, vector<5x8xf32> -> vector<5x8xf32>
    %c16_230 = arith.constant 16 : index
    %c0_231 = arith.constant 0 : index
    %502 = vector.load %arg23[%c16_230, %c0_231] : memref<32x32xf32, #tpu.memory_space<vmem>>, vector<8x32xf32>
    %cst_232 = arith.constant dense<0.000000e+00> : vector<5x32xf32>
    %503 = tpu.matmul %501, %502, %cst_232 {dimension_numbers = #tpu.dot_dimension_numbers<[1], [0], [0], [1], [0, 0, 1, 1], [], []>} : vector<5x8xf32>, vector<8x32xf32>, vector<5x32xf32> -> vector<5x32xf32>
    %504 = arith.addf %484, %503 : vector<5x32xf32>
    %505 = vector.extract_strided_slice %441 {offsets = [0, 24], sizes = [5, 8], strides = [1, 1]} : vector<5x32xf32> to vector<5x8xf32>
    %cst_233 = arith.constant 0.353553385 : f32
    %506 = vector.broadcast %cst_233 : f32 to vector<5x8xf32>
    %507 = arith.mulf %505, %506 : vector<5x8xf32>
    %508 = vector.extract_strided_slice %442 {offsets = [0, 24], sizes = [5, 8], strides = [1, 1]} : vector<5x32xf32> to vector<5x8xf32>
    %509 = vector.extract_strided_slice %443 {offsets = [0, 24], sizes = [5, 8], strides = [1, 1]} : vector<5x32xf32> to vector<5x8xf32>
    %cst_234 = arith.constant dense<0.000000e+00> : vector<5x5xf32>
    %510 = tpu.matmul %507, %508, %cst_234 {dimension_numbers = #tpu.dot_dimension_numbers<[1], [1], [0], [0], [0, 0, 1, 0], [], []>} : vector<5x8xf32>, vector<5x8xf32>, vector<5x5xf32> -> vector<5x5xf32>
    %cst_235 = arith.constant dense<0xFF800000> : vector<5xf32>
    %511 = vector.multi_reduction <maximumf>, %510, %cst_235 [1] : vector<5x5xf32> to vector<5xf32>
    %512 = vector.shape_cast %511 : vector<5xf32> to vector<5x1xf32>
    %513 = vector.broadcast %512 : vector<5x1xf32> to vector<5x5xf32>
    %514 = arith.subf %510, %513 : vector<5x5xf32>
    %515 = math.exp %514 : vector<5x5xf32>
    %cst_236 = arith.constant dense<0.000000e+00> : vector<5xf32>
    %516 = vector.multi_reduction <add>, %515, %cst_236 [1] : vector<5x5xf32> to vector<5xf32>
    %517 = vector.shape_cast %516 : vector<5xf32> to vector<5x1xf32>
    %518 = tpu.reciprocal %517 {approx = true} : vector<5x1xf32> -> vector<5x1xf32>
    %519 = vector.broadcast %518 : vector<5x1xf32> to vector<5x5xf32>
    %520 = arith.mulf %515, %519 : vector<5x5xf32>
    %cst_237 = arith.constant dense<0.000000e+00> : vector<5x8xf32>
    %521 = tpu.matmul %520, %509, %cst_237 {dimension_numbers = #tpu.dot_dimension_numbers<[1], [0], [0], [1], [0, 0, 1, 1], [], []>} : vector<5x5xf32>, vector<5x8xf32>, vector<5x8xf32> -> vector<5x8xf32>
    %c24_238 = arith.constant 24 : index
    %c0_239 = arith.constant 0 : index
    %522 = vector.load %arg23[%c24_238, %c0_239] : memref<32x32xf32, #tpu.memory_space<vmem>>, vector<8x32xf32>
    %cst_240 = arith.constant dense<0.000000e+00> : vector<5x32xf32>
    %523 = tpu.matmul %521, %522, %cst_240 {dimension_numbers = #tpu.dot_dimension_numbers<[1], [0], [0], [1], [0, 0, 1, 1], [], []>} : vector<5x8xf32>, vector<8x32xf32>, vector<5x32xf32> -> vector<5x32xf32>
    %524 = arith.addf %504, %523 : vector<5x32xf32>
    %525 = vector.extract_strided_slice %318 {offsets = [5, 0], sizes = [5, 32], strides = [1, 1]} : vector<10x32xf32> to vector<5x32xf32>
    %c0_241 = arith.constant 0 : index
    %c0_242 = arith.constant 0 : index
    %526 = vector.load %arg25[%c0_241, %c0_242] : memref<1x32xf32, #tpu.memory_space<vmem>>, vector<1x32xf32>
    %c0_243 = arith.constant 0 : index
    %c0_244 = arith.constant 0 : index
    %527 = vector.load %arg24[%c0_243, %c0_244] : memref<1x32xf32, #tpu.memory_space<vmem>>, vector<1x32xf32>
    %528 = vector.broadcast %527 : vector<1x32xf32> to vector<5x32xf32>
    %529 = arith.addf %524, %528 : vector<5x32xf32>
    %530 = vector.broadcast %526 : vector<1x32xf32> to vector<5x32xf32>
    %531 = arith.mulf %530, %529 : vector<5x32xf32>
    %532 = arith.addf %525, %531 : vector<5x32xf32>
    %c5_245 = arith.constant 5 : index
    %c0_246 = arith.constant 0 : index
    %533 = vector.load %arg36[%c5_245, %c0_246] : memref<10x32xf32, #tpu.memory_space<vmem>>, vector<5x32xf32>
    tpu.vector_store %arg36[%c5_245, %c0_246], %532 {strides = array<i32>} : memref<10x32xf32, #tpu.memory_space<vmem>>, vector<5x32xf32>,
    %c0_247 = arith.constant 0 : index
    %c0_248 = arith.constant 0 : index
    %534 = vector.load %arg36[%c0_247, %c0_248] : memref<10x32xf32, #tpu.memory_space<vmem>>, vector<10x32xf32>
    %c0_249 = arith.constant 0 : index
    %c0_250 = arith.constant 0 : index
    %535 = vector.load %arg26[%c0_249, %c0_250] : memref<1x32xf32, #tpu.memory_space<vmem>>, vector<1x32xf32>
    %c0_251 = arith.constant 0 : index
    %c0_252 = arith.constant 0 : index
    %536 = vector.load %arg27[%c0_251, %c0_252] : memref<1x32xf32, #tpu.memory_space<vmem>>, vector<1x32xf32>
    %cst_253 = arith.constant dense<0.000000e+00> : vector<10xf32>
    %537 = vector.multi_reduction <add>, %534, %cst_253 [1] : vector<10x32xf32> to vector<10xf32>
    %538 = vector.shape_cast %537 : vector<10xf32> to vector<10x1xf32>
    %cst_254 = arith.constant 3.200000e+01 : f32
    %539 = vector.broadcast %cst_254 : f32 to vector<10x1xf32>
    %540 = arith.divf %538, %539 : vector<10x1xf32>
    %541 = vector.broadcast %540 : vector<10x1xf32> to vector<10x32xf32>
    %542 = arith.subf %534, %541 : vector<10x32xf32>
    %543 = arith.mulf %542, %542 : vector<10x32xf32>
    %cst_255 = arith.constant dense<0.000000e+00> : vector<10xf32>
    %544 = vector.multi_reduction <add>, %543, %cst_255 [1] : vector<10x32xf32> to vector<10xf32>
    %545 = vector.shape_cast %544 : vector<10xf32> to vector<10x1xf32>
    %cst_256 = arith.constant 3.200000e+01 : f32
    %546 = vector.broadcast %cst_256 : f32 to vector<10x1xf32>
    %547 = arith.divf %545, %546 : vector<10x1xf32>
    %548 = vector.broadcast %540 : vector<10x1xf32> to vector<10x32xf32>
    %549 = arith.subf %534, %548 : vector<10x32xf32>
    %cst_257 = arith.constant 9.99999997E-7 : f32
    %550 = vector.broadcast %cst_257 : f32 to vector<10x1xf32>
    %551 = arith.addf %547, %550 : vector<10x1xf32>
    %552 = math.rsqrt %551 : vector<10x1xf32>
    %553 = vector.broadcast %552 : vector<10x1xf32> to vector<10x32xf32>
    %554 = arith.mulf %549, %553 : vector<10x32xf32>
    %555 = vector.broadcast %535 : vector<1x32xf32> to vector<10x32xf32>
    %556 = arith.mulf %554, %555 : vector<10x32xf32>
    %557 = vector.broadcast %536 : vector<1x32xf32> to vector<10x32xf32>
    %558 = arith.addf %556, %557 : vector<10x32xf32>
    %c0_258 = arith.constant 0 : index
    %c0_259 = arith.constant 0 : index
    %559 = vector.load %arg28[%c0_258, %c0_259] : memref<32x128xf32, #tpu.memory_space<vmem>>, vector<32x128xf32>
    %cst_260 = arith.constant dense<0.000000e+00> : vector<10x128xf32>
    %560 = tpu.matmul %558, %559, %cst_260 {dimension_numbers = #tpu.dot_dimension_numbers<[1], [0], [0], [1], [0, 0, 1, 1], [], []>} : vector<10x32xf32>, vector<32x128xf32>, vector<10x128xf32> -> vector<10x128xf32>
    %c0_261 = arith.constant 0 : index
    %c0_262 = arith.constant 0 : index
    %561 = vector.load %arg29[%c0_261, %c0_262] : memref<1x128xf32, #tpu.memory_space<vmem>>, vector<1x128xf32>
    %562 = vector.broadcast %561 : vector<1x128xf32> to vector<10x128xf32>
    %563 = arith.addf %560, %562 : vector<10x128xf32>
    %cst_263 = arith.constant 5.000000e-01 : f32
    %564 = vector.broadcast %cst_263 : f32 to vector<10x128xf32>
    %565 = arith.mulf %564, %563 : vector<10x128xf32>
    %cst_264 = arith.constant 0.707106769 : f32
    %566 = vector.broadcast %cst_264 : f32 to vector<10x128xf32>
    %567 = arith.mulf %563, %566 : vector<10x128xf32>
    %568 = math.absf %567 : vector<10x128xf32>
    %cst_265 = arith.constant 0.327591091 : f32
    %569 = vector.broadcast %cst_265 : f32 to vector<10x128xf32>
    %570 = arith.mulf %569, %568 : vector<10x128xf32>
    %cst_266 = arith.constant 1.000000e+00 : f32
    %571 = vector.broadcast %cst_266 : f32 to vector<10x128xf32>
    %572 = arith.addf %571, %570 : vector<10x128xf32>
    %cst_267 = arith.constant 1.000000e+00 : f32
    %573 = vector.broadcast %cst_267 : f32 to vector<10x128xf32>
    %574 = arith.divf %573, %572 : vector<10x128xf32>
    %cst_268 = arith.constant 1.06140542 : f32
    %575 = vector.broadcast %cst_268 : f32 to vector<10x128xf32>
    %576 = arith.mulf %575, %574 : vector<10x128xf32>
    %cst_269 = arith.constant -1.45315206 : f32
    %577 = vector.broadcast %cst_269 : f32 to vector<10x128xf32>
    %578 = arith.addf %576, %577 : vector<10x128xf32>
    %579 = arith.mulf %578, %574 : vector<10x128xf32>
    %cst_270 = arith.constant 1.42141378 : f32
    %580 = vector.broadcast %cst_270 : f32 to vector<10x128xf32>
    %581 = arith.addf %579, %580 : vector<10x128xf32>
    %582 = arith.mulf %581, %574 : vector<10x128xf32>
    %cst_271 = arith.constant -0.284496725 : f32
    %583 = vector.broadcast %cst_271 : f32 to vector<10x128xf32>
    %584 = arith.addf %582, %583 : vector<10x128xf32>
    %585 = arith.mulf %584, %574 : vector<10x128xf32>
    %cst_272 = arith.constant 0.254829586 : f32
    %586 = vector.broadcast %cst_272 : f32 to vector<10x128xf32>
    %587 = arith.addf %585, %586 : vector<10x128xf32>
    %588 = arith.mulf %587, %574 : vector<10x128xf32>
    %cst_273 = arith.constant 0.000000e+00 : f32
    %589 = vector.broadcast %cst_273 : f32 to vector<10x128xf32>
    %590 = arith.subf %589, %568 : vector<10x128xf32>
    %591 = arith.mulf %590, %568 : vector<10x128xf32>
    %592 = math.exp %591 : vector<10x128xf32>
    %593 = arith.mulf %588, %592 : vector<10x128xf32>
    %cst_274 = arith.constant 1.000000e+00 : f32
    %594 = vector.broadcast %cst_274 : f32 to vector<10x128xf32>
    %595 = arith.subf %594, %593 : vector<10x128xf32>
    %cst_275 = arith.constant 0.000000e+00 : f32
    %596 = vector.broadcast %cst_275 : f32 to vector<10x128xf32>
    %597 = arith.cmpf olt, %567, %596 : vector<10x128xf32>
    %cst_276 = arith.constant 0.000000e+00 : f32
    %598 = vector.broadcast %cst_276 : f32 to vector<10x128xf32>
    %599 = arith.subf %598, %595 : vector<10x128xf32>
    %600 = arith.select %597, %599, %595 : vector<10x128xi1>, vector<10x128xf32>
    %cst_277 = arith.constant 1.000000e+00 : f32
    %601 = vector.broadcast %cst_277 : f32 to vector<10x128xf32>
    %602 = arith.addf %601, %600 : vector<10x128xf32>
    %603 = arith.mulf %565, %602 : vector<10x128xf32>
    %c0_278 = arith.constant 0 : index
    %c0_279 = arith.constant 0 : index
    %604 = vector.load %arg30[%c0_278, %c0_279] : memref<128x32xf32, #tpu.memory_space<vmem>>, vector<128x32xf32>
    %cst_280 = arith.constant dense<0.000000e+00> : vector<10x32xf32>
    %605 = tpu.matmul %603, %604, %cst_280 {dimension_numbers = #tpu.dot_dimension_numbers<[1], [0], [0], [1], [0, 0, 1, 1], [], []>} : vector<10x128xf32>, vector<128x32xf32>, vector<10x32xf32> -> vector<10x32xf32>
    %c0_281 = arith.constant 0 : index
    %c0_282 = arith.constant 0 : index
    %606 = vector.load %arg31[%c0_281, %c0_282] : memref<1x32xf32, #tpu.memory_space<vmem>>, vector<1x32xf32>
    %607 = vector.broadcast %606 : vector<1x32xf32> to vector<10x32xf32>
    %608 = arith.addf %605, %607 : vector<10x32xf32>
    %c0_283 = arith.constant 0 : index
    %c0_284 = arith.constant 0 : index
    %609 = vector.load %arg32[%c0_283, %c0_284] : memref<1x32xf32, #tpu.memory_space<vmem>>, vector<1x32xf32>
    %610 = vector.broadcast %609 : vector<1x32xf32> to vector<10x32xf32>
    %611 = arith.mulf %610, %608 : vector<10x32xf32>
    %612 = arith.addf %534, %611 : vector<10x32xf32>
    %c0_285 = arith.constant 0 : index
    %c0_286 = arith.constant 0 : index
    %613 = vector.load %arg36[%c0_285, %c0_286] : memref<10x32xf32, #tpu.memory_space<vmem>>, vector<10x32xf32>
    tpu.vector_store %arg36[%c0_285, %c0_286], %612 {strides = array<i32>} : memref<10x32xf32, #tpu.memory_space<vmem>>, vector<10x32xf32>,
    %c0_287 = arith.constant 0 : index
    %c0_288 = arith.constant 0 : index
    %614 = vector.load %arg36[%c0_287, %c0_288] : memref<10x32xf32, #tpu.memory_space<vmem>>, vector<10x32xf32>
    %615 = vector.extract_strided_slice %614 {offsets = [0, 0], sizes = [1, 32], strides = [1, 1]} : vector<10x32xf32> to vector<1x32xf32>
    %c0_289 = arith.constant 0 : index
    %c0_290 = arith.constant 0 : index
    %616 = vector.load %arg33[%c0_289, %c0_290] : memref<1x32xf32, #tpu.memory_space<vmem>>, vector<1x32xf32>
    %c0_291 = arith.constant 0 : index
    %c0_292 = arith.constant 0 : index
    %617 = vector.load %arg34[%c0_291, %c0_292] : memref<1x32xf32, #tpu.memory_space<vmem>>, vector<1x32xf32>
    %cst_293 = arith.constant dense<0.000000e+00> : vector<1xf32>
    %618 = vector.multi_reduction <add>, %615, %cst_293 [1] : vector<1x32xf32> to vector<1xf32>
    %619 = vector.shape_cast %618 : vector<1xf32> to vector<1x1xf32>
    %cst_294 = arith.constant 3.200000e+01 : f32
    %620 = vector.broadcast %cst_294 : f32 to vector<1x1xf32>
    %621 = arith.divf %619, %620 : vector<1x1xf32>
    %622 = vector.broadcast %621 : vector<1x1xf32> to vector<1x32xf32>
    %623 = arith.subf %615, %622 : vector<1x32xf32>
    %624 = arith.mulf %623, %623 : vector<1x32xf32>
    %cst_295 = arith.constant dense<0.000000e+00> : vector<1xf32>
    %625 = vector.multi_reduction <add>, %624, %cst_295 [1] : vector<1x32xf32> to vector<1xf32>
    %626 = vector.shape_cast %625 : vector<1xf32> to vector<1x1xf32>
    %cst_296 = arith.constant 3.200000e+01 : f32
    %627 = vector.broadcast %cst_296 : f32 to vector<1x1xf32>
    %628 = arith.divf %626, %627 : vector<1x1xf32>
    %629 = vector.broadcast %621 : vector<1x1xf32> to vector<1x32xf32>
    %630 = arith.subf %615, %629 : vector<1x32xf32>
    %cst_297 = arith.constant 9.99999997E-7 : f32
    %631 = vector.broadcast %cst_297 : f32 to vector<1x1xf32>
    %632 = arith.addf %628, %631 : vector<1x1xf32>
    %633 = math.rsqrt %632 : vector<1x1xf32>
    %634 = vector.broadcast %633 : vector<1x1xf32> to vector<1x32xf32>
    %635 = arith.mulf %630, %634 : vector<1x32xf32>
    %636 = arith.mulf %635, %616 : vector<1x32xf32>
    %637 = arith.addf %636, %617 : vector<1x32xf32>
    %c0_298 = arith.constant 0 : index
    %c0_299 = arith.constant 0 : index
    %638 = vector.load %arg35[%c0_298, %c0_299] : memref<2x32xf32, #tpu.memory_space<vmem>>, vector<1x32xf32>
    tpu.vector_store %arg35[%c0_298, %c0_299], %637 {strides = array<i32>} : memref<2x32xf32, #tpu.memory_space<vmem>>, vector<1x32xf32>,
    %639 = vector.extract_strided_slice %614 {offsets = [5, 0], sizes = [1, 32], strides = [1, 1]} : vector<10x32xf32> to vector<1x32xf32>
    %c0_300 = arith.constant 0 : index
    %c0_301 = arith.constant 0 : index
    %640 = vector.load %arg33[%c0_300, %c0_301] : memref<1x32xf32, #tpu.memory_space<vmem>>, vector<1x32xf32>
    %c0_302 = arith.constant 0 : index
    %c0_303 = arith.constant 0 : index
    %641 = vector.load %arg34[%c0_302, %c0_303] : memref<1x32xf32, #tpu.memory_space<vmem>>, vector<1x32xf32>
    %cst_304 = arith.constant dense<0.000000e+00> : vector<1xf32>
    %642 = vector.multi_reduction <add>, %639, %cst_304 [1] : vector<1x32xf32> to vector<1xf32>
    %643 = vector.shape_cast %642 : vector<1xf32> to vector<1x1xf32>
    %cst_305 = arith.constant 3.200000e+01 : f32
    %644 = vector.broadcast %cst_305 : f32 to vector<1x1xf32>
    %645 = arith.divf %643, %644 : vector<1x1xf32>
    %646 = vector.broadcast %645 : vector<1x1xf32> to vector<1x32xf32>
    %647 = arith.subf %639, %646 : vector<1x32xf32>
    %648 = arith.mulf %647, %647 : vector<1x32xf32>
    %cst_306 = arith.constant dense<0.000000e+00> : vector<1xf32>
    %649 = vector.multi_reduction <add>, %648, %cst_306 [1] : vector<1x32xf32> to vector<1xf32>
    %650 = vector.shape_cast %649 : vector<1xf32> to vector<1x1xf32>
    %cst_307 = arith.constant 3.200000e+01 : f32
    %651 = vector.broadcast %cst_307 : f32 to vector<1x1xf32>
    %652 = arith.divf %650, %651 : vector<1x1xf32>
    %653 = vector.broadcast %645 : vector<1x1xf32> to vector<1x32xf32>
    %654 = arith.subf %639, %653 : vector<1x32xf32>
    %cst_308 = arith.constant 9.99999997E-7 : f32
    %655 = vector.broadcast %cst_308 : f32 to vector<1x1xf32>
    %656 = arith.addf %652, %655 : vector<1x1xf32>
    %657 = math.rsqrt %656 : vector<1x1xf32>
    %658 = vector.broadcast %657 : vector<1x1xf32> to vector<1x32xf32>
    %659 = arith.mulf %654, %658 : vector<1x32xf32>
    %660 = arith.mulf %659, %640 : vector<1x32xf32>
    %661 = arith.addf %660, %641 : vector<1x32xf32>
    %c1_309 = arith.constant 1 : index
    %c0_310 = arith.constant 0 : index
    %662 = vector.load %arg35[%c1_309, %c0_310] : memref<2x32xf32, #tpu.memory_space<vmem>>, vector<1x32xf32>
    tpu.vector_store %arg35[%c1_309, %c0_310], %661 {strides = array<i32>} : memref<2x32xf32, #tpu.memory_space<vmem>>, vector<1x32xf32>,
    return
  }
}

</mosaic_0001>

<llo_original>
// kernel: dino_v2_forward.1
$region0: #{dino_v2_forward.1}
  #allocation0 [shape = 'u32[]', space=smem, size = 0x4, offset = 0x4, fixed_abs, tag = 'smem constant byte address 0x4 - core index']
  #allocation1 [shape = 'u32[144,128]{1,0:T(1,128)}', space=vmem, size = 0x12000, scoped, tag = 'internal scratch']
  #allocation2 [shape = 'f32[10,32]{1,0:T(8,128)}', space=vmem, size = 0x2000, scoped, tag = 'scratch operand']
  %s0 = inlined_call_operand.smem [shape: u32[36], index: -1, kind: input, shape index: {}]
  %s1 = sld [smem:[%s0]]
  %s2 = scalar_lea.smem %s0, 1
  %s3 = sld [smem:[%s2]]
  %s4 = scalar_lea.smem %s0, 2
  %s5 = sld [smem:[%s4]]
  %s6 = scalar_lea.smem %s0, 3
  %s7 = sld [smem:[%s6]]
  %s8 = scalar_lea.smem %s0, 4
  %s9 = sld [smem:[%s8]]
  %s10 = scalar_lea.smem %s0, 5
  %s11 = sld [smem:[%s10]]
  %s12 = scalar_lea.smem %s0, 6
  %s13 = sld [smem:[%s12]]
  %s14 = scalar_lea.smem %s0, 7
  %s15 = sld [smem:[%s14]]
  %s16 = scalar_lea.smem %s0, 8
  %s17 = sld [smem:[%s16]]
  %s18 = scalar_lea.smem %s0, 9
  %s19 = sld [smem:[%s18]]
  %s20 = scalar_lea.smem %s0, 10
  %s21 = sld [smem:[%s20]]
  %s22 = scalar_lea.smem %s0, 11
  %s23 = sld [smem:[%s22]]
  %s24 = scalar_lea.smem %s0, 12
  %s25 = sld [smem:[%s24]]
  %s26 = scalar_lea.smem %s0, 13
  %s27 = sld [smem:[%s26]]
  %s28 = scalar_lea.smem %s0, 14
  %s29 = sld [smem:[%s28]]
  %s30 = scalar_lea.smem %s0, 15
  %s31 = sld [smem:[%s30]]
  %s32 = scalar_lea.smem %s0, 16
  %s33 = sld [smem:[%s32]]
  %s34 = scalar_lea.smem %s0, 17
  %s35 = sld [smem:[%s34]]
  %s36 = scalar_lea.smem %s0, 18
  %s37 = sld [smem:[%s36]]
  %s38 = scalar_lea.smem %s0, 19
  %s39 = sld [smem:[%s38]]
  %s40 = scalar_lea.smem %s0, 20
  %s41 = sld [smem:[%s40]]
  %s42 = scalar_lea.smem %s0, 21
  %s43 = sld [smem:[%s42]]
  %s44 = scalar_lea.smem %s0, 22
  %s45 = sld [smem:[%s44]]
  %s46 = scalar_lea.smem %s0, 23
  %s47 = sld [smem:[%s46]]
  %s48 = scalar_lea.smem %s0, 24
  %s49 = sld [smem:[%s48]]
  %s50 = scalar_lea.smem %s0, 25
  %s51 = sld [smem:[%s50]]
  %s52 = scalar_lea.smem %s0, 26
  %s53 = sld [smem:[%s52]]
  %s54 = scalar_lea.smem %s0, 27
  %s55 = sld [smem:[%s54]]
  %s56 = scalar_lea.smem %s0, 28
  %s57 = sld [smem:[%s56]]
  %s58 = scalar_lea.smem %s0, 29
  %s59 = sld [smem:[%s58]]
  %s60 = scalar_lea.smem %s0, 30
  %s61 = sld [smem:[%s60]]
  %s62 = scalar_lea.smem %s0, 31
  %s63 = sld [smem:[%s62]]
  %s64 = scalar_lea.smem %s0, 32
  %s65 = sld [smem:[%s64]]
  %s66 = scalar_lea.smem %s0, 33
  %s67 = sld [smem:[%s66]]
  %s68 = scalar_lea.smem %s0, 34
  %s69 = sld [smem:[%s68]]
  %s70 = scalar_lea.smem %s0, 35
  %s71 = sld [smem:[%s70]]
  %s72 = sld [smem:[#allocation0]]
  $region150: #{dino_v2_forward.1} parent=0
    _
  %s74 = ssub.s32 1, %s72
  %s75 = scalar_select 0, %s74, %s72
  $region1: #{dino_v2_forward.1} parent=0
    #allocation3 [shape = 'u8[1024]{0}', space=vmem, size = 0x400, scoped, tag = 'output window, operand 0, single buffered']
    #allocation4 [shape = 's32[1]{0}', space=sflag, size = 0x4, scoped, tag = 'scoped memory for dino_v2_forward.1']
    %76 = vsyncpa [#allocation4], 0
    // Predicated region
    $region2: #{dino_v2_forward.1} parent=1 // pred_check
      _
    $region3: #{dino_v2_forward.1} parent=1 // pred_check_branch
      %78 = sbr.rel (0) target = $region5
    $region4: #{dino_v2_forward.1} parent=1 // pred_region
      _
    $region5: #{dino_v2_forward.1} parent=1 // pred_fallthru
      _
    // Predicated region
    $region6: #{dino_v2_forward.1} parent=1 // pred_check
      _
    $region7: #{dino_v2_forward.1} parent=1 // pred_check_branch
      %80 = sbr.rel (0) target = $region9
    $region8: #{dino_v2_forward.1} parent=1 // pred_region
      _
    $region9: #{dino_v2_forward.1} parent=1 // pred_fallthru
      _
    // Predicated region
    $region10: #{dino_v2_forward.1} parent=1 // pred_check
      _
    $region11: #{dino_v2_forward.1} parent=1 // pred_check_branch
      %82 = sbr.rel (0) target = $region13
    $region12: #{dino_v2_forward.1} parent=1 // pred_region
      _
    $region13: #{dino_v2_forward.1} parent=1 // pred_fallthru
      _
    // Predicated region
    $region14: #{dino_v2_forward.1} parent=1 // pred_check
      _
    $region15: #{dino_v2_forward.1} parent=1 // pred_check_branch
      %84 = sbr.rel (0) target = $region17
    $region16: #{dino_v2_forward.1} parent=1 // pred_region
      _
    $region17: #{dino_v2_forward.1} parent=1 // pred_fallthru
      _
    // Predicated region
    $region18: #{dino_v2_forward.1} parent=1 // pred_check
      _
    $region19: #{dino_v2_forward.1} parent=1 // pred_check_branch
      %86 = sbr.rel (0) target = $region21
    $region20: #{dino_v2_forward.1} parent=1 // pred_region
      _
    $region21: #{dino_v2_forward.1} parent=1 // pred_fallthru
      _
    // Predicated region
    $region22: #{dino_v2_forward.1} parent=1 // pred_check
      _
    $region23: #{dino_v2_forward.1} parent=1 // pred_check_branch
      %88 = sbr.rel (0) target = $region25
    $region24: #{dino_v2_forward.1} parent=1 // pred_region
      _
    $region25: #{dino_v2_forward.1} parent=1 // pred_fallthru
      _
    // Predicated region
    $region26: #{dino_v2_forward.1} parent=1 // pred_check
      _
    $region27: #{dino_v2_forward.1} parent=1 // pred_check_branch
      %90 = sbr.rel (0) target = $region29
    $region28: #{dino_v2_forward.1} parent=1 // pred_region
      _
    $region29: #{dino_v2_forward.1} parent=1 // pred_fallthru
      _
    // Predicated region
    $region30: #{dino_v2_forward.1} parent=1 // pred_check
      _
    $region31: #{dino_v2_forward.1} parent=1 // pred_check_branch
      %92 = sbr.rel (0) target = $region33
    $region32: #{dino_v2_forward.1} parent=1 // pred_region
      _
    $region33: #{dino_v2_forward.1} parent=1 // pred_fallthru
      _
    // Predicated region
    $region34: #{dino_v2_forward.1} parent=1 // pred_check
      _
    $region35: #{dino_v2_forward.1} parent=1 // pred_check_branch
      %94 = sbr.rel (0) target = $region37
    $region36: #{dino_v2_forward.1} parent=1 // pred_region
      _
    $region37: #{dino_v2_forward.1} parent=1 // pred_fallthru
      _
    // Predicated region
    $region38: #{dino_v2_forward.1} parent=1 // pred_check
      _
    $region39: #{dino_v2_forward.1} parent=1 // pred_check_branch
      %96 = sbr.rel (0) target = $region41
    $region40: #{dino_v2_forward.1} parent=1 // pred_region
      _
    $region41: #{dino_v2_forward.1} parent=1 // pred_fallthru
      _
    // Predicated region
    $region42: #{dino_v2_forward.1} parent=1 // pred_check
      _
    $region43: #{dino_v2_forward.1} parent=1 // pred_check_branch
      %98 = sbr.rel (0) target = $region45
    $region44: #{dino_v2_forward.1} parent=1 // pred_region
      _
    $region45: #{dino_v2_forward.1} parent=1 // pred_fallthru
      _
    // Predicated region
    $region46: #{dino_v2_forward.1} parent=1 // pred_check
      _
    $region47: #{dino_v2_forward.1} parent=1 // pred_check_branch
      %100 = sbr.rel (0) target = $region49
    $region48: #{dino_v2_forward.1} parent=1 // pred_region
      _
    $region49: #{dino_v2_forward.1} parent=1 // pred_fallthru
      _
    // Predicated region
    $region50: #{dino_v2_forward.1} parent=1 // pred_check
      _
    $region51: #{dino_v2_forward.1} parent=1 // pred_check_branch
      %102 = sbr.rel (0) target = $region53
    $region52: #{dino_v2_forward.1} parent=1 // pred_region
      _
    $region53: #{dino_v2_forward.1} parent=1 // pred_fallthru
      _
    // Predicated region
    $region54: #{dino_v2_forward.1} parent=1 // pred_check
      _
    $region55: #{dino_v2_forward.1} parent=1 // pred_check_branch
      %104 = sbr.rel (0) target = $region57
    $region56: #{dino_v2_forward.1} parent=1 // pred_region
      _
    $region57: #{dino_v2_forward.1} parent=1 // pred_fallthru
      _
    // Predicated region
    $region58: #{dino_v2_forward.1} parent=1 // pred_check
      _
    $region59: #{dino_v2_forward.1} parent=1 // pred_check_branch
      %106 = sbr.rel (0) target = $region61
    $region60: #{dino_v2_forward.1} parent=1 // pred_region
      _
    $region61: #{dino_v2_forward.1} parent=1 // pred_fallthru
      _
    // Predicated region
    $region62: #{dino_v2_forward.1} parent=1 // pred_check
      _
    $region63: #{dino_v2_forward.1} parent=1 // pred_check_branch
      %108 = sbr.rel (0) target = $region65
    $region64: #{dino_v2_forward.1} parent=1 // pred_region
      _
    $region65: #{dino_v2_forward.1} parent=1 // pred_fallthru
      _
    // Predicated region
    $region66: #{dino_v2_forward.1} parent=1 // pred_check
      _
    $region67: #{dino_v2_forward.1} parent=1 // pred_check_branch
      %110 = sbr.rel (0) target = $region69
    $region68: #{dino_v2_forward.1} parent=1 // pred_region
      _
    $region69: #{dino_v2_forward.1} parent=1 // pred_fallthru
      _
    // Predicated region
    $region70: #{dino_v2_forward.1} parent=1 // pred_check
      _
    $region71: #{dino_v2_forward.1} parent=1 // pred_check_branch
      %112 = sbr.rel (0) target = $region73
    $region72: #{dino_v2_forward.1} parent=1 // pred_region
      _
    $region73: #{dino_v2_forward.1} parent=1 // pred_fallthru
      _
    // Predicated region
    $region74: #{dino_v2_forward.1} parent=1 // pred_check
      _
    $region75: #{dino_v2_forward.1} parent=1 // pred_check_branch
      %114 = sbr.rel (0) target = $region77
    $region76: #{dino_v2_forward.1} parent=1 // pred_region
      _
    $region77: #{dino_v2_forward.1} parent=1 // pred_fallthru
      _
    // Predicated region
    $region78: #{dino_v2_forward.1} parent=1 // pred_check
      _
    $region79: #{dino_v2_forward.1} parent=1 // pred_check_branch
      %116 = sbr.rel (0) target = $region81
    $region80: #{dino_v2_forward.1} parent=1 // pred_region
      _
    $region81: #{dino_v2_forward.1} parent=1 // pred_fallthru
      _
    // Predicated region
    $region82: #{dino_v2_forward.1} parent=1 // pred_check
      _
    $region83: #{dino_v2_forward.1} parent=1 // pred_check_branch
      %118 = sbr.rel (0) target = $region85
    $region84: #{dino_v2_forward.1} parent=1 // pred_region
      _
    $region85: #{dino_v2_forward.1} parent=1 // pred_fallthru
      _
    // Predicated region
    $region86: #{dino_v2_forward.1} parent=1 // pred_check
      _
    $region87: #{dino_v2_forward.1} parent=1 // pred_check_branch
      %120 = sbr.rel (0) target = $region89
    $region88: #{dino_v2_forward.1} parent=1 // pred_region
      _
    $region89: #{dino_v2_forward.1} parent=1 // pred_fallthru
      _
    // Predicated region
    $region90: #{dino_v2_forward.1} parent=1 // pred_check
      _
    $region91: #{dino_v2_forward.1} parent=1 // pred_check_branch
      %122 = sbr.rel (0) target = $region93
    $region92: #{dino_v2_forward.1} parent=1 // pred_region
      _
    $region93: #{dino_v2_forward.1} parent=1 // pred_fallthru
      _
    // Predicated region
    $region94: #{dino_v2_forward.1} parent=1 // pred_check
      _
    $region95: #{dino_v2_forward.1} parent=1 // pred_check_branch
      %124 = sbr.rel (0) target = $region97
    $region96: #{dino_v2_forward.1} parent=1 // pred_region
      _
    $region97: #{dino_v2_forward.1} parent=1 // pred_fallthru
      _
    // Predicated region
    $region98: #{dino_v2_forward.1} parent=1 // pred_check
      _
    $region99: #{dino_v2_forward.1} parent=1 // pred_check_branch
      %126 = sbr.rel (0) target = $region101
    $region100: #{dino_v2_forward.1} parent=1 // pred_region
      _
    $region101: #{dino_v2_forward.1} parent=1 // pred_fallthru
      _
    // Predicated region
    $region102: #{dino_v2_forward.1} parent=1 // pred_check
      _
    $region103: #{dino_v2_forward.1} parent=1 // pred_check_branch
      %128 = sbr.rel (0) target = $region105
    $region104: #{dino_v2_forward.1} parent=1 // pred_region
      _
    $region105: #{dino_v2_forward.1} parent=1 // pred_fallthru
      _
    // Predicated region
    $region106: #{dino_v2_forward.1} parent=1 // pred_check
      _
    $region107: #{dino_v2_forward.1} parent=1 // pred_check_branch
      %130 = sbr.rel (0) target = $region109
    $region108: #{dino_v2_forward.1} parent=1 // pred_region
      _
    $region109: #{dino_v2_forward.1} parent=1 // pred_fallthru
      _
    // Predicated region
    $region110: #{dino_v2_forward.1} parent=1 // pred_check
      _
    $region111: #{dino_v2_forward.1} parent=1 // pred_check_branch
      %132 = sbr.rel (0) target = $region113
    $region112: #{dino_v2_forward.1} parent=1 // pred_region
      _
    $region113: #{dino_v2_forward.1} parent=1 // pred_fallthru
      _
    // Predicated region
    $region114: #{dino_v2_forward.1} parent=1 // pred_check
      _
    $region115: #{dino_v2_forward.1} parent=1 // pred_check_branch
      %134 = sbr.rel (0) target = $region117
    $region116: #{dino_v2_forward.1} parent=1 // pred_region
      _
    $region117: #{dino_v2_forward.1} parent=1 // pred_fallthru
      _
    // Predicated region
    $region118: #{dino_v2_forward.1} parent=1 // pred_check
      _
    $region119: #{dino_v2_forward.1} parent=1 // pred_check_branch
      %136 = sbr.rel (0) target = $region121
    $region120: #{dino_v2_forward.1} parent=1 // pred_region
      _
    $region121: #{dino_v2_forward.1} parent=1 // pred_fallthru
      _
    // Predicated region
    $region122: #{dino_v2_forward.1} parent=1 // pred_check
      _
    $region123: #{dino_v2_forward.1} parent=1 // pred_check_branch
      %138 = sbr.rel (0) target = $region125
    $region124: #{dino_v2_forward.1} parent=1 // pred_region
      _
    $region125: #{dino_v2_forward.1} parent=1 // pred_fallthru
      _
    // Predicated region
    $region126: #{dino_v2_forward.1} parent=1 // pred_check
      _
    $region127: #{dino_v2_forward.1} parent=1 // pred_check_branch
      %140 = sbr.rel (0) target = $region129
    $region128: #{dino_v2_forward.1} parent=1 // pred_region
      _
    $region129: #{dino_v2_forward.1} parent=1 // pred_fallthru
      _
    // Predicated region
    $region130: #{dino_v2_forward.1} parent=1 // pred_check
      _
    $region131: #{dino_v2_forward.1} parent=1 // pred_check_branch
      %142 = sbr.rel (0) target = $region133
    $region132: #{dino_v2_forward.1} parent=1 // pred_region
      _
    $region133: #{dino_v2_forward.1} parent=1 // pred_fallthru
      _
    // Predicated region
    $region134: #{dino_v2_forward.1} parent=1 // pred_check
      _
    $region135: #{dino_v2_forward.1} parent=1 // pred_check_branch
      %144 = sbr.rel (0) target = $region137
    $region136: #{dino_v2_forward.1} parent=1 // pred_region
      _
    $region137: #{dino_v2_forward.1} parent=1 // pred_fallthru
      _
    // Predicated region
    $region138: #{dino_v2_forward.1} parent=1 // pred_check
      _
    $region139: #{dino_v2_forward.1} parent=1 // pred_check_branch
      %146 = sbr.rel (0) target = $region141
    $region140: #{dino_v2_forward.1} parent=1 // pred_region
      _
    $region141: #{dino_v2_forward.1} parent=1 // pred_fallthru
      _
    %v147 = vld [vmem:[%s1] sm:$0xff]
    %v148 = vld [vmem:[%s1 + $0x8] sm:$0xff]
    %v149 = vld [vmem:[%s3] sm:$0xff]
    %v150 = vld [vmem:[%s3 + $0x8] sm:$0xff]
    %v151 = vld [vmem:[%s3 + $0x10] sm:$0xff]
    %v152 = vld [vmem:[%s3 + $0x18] sm:$0xff]
    %v153 = vld [vmem:[%s3 + $0x20] sm:$0xff]
    %v154 = vld [vmem:[%s3 + $0x28] sm:$0xff]
    %v155 = vld [vmem:[%s3 + $0x30] sm:$0xff]
    %v156 = vld [vmem:[%s3 + $0x38] sm:$0xff]
    %v157 = vld [vmem:[%s3 + $0x40] sm:$0xff]
    %v158 = vld [vmem:[%s3 + $0x48] sm:$0xff]
    %v159 = vld [vmem:[%s3 + $0x50] sm:$0xff]
    %v160 = vld [vmem:[%s3 + $0x58] sm:$0xff]
    %v161 = vld [vmem:[%s3 + $0x60] sm:$0xff]
    %v162 = vld [vmem:[%s3 + $0x68] sm:$0xff]
    %v163 = vld [vmem:[%s3 + $0x70] sm:$0xff]
    %v164 = vld [vmem:[%s3 + $0x78] sm:$0xff]
    %v165 = vld [vmem:[%s3 + $0x80] sm:$0xff]
    %v166 = vld [vmem:[%s3 + $0x88] sm:$0xff]
    %v167 = vld [vmem:[%s3 + $0x90] sm:$0xff]
    %v168 = vld [vmem:[%s3 + $0x98] sm:$0xff]
    %v169 = vld [vmem:[%s3 + $0xa0] sm:$0xff]
    %v170 = vld [vmem:[%s3 + $0xa8] sm:$0xff]
    %v171 = vld [vmem:[%s3 + $0xb0] sm:$0xff]
    %v172 = vld [vmem:[%s3 + $0xb8] sm:$0xff]
    %v173 = vld [vmem:[%s5] sm:$0x1]
    %v175 = vlaneseq
    %v176 = vshrl.u32 %v175, 7
    %v177 = vsub.s32 0, %v176
    %v178 = vrot.slane %v173, %v177
    %vm180 = vcmask 523264
    %v182 = vsel %vm180, %v148, 0
    %184 = vmatprep.subr.mxu0 0.0
    %185 = vmatpush1.msra.mxu0 %v164
    %186 = vmatprep.subr.mxu0 0.0
    %187 = vmatpush1.msra.mxu0 %v163
    %188 = vmatprep.subr.mxu0 0.0
    %189 = vmatpush1.msra.mxu0 %v162
    %190 = vmatprep.subr.mxu0 0.0
    %191 = vmatpush1.msra.mxu0 %v161
    %192 = vmatprep.subr.mxu0 0.0
    %193 = vmatpush1.msra.mxu0 %v160
    %194 = vmatprep.subr.mxu0 0.0
    %195 = vmatpush1.msra.mxu0 %v159
    %196 = vmatprep.subr.mxu0 0.0
    %197 = vmatpush1.msra.mxu0 %v158
    %198 = vmatprep.subr.mxu0 0.0
    %199 = vmatpush1.msra.mxu0 %v157
    %200 = vmatprep.subr.mxu0 0.0
    %201 = vmatpush1.msra.mxu0 %v156
    %202 = vmatprep.subr.mxu0 0.0
    %203 = vmatpush1.msra.mxu0 %v155
    %204 = vmatprep.subr.mxu0 0.0
    %205 = vmatpush1.msra.mxu0 %v154
    %206 = vmatprep.subr.mxu0 0.0
    %207 = vmatpush1.msra.mxu0 %v153
    %208 = vmatprep.subr.mxu0 0.0
    %209 = vmatpush1.msra.mxu0 %v152
    %210 = vmatprep.subr.mxu0 0.0
    %211 = vmatpush1.msra.mxu0 %v151
    %212 = vmatprep.subr.mxu0 0.0
    %213 = vmatpush1.msra.mxu0 %v150
    %214 = vmatprep.subr.mxu0 0.0
    %215 = vmatpush1.msra.mxu0 %v149
    %216 = vmatprep.subr.mxu0 0.0
    %217 = vmatpush2.msra.mxu0 0.0
    %218 = vmatprep.subr.mxu0 0.0
    %219 = vmatpush2.msra.mxu0 0.0
    %220 = vmatprep.subr.mxu0 0.0
    %221 = vmatpush2.msra.mxu0 0.0
    %222 = vmatprep.subr.mxu0 0.0
    %223 = vmatpush2.msra.mxu0 0.0
    %224 = vmatprep.subr.mxu0 0.0
    %225 = vmatpush2.msra.mxu0 0.0
    %226 = vmatprep.subr.mxu0 0.0
    %227 = vmatpush2.msra.mxu0 0.0
    %228 = vmatprep.subr.mxu0 0.0
    %229 = vmatpush2.msra.mxu0 0.0
    %230 = vmatprep.subr.mxu0 0.0
    %231 = vmatpush2.msra.mxu0 0.0
    %232 = vmatprep.subr.mxu0 0.0
    %233 = vmatpush2.msra.mxu0 %v172
    %234 = vmatprep.subr.mxu0 0.0
    %235 = vmatpush2.msra.mxu0 %v171
    %236 = vmatprep.subr.mxu0 0.0
    %237 = vmatpush2.msra.mxu0 %v170
    %238 = vmatprep.subr.mxu0 0.0
    %239 = vmatpush2.msra.mxu0 %v169
    %240 = vmatprep.subr.mxu0 0.0
    %241 = vmatpush2.msra.mxu0 %v168
    %242 = vmatprep.subr.mxu0 0.0
    %243 = vmatpush2.msra.mxu0 %v167
    %244 = vmatprep.subr.mxu0 0.0
    %245 = vmatpush2.msra.mxu0 %v166
    %246 = vmatprep.subr.mxu0 0.0
    %247 = vmatpush2.msra.mxu0 %v165
    %248 = vmatprep.mubr.f32.mxu0 %v182
    %249 = vmatmul.mubr.f32.gmra.mxu0 %v147
    %v250 = vpop.f32.mrf.mxu0
    %v251 = vadd.f32 %v178, %v250
    %v252 = vpop.f32.mrf.mxu0
    %253 = vdwg.mxu0
    %v254 = vld [vmem:[%s7] sm:$0x1]
    %v255 = vld [vmem:[%s9] sm:$0x1]
    %v256 = vadd.f32 %v254, %v255
    %vm257 = vcmask 253952
    %258 = vst.msk [vmem:[#allocation2] sm:$0x1] %vm257, %v256
    %v259 = vld [vmem:[%s9 + $0x1] sm:$0xf]
    %v260 = vadd.f32 %v251, %v259
    %vm261 = vcmask 257024
    %262 = vst.msk [vmem:[#allocation2 + $0x1] sm:$0xf] %vm261, %v260
    %v263 = vld [vmem:[%s7] sm:$0x1]
    %v264 = vld [vmem:[%s9] sm:$0x1]
    %v265 = vadd.f32 %v263, %v264
    %266 = vst.msk [vmem:[#allocation2 + $0x5] sm:$0x1] %vm257, %v265
    %v267 = vld [vmem:[%s9 + $0x1] sm:$0xf]
    %v269 = vrot.slane %v267, 4
    %v271 = vadd.f32 %v251, %v269
    %vm272 = vcmask 261124
    %273 = vst.msk [vmem:[#allocation2 + $0x2] sm:$0xf0] %vm272, %v271
    %v274 = vld [vmem:[#allocation2] sm:$0xff]
    %v275 = vld [vmem:[#allocation2 + $0x8] sm:$0x3]
    %v276 = vld [vmem:[%s11] sm:$0x1]
    %v277 = vld [vmem:[%s13] sm:$0x1]
    %vm278 = vcmask 261120
    %v279 = vsel %vm278, %v274, 0.0
    %280 = vadd.xlane.f32.xlu0 %v279
    %v281 = vpop.xlane.xlu0 %280
    %vm282 = vcmask 254976
    %v283 = vsel %vm282, %v275, 0.0
    %284 = vadd.xlane.f32.xlu0 %v283
    %v285 = vpop.xlane.xlu0 %284
    %v286 = vrcp.pop 32.0
    %v287 = vmul.f32 %v281, %v286
    %v288 = vmul.f32 %v285, %v286
    %v289 = vsub.f32 %v274, %v287
    %v290 = vsub.f32 %v275, %v288
    %v291 = vmul.f32 %v289, %v289
    %v292 = vmul.f32 %v290, %v290
    %v293 = vsel %vm278, %v291, 0.0
    %294 = vadd.xlane.f32.xlu0 %v293
    %v295 = vpop.xlane.xlu0 %294
    %v296 = vsel %vm282, %v292, 0.0
    %297 = vadd.xlane.f32.xlu0 %v296
    %v298 = vpop.xlane.xlu0 %297
    %v299 = vmul.f32 %v295, %v286
    %v300 = vmul.f32 %v298, %v286
    %v301 = vadd.f32 %v299, 1e-06
    %v302 = vadd.f32 %v300, 1e-06
    %v303 = vrsqrt.pop %v301
    %v304 = vrsqrt.pop %v302
    %v305 = vmul.f32 %v289, %v303
    %v306 = vmul.f32 %v290, %v304
    %v308 = vlaneseq
    %v309 = vshrl.u32 %v308, 7
    %v310 = vsub.s32 0, %v309
    %v311 = vrot.slane %v276, %v310
    %v313 = vmul.f32 %v305, %v311
    %v314 = vmul.f32 %v306, %v311
    %v316 = vlaneseq
    %v317 = vshrl.u32 %v316, 7
    %v318 = vsub.s32 0, %v317
    %v319 = vrot.slane %v277, %v318
    %v321 = vadd.f32 %v313, %v319
    %v322 = vadd.f32 %v314, %v319
    %v323 = vld [vmem:[%s15] sm:$0xff]
    %v324 = vld [vmem:[%s15 + $0x8] sm:$0xff]
    %v325 = vld [vmem:[%s15 + $0x10] sm:$0xff]
    %v326 = vld [vmem:[%s15 + $0x18] sm:$0xff]
    %v327 = vld [vmem:[%s17] sm:$0x1]
    %v329 = vlaneseq
    %v330 = vshrl.u32 %v329, 7
    %v331 = vsub.s32 0, %v330
    %v332 = vrot.slane %v327, %v331
    %v335 = vsel %vm278, %v321, 0
    %v338 = vsel %vm278, %v322, 0
    %340 = vmatprep.subr.mxu0 0.0
    %341 = vmatpush1.msra.mxu0 0.0
    %342 = vmatprep.subr.mxu0 0.0
    %343 = vmatpush1.msra.mxu0 0.0
    %344 = vmatprep.subr.mxu0 0.0
    %345 = vmatpush1.msra.mxu0 0.0
    %346 = vmatprep.subr.mxu0 0.0
    %347 = vmatpush1.msra.mxu0 0.0
    %348 = vmatprep.subr.mxu0 0.0
    %349 = vmatpush1.msra.mxu0 0.0
    %350 = vmatprep.subr.mxu0 0.0
    %351 = vmatpush1.msra.mxu0 0.0
    %352 = vmatprep.subr.mxu0 0.0
    %353 = vmatpush1.msra.mxu0 0.0
    %354 = vmatprep.subr.mxu0 0.0
    %355 = vmatpush1.msra.mxu0 0.0
    %356 = vmatprep.subr.mxu0 0.0
    %357 = vmatpush1.msra.mxu0 0.0
    %358 = vmatprep.subr.mxu0 0.0
    %359 = vmatpush1.msra.mxu0 0.0
    %360 = vmatprep.subr.mxu0 0.0
    %361 = vmatpush1.msra.mxu0 0.0
    %362 = vmatprep.subr.mxu0 0.0
    %363 = vmatpush1.msra.mxu0 0.0
    %364 = vmatprep.subr.mxu0 0.0
    %365 = vmatpush1.msra.mxu0 %v326
    %366 = vmatprep.subr.mxu0 0.0
    %367 = vmatpush1.msra.mxu0 %v325
    %368 = vmatprep.subr.mxu0 0.0
    %369 = vmatpush1.msra.mxu0 %v324
    %370 = vmatprep.subr.mxu0 0.0
    %371 = vmatpush1.msra.mxu0 %v323
    %372 = vmatprep.subr.mxu0 0.0
    %373 = vmatpush2.msra.mxu0 0.0
    %374 = vmatprep.subr.mxu0 0.0
    %375 = vmatpush2.msra.mxu0 0.0
    %376 = vmatprep.subr.mxu0 0.0
    %377 = vmatpush2.msra.mxu0 0.0
    %378 = vmatprep.subr.mxu0 0.0
    %379 = vmatpush2.msra.mxu0 0.0
    %380 = vmatprep.subr.mxu0 0.0
    %381 = vmatpush2.msra.mxu0 0.0
    %382 = vmatprep.subr.mxu0 0.0
    %383 = vmatpush2.msra.mxu0 0.0
    %384 = vmatprep.subr.mxu0 0.0
    %385 = vmatpush2.msra.mxu0 0.0
    %386 = vmatprep.subr.mxu0 0.0
    %387 = vmatpush2.msra.mxu0 0.0
    %388 = vmatprep.subr.mxu0 0.0
    %389 = vmatpush2.msra.mxu0 0.0
    %390 = vmatprep.subr.mxu0 0.0
    %391 = vmatpush2.msra.mxu0 0.0
    %392 = vmatprep.subr.mxu0 0.0
    %393 = vmatpush2.msra.mxu0 0.0
    %394 = vmatprep.subr.mxu0 0.0
    %395 = vmatpush2.msra.mxu0 0.0
    %396 = vmatprep.subr.mxu0 0.0
    %397 = vmatpush2.msra.mxu0 0.0
    %398 = vmatprep.subr.mxu0 0.0
    %399 = vmatpush2.msra.mxu0 0.0
    %400 = vmatprep.subr.mxu0 0.0
    %401 = vmatpush2.msra.mxu0 0.0
    %402 = vmatprep.subr.mxu0 0.0
    %403 = vmatpush2.msra.mxu0 0.0
    %404 = vmatprep.mubr.f32.mxu0 0.0
    %405 = vmatmul.mubr.f32.gmra.mxu0 %v335
    %v406 = vpop.f32.mrf.mxu0
    %v407 = vadd.f32 %v332, %v406
    %v408 = vpop.f32.mrf.mxu0
    %409 = vmatprep.mubr.f32.mxu0 0.0
    %410 = vmatmul.mubr.f32.gmra.mxu0 %v338
    %v411 = vpop.f32.mrf.mxu0
    %v412 = vadd.f32 %v332, %v411
    %v413 = vpop.f32.mrf.mxu0
    %414 = vdwg.mxu0
    %v415 = vmul.f32 %v407, 0.35355338
    %417 = vrot.lane.b32.xlu0 %v407, 96
    %v418 = vpop.permute.xlu0 %417
    %vm419 = vcmask 64512
    %v421 = vsel %vm419, %v415, 0
    %v423 = vsel %vm419, %v418, 0
    %425 = vmatprep.subr.mxu0 0.0
    %426 = vmatpush1.xpose.msra.mxu0 0.0
    %427 = vmatprep.subr.mxu0 0.0
    %428 = vmatpush1.xpose.msra.mxu0 0.0
    %429 = vmatprep.subr.mxu0 0.0
    %430 = vmatpush1.xpose.msra.mxu0 0.0
    %431 = vmatprep.subr.mxu0 0.0
    %432 = vmatpush1.xpose.msra.mxu0 0.0
    %433 = vmatprep.subr.mxu0 0.0
    %434 = vmatpush1.xpose.msra.mxu0 0.0
    %435 = vmatprep.subr.mxu0 0.0
    %436 = vmatpush1.xpose.msra.mxu0 0.0
    %437 = vmatprep.subr.mxu0 0.0
    %438 = vmatpush1.xpose.msra.mxu0 0.0
    %439 = vmatprep.subr.mxu0 0.0
    %440 = vmatpush1.xpose.msra.mxu0 0.0
    %441 = vmatprep.subr.mxu0 0.0
    %442 = vmatpush1.xpose.msra.mxu0 0.0
    %443 = vmatprep.subr.mxu0 0.0
    %444 = vmatpush1.xpose.msra.mxu0 0.0
    %445 = vmatprep.subr.mxu0 0.0
    %446 = vmatpush1.xpose.msra.mxu0 0.0
    %447 = vmatprep.subr.mxu0 0.0
    %448 = vmatpush1.xpose.msra.mxu0 0.0
    %449 = vmatprep.subr.mxu0 0.0
    %450 = vmatpush1.xpose.msra.mxu0 0.0
    %451 = vmatprep.subr.mxu0 0.0
    %452 = vmatpush1.xpose.msra.mxu0 0.0
    %453 = vmatprep.subr.mxu0 0.0
    %454 = vmatpush1.xpose.msra.mxu0 0.0
    %455 = vmatprep.subr.mxu0 0.0
    %456 = vmatpush1.xpose.msra.mxu0 %v423
    %457 = vmatprep.subr.mxu0 0.0
    %458 = vmatpush2.xpose.msra.mxu0 0.0
    %459 = vmatprep.subr.mxu0 0.0
    %460 = vmatpush2.xpose.msra.mxu0 0.0
    %461 = vmatprep.subr.mxu0 0.0
    %462 = vmatpush2.xpose.msra.mxu0 0.0
    %463 = vmatprep.subr.mxu0 0.0
    %464 = vmatpush2.xpose.msra.mxu0 0.0
    %465 = vmatprep.subr.mxu0 0.0
    %466 = vmatpush2.xpose.msra.mxu0 0.0
    %467 = vmatprep.subr.mxu0 0.0
    %468 = vmatpush2.xpose.msra.mxu0 0.0
    %469 = vmatprep.subr.mxu0 0.0
    %470 = vmatpush2.xpose.msra.mxu0 0.0
    %471 = vmatprep.subr.mxu0 0.0
    %472 = vmatpush2.xpose.msra.mxu0 0.0
    %473 = vmatprep.subr.mxu0 0.0
    %474 = vmatpush2.xpose.msra.mxu0 0.0
    %475 = vmatprep.subr.mxu0 0.0
    %476 = vmatpush2.xpose.msra.mxu0 0.0
    %477 = vmatprep.subr.mxu0 0.0
    %478 = vmatpush2.xpose.msra.mxu0 0.0
    %479 = vmatprep.subr.mxu0 0.0
    %480 = vmatpush2.xpose.msra.mxu0 0.0
    %481 = vmatprep.subr.mxu0 0.0
    %482 = vmatpush2.xpose.msra.mxu0 0.0
    %483 = vmatprep.subr.mxu0 0.0
    %484 = vmatpush2.xpose.msra.mxu0 0.0
    %485 = vmatprep.subr.mxu0 0.0
    %486 = vmatpush2.xpose.msra.mxu0 0.0
    %487 = vmatprep.subr.mxu0 0.0
    %488 = vmatpush2.xpose.msra.mxu0 0.0
    %489 = vmatprep.mubr.f32.mxu0 0.0
    %490 = vmatmul.mubr.f32.gmra.mxu0 %v421
    %v491 = vpop.f32.mrf.mxu0
    %v492 = vadd.f32 0.0, %v491
    %v493 = vpop.f32.mrf.mxu0
    %494 = vdwg.mxu0
    %vm495 = vcmask 36864
    %v496 = vsel %vm495, %v492, -inf
    %497 = vmax.xlane.f32.xlu0 %v496
    %v498 = vpop.xlane.xlu0 %497
    %v499 = vsub.f32 %v492, %v498
    %v500 = vmul.f32 %v499, 1.442695
    %v501 = vpow.pop %v500
    %v502 = vsel %vm495, %v501, 0.0
    %503 = vadd.xlane.f32.xlu0 %v502
    %v504 = vpop.xlane.xlu0 %503
    %v505 = vrcp.pop %v504
    %v506 = vmul.f32 %v501, %v505
    %507 = vrot.lane.b32.xlu0 %v407, 64
    %v508 = vpop.permute.xlu0 %507
    %vm509 = vcmask 39936
    %v511 = vsel %vm509, %v506, 0
    %vm513 = vcmask 1044480
    %v514 = vsel %vm513, %v508, 0
    %516 = vmatprep.subr.mxu0 0.0
    %517 = vmatpush1.msra.mxu0 0.0
    %518 = vmatprep.subr.mxu0 0.0
    %519 = vmatpush1.msra.mxu0 0.0
    %520 = vmatprep.subr.mxu0 0.0
    %521 = vmatpush1.msra.mxu0 0.0
    %522 = vmatprep.subr.mxu0 0.0
    %523 = vmatpush1.msra.mxu0 0.0
    %524 = vmatprep.subr.mxu0 0.0
    %525 = vmatpush1.msra.mxu0 0.0
    %526 = vmatprep.subr.mxu0 0.0
    %527 = vmatpush1.msra.mxu0 0.0
    %528 = vmatprep.subr.mxu0 0.0
    %529 = vmatpush1.msra.mxu0 0.0
    %530 = vmatprep.subr.mxu0 0.0
    %531 = vmatpush1.msra.mxu0 0.0
    %532 = vmatprep.subr.mxu0 0.0
    %533 = vmatpush1.msra.mxu0 0.0
    %534 = vmatprep.subr.mxu0 0.0
    %535 = vmatpush1.msra.mxu0 0.0
    %536 = vmatprep.subr.mxu0 0.0
    %537 = vmatpush1.msra.mxu0 0.0
    %538 = vmatprep.subr.mxu0 0.0
    %539 = vmatpush1.msra.mxu0 0.0
    %540 = vmatprep.subr.mxu0 0.0
    %541 = vmatpush1.msra.mxu0 0.0
    %542 = vmatprep.subr.mxu0 0.0
    %543 = vmatpush1.msra.mxu0 0.0
    %544 = vmatprep.subr.mxu0 0.0
    %545 = vmatpush1.msra.mxu0 0.0
    %546 = vmatprep.subr.mxu0 0.0
    %547 = vmatpush1.msra.mxu0 %v514
    %548 = vmatprep.subr.mxu0 0.0
    %549 = vmatpush2.msra.mxu0 0.0
    %550 = vmatprep.subr.mxu0 0.0
    %551 = vmatpush2.msra.mxu0 0.0
    %552 = vmatprep.subr.mxu0 0.0
    %553 = vmatpush2.msra.mxu0 0.0
    %554 = vmatprep.subr.mxu0 0.0
    %555 = vmatpush2.msra.mxu0 0.0
    %556 = vmatprep.subr.mxu0 0.0
    %557 = vmatpush2.msra.mxu0 0.0
    %558 = vmatprep.subr.mxu0 0.0
    %559 = vmatpush2.msra.mxu0 0.0
    %560 = vmatprep.subr.mxu0 0.0
    %561 = vmatpush2.msra.mxu0 0.0
    %562 = vmatprep.subr.mxu0 0.0
    %563 = vmatpush2.msra.mxu0 0.0
    %564 = vmatprep.subr.mxu0 0.0
    %565 = vmatpush2.msra.mxu0 0.0
    %566 = vmatprep.subr.mxu0 0.0
    %567 = vmatpush2.msra.mxu0 0.0
    %568 = vmatprep.subr.mxu0 0.0
    %569 = vmatpush2.msra.mxu0 0.0
    %570 = vmatprep.subr.mxu0 0.0
    %571 = vmatpush2.msra.mxu0 0.0
    %572 = vmatprep.subr.mxu0 0.0
    %573 = vmatpush2.msra.mxu0 0.0
    %574 = vmatprep.subr.mxu0 0.0
    %575 = vmatpush2.msra.mxu0 0.0
    %576 = vmatprep.subr.mxu0 0.0
    %577 = vmatpush2.msra.mxu0 0.0
    %578 = vmatprep.subr.mxu0 0.0
    %579 = vmatpush2.msra.mxu0 0.0
    %580 = vmatprep.mubr.f32.mxu0 0.0
    %581 = vmatmul.mubr.f32.gmra.mxu0 %v511
    %v582 = vpop.f32.mrf.mxu0
    %v583 = vadd.f32 0.0, %v582
    %v584 = vpop.f32.mrf.mxu0
    %585 = vdwg.mxu0
    %v586 = vld [vmem:[%s19] sm:$0xff]
    %587 = vrot.lane.b32.xlu0 %v415, 120
    %v588 = vpop.permute.xlu0 %587
    %589 = vrot.lane.b32.xlu0 %v407, 88
    %v590 = vpop.permute.xlu0 %589
    %v591 = vsel %vm419, %v588, 0
    %v593 = vsel %vm419, %v590, 0
    %595 = vmatprep.subr.mxu0 0.0
    %596 = vmatpush1.xpose.msra.mxu0 0.0
    %597 = vmatprep.subr.mxu0 0.0
    %598 = vmatpush1.xpose.msra.mxu0 0.0
    %599 = vmatprep.subr.mxu0 0.0
    %600 = vmatpush1.xpose.msra.mxu0 0.0
    %601 = vmatprep.subr.mxu0 0.0
    %602 = vmatpush1.xpose.msra.mxu0 0.0
    %603 = vmatprep.subr.mxu0 0.0
    %604 = vmatpush1.xpose.msra.mxu0 0.0
    %605 = vmatprep.subr.mxu0 0.0
    %606 = vmatpush1.xpose.msra.mxu0 0.0
    %607 = vmatprep.subr.mxu0 0.0
    %608 = vmatpush1.xpose.msra.mxu0 0.0
    %609 = vmatprep.subr.mxu0 0.0
    %610 = vmatpush1.xpose.msra.mxu0 0.0
    %611 = vmatprep.subr.mxu0 0.0
    %612 = vmatpush1.xpose.msra.mxu0 0.0
    %613 = vmatprep.subr.mxu0 0.0
    %614 = vmatpush1.xpose.msra.mxu0 0.0
    %615 = vmatprep.subr.mxu0 0.0
    %616 = vmatpush1.xpose.msra.mxu0 0.0
    %617 = vmatprep.subr.mxu0 0.0
    %618 = vmatpush1.xpose.msra.mxu0 0.0
    %619 = vmatprep.subr.mxu0 0.0
    %620 = vmatpush1.xpose.msra.mxu0 0.0
    %621 = vmatprep.subr.mxu0 0.0
    %622 = vmatpush1.xpose.msra.mxu0 0.0
    %623 = vmatprep.subr.mxu0 0.0
    %624 = vmatpush1.xpose.msra.mxu0 0.0
    %625 = vmatprep.subr.mxu0 0.0
    %626 = vmatpush1.xpose.msra.mxu0 %v593
    %627 = vmatprep.subr.mxu0 0.0
    %628 = vmatpush2.xpose.msra.mxu0 0.0
    %629 = vmatprep.subr.mxu0 0.0
    %630 = vmatpush2.xpose.msra.mxu0 0.0
    %631 = vmatprep.subr.mxu0 0.0
    %632 = vmatpush2.xpose.msra.mxu0 0.0
    %633 = vmatprep.subr.mxu0 0.0
    %634 = vmatpush2.xpose.msra.mxu0 0.0
    %635 = vmatprep.subr.mxu0 0.0
    %636 = vmatpush2.xpose.msra.mxu0 0.0
    %637 = vmatprep.subr.mxu0 0.0
    %638 = vmatpush2.xpose.msra.mxu0 0.0
    %639 = vmatprep.subr.mxu0 0.0
    %640 = vmatpush2.xpose.msra.mxu0 0.0
    %641 = vmatprep.subr.mxu0 0.0
    %642 = vmatpush2.xpose.msra.mxu0 0.0
    %643 = vmatprep.subr.mxu0 0.0
    %644 = vmatpush2.xpose.msra.mxu0 0.0
    %645 = vmatprep.subr.mxu0 0.0
    %646 = vmatpush2.xpose.msra.mxu0 0.0
    %647 = vmatprep.subr.mxu0 0.0
    %648 = vmatpush2.xpose.msra.mxu0 0.0
    %649 = vmatprep.subr.mxu0 0.0
    %650 = vmatpush2.xpose.msra.mxu0 0.0
    %651 = vmatprep.subr.mxu0 0.0
    %652 = vmatpush2.xpose.msra.mxu0 0.0
    %653 = vmatprep.subr.mxu0 0.0
    %654 = vmatpush2.xpose.msra.mxu0 0.0
    %655 = vmatprep.subr.mxu0 0.0
    %656 = vmatpush2.xpose.msra.mxu0 0.0
    %657 = vmatprep.subr.mxu0 0.0
    %658 = vmatpush2.xpose.msra.mxu0 0.0
    %659 = vmatprep.mubr.f32.mxu0 0.0
    %660 = vmatmul.mubr.f32.gmra.mxu0 %v591
    %v661 = vpop.f32.mrf.mxu0
    %v662 = vadd.f32 0.0, %v661
    %v663 = vpop.f32.mrf.mxu0
    %664 = vdwg.mxu0
    %v665 = vsel %vm495, %v662, -inf
    %666 = vmax.xlane.f32.xlu0 %v665
    %v667 = vpop.xlane.xlu0 %666
    %v668 = vsub.f32 %v662, %v667
    %v669 = vmul.f32 %v668, 1.442695
    %v670 = vpow.pop %v669
    %v671 = vsel %vm495, %v670, 0.0
    %672 = vadd.xlane.f32.xlu0 %v671
    %v673 = vpop.xlane.xlu0 %672
    %v674 = vrcp.pop %v673
    %v675 = vmul.f32 %v670, %v674
    %676 = vrot.lane.b32.xlu0 %v407, 56
    %v677 = vpop.permute.xlu0 %676
    %v679 = vsel %vm509, %v675, 0
    %v681 = vsel %vm513, %v677, 0
    %683 = vmatprep.subr.mxu0 0.0
    %684 = vmatpush1.msra.mxu0 0.0
    %685 = vmatprep.subr.mxu0 0.0
    %686 = vmatpush1.msra.mxu0 0.0
    %687 = vmatprep.subr.mxu0 0.0
    %688 = vmatpush1.msra.mxu0 0.0
    %689 = vmatprep.subr.mxu0 0.0
    %690 = vmatpush1.msra.mxu0 0.0
    %691 = vmatprep.subr.mxu0 0.0
    %692 = vmatpush1.msra.mxu0 0.0
    %693 = vmatprep.subr.mxu0 0.0
    %694 = vmatpush1.msra.mxu0 0.0
    %695 = vmatprep.subr.mxu0 0.0
    %696 = vmatpush1.msra.mxu0 0.0
    %697 = vmatprep.subr.mxu0 0.0
    %698 = vmatpush1.msra.mxu0 0.0
    %699 = vmatprep.subr.mxu0 0.0
    %700 = vmatpush1.msra.mxu0 0.0
    %701 = vmatprep.subr.mxu0 0.0
    %702 = vmatpush1.msra.mxu0 0.0
    %703 = vmatprep.subr.mxu0 0.0
    %704 = vmatpush1.msra.mxu0 0.0
    %705 = vmatprep.subr.mxu0 0.0
    %706 = vmatpush1.msra.mxu0 0.0
    %707 = vmatprep.subr.mxu0 0.0
    %708 = vmatpush1.msra.mxu0 0.0
    %709 = vmatprep.subr.mxu0 0.0
    %710 = vmatpush1.msra.mxu0 0.0
    %711 = vmatprep.subr.mxu0 0.0
    %712 = vmatpush1.msra.mxu0 0.0
    %713 = vmatprep.subr.mxu0 0.0
    %714 = vmatpush1.msra.mxu0 %v681
    %715 = vmatprep.subr.mxu0 0.0
    %716 = vmatpush2.msra.mxu0 0.0
    %717 = vmatprep.subr.mxu0 0.0
    %718 = vmatpush2.msra.mxu0 0.0
    %719 = vmatprep.subr.mxu0 0.0
    %720 = vmatpush2.msra.mxu0 0.0
    %721 = vmatprep.subr.mxu0 0.0
    %722 = vmatpush2.msra.mxu0 0.0
    %723 = vmatprep.subr.mxu0 0.0
    %724 = vmatpush2.msra.mxu0 0.0
    %725 = vmatprep.subr.mxu0 0.0
    %726 = vmatpush2.msra.mxu0 0.0
    %727 = vmatprep.subr.mxu0 0.0
    %728 = vmatpush2.msra.mxu0 0.0
    %729 = vmatprep.subr.mxu0 0.0
    %730 = vmatpush2.msra.mxu0 0.0
    %731 = vmatprep.subr.mxu0 0.0
    %732 = vmatpush2.msra.mxu0 0.0
    %733 = vmatprep.subr.mxu0 0.0
    %734 = vmatpush2.msra.mxu0 0.0
    %735 = vmatprep.subr.mxu0 0.0
    %736 = vmatpush2.msra.mxu0 0.0
    %737 = vmatprep.subr.mxu0 0.0
    %738 = vmatpush2.msra.mxu0 0.0
    %739 = vmatprep.subr.mxu0 0.0
    %740 = vmatpush2.msra.mxu0 0.0
    %741 = vmatprep.subr.mxu0 0.0
    %742 = vmatpush2.msra.mxu0 0.0
    %743 = vmatprep.subr.mxu0 0.0
    %744 = vmatpush2.msra.mxu0 0.0
    %745 = vmatprep.subr.mxu0 0.0
    %746 = vmatpush2.msra.mxu0 0.0
    %747 = vmatprep.mubr.f32.mxu0 0.0
    %748 = vmatmul.mubr.f32.gmra.mxu0 %v679
    %v749 = vpop.f32.mrf.mxu0
    %v750 = vadd.f32 0.0, %v749
    %v751 = vpop.f32.mrf.mxu0
    %752 = vdwg.mxu0
    %v753 = vld [vmem:[%s19 + $0x8] sm:$0xff]
    %v755 = vsel %vm419, %v750, 0
    %757 = vmatprep.subr.mxu0 0.0
    %758 = vmatpush1.msra.mxu0 0.0
    %759 = vmatprep.subr.mxu0 0.0
    %760 = vmatpush1.msra.mxu0 0.0
    %761 = vmatprep.subr.mxu0 0.0
    %762 = vmatpush1.msra.mxu0 0.0
    %763 = vmatprep.subr.mxu0 0.0
    %764 = vmatpush1.msra.mxu0 0.0
    %765 = vmatprep.subr.mxu0 0.0
    %766 = vmatpush1.msra.mxu0 0.0
    %767 = vmatprep.subr.mxu0 0.0
    %768 = vmatpush1.msra.mxu0 0.0
    %769 = vmatprep.subr.mxu0 0.0
    %770 = vmatpush1.msra.mxu0 0.0
    %771 = vmatprep.subr.mxu0 0.0
    %772 = vmatpush1.msra.mxu0 0.0
    %773 = vmatprep.subr.mxu0 0.0
    %774 = vmatpush1.msra.mxu0 0.0
    %775 = vmatprep.subr.mxu0 0.0
    %776 = vmatpush1.msra.mxu0 0.0
    %777 = vmatprep.subr.mxu0 0.0
    %778 = vmatpush1.msra.mxu0 0.0
    %779 = vmatprep.subr.mxu0 0.0
    %780 = vmatpush1.msra.mxu0 0.0
    %781 = vmatprep.subr.mxu0 0.0
    %782 = vmatpush1.msra.mxu0 0.0
    %783 = vmatprep.subr.mxu0 0.0
    %784 = vmatpush1.msra.mxu0 0.0
    %785 = vmatprep.subr.mxu0 0.0
    %786 = vmatpush1.msra.mxu0 0.0
    %787 = vmatprep.subr.mxu0 0.0
    %788 = vmatpush1.msra.mxu0 %v753
    %789 = vmatprep.subr.mxu0 0.0
    %790 = vmatpush2.msra.mxu0 0.0
    %791 = vmatprep.subr.mxu0 0.0
    %792 = vmatpush2.msra.mxu0 0.0
    %793 = vmatprep.subr.mxu0 0.0
    %794 = vmatpush2.msra.mxu0 0.0
    %795 = vmatprep.subr.mxu0 0.0
    %796 = vmatpush2.msra.mxu0 0.0
    %797 = vmatprep.subr.mxu0 0.0
    %798 = vmatpush2.msra.mxu0 0.0
    %799 = vmatprep.subr.mxu0 0.0
    %800 = vmatpush2.msra.mxu0 0.0
    %801 = vmatprep.subr.mxu0 0.0
    %802 = vmatpush2.msra.mxu0 0.0
    %803 = vmatprep.subr.mxu0 0.0
    %804 = vmatpush2.msra.mxu0 0.0
    %805 = vmatprep.subr.mxu0 0.0
    %806 = vmatpush2.msra.mxu0 0.0
    %807 = vmatprep.subr.mxu0 0.0
    %808 = vmatpush2.msra.mxu0 0.0
    %809 = vmatprep.subr.mxu0 0.0
    %810 = vmatpush2.msra.mxu0 0.0
    %811 = vmatprep.subr.mxu0 0.0
    %812 = vmatpush2.msra.mxu0 0.0
    %813 = vmatprep.subr.mxu0 0.0
    %814 = vmatpush2.msra.mxu0 0.0
    %815 = vmatprep.subr.mxu0 0.0
    %816 = vmatpush2.msra.mxu0 0.0
    %817 = vmatprep.subr.mxu0 0.0
    %818 = vmatpush2.msra.mxu0 0.0
    %819 = vmatprep.subr.mxu0 0.0
    %820 = vmatpush2.msra.mxu0 0.0
    %821 = vmatprep.mubr.f32.mxu0 0.0
    %822 = vmatmul.mubr.f32.gmra.mxu0 %v755
    %v823 = vpop.f32.mrf.mxu0
    %v824 = vadd.f32 0.0, %v823
    %v825 = vpop.f32.mrf.mxu0
    %826 = vdwg.mxu0
    %v828 = vsel %vm419, %v583, 0
    %830 = vmatprep.subr.mxu0 0.0
    %831 = vmatpush1.msra.mxu0 0.0
    %832 = vmatprep.subr.mxu0 0.0
    %833 = vmatpush1.msra.mxu0 0.0
    %834 = vmatprep.subr.mxu0 0.0
    %835 = vmatpush1.msra.mxu0 0.0
    %836 = vmatprep.subr.mxu0 0.0
    %837 = vmatpush1.msra.mxu0 0.0
    %838 = vmatprep.subr.mxu0 0.0
    %839 = vmatpush1.msra.mxu0 0.0
    %840 = vmatprep.subr.mxu0 0.0
    %841 = vmatpush1.msra.mxu0 0.0
    %842 = vmatprep.subr.mxu0 0.0
    %843 = vmatpush1.msra.mxu0 0.0
    %844 = vmatprep.subr.mxu0 0.0
    %845 = vmatpush1.msra.mxu0 0.0
    %846 = vmatprep.subr.mxu0 0.0
    %847 = vmatpush1.msra.mxu0 0.0
    %848 = vmatprep.subr.mxu0 0.0
    %849 = vmatpush1.msra.mxu0 0.0
    %850 = vmatprep.subr.mxu0 0.0
    %851 = vmatpush1.msra.mxu0 0.0
    %852 = vmatprep.subr.mxu0 0.0
    %853 = vmatpush1.msra.mxu0 0.0
    %854 = vmatprep.subr.mxu0 0.0
    %855 = vmatpush1.msra.mxu0 0.0
    %856 = vmatprep.subr.mxu0 0.0
    %857 = vmatpush1.msra.mxu0 0.0
    %858 = vmatprep.subr.mxu0 0.0
    %859 = vmatpush1.msra.mxu0 0.0
    %860 = vmatprep.subr.mxu0 0.0
    %861 = vmatpush1.msra.mxu0 %v586
    %862 = vmatprep.subr.mxu0 0.0
    %863 = vmatpush2.msra.mxu0 0.0
    %864 = vmatprep.subr.mxu0 0.0
    %865 = vmatpush2.msra.mxu0 0.0
    %866 = vmatprep.subr.mxu0 0.0
    %867 = vmatpush2.msra.mxu0 0.0
    %868 = vmatprep.subr.mxu0 0.0
    %869 = vmatpush2.msra.mxu0 0.0
    %870 = vmatprep.subr.mxu0 0.0
    %871 = vmatpush2.msra.mxu0 0.0
    %872 = vmatprep.subr.mxu0 0.0
    %873 = vmatpush2.msra.mxu0 0.0
    %874 = vmatprep.subr.mxu0 0.0
    %875 = vmatpush2.msra.mxu0 0.0
    %876 = vmatprep.subr.mxu0 0.0
    %877 = vmatpush2.msra.mxu0 0.0
    %878 = vmatprep.subr.mxu0 0.0
    %879 = vmatpush2.msra.mxu0 0.0
    %880 = vmatprep.subr.mxu0 0.0
    %881 = vmatpush2.msra.mxu0 0.0
    %882 = vmatprep.subr.mxu0 0.0
    %883 = vmatpush2.msra.mxu0 0.0
    %884 = vmatprep.subr.mxu0 0.0
    %885 = vmatpush2.msra.mxu0 0.0
    %886 = vmatprep.subr.mxu0 0.0
    %887 = vmatpush2.msra.mxu0 0.0
    %888 = vmatprep.subr.mxu0 0.0
    %889 = vmatpush2.msra.mxu0 0.0
    %890 = vmatprep.subr.mxu0 0.0
    %891 = vmatpush2.msra.mxu0 0.0
    %892 = vmatprep.subr.mxu0 0.0
    %893 = vmatpush2.msra.mxu0 0.0
    %894 = vmatprep.mubr.f32.mxu0 0.0
    %895 = vmatmul.mubr.f32.gmra.mxu0 %v828
    %v896 = vpop.f32.mrf.mxu0
    %v897 = vadd.f32 %v824, %v896
    %v898 = vpop.f32.mrf.mxu0
    %899 = vdwg.mxu0
    %900 = vrot.lane.b32.xlu0 %v415, 112
    %v901 = vpop.permute.xlu0 %900
    %902 = vrot.lane.b32.xlu0 %v407, 80
    %v903 = vpop.permute.xlu0 %902
    %v904 = vsel %vm419, %v901, 0
    %v906 = vsel %vm419, %v903, 0
    %908 = vmatprep.subr.mxu0 0.0
    %909 = vmatpush1.xpose.msra.mxu0 0.0
    %910 = vmatprep.subr.mxu0 0.0
    %911 = vmatpush1.xpose.msra.mxu0 0.0
    %912 = vmatprep.subr.mxu0 0.0
    %913 = vmatpush1.xpose.msra.mxu0 0.0
    %914 = vmatprep.subr.mxu0 0.0
    %915 = vmatpush1.xpose.msra.mxu0 0.0
    %916 = vmatprep.subr.mxu0 0.0
    %917 = vmatpush1.xpose.msra.mxu0 0.0
    %918 = vmatprep.subr.mxu0 0.0
    %919 = vmatpush1.xpose.msra.mxu0 0.0
    %920 = vmatprep.subr.mxu0 0.0
    %921 = vmatpush1.xpose.msra.mxu0 0.0
    %922 = vmatprep.subr.mxu0 0.0
    %923 = vmatpush1.xpose.msra.mxu0 0.0
    %924 = vmatprep.subr.mxu0 0.0
    %925 = vmatpush1.xpose.msra.mxu0 0.0
    %926 = vmatprep.subr.mxu0 0.0
    %927 = vmatpush1.xpose.msra.mxu0 0.0
    %928 = vmatprep.subr.mxu0 0.0
    %929 = vmatpush1.xpose.msra.mxu0 0.0
    %930 = vmatprep.subr.mxu0 0.0
    %931 = vmatpush1.xpose.msra.mxu0 0.0
    %932 = vmatprep.subr.mxu0 0.0
    %933 = vmatpush1.xpose.msra.mxu0 0.0
    %934 = vmatprep.subr.mxu0 0.0
    %935 = vmatpush1.xpose.msra.mxu0 0.0
    %936 = vmatprep.subr.mxu0 0.0
    %937 = vmatpush1.xpose.msra.mxu0 0.0
    %938 = vmatprep.subr.mxu0 0.0
    %939 = vmatpush1.xpose.msra.mxu0 %v906
    %940 = vmatprep.subr.mxu0 0.0
    %941 = vmatpush2.xpose.msra.mxu0 0.0
    %942 = vmatprep.subr.mxu0 0.0
    %943 = vmatpush2.xpose.msra.mxu0 0.0
    %944 = vmatprep.subr.mxu0 0.0
    %945 = vmatpush2.xpose.msra.mxu0 0.0
    %946 = vmatprep.subr.mxu0 0.0
    %947 = vmatpush2.xpose.msra.mxu0 0.0
    %948 = vmatprep.subr.mxu0 0.0
    %949 = vmatpush2.xpose.msra.mxu0 0.0
    %950 = vmatprep.subr.mxu0 0.0
    %951 = vmatpush2.xpose.msra.mxu0 0.0
    %952 = vmatprep.subr.mxu0 0.0
    %953 = vmatpush2.xpose.msra.mxu0 0.0
    %954 = vmatprep.subr.mxu0 0.0
    %955 = vmatpush2.xpose.msra.mxu0 0.0
    %956 = vmatprep.subr.mxu0 0.0
    %957 = vmatpush2.xpose.msra.mxu0 0.0
    %958 = vmatprep.subr.mxu0 0.0
    %959 = vmatpush2.xpose.msra.mxu0 0.0
    %960 = vmatprep.subr.mxu0 0.0
    %961 = vmatpush2.xpose.msra.mxu0 0.0
    %962 = vmatprep.subr.mxu0 0.0
    %963 = vmatpush2.xpose.msra.mxu0 0.0
    %964 = vmatprep.subr.mxu0 0.0
    %965 = vmatpush2.xpose.msra.mxu0 0.0
    %966 = vmatprep.subr.mxu0 0.0
    %967 = vmatpush2.xpose.msra.mxu0 0.0
    %968 = vmatprep.subr.mxu0 0.0
    %969 = vmatpush2.xpose.msra.mxu0 0.0
    %970 = vmatprep.subr.mxu0 0.0
    %971 = vmatpush2.xpose.msra.mxu0 0.0
    %972 = vmatprep.mubr.f32.mxu0 0.0
    %973 = vmatmul.mubr.f32.gmra.mxu0 %v904
    %v974 = vpop.f32.mrf.mxu0
    %v975 = vadd.f32 0.0, %v974
    %v976 = vpop.f32.mrf.mxu0
    %977 = vdwg.mxu0
    %v978 = vsel %vm495, %v975, -inf
    %979 = vmax.xlane.f32.xlu0 %v978
    %v980 = vpop.xlane.xlu0 %979
    %v981 = vsub.f32 %v975, %v980
    %v982 = vmul.f32 %v981, 1.442695
    %v983 = vpow.pop %v982
    %v984 = vsel %vm495, %v983, 0.0
    %985 = vadd.xlane.f32.xlu0 %v984
    %v986 = vpop.xlane.xlu0 %985
    %v987 = vrcp.pop %v986
    %v988 = vmul.f32 %v983, %v987
    %989 = vrot.lane.b32.xlu0 %v407, 48
    %v990 = vpop.permute.xlu0 %989
    %v992 = vsel %vm509, %v988, 0
    %v994 = vsel %vm513, %v990, 0
    %996 = vmatprep.subr.mxu0 0.0
    %997 = vmatpush1.msra.mxu0 0.0
    %998 = vmatprep.subr.mxu0 0.0
    %999 = vmatpush1.msra.mxu0 0.0
    %1000 = vmatprep.subr.mxu0 0.0
    %1001 = vmatpush1.msra.mxu0 0.0
    %1002 = vmatprep.subr.mxu0 0.0
    %1003 = vmatpush1.msra.mxu0 0.0
    %1004 = vmatprep.subr.mxu0 0.0
    %1005 = vmatpush1.msra.mxu0 0.0
    %1006 = vmatprep.subr.mxu0 0.0
    %1007 = vmatpush1.msra.mxu0 0.0
    %1008 = vmatprep.subr.mxu0 0.0
    %1009 = vmatpush1.msra.mxu0 0.0
    %1010 = vmatprep.subr.mxu0 0.0
    %1011 = vmatpush1.msra.mxu0 0.0
    %1012 = vmatprep.subr.mxu0 0.0
    %1013 = vmatpush1.msra.mxu0 0.0
    %1014 = vmatprep.subr.mxu0 0.0
    %1015 = vmatpush1.msra.mxu0 0.0
    %1016 = vmatprep.subr.mxu0 0.0
    %1017 = vmatpush1.msra.mxu0 0.0
    %1018 = vmatprep.subr.mxu0 0.0
    %1019 = vmatpush1.msra.mxu0 0.0
    %1020 = vmatprep.subr.mxu0 0.0
    %1021 = vmatpush1.msra.mxu0 0.0
    %1022 = vmatprep.subr.mxu0 0.0
    %1023 = vmatpush1.msra.mxu0 0.0
    %1024 = vmatprep.subr.mxu0 0.0
    %1025 = vmatpush1.msra.mxu0 0.0
    %1026 = vmatprep.subr.mxu0 0.0
    %1027 = vmatpush1.msra.mxu0 %v994
    %1028 = vmatprep.subr.mxu0 0.0
    %1029 = vmatpush2.msra.mxu0 0.0
    %1030 = vmatprep.subr.mxu0 0.0
    %1031 = vmatpush2.msra.mxu0 0.0
    %1032 = vmatprep.subr.mxu0 0.0
    %1033 = vmatpush2.msra.mxu0 0.0
    %1034 = vmatprep.subr.mxu0 0.0
    %1035 = vmatpush2.msra.mxu0 0.0
    %1036 = vmatprep.subr.mxu0 0.0
    %1037 = vmatpush2.msra.mxu0 0.0
    %1038 = vmatprep.subr.mxu0 0.0
    %1039 = vmatpush2.msra.mxu0 0.0
    %1040 = vmatprep.subr.mxu0 0.0
    %1041 = vmatpush2.msra.mxu0 0.0
    %1042 = vmatprep.subr.mxu0 0.0
    %1043 = vmatpush2.msra.mxu0 0.0
    %1044 = vmatprep.subr.mxu0 0.0
    %1045 = vmatpush2.msra.mxu0 0.0
    %1046 = vmatprep.subr.mxu0 0.0
    %1047 = vmatpush2.msra.mxu0 0.0
    %1048 = vmatprep.subr.mxu0 0.0
    %1049 = vmatpush2.msra.mxu0 0.0
    %1050 = vmatprep.subr.mxu0 0.0
    %1051 = vmatpush2.msra.mxu0 0.0
    %1052 = vmatprep.subr.mxu0 0.0
    %1053 = vmatpush2.msra.mxu0 0.0
    %1054 = vmatprep.subr.mxu0 0.0
    %1055 = vmatpush2.msra.mxu0 0.0
    %1056 = vmatprep.subr.mxu0 0.0
    %1057 = vmatpush2.msra.mxu0 0.0
    %1058 = vmatprep.subr.mxu0 0.0
    %1059 = vmatpush2.msra.mxu0 0.0
    %1060 = vmatprep.mubr.f32.mxu0 0.0
    %1061 = vmatmul.mubr.f32.gmra.mxu0 %v992
    %v1062 = vpop.f32.mrf.mxu0
    %v1063 = vadd.f32 0.0, %v1062
    %v1064 = vpop.f32.mrf.mxu0
    %1065 = vdwg.mxu0
    %v1066 = vld [vmem:[%s19 + $0x10] sm:$0xff]
    %v1068 = vsel %vm419, %v1063, 0
    %1070 = vmatprep.subr.mxu0 0.0
    %1071 = vmatpush1.msra.mxu0 0.0
    %1072 = vmatprep.subr.mxu0 0.0
    %1073 = vmatpush1.msra.mxu0 0.0
    %1074 = vmatprep.subr.mxu0 0.0
    %1075 = vmatpush1.msra.mxu0 0.0
    %1076 = vmatprep.subr.mxu0 0.0
    %1077 = vmatpush1.msra.mxu0 0.0
    %1078 = vmatprep.subr.mxu0 0.0
    %1079 = vmatpush1.msra.mxu0 0.0
    %1080 = vmatprep.subr.mxu0 0.0
    %1081 = vmatpush1.msra.mxu0 0.0
    %1082 = vmatprep.subr.mxu0 0.0
    %1083 = vmatpush1.msra.mxu0 0.0
    %1084 = vmatprep.subr.mxu0 0.0
    %1085 = vmatpush1.msra.mxu0 0.0
    %1086 = vmatprep.subr.mxu0 0.0
    %1087 = vmatpush1.msra.mxu0 0.0
    %1088 = vmatprep.subr.mxu0 0.0
    %1089 = vmatpush1.msra.mxu0 0.0
    %1090 = vmatprep.subr.mxu0 0.0
    %1091 = vmatpush1.msra.mxu0 0.0
    %1092 = vmatprep.subr.mxu0 0.0
    %1093 = vmatpush1.msra.mxu0 0.0
    %1094 = vmatprep.subr.mxu0 0.0
    %1095 = vmatpush1.msra.mxu0 0.0
    %1096 = vmatprep.subr.mxu0 0.0
    %1097 = vmatpush1.msra.mxu0 0.0
    %1098 = vmatprep.subr.mxu0 0.0
    %1099 = vmatpush1.msra.mxu0 0.0
    %1100 = vmatprep.subr.mxu0 0.0
    %1101 = vmatpush1.msra.mxu0 %v1066
    %1102 = vmatprep.subr.mxu0 0.0
    %1103 = vmatpush2.msra.mxu0 0.0
    %1104 = vmatprep.subr.mxu0 0.0
    %1105 = vmatpush2.msra.mxu0 0.0
    %1106 = vmatprep.subr.mxu0 0.0
    %1107 = vmatpush2.msra.mxu0 0.0
    %1108 = vmatprep.subr.mxu0 0.0
    %1109 = vmatpush2.msra.mxu0 0.0
    %1110 = vmatprep.subr.mxu0 0.0
    %1111 = vmatpush2.msra.mxu0 0.0
    %1112 = vmatprep.subr.mxu0 0.0
    %1113 = vmatpush2.msra.mxu0 0.0
    %1114 = vmatprep.subr.mxu0 0.0
    %1115 = vmatpush2.msra.mxu0 0.0
    %1116 = vmatprep.subr.mxu0 0.0
    %1117 = vmatpush2.msra.mxu0 0.0
    %1118 = vmatprep.subr.mxu0 0.0
    %1119 = vmatpush2.msra.mxu0 0.0
    %1120 = vmatprep.subr.mxu0 0.0
    %1121 = vmatpush2.msra.mxu0 0.0
    %1122 = vmatprep.subr.mxu0 0.0
    %1123 = vmatpush2.msra.mxu0 0.0
    %1124 = vmatprep.subr.mxu0 0.0
    %1125 = vmatpush2.msra.mxu0 0.0
    %1126 = vmatprep.subr.mxu0 0.0
    %1127 = vmatpush2.msra.mxu0 0.0
    %1128 = vmatprep.subr.mxu0 0.0
    %1129 = vmatpush2.msra.mxu0 0.0
    %1130 = vmatprep.subr.mxu0 0.0
    %1131 = vmatpush2.msra.mxu0 0.0
    %1132 = vmatprep.subr.mxu0 0.0
    %1133 = vmatpush2.msra.mxu0 0.0
    %1134 = vmatprep.mubr.f32.mxu0 0.0
    %1135 = vmatmul.mubr.f32.gmra.mxu0 %v1068
    %v1136 = vpop.f32.mrf.mxu0
    %v1137 = vadd.f32 0.0, %v1136
    %v1138 = vpop.f32.mrf.mxu0
    %1139 = vdwg.mxu0
    %v1140 = vadd.f32 %v897, %v1137
    %1141 = vrot.lane.b32.xlu0 %v415, 104
    %v1142 = vpop.permute.xlu0 %1141
    %1143 = vrot.lane.b32.xlu0 %v407, 72
    %v1144 = vpop.permute.xlu0 %1143
    %v1145 = vsel %vm419, %v1142, 0
    %v1147 = vsel %vm419, %v1144, 0
    %1149 = vmatprep.subr.mxu0 0.0
    %1150 = vmatpush1.xpose.msra.mxu0 0.0
    %1151 = vmatprep.subr.mxu0 0.0
    %1152 = vmatpush1.xpose.msra.mxu0 0.0
    %1153 = vmatprep.subr.mxu0 0.0
    %1154 = vmatpush1.xpose.msra.mxu0 0.0
    %1155 = vmatprep.subr.mxu0 0.0
    %1156 = vmatpush1.xpose.msra.mxu0 0.0
    %1157 = vmatprep.subr.mxu0 0.0
    %1158 = vmatpush1.xpose.msra.mxu0 0.0
    %1159 = vmatprep.subr.mxu0 0.0
    %1160 = vmatpush1.xpose.msra.mxu0 0.0
    %1161 = vmatprep.subr.mxu0 0.0
    %1162 = vmatpush1.xpose.msra.mxu0 0.0
    %1163 = vmatprep.subr.mxu0 0.0
    %1164 = vmatpush1.xpose.msra.mxu0 0.0
    %1165 = vmatprep.subr.mxu0 0.0
    %1166 = vmatpush1.xpose.msra.mxu0 0.0
    %1167 = vmatprep.subr.mxu0 0.0
    %1168 = vmatpush1.xpose.msra.mxu0 0.0
    %1169 = vmatprep.subr.mxu0 0.0
    %1170 = vmatpush1.xpose.msra.mxu0 0.0
    %1171 = vmatprep.subr.mxu0 0.0
    %1172 = vmatpush1.xpose.msra.mxu0 0.0
    %1173 = vmatprep.subr.mxu0 0.0
    %1174 = vmatpush1.xpose.msra.mxu0 0.0
    %1175 = vmatprep.subr.mxu0 0.0
    %1176 = vmatpush1.xpose.msra.mxu0 0.0
    %1177 = vmatprep.subr.mxu0 0.0
    %1178 = vmatpush1.xpose.msra.mxu0 0.0
    %1179 = vmatprep.subr.mxu0 0.0
    %1180 = vmatpush1.xpose.msra.mxu0 %v1147
    %1181 = vmatprep.subr.mxu0 0.0
    %1182 = vmatpush2.xpose.msra.mxu0 0.0
    %1183 = vmatprep.subr.mxu0 0.0
    %1184 = vmatpush2.xpose.msra.mxu0 0.0
    %1185 = vmatprep.subr.mxu0 0.0
    %1186 = vmatpush2.xpose.msra.mxu0 0.0
    %1187 = vmatprep.subr.mxu0 0.0
    %1188 = vmatpush2.xpose.msra.mxu0 0.0
    %1189 = vmatprep.subr.mxu0 0.0
    %1190 = vmatpush2.xpose.msra.mxu0 0.0
    %1191 = vmatprep.subr.mxu0 0.0
    %1192 = vmatpush2.xpose.msra.mxu0 0.0
    %1193 = vmatprep.subr.mxu0 0.0
    %1194 = vmatpush2.xpose.msra.mxu0 0.0
    %1195 = vmatprep.subr.mxu0 0.0
    %1196 = vmatpush2.xpose.msra.mxu0 0.0
    %1197 = vmatprep.subr.mxu0 0.0
    %1198 = vmatpush2.xpose.msra.mxu0 0.0
    %1199 = vmatprep.subr.mxu0 0.0
    %1200 = vmatpush2.xpose.msra.mxu0 0.0
    %1201 = vmatprep.subr.mxu0 0.0
    %1202 = vmatpush2.xpose.msra.mxu0 0.0
    %1203 = vmatprep.subr.mxu0 0.0
    %1204 = vmatpush2.xpose.msra.mxu0 0.0
    %1205 = vmatprep.subr.mxu0 0.0
    %1206 = vmatpush2.xpose.msra.mxu0 0.0
    %1207 = vmatprep.subr.mxu0 0.0
    %1208 = vmatpush2.xpose.msra.mxu0 0.0
    %1209 = vmatprep.subr.mxu0 0.0
    %1210 = vmatpush2.xpose.msra.mxu0 0.0
    %1211 = vmatprep.subr.mxu0 0.0
    %1212 = vmatpush2.xpose.msra.mxu0 0.0
    %1213 = vmatprep.mubr.f32.mxu0 0.0
    %1214 = vmatmul.mubr.f32.gmra.mxu0 %v1145
    %v1215 = vpop.f32.mrf.mxu0
    %v1216 = vadd.f32 0.0, %v1215
    %v1217 = vpop.f32.mrf.mxu0
    %1218 = vdwg.mxu0
    %v1219 = vsel %vm495, %v1216, -inf
    %1220 = vmax.xlane.f32.xlu0 %v1219
    %v1221 = vpop.xlane.xlu0 %1220
    %v1222 = vsub.f32 %v1216, %v1221
    %v1223 = vmul.f32 %v1222, 1.442695
    %v1224 = vpow.pop %v1223
    %v1225 = vsel %vm495, %v1224, 0.0
    %1226 = vadd.xlane.f32.xlu0 %v1225
    %v1227 = vpop.xlane.xlu0 %1226
    %v1228 = vrcp.pop %v1227
    %v1229 = vmul.f32 %v1224, %v1228
    %1230 = vrot.lane.b32.xlu0 %v407, 40
    %v1231 = vpop.permute.xlu0 %1230
    %v1233 = vsel %vm509, %v1229, 0
    %v1235 = vsel %vm513, %v1231, 0
    %1237 = vmatprep.subr.mxu0 0.0
    %1238 = vmatpush1.msra.mxu0 0.0
    %1239 = vmatprep.subr.mxu0 0.0
    %1240 = vmatpush1.msra.mxu0 0.0
    %1241 = vmatprep.subr.mxu0 0.0
    %1242 = vmatpush1.msra.mxu0 0.0
    %1243 = vmatprep.subr.mxu0 0.0
    %1244 = vmatpush1.msra.mxu0 0.0
    %1245 = vmatprep.subr.mxu0 0.0
    %1246 = vmatpush1.msra.mxu0 0.0
    %1247 = vmatprep.subr.mxu0 0.0
    %1248 = vmatpush1.msra.mxu0 0.0
    %1249 = vmatprep.subr.mxu0 0.0
    %1250 = vmatpush1.msra.mxu0 0.0
    %1251 = vmatprep.subr.mxu0 0.0
    %1252 = vmatpush1.msra.mxu0 0.0
    %1253 = vmatprep.subr.mxu0 0.0
    %1254 = vmatpush1.msra.mxu0 0.0
    %1255 = vmatprep.subr.mxu0 0.0
    %1256 = vmatpush1.msra.mxu0 0.0
    %1257 = vmatprep.subr.mxu0 0.0
    %1258 = vmatpush1.msra.mxu0 0.0
    %1259 = vmatprep.subr.mxu0 0.0
    %1260 = vmatpush1.msra.mxu0 0.0
    %1261 = vmatprep.subr.mxu0 0.0
    %1262 = vmatpush1.msra.mxu0 0.0
    %1263 = vmatprep.subr.mxu0 0.0
    %1264 = vmatpush1.msra.mxu0 0.0
    %1265 = vmatprep.subr.mxu0 0.0
    %1266 = vmatpush1.msra.mxu0 0.0
    %1267 = vmatprep.subr.mxu0 0.0
    %1268 = vmatpush1.msra.mxu0 %v1235
    %1269 = vmatprep.subr.mxu0 0.0
    %1270 = vmatpush2.msra.mxu0 0.0
    %1271 = vmatprep.subr.mxu0 0.0
    %1272 = vmatpush2.msra.mxu0 0.0
    %1273 = vmatprep.subr.mxu0 0.0
    %1274 = vmatpush2.msra.mxu0 0.0
    %1275 = vmatprep.subr.mxu0 0.0
    %1276 = vmatpush2.msra.mxu0 0.0
    %1277 = vmatprep.subr.mxu0 0.0
    %1278 = vmatpush2.msra.mxu0 0.0
    %1279 = vmatprep.subr.mxu0 0.0
    %1280 = vmatpush2.msra.mxu0 0.0
    %1281 = vmatprep.subr.mxu0 0.0
    %1282 = vmatpush2.msra.mxu0 0.0
    %1283 = vmatprep.subr.mxu0 0.0
    %1284 = vmatpush2.msra.mxu0 0.0
    %1285 = vmatprep.subr.mxu0 0.0
    %1286 = vmatpush2.msra.mxu0 0.0
    %1287 = vmatprep.subr.mxu0 0.0
    %1288 = vmatpush2.msra.mxu0 0.0
    %1289 = vmatprep.subr.mxu0 0.0
    %1290 = vmatpush2.msra.mxu0 0.0
    %1291 = vmatprep.subr.mxu0 0.0
    %1292 = vmatpush2.msra.mxu0 0.0
    %1293 = vmatprep.subr.mxu0 0.0
    %1294 = vmatpush2.msra.mxu0 0.0
    %1295 = vmatprep.subr.mxu0 0.0
    %1296 = vmatpush2.msra.mxu0 0.0
    %1297 = vmatprep.subr.mxu0 0.0
    %1298 = vmatpush2.msra.mxu0 0.0
    %1299 = vmatprep.subr.mxu0 0.0
    %1300 = vmatpush2.msra.mxu0 0.0
    %1301 = vmatprep.mubr.f32.mxu0 0.0
    %1302 = vmatmul.mubr.f32.gmra.mxu0 %v1233
    %v1303 = vpop.f32.mrf.mxu0
    %v1304 = vadd.f32 0.0, %v1303
    %v1305 = vpop.f32.mrf.mxu0
    %1306 = vdwg.mxu0
    %v1307 = vld [vmem:[%s19 + $0x18] sm:$0xff]
    %v1309 = vsel %vm419, %v1304, 0
    %1311 = vmatprep.subr.mxu0 0.0
    %1312 = vmatpush1.msra.mxu0 0.0
    %1313 = vmatprep.subr.mxu0 0.0
    %1314 = vmatpush1.msra.mxu0 0.0
    %1315 = vmatprep.subr.mxu0 0.0
    %1316 = vmatpush1.msra.mxu0 0.0
    %1317 = vmatprep.subr.mxu0 0.0
    %1318 = vmatpush1.msra.mxu0 0.0
    %1319 = vmatprep.subr.mxu0 0.0
    %1320 = vmatpush1.msra.mxu0 0.0
    %1321 = vmatprep.subr.mxu0 0.0
    %1322 = vmatpush1.msra.mxu0 0.0
    %1323 = vmatprep.subr.mxu0 0.0
    %1324 = vmatpush1.msra.mxu0 0.0
    %1325 = vmatprep.subr.mxu0 0.0
    %1326 = vmatpush1.msra.mxu0 0.0
    %1327 = vmatprep.subr.mxu0 0.0
    %1328 = vmatpush1.msra.mxu0 0.0
    %1329 = vmatprep.subr.mxu0 0.0
    %1330 = vmatpush1.msra.mxu0 0.0
    %1331 = vmatprep.subr.mxu0 0.0
    %1332 = vmatpush1.msra.mxu0 0.0
    %1333 = vmatprep.subr.mxu0 0.0
    %1334 = vmatpush1.msra.mxu0 0.0
    %1335 = vmatprep.subr.mxu0 0.0
    %1336 = vmatpush1.msra.mxu0 0.0
    %1337 = vmatprep.subr.mxu0 0.0
    %1338 = vmatpush1.msra.mxu0 0.0
    %1339 = vmatprep.subr.mxu0 0.0
    %1340 = vmatpush1.msra.mxu0 0.0
    %1341 = vmatprep.subr.mxu0 0.0
    %1342 = vmatpush1.msra.mxu0 %v1307
    %1343 = vmatprep.subr.mxu0 0.0
    %1344 = vmatpush2.msra.mxu0 0.0
    %1345 = vmatprep.subr.mxu0 0.0
    %1346 = vmatpush2.msra.mxu0 0.0
    %1347 = vmatprep.subr.mxu0 0.0
    %1348 = vmatpush2.msra.mxu0 0.0
    %1349 = vmatprep.subr.mxu0 0.0
    %1350 = vmatpush2.msra.mxu0 0.0
    %1351 = vmatprep.subr.mxu0 0.0
    %1352 = vmatpush2.msra.mxu0 0.0
    %1353 = vmatprep.subr.mxu0 0.0
    %1354 = vmatpush2.msra.mxu0 0.0
    %1355 = vmatprep.subr.mxu0 0.0
    %1356 = vmatpush2.msra.mxu0 0.0
    %1357 = vmatprep.subr.mxu0 0.0
    %1358 = vmatpush2.msra.mxu0 0.0
    %1359 = vmatprep.subr.mxu0 0.0
    %1360 = vmatpush2.msra.mxu0 0.0
    %1361 = vmatprep.subr.mxu0 0.0
    %1362 = vmatpush2.msra.mxu0 0.0
    %1363 = vmatprep.subr.mxu0 0.0
    %1364 = vmatpush2.msra.mxu0 0.0
    %1365 = vmatprep.subr.mxu0 0.0
    %1366 = vmatpush2.msra.mxu0 0.0
    %1367 = vmatprep.subr.mxu0 0.0
    %1368 = vmatpush2.msra.mxu0 0.0
    %1369 = vmatprep.subr.mxu0 0.0
    %1370 = vmatpush2.msra.mxu0 0.0
    %1371 = vmatprep.subr.mxu0 0.0
    %1372 = vmatpush2.msra.mxu0 0.0
    %1373 = vmatprep.subr.mxu0 0.0
    %1374 = vmatpush2.msra.mxu0 0.0
    %1375 = vmatprep.mubr.f32.mxu0 0.0
    %1376 = vmatmul.mubr.f32.gmra.mxu0 %v1309
    %v1377 = vpop.f32.mrf.mxu0
    %v1378 = vadd.f32 0.0, %v1377
    %v1379 = vpop.f32.mrf.mxu0
    %1380 = vdwg.mxu0
    %v1381 = vadd.f32 %v1140, %v1378
    %v1382 = vld [vmem:[%s23] sm:$0x1]
    %v1383 = vld [vmem:[%s21] sm:$0x1]
    %v1385 = vlaneseq
    %v1386 = vshrl.u32 %v1385, 7
    %v1387 = vsub.s32 0, %v1386
    %v1388 = vrot.slane %v1383, %v1387
    %v1390 = vadd.f32 %v1381, %v1388
    %v1392 = vlaneseq
    %v1393 = vshrl.u32 %v1392, 7
    %v1394 = vsub.s32 0, %v1393
    %v1395 = vrot.slane %v1382, %v1394
    %v1397 = vmul.f32 %v1395, %v1390
    %v1398 = vadd.f32 %v274, %v1397
    %vm1399 = vcmask 258048
    %1400 = vst.msk [vmem:[#allocation2] sm:$0x1f] %vm1399, %v1398
    %v1401 = vmul.f32 %v412, 0.35355338
    %vm1403 = vcmask 1042432
    %v1404 = vrot.slane %v415, 5
    %v1405 = vrot.slane %v1401, 5
    %v1406 = vsel %vm1403, %v1404, %v1405
    %v1408 = vrot.slane %v407, 5
    %v1409 = vrot.slane %v412, 5
    %v1410 = vsel %vm1403, %v1408, %v1409
    %1411 = vrot.lane.b32.xlu0 %v1410, 96
    %v1412 = vpop.permute.xlu0 %1411
    %v1413 = vsel %vm419, %v1406, 0
    %v1415 = vsel %vm419, %v1412, 0
    %1417 = vmatprep.subr.mxu0 0.0
    %1418 = vmatpush1.xpose.msra.mxu0 0.0
    %1419 = vmatprep.subr.mxu0 0.0
    %1420 = vmatpush1.xpose.msra.mxu0 0.0
    %1421 = vmatprep.subr.mxu0 0.0
    %1422 = vmatpush1.xpose.msra.mxu0 0.0
    %1423 = vmatprep.subr.mxu0 0.0
    %1424 = vmatpush1.xpose.msra.mxu0 0.0
    %1425 = vmatprep.subr.mxu0 0.0
    %1426 = vmatpush1.xpose.msra.mxu0 0.0
    %1427 = vmatprep.subr.mxu0 0.0
    %1428 = vmatpush1.xpose.msra.mxu0 0.0
    %1429 = vmatprep.subr.mxu0 0.0
    %1430 = vmatpush1.xpose.msra.mxu0 0.0
    %1431 = vmatprep.subr.mxu0 0.0
    %1432 = vmatpush1.xpose.msra.mxu0 0.0
    %1433 = vmatprep.subr.mxu0 0.0
    %1434 = vmatpush1.xpose.msra.mxu0 0.0
    %1435 = vmatprep.subr.mxu0 0.0
    %1436 = vmatpush1.xpose.msra.mxu0 0.0
    %1437 = vmatprep.subr.mxu0 0.0
    %1438 = vmatpush1.xpose.msra.mxu0 0.0
    %1439 = vmatprep.subr.mxu0 0.0
    %1440 = vmatpush1.xpose.msra.mxu0 0.0
    %1441 = vmatprep.subr.mxu0 0.0
    %1442 = vmatpush1.xpose.msra.mxu0 0.0
    %1443 = vmatprep.subr.mxu0 0.0
    %1444 = vmatpush1.xpose.msra.mxu0 0.0
    %1445 = vmatprep.subr.mxu0 0.0
    %1446 = vmatpush1.xpose.msra.mxu0 0.0
    %1447 = vmatprep.subr.mxu0 0.0
    %1448 = vmatpush1.xpose.msra.mxu0 %v1415
    %1449 = vmatprep.subr.mxu0 0.0
    %1450 = vmatpush2.xpose.msra.mxu0 0.0
    %1451 = vmatprep.subr.mxu0 0.0
    %1452 = vmatpush2.xpose.msra.mxu0 0.0
    %1453 = vmatprep.subr.mxu0 0.0
    %1454 = vmatpush2.xpose.msra.mxu0 0.0
    %1455 = vmatprep.subr.mxu0 0.0
    %1456 = vmatpush2.xpose.msra.mxu0 0.0
    %1457 = vmatprep.subr.mxu0 0.0
    %1458 = vmatpush2.xpose.msra.mxu0 0.0
    %1459 = vmatprep.subr.mxu0 0.0
    %1460 = vmatpush2.xpose.msra.mxu0 0.0
    %1461 = vmatprep.subr.mxu0 0.0
    %1462 = vmatpush2.xpose.msra.mxu0 0.0
    %1463 = vmatprep.subr.mxu0 0.0
    %1464 = vmatpush2.xpose.msra.mxu0 0.0
    %1465 = vmatprep.subr.mxu0 0.0
    %1466 = vmatpush2.xpose.msra.mxu0 0.0
    %1467 = vmatprep.subr.mxu0 0.0
    %1468 = vmatpush2.xpose.msra.mxu0 0.0
    %1469 = vmatprep.subr.mxu0 0.0
    %1470 = vmatpush2.xpose.msra.mxu0 0.0
    %1471 = vmatprep.subr.mxu0 0.0
    %1472 = vmatpush2.xpose.msra.mxu0 0.0
    %1473 = vmatprep.subr.mxu0 0.0
    %1474 = vmatpush2.xpose.msra.mxu0 0.0
    %1475 = vmatprep.subr.mxu0 0.0
    %1476 = vmatpush2.xpose.msra.mxu0 0.0
    %1477 = vmatprep.subr.mxu0 0.0
    %1478 = vmatpush2.xpose.msra.mxu0 0.0
    %1479 = vmatprep.subr.mxu0 0.0
    %1480 = vmatpush2.xpose.msra.mxu0 0.0
    %1481 = vmatprep.mubr.f32.mxu0 0.0
    %1482 = vmatmul.mubr.f32.gmra.mxu0 %v1413
    %v1483 = vpop.f32.mrf.mxu0
    %v1484 = vadd.f32 0.0, %v1483
    %v1485 = vpop.f32.mrf.mxu0
    %1486 = vdwg.mxu0
    %v1487 = vsel %vm495, %v1484, -inf
    %1488 = vmax.xlane.f32.xlu0 %v1487
    %v1489 = vpop.xlane.xlu0 %1488
    %v1490 = vsub.f32 %v1484, %v1489
    %v1491 = vmul.f32 %v1490, 1.442695
    %v1492 = vpow.pop %v1491
    %v1493 = vsel %vm495, %v1492, 0.0
    %1494 = vadd.xlane.f32.xlu0 %v1493
    %v1495 = vpop.xlane.xlu0 %1494
    %v1496 = vrcp.pop %v1495
    %v1497 = vmul.f32 %v1492, %v1496
    %1498 = vrot.lane.b32.xlu0 %v1410, 64
    %v1499 = vpop.permute.xlu0 %1498
    %v1501 = vsel %vm509, %v1497, 0
    %v1503 = vsel %vm513, %v1499, 0
    %1505 = vmatprep.subr.mxu0 0.0
    %1506 = vmatpush1.msra.mxu0 0.0
    %1507 = vmatprep.subr.mxu0 0.0
    %1508 = vmatpush1.msra.mxu0 0.0
    %1509 = vmatprep.subr.mxu0 0.0
    %1510 = vmatpush1.msra.mxu0 0.0
    %1511 = vmatprep.subr.mxu0 0.0
    %1512 = vmatpush1.msra.mxu0 0.0
    %1513 = vmatprep.subr.mxu0 0.0
    %1514 = vmatpush1.msra.mxu0 0.0
    %1515 = vmatprep.subr.mxu0 0.0
    %1516 = vmatpush1.msra.mxu0 0.0
    %1517 = vmatprep.subr.mxu0 0.0
    %1518 = vmatpush1.msra.mxu0 0.0
    %1519 = vmatprep.subr.mxu0 0.0
    %1520 = vmatpush1.msra.mxu0 0.0
    %1521 = vmatprep.subr.mxu0 0.0
    %1522 = vmatpush1.msra.mxu0 0.0
    %1523 = vmatprep.subr.mxu0 0.0
    %1524 = vmatpush1.msra.mxu0 0.0
    %1525 = vmatprep.subr.mxu0 0.0
    %1526 = vmatpush1.msra.mxu0 0.0
    %1527 = vmatprep.subr.mxu0 0.0
    %1528 = vmatpush1.msra.mxu0 0.0
    %1529 = vmatprep.subr.mxu0 0.0
    %1530 = vmatpush1.msra.mxu0 0.0
    %1531 = vmatprep.subr.mxu0 0.0
    %1532 = vmatpush1.msra.mxu0 0.0
    %1533 = vmatprep.subr.mxu0 0.0
    %1534 = vmatpush1.msra.mxu0 0.0
    %1535 = vmatprep.subr.mxu0 0.0
    %1536 = vmatpush1.msra.mxu0 %v1503
    %1537 = vmatprep.subr.mxu0 0.0
    %1538 = vmatpush2.msra.mxu0 0.0
    %1539 = vmatprep.subr.mxu0 0.0
    %1540 = vmatpush2.msra.mxu0 0.0
    %1541 = vmatprep.subr.mxu0 0.0
    %1542 = vmatpush2.msra.mxu0 0.0
    %1543 = vmatprep.subr.mxu0 0.0
    %1544 = vmatpush2.msra.mxu0 0.0
    %1545 = vmatprep.subr.mxu0 0.0
    %1546 = vmatpush2.msra.mxu0 0.0
    %1547 = vmatprep.subr.mxu0 0.0
    %1548 = vmatpush2.msra.mxu0 0.0
    %1549 = vmatprep.subr.mxu0 0.0
    %1550 = vmatpush2.msra.mxu0 0.0
    %1551 = vmatprep.subr.mxu0 0.0
    %1552 = vmatpush2.msra.mxu0 0.0
    %1553 = vmatprep.subr.mxu0 0.0
    %1554 = vmatpush2.msra.mxu0 0.0
    %1555 = vmatprep.subr.mxu0 0.0
    %1556 = vmatpush2.msra.mxu0 0.0
    %1557 = vmatprep.subr.mxu0 0.0
    %1558 = vmatpush2.msra.mxu0 0.0
    %1559 = vmatprep.subr.mxu0 0.0
    %1560 = vmatpush2.msra.mxu0 0.0
    %1561 = vmatprep.subr.mxu0 0.0
    %1562 = vmatpush2.msra.mxu0 0.0
    %1563 = vmatprep.subr.mxu0 0.0
    %1564 = vmatpush2.msra.mxu0 0.0
    %1565 = vmatprep.subr.mxu0 0.0
    %1566 = vmatpush2.msra.mxu0 0.0
    %1567 = vmatprep.subr.mxu0 0.0
    %1568 = vmatpush2.msra.mxu0 0.0
    %1569 = vmatprep.mubr.f32.mxu0 0.0
    %1570 = vmatmul.mubr.f32.gmra.mxu0 %v1501
    %v1571 = vpop.f32.mrf.mxu0
    %v1572 = vadd.f32 0.0, %v1571
    %v1573 = vpop.f32.mrf.mxu0
    %1574 = vdwg.mxu0
    %v1575 = vld [vmem:[%s19] sm:$0xff]
    %1576 = vrot.lane.b32.xlu0 %v1406, 120
    %v1577 = vpop.permute.xlu0 %1576
    %1578 = vrot.lane.b32.xlu0 %v1410, 88
    %v1579 = vpop.permute.xlu0 %1578
    %v1580 = vsel %vm419, %v1577, 0
    %v1582 = vsel %vm419, %v1579, 0
    %1584 = vmatprep.subr.mxu0 0.0
    %1585 = vmatpush1.xpose.msra.mxu0 0.0
    %1586 = vmatprep.subr.mxu0 0.0
    %1587 = vmatpush1.xpose.msra.mxu0 0.0
    %1588 = vmatprep.subr.mxu0 0.0
    %1589 = vmatpush1.xpose.msra.mxu0 0.0
    %1590 = vmatprep.subr.mxu0 0.0
    %1591 = vmatpush1.xpose.msra.mxu0 0.0
    %1592 = vmatprep.subr.mxu0 0.0
    %1593 = vmatpush1.xpose.msra.mxu0 0.0
    %1594 = vmatprep.subr.mxu0 0.0
    %1595 = vmatpush1.xpose.msra.mxu0 0.0
    %1596 = vmatprep.subr.mxu0 0.0
    %1597 = vmatpush1.xpose.msra.mxu0 0.0
    %1598 = vmatprep.subr.mxu0 0.0
    %1599 = vmatpush1.xpose.msra.mxu0 0.0
    %1600 = vmatprep.subr.mxu0 0.0
    %1601 = vmatpush1.xpose.msra.mxu0 0.0
    %1602 = vmatprep.subr.mxu0 0.0
    %1603 = vmatpush1.xpose.msra.mxu0 0.0
    %1604 = vmatprep.subr.mxu0 0.0
    %1605 = vmatpush1.xpose.msra.mxu0 0.0
    %1606 = vmatprep.subr.mxu0 0.0
    %1607 = vmatpush1.xpose.msra.mxu0 0.0
    %1608 = vmatprep.subr.mxu0 0.0
    %1609 = vmatpush1.xpose.msra.mxu0 0.0
    %1610 = vmatprep.subr.mxu0 0.0
    %1611 = vmatpush1.xpose.msra.mxu0 0.0
    %1612 = vmatprep.subr.mxu0 0.0
    %1613 = vmatpush1.xpose.msra.mxu0 0.0
    %1614 = vmatprep.subr.mxu0 0.0
    %1615 = vmatpush1.xpose.msra.mxu0 %v1582
    %1616 = vmatprep.subr.mxu0 0.0
    %1617 = vmatpush2.xpose.msra.mxu0 0.0
    %1618 = vmatprep.subr.mxu0 0.0
    %1619 = vmatpush2.xpose.msra.mxu0 0.0
    %1620 = vmatprep.subr.mxu0 0.0
    %1621 = vmatpush2.xpose.msra.mxu0 0.0
    %1622 = vmatprep.subr.mxu0 0.0
    %1623 = vmatpush2.xpose.msra.mxu0 0.0
    %1624 = vmatprep.subr.mxu0 0.0
    %1625 = vmatpush2.xpose.msra.mxu0 0.0
    %1626 = vmatprep.subr.mxu0 0.0
    %1627 = vmatpush2.xpose.msra.mxu0 0.0
    %1628 = vmatprep.subr.mxu0 0.0
    %1629 = vmatpush2.xpose.msra.mxu0 0.0
    %1630 = vmatprep.subr.mxu0 0.0
    %1631 = vmatpush2.xpose.msra.mxu0 0.0
    %1632 = vmatprep.subr.mxu0 0.0
    %1633 = vmatpush2.xpose.msra.mxu0 0.0
    %1634 = vmatprep.subr.mxu0 0.0
    %1635 = vmatpush2.xpose.msra.mxu0 0.0
    %1636 = vmatprep.subr.mxu0 0.0
    %1637 = vmatpush2.xpose.msra.mxu0 0.0
    %1638 = vmatprep.subr.mxu0 0.0
    %1639 = vmatpush2.xpose.msra.mxu0 0.0
    %1640 = vmatprep.subr.mxu0 0.0
    %1641 = vmatpush2.xpose.msra.mxu0 0.0
    %1642 = vmatprep.subr.mxu0 0.0
    %1643 = vmatpush2.xpose.msra.mxu0 0.0
    %1644 = vmatprep.subr.mxu0 0.0
    %1645 = vmatpush2.xpose.msra.mxu0 0.0
    %1646 = vmatprep.subr.mxu0 0.0
    %1647 = vmatpush2.xpose.msra.mxu0 0.0
    %1648 = vmatprep.mubr.f32.mxu0 0.0
    %1649 = vmatmul.mubr.f32.gmra.mxu0 %v1580
    %v1650 = vpop.f32.mrf.mxu0
    %v1651 = vadd.f32 0.0, %v1650
    %v1652 = vpop.f32.mrf.mxu0
    %1653 = vdwg.mxu0
    %v1654 = vsel %vm495, %v1651, -inf
    %1655 = vmax.xlane.f32.xlu0 %v1654
    %v1656 = vpop.xlane.xlu0 %1655
    %v1657 = vsub.f32 %v1651, %v1656
    %v1658 = vmul.f32 %v1657, 1.442695
    %v1659 = vpow.pop %v1658
    %v1660 = vsel %vm495, %v1659, 0.0
    %1661 = vadd.xlane.f32.xlu0 %v1660
    %v1662 = vpop.xlane.xlu0 %1661
    %v1663 = vrcp.pop %v1662
    %v1664 = vmul.f32 %v1659, %v1663
    %1665 = vrot.lane.b32.xlu0 %v1410, 56
    %v1666 = vpop.permute.xlu0 %1665
    %v1668 = vsel %vm509, %v1664, 0
    %v1670 = vsel %vm513, %v1666, 0
    %1672 = vmatprep.subr.mxu0 0.0
    %1673 = vmatpush1.msra.mxu0 0.0
    %1674 = vmatprep.subr.mxu0 0.0
    %1675 = vmatpush1.msra.mxu0 0.0
    %1676 = vmatprep.subr.mxu0 0.0
    %1677 = vmatpush1.msra.mxu0 0.0
    %1678 = vmatprep.subr.mxu0 0.0
    %1679 = vmatpush1.msra.mxu0 0.0
    %1680 = vmatprep.subr.mxu0 0.0
    %1681 = vmatpush1.msra.mxu0 0.0
    %1682 = vmatprep.subr.mxu0 0.0
    %1683 = vmatpush1.msra.mxu0 0.0
    %1684 = vmatprep.subr.mxu0 0.0
    %1685 = vmatpush1.msra.mxu0 0.0
    %1686 = vmatprep.subr.mxu0 0.0
    %1687 = vmatpush1.msra.mxu0 0.0
    %1688 = vmatprep.subr.mxu0 0.0
    %1689 = vmatpush1.msra.mxu0 0.0
    %1690 = vmatprep.subr.mxu0 0.0
    %1691 = vmatpush1.msra.mxu0 0.0
    %1692 = vmatprep.subr.mxu0 0.0
    %1693 = vmatpush1.msra.mxu0 0.0
    %1694 = vmatprep.subr.mxu0 0.0
    %1695 = vmatpush1.msra.mxu0 0.0
    %1696 = vmatprep.subr.mxu0 0.0
    %1697 = vmatpush1.msra.mxu0 0.0
    %1698 = vmatprep.subr.mxu0 0.0
    %1699 = vmatpush1.msra.mxu0 0.0
    %1700 = vmatprep.subr.mxu0 0.0
    %1701 = vmatpush1.msra.mxu0 0.0
    %1702 = vmatprep.subr.mxu0 0.0
    %1703 = vmatpush1.msra.mxu0 %v1670
    %1704 = vmatprep.subr.mxu0 0.0
    %1705 = vmatpush2.msra.mxu0 0.0
    %1706 = vmatprep.subr.mxu0 0.0
    %1707 = vmatpush2.msra.mxu0 0.0
    %1708 = vmatprep.subr.mxu0 0.0
    %1709 = vmatpush2.msra.mxu0 0.0
    %1710 = vmatprep.subr.mxu0 0.0
    %1711 = vmatpush2.msra.mxu0 0.0
    %1712 = vmatprep.subr.mxu0 0.0
    %1713 = vmatpush2.msra.mxu0 0.0
    %1714 = vmatprep.subr.mxu0 0.0
    %1715 = vmatpush2.msra.mxu0 0.0
    %1716 = vmatprep.subr.mxu0 0.0
    %1717 = vmatpush2.msra.mxu0 0.0
    %1718 = vmatprep.subr.mxu0 0.0
    %1719 = vmatpush2.msra.mxu0 0.0
    %1720 = vmatprep.subr.mxu0 0.0
    %1721 = vmatpush2.msra.mxu0 0.0
    %1722 = vmatprep.subr.mxu0 0.0
    %1723 = vmatpush2.msra.mxu0 0.0
    %1724 = vmatprep.subr.mxu0 0.0
    %1725 = vmatpush2.msra.mxu0 0.0
    %1726 = vmatprep.subr.mxu0 0.0
    %1727 = vmatpush2.msra.mxu0 0.0
    %1728 = vmatprep.subr.mxu0 0.0
    %1729 = vmatpush2.msra.mxu0 0.0
    %1730 = vmatprep.subr.mxu0 0.0
    %1731 = vmatpush2.msra.mxu0 0.0
    %1732 = vmatprep.subr.mxu0 0.0
    %1733 = vmatpush2.msra.mxu0 0.0
    %1734 = vmatprep.subr.mxu0 0.0
    %1735 = vmatpush2.msra.mxu0 0.0
    %1736 = vmatprep.mubr.f32.mxu0 0.0
    %1737 = vmatmul.mubr.f32.gmra.mxu0 %v1668
    %v1738 = vpop.f32.mrf.mxu0
    %v1739 = vadd.f32 0.0, %v1738
    %v1740 = vpop.f32.mrf.mxu0
    %1741 = vdwg.mxu0
    %v1742 = vld [vmem:[%s19 + $0x8] sm:$0xff]
    %v1744 = vsel %vm419, %v1739, 0
    %1746 = vmatprep.subr.mxu0 0.0
    %1747 = vmatpush1.msra.mxu0 0.0
    %1748 = vmatprep.subr.mxu0 0.0
    %1749 = vmatpush1.msra.mxu0 0.0
    %1750 = vmatprep.subr.mxu0 0.0
    %1751 = vmatpush1.msra.mxu0 0.0
    %1752 = vmatprep.subr.mxu0 0.0
    %1753 = vmatpush1.msra.mxu0 0.0
    %1754 = vmatprep.subr.mxu0 0.0
    %1755 = vmatpush1.msra.mxu0 0.0
    %1756 = vmatprep.subr.mxu0 0.0
    %1757 = vmatpush1.msra.mxu0 0.0
    %1758 = vmatprep.subr.mxu0 0.0
    %1759 = vmatpush1.msra.mxu0 0.0
    %1760 = vmatprep.subr.mxu0 0.0
    %1761 = vmatpush1.msra.mxu0 0.0
    %1762 = vmatprep.subr.mxu0 0.0
    %1763 = vmatpush1.msra.mxu0 0.0
    %1764 = vmatprep.subr.mxu0 0.0
    %1765 = vmatpush1.msra.mxu0 0.0
    %1766 = vmatprep.subr.mxu0 0.0
    %1767 = vmatpush1.msra.mxu0 0.0
    %1768 = vmatprep.subr.mxu0 0.0
    %1769 = vmatpush1.msra.mxu0 0.0
    %1770 = vmatprep.subr.mxu0 0.0
    %1771 = vmatpush1.msra.mxu0 0.0
    %1772 = vmatprep.subr.mxu0 0.0
    %1773 = vmatpush1.msra.mxu0 0.0
    %1774 = vmatprep.subr.mxu0 0.0
    %1775 = vmatpush1.msra.mxu0 0.0
    %1776 = vmatprep.subr.mxu0 0.0
    %1777 = vmatpush1.msra.mxu0 %v1742
    %1778 = vmatprep.subr.mxu0 0.0
    %1779 = vmatpush2.msra.mxu0 0.0
    %1780 = vmatprep.subr.mxu0 0.0
    %1781 = vmatpush2.msra.mxu0 0.0
    %1782 = vmatprep.subr.mxu0 0.0
    %1783 = vmatpush2.msra.mxu0 0.0
    %1784 = vmatprep.subr.mxu0 0.0
    %1785 = vmatpush2.msra.mxu0 0.0
    %1786 = vmatprep.subr.mxu0 0.0
    %1787 = vmatpush2.msra.mxu0 0.0
    %1788 = vmatprep.subr.mxu0 0.0
    %1789 = vmatpush2.msra.mxu0 0.0
    %1790 = vmatprep.subr.mxu0 0.0
    %1791 = vmatpush2.msra.mxu0 0.0
    %1792 = vmatprep.subr.mxu0 0.0
    %1793 = vmatpush2.msra.mxu0 0.0
    %1794 = vmatprep.subr.mxu0 0.0
    %1795 = vmatpush2.msra.mxu0 0.0
    %1796 = vmatprep.subr.mxu0 0.0
    %1797 = vmatpush2.msra.mxu0 0.0
    %1798 = vmatprep.subr.mxu0 0.0
    %1799 = vmatpush2.msra.mxu0 0.0
    %1800 = vmatprep.subr.mxu0 0.0
    %1801 = vmatpush2.msra.mxu0 0.0
    %1802 = vmatprep.subr.mxu0 0.0
    %1803 = vmatpush2.msra.mxu0 0.0
    %1804 = vmatprep.subr.mxu0 0.0
    %1805 = vmatpush2.msra.mxu0 0.0
    %1806 = vmatprep.subr.mxu0 0.0
    %1807 = vmatpush2.msra.mxu0 0.0
    %1808 = vmatprep.subr.mxu0 0.0
    %1809 = vmatpush2.msra.mxu0 0.0
    %1810 = vmatprep.mubr.f32.mxu0 0.0
    %1811 = vmatmul.mubr.f32.gmra.mxu0 %v1744
    %v1812 = vpop.f32.mrf.mxu0
    %v1813 = vadd.f32 0.0, %v1812
    %v1814 = vpop.f32.mrf.mxu0
    %1815 = vdwg.mxu0
    %v1817 = vsel %vm419, %v1572, 0
    %1819 = vmatprep.subr.mxu0 0.0
    %1820 = vmatpush1.msra.mxu0 0.0
    %1821 = vmatprep.subr.mxu0 0.0
    %1822 = vmatpush1.msra.mxu0 0.0
    %1823 = vmatprep.subr.mxu0 0.0
    %1824 = vmatpush1.msra.mxu0 0.0
    %1825 = vmatprep.subr.mxu0 0.0
    %1826 = vmatpush1.msra.mxu0 0.0
    %1827 = vmatprep.subr.mxu0 0.0
    %1828 = vmatpush1.msra.mxu0 0.0
    %1829 = vmatprep.subr.mxu0 0.0
    %1830 = vmatpush1.msra.mxu0 0.0
    %1831 = vmatprep.subr.mxu0 0.0
    %1832 = vmatpush1.msra.mxu0 0.0
    %1833 = vmatprep.subr.mxu0 0.0
    %1834 = vmatpush1.msra.mxu0 0.0
    %1835 = vmatprep.subr.mxu0 0.0
    %1836 = vmatpush1.msra.mxu0 0.0
    %1837 = vmatprep.subr.mxu0 0.0
    %1838 = vmatpush1.msra.mxu0 0.0
    %1839 = vmatprep.subr.mxu0 0.0
    %1840 = vmatpush1.msra.mxu0 0.0
    %1841 = vmatprep.subr.mxu0 0.0
    %1842 = vmatpush1.msra.mxu0 0.0
    %1843 = vmatprep.subr.mxu0 0.0
    %1844 = vmatpush1.msra.mxu0 0.0
    %1845 = vmatprep.subr.mxu0 0.0
    %1846 = vmatpush1.msra.mxu0 0.0
    %1847 = vmatprep.subr.mxu0 0.0
    %1848 = vmatpush1.msra.mxu0 0.0
    %1849 = vmatprep.subr.mxu0 0.0
    %1850 = vmatpush1.msra.mxu0 %v1575
    %1851 = vmatprep.subr.mxu0 0.0
    %1852 = vmatpush2.msra.mxu0 0.0
    %1853 = vmatprep.subr.mxu0 0.0
    %1854 = vmatpush2.msra.mxu0 0.0
    %1855 = vmatprep.subr.mxu0 0.0
    %1856 = vmatpush2.msra.mxu0 0.0
    %1857 = vmatprep.subr.mxu0 0.0
    %1858 = vmatpush2.msra.mxu0 0.0
    %1859 = vmatprep.subr.mxu0 0.0
    %1860 = vmatpush2.msra.mxu0 0.0
    %1861 = vmatprep.subr.mxu0 0.0
    %1862 = vmatpush2.msra.mxu0 0.0
    %1863 = vmatprep.subr.mxu0 0.0
    %1864 = vmatpush2.msra.mxu0 0.0
    %1865 = vmatprep.subr.mxu0 0.0
    %1866 = vmatpush2.msra.mxu0 0.0
    %1867 = vmatprep.subr.mxu0 0.0
    %1868 = vmatpush2.msra.mxu0 0.0
    %1869 = vmatprep.subr.mxu0 0.0
    %1870 = vmatpush2.msra.mxu0 0.0
    %1871 = vmatprep.subr.mxu0 0.0
    %1872 = vmatpush2.msra.mxu0 0.0
    %1873 = vmatprep.subr.mxu0 0.0
    %1874 = vmatpush2.msra.mxu0 0.0
    %1875 = vmatprep.subr.mxu0 0.0
    %1876 = vmatpush2.msra.mxu0 0.0
    %1877 = vmatprep.subr.mxu0 0.0
    %1878 = vmatpush2.msra.mxu0 0.0
    %1879 = vmatprep.subr.mxu0 0.0
    %1880 = vmatpush2.msra.mxu0 0.0
    %1881 = vmatprep.subr.mxu0 0.0
    %1882 = vmatpush2.msra.mxu0 0.0
    %1883 = vmatprep.mubr.f32.mxu0 0.0
    %1884 = vmatmul.mubr.f32.gmra.mxu0 %v1817
    %v1885 = vpop.f32.mrf.mxu0
    %v1886 = vadd.f32 %v1813, %v1885
    %v1887 = vpop.f32.mrf.mxu0
    %1888 = vdwg.mxu0
    %1889 = vrot.lane.b32.xlu0 %v1406, 112
    %v1890 = vpop.permute.xlu0 %1889
    %1891 = vrot.lane.b32.xlu0 %v1410, 80
    %v1892 = vpop.permute.xlu0 %1891
    %v1893 = vsel %vm419, %v1890, 0
    %v1895 = vsel %vm419, %v1892, 0
    %1897 = vmatprep.subr.mxu0 0.0
    %1898 = vmatpush1.xpose.msra.mxu0 0.0
    %1899 = vmatprep.subr.mxu0 0.0
    %1900 = vmatpush1.xpose.msra.mxu0 0.0
    %1901 = vmatprep.subr.mxu0 0.0
    %1902 = vmatpush1.xpose.msra.mxu0 0.0
    %1903 = vmatprep.subr.mxu0 0.0
    %1904 = vmatpush1.xpose.msra.mxu0 0.0
    %1905 = vmatprep.subr.mxu0 0.0
    %1906 = vmatpush1.xpose.msra.mxu0 0.0
    %1907 = vmatprep.subr.mxu0 0.0
    %1908 = vmatpush1.xpose.msra.mxu0 0.0
    %1909 = vmatprep.subr.mxu0 0.0
    %1910 = vmatpush1.xpose.msra.mxu0 0.0
    %1911 = vmatprep.subr.mxu0 0.0
    %1912 = vmatpush1.xpose.msra.mxu0 0.0
    %1913 = vmatprep.subr.mxu0 0.0
    %1914 = vmatpush1.xpose.msra.mxu0 0.0
    %1915 = vmatprep.subr.mxu0 0.0
    %1916 = vmatpush1.xpose.msra.mxu0 0.0
    %1917 = vmatprep.subr.mxu0 0.0
    %1918 = vmatpush1.xpose.msra.mxu0 0.0
    %1919 = vmatprep.subr.mxu0 0.0
    %1920 = vmatpush1.xpose.msra.mxu0 0.0
    %1921 = vmatprep.subr.mxu0 0.0
    %1922 = vmatpush1.xpose.msra.mxu0 0.0
    %1923 = vmatprep.subr.mxu0 0.0
    %1924 = vmatpush1.xpose.msra.mxu0 0.0
    %1925 = vmatprep.subr.mxu0 0.0
    %1926 = vmatpush1.xpose.msra.mxu0 0.0
    %1927 = vmatprep.subr.mxu0 0.0
    %1928 = vmatpush1.xpose.msra.mxu0 %v1895
    %1929 = vmatprep.subr.mxu0 0.0
    %1930 = vmatpush2.xpose.msra.mxu0 0.0
    %1931 = vmatprep.subr.mxu0 0.0
    %1932 = vmatpush2.xpose.msra.mxu0 0.0
    %1933 = vmatprep.subr.mxu0 0.0
    %1934 = vmatpush2.xpose.msra.mxu0 0.0
    %1935 = vmatprep.subr.mxu0 0.0
    %1936 = vmatpush2.xpose.msra.mxu0 0.0
    %1937 = vmatprep.subr.mxu0 0.0
    %1938 = vmatpush2.xpose.msra.mxu0 0.0
    %1939 = vmatprep.subr.mxu0 0.0
    %1940 = vmatpush2.xpose.msra.mxu0 0.0
    %1941 = vmatprep.subr.mxu0 0.0
    %1942 = vmatpush2.xpose.msra.mxu0 0.0
    %1943 = vmatprep.subr.mxu0 0.0
    %1944 = vmatpush2.xpose.msra.mxu0 0.0
    %1945 = vmatprep.subr.mxu0 0.0
    %1946 = vmatpush2.xpose.msra.mxu0 0.0
    %1947 = vmatprep.subr.mxu0 0.0
    %1948 = vmatpush2.xpose.msra.mxu0 0.0
    %1949 = vmatprep.subr.mxu0 0.0
    %1950 = vmatpush2.xpose.msra.mxu0 0.0
    %1951 = vmatprep.subr.mxu0 0.0
    %1952 = vmatpush2.xpose.msra.mxu0 0.0
    %1953 = vmatprep.subr.mxu0 0.0
    %1954 = vmatpush2.xpose.msra.mxu0 0.0
    %1955 = vmatprep.subr.mxu0 0.0
    %1956 = vmatpush2.xpose.msra.mxu0 0.0
    %1957 = vmatprep.subr.mxu0 0.0
    %1958 = vmatpush2.xpose.msra.mxu0 0.0
    %1959 = vmatprep.subr.mxu0 0.0
    %1960 = vmatpush2.xpose.msra.mxu0 0.0
    %1961 = vmatprep.mubr.f32.mxu0 0.0
    %1962 = vmatmul.mubr.f32.gmra.mxu0 %v1893
    %v1963 = vpop.f32.mrf.mxu0
    %v1964 = vadd.f32 0.0, %v1963
    %v1965 = vpop.f32.mrf.mxu0
    %1966 = vdwg.mxu0
    %v1967 = vsel %vm495, %v1964, -inf
    %1968 = vmax.xlane.f32.xlu0 %v1967
    %v1969 = vpop.xlane.xlu0 %1968
    %v1970 = vsub.f32 %v1964, %v1969
    %v1971 = vmul.f32 %v1970, 1.442695
    %v1972 = vpow.pop %v1971
    %v1973 = vsel %vm495, %v1972, 0.0
    %1974 = vadd.xlane.f32.xlu0 %v1973
    %v1975 = vpop.xlane.xlu0 %1974
    %v1976 = vrcp.pop %v1975
    %v1977 = vmul.f32 %v1972, %v1976
    %1978 = vrot.lane.b32.xlu0 %v1410, 48
    %v1979 = vpop.permute.xlu0 %1978
    %v1981 = vsel %vm509, %v1977, 0
    %v1983 = vsel %vm513, %v1979, 0
    %1985 = vmatprep.subr.mxu0 0.0
    %1986 = vmatpush1.msra.mxu0 0.0
    %1987 = vmatprep.subr.mxu0 0.0
    %1988 = vmatpush1.msra.mxu0 0.0
    %1989 = vmatprep.subr.mxu0 0.0
    %1990 = vmatpush1.msra.mxu0 0.0
    %1991 = vmatprep.subr.mxu0 0.0
    %1992 = vmatpush1.msra.mxu0 0.0
    %1993 = vmatprep.subr.mxu0 0.0
    %1994 = vmatpush1.msra.mxu0 0.0
    %1995 = vmatprep.subr.mxu0 0.0
    %1996 = vmatpush1.msra.mxu0 0.0
    %1997 = vmatprep.subr.mxu0 0.0
    %1998 = vmatpush1.msra.mxu0 0.0
    %1999 = vmatprep.subr.mxu0 0.0
    %2000 = vmatpush1.msra.mxu0 0.0
    %2001 = vmatprep.subr.mxu0 0.0
    %2002 = vmatpush1.msra.mxu0 0.0
    %2003 = vmatprep.subr.mxu0 0.0
    %2004 = vmatpush1.msra.mxu0 0.0
    %2005 = vmatprep.subr.mxu0 0.0
    %2006 = vmatpush1.msra.mxu0 0.0
    %2007 = vmatprep.subr.mxu0 0.0
    %2008 = vmatpush1.msra.mxu0 0.0
    %2009 = vmatprep.subr.mxu0 0.0
    %2010 = vmatpush1.msra.mxu0 0.0
    %2011 = vmatprep.subr.mxu0 0.0
    %2012 = vmatpush1.msra.mxu0 0.0
    %2013 = vmatprep.subr.mxu0 0.0
    %2014 = vmatpush1.msra.mxu0 0.0
    %2015 = vmatprep.subr.mxu0 0.0
    %2016 = vmatpush1.msra.mxu0 %v1983
    %2017 = vmatprep.subr.mxu0 0.0
    %2018 = vmatpush2.msra.mxu0 0.0
    %2019 = vmatprep.subr.mxu0 0.0
    %2020 = vmatpush2.msra.mxu0 0.0
    %2021 = vmatprep.subr.mxu0 0.0
    %2022 = vmatpush2.msra.mxu0 0.0
    %2023 = vmatprep.subr.mxu0 0.0
    %2024 = vmatpush2.msra.mxu0 0.0
    %2025 = vmatprep.subr.mxu0 0.0
    %2026 = vmatpush2.msra.mxu0 0.0
    %2027 = vmatprep.subr.mxu0 0.0
    %2028 = vmatpush2.msra.mxu0 0.0
    %2029 = vmatprep.subr.mxu0 0.0
    %2030 = vmatpush2.msra.mxu0 0.0
    %2031 = vmatprep.subr.mxu0 0.0
    %2032 = vmatpush2.msra.mxu0 0.0
    %2033 = vmatprep.subr.mxu0 0.0
    %2034 = vmatpush2.msra.mxu0 0.0
    %2035 = vmatprep.subr.mxu0 0.0
    %2036 = vmatpush2.msra.mxu0 0.0
    %2037 = vmatprep.subr.mxu0 0.0
    %2038 = vmatpush2.msra.mxu0 0.0
    %2039 = vmatprep.subr.mxu0 0.0
    %2040 = vmatpush2.msra.mxu0 0.0
    %2041 = vmatprep.subr.mxu0 0.0
    %2042 = vmatpush2.msra.mxu0 0.0
    %2043 = vmatprep.subr.mxu0 0.0
    %2044 = vmatpush2.msra.mxu0 0.0
    %2045 = vmatprep.subr.mxu0 0.0
    %2046 = vmatpush2.msra.mxu0 0.0
    %2047 = vmatprep.subr.mxu0 0.0
    %2048 = vmatpush2.msra.mxu0 0.0
    %2049 = vmatprep.mubr.f32.mxu0 0.0
    %2050 = vmatmul.mubr.f32.gmra.mxu0 %v1981
    %v2051 = vpop.f32.mrf.mxu0
    %v2052 = vadd.f32 0.0, %v2051
    %v2053 = vpop.f32.mrf.mxu0
    %2054 = vdwg.mxu0
    %v2055 = vld [vmem:[%s19 + $0x10] sm:$0xff]
    %v2057 = vsel %vm419, %v2052, 0
    %2059 = vmatprep.subr.mxu0 0.0
    %2060 = vmatpush1.msra.mxu0 0.0
    %2061 = vmatprep.subr.mxu0 0.0
    %2062 = vmatpush1.msra.mxu0 0.0
    %2063 = vmatprep.subr.mxu0 0.0
    %2064 = vmatpush1.msra.mxu0 0.0
    %2065 = vmatprep.subr.mxu0 0.0
    %2066 = vmatpush1.msra.mxu0 0.0
    %2067 = vmatprep.subr.mxu0 0.0
    %2068 = vmatpush1.msra.mxu0 0.0
    %2069 = vmatprep.subr.mxu0 0.0
    %2070 = vmatpush1.msra.mxu0 0.0
    %2071 = vmatprep.subr.mxu0 0.0
    %2072 = vmatpush1.msra.mxu0 0.0
    %2073 = vmatprep.subr.mxu0 0.0
    %2074 = vmatpush1.msra.mxu0 0.0
    %2075 = vmatprep.subr.mxu0 0.0
    %2076 = vmatpush1.msra.mxu0 0.0
    %2077 = vmatprep.subr.mxu0 0.0
    %2078 = vmatpush1.msra.mxu0 0.0
    %2079 = vmatprep.subr.mxu0 0.0
    %2080 = vmatpush1.msra.mxu0 0.0
    %2081 = vmatprep.subr.mxu0 0.0
    %2082 = vmatpush1.msra.mxu0 0.0
    %2083 = vmatprep.subr.mxu0 0.0
    %2084 = vmatpush1.msra.mxu0 0.0
    %2085 = vmatprep.subr.mxu0 0.0
    %2086 = vmatpush1.msra.mxu0 0.0
    %2087 = vmatprep.subr.mxu0 0.0
    %2088 = vmatpush1.msra.mxu0 0.0
    %2089 = vmatprep.subr.mxu0 0.0
    %2090 = vmatpush1.msra.mxu0 %v2055
    %2091 = vmatprep.subr.mxu0 0.0
    %2092 = vmatpush2.msra.mxu0 0.0
    %2093 = vmatprep.subr.mxu0 0.0
    %2094 = vmatpush2.msra.mxu0 0.0
    %2095 = vmatprep.subr.mxu0 0.0
    %2096 = vmatpush2.msra.mxu0 0.0
    %2097 = vmatprep.subr.mxu0 0.0
    %2098 = vmatpush2.msra.mxu0 0.0
    %2099 = vmatprep.subr.mxu0 0.0
    %2100 = vmatpush2.msra.mxu0 0.0
    %2101 = vmatprep.subr.mxu0 0.0
    %2102 = vmatpush2.msra.mxu0 0.0
    %2103 = vmatprep.subr.mxu0 0.0
    %2104 = vmatpush2.msra.mxu0 0.0
    %2105 = vmatprep.subr.mxu0 0.0
    %2106 = vmatpush2.msra.mxu0 0.0
    %2107 = vmatprep.subr.mxu0 0.0
    %2108 = vmatpush2.msra.mxu0 0.0
    %2109 = vmatprep.subr.mxu0 0.0
    %2110 = vmatpush2.msra.mxu0 0.0
    %2111 = vmatprep.subr.mxu0 0.0
    %2112 = vmatpush2.msra.mxu0 0.0
    %2113 = vmatprep.subr.mxu0 0.0
    %2114 = vmatpush2.msra.mxu0 0.0
    %2115 = vmatprep.subr.mxu0 0.0
    %2116 = vmatpush2.msra.mxu0 0.0
    %2117 = vmatprep.subr.mxu0 0.0
    %2118 = vmatpush2.msra.mxu0 0.0
    %2119 = vmatprep.subr.mxu0 0.0
    %2120 = vmatpush2.msra.mxu0 0.0
    %2121 = vmatprep.subr.mxu0 0.0
    %2122 = vmatpush2.msra.mxu0 0.0
    %2123 = vmatprep.mubr.f32.mxu0 0.0
    %2124 = vmatmul.mubr.f32.gmra.mxu0 %v2057
    %v2125 = vpop.f32.mrf.mxu0
    %v2126 = vadd.f32 0.0, %v2125
    %v2127 = vpop.f32.mrf.mxu0
    %2128 = vdwg.mxu0
    %v2129 = vadd.f32 %v1886, %v2126
    %2130 = vrot.lane.b32.xlu0 %v1406, 104
    %v2131 = vpop.permute.xlu0 %2130
    %2132 = vrot.lane.b32.xlu0 %v1410, 72
    %v2133 = vpop.permute.xlu0 %2132
    %v2134 = vsel %vm419, %v2131, 0
    %v2136 = vsel %vm419, %v2133, 0
    %2138 = vmatprep.subr.mxu0 0.0
    %2139 = vmatpush1.xpose.msra.mxu0 0.0
    %2140 = vmatprep.subr.mxu0 0.0
    %2141 = vmatpush1.xpose.msra.mxu0 0.0
    %2142 = vmatprep.subr.mxu0 0.0
    %2143 = vmatpush1.xpose.msra.mxu0 0.0
    %2144 = vmatprep.subr.mxu0 0.0
    %2145 = vmatpush1.xpose.msra.mxu0 0.0
    %2146 = vmatprep.subr.mxu0 0.0
    %2147 = vmatpush1.xpose.msra.mxu0 0.0
    %2148 = vmatprep.subr.mxu0 0.0
    %2149 = vmatpush1.xpose.msra.mxu0 0.0
    %2150 = vmatprep.subr.mxu0 0.0
    %2151 = vmatpush1.xpose.msra.mxu0 0.0
    %2152 = vmatprep.subr.mxu0 0.0
    %2153 = vmatpush1.xpose.msra.mxu0 0.0
    %2154 = vmatprep.subr.mxu0 0.0
    %2155 = vmatpush1.xpose.msra.mxu0 0.0
    %2156 = vmatprep.subr.mxu0 0.0
    %2157 = vmatpush1.xpose.msra.mxu0 0.0
    %2158 = vmatprep.subr.mxu0 0.0
    %2159 = vmatpush1.xpose.msra.mxu0 0.0
    %2160 = vmatprep.subr.mxu0 0.0
    %2161 = vmatpush1.xpose.msra.mxu0 0.0
    %2162 = vmatprep.subr.mxu0 0.0
    %2163 = vmatpush1.xpose.msra.mxu0 0.0
    %2164 = vmatprep.subr.mxu0 0.0
    %2165 = vmatpush1.xpose.msra.mxu0 0.0
    %2166 = vmatprep.subr.mxu0 0.0
    %2167 = vmatpush1.xpose.msra.mxu0 0.0
    %2168 = vmatprep.subr.mxu0 0.0
    %2169 = vmatpush1.xpose.msra.mxu0 %v2136
    %2170 = vmatprep.subr.mxu0 0.0
    %2171 = vmatpush2.xpose.msra.mxu0 0.0
    %2172 = vmatprep.subr.mxu0 0.0
    %2173 = vmatpush2.xpose.msra.mxu0 0.0
    %2174 = vmatprep.subr.mxu0 0.0
    %2175 = vmatpush2.xpose.msra.mxu0 0.0
    %2176 = vmatprep.subr.mxu0 0.0
    %2177 = vmatpush2.xpose.msra.mxu0 0.0
    %2178 = vmatprep.subr.mxu0 0.0
    %2179 = vmatpush2.xpose.msra.mxu0 0.0
    %2180 = vmatprep.subr.mxu0 0.0
    %2181 = vmatpush2.xpose.msra.mxu0 0.0
    %2182 = vmatprep.subr.mxu0 0.0
    %2183 = vmatpush2.xpose.msra.mxu0 0.0
    %2184 = vmatprep.subr.mxu0 0.0
    %2185 = vmatpush2.xpose.msra.mxu0 0.0
    %2186 = vmatprep.subr.mxu0 0.0
    %2187 = vmatpush2.xpose.msra.mxu0 0.0
    %2188 = vmatprep.subr.mxu0 0.0
    %2189 = vmatpush2.xpose.msra.mxu0 0.0
    %2190 = vmatprep.subr.mxu0 0.0
    %2191 = vmatpush2.xpose.msra.mxu0 0.0
    %2192 = vmatprep.subr.mxu0 0.0
    %2193 = vmatpush2.xpose.msra.mxu0 0.0
    %2194 = vmatprep.subr.mxu0 0.0
    %2195 = vmatpush2.xpose.msra.mxu0 0.0
    %2196 = vmatprep.subr.mxu0 0.0
    %2197 = vmatpush2.xpose.msra.mxu0 0.0
    %2198 = vmatprep.subr.mxu0 0.0
    %2199 = vmatpush2.xpose.msra.mxu0 0.0
    %2200 = vmatprep.subr.mxu0 0.0
    %2201 = vmatpush2.xpose.msra.mxu0 0.0
    %2202 = vmatprep.mubr.f32.mxu0 0.0
    %2203 = vmatmul.mubr.f32.gmra.mxu0 %v2134
    %v2204 = vpop.f32.mrf.mxu0
    %v2205 = vadd.f32 0.0, %v2204
    %v2206 = vpop.f32.mrf.mxu0
    %2207 = vdwg.mxu0
    %v2208 = vsel %vm495, %v2205, -inf
    %2209 = vmax.xlane.f32.xlu0 %v2208
    %v2210 = vpop.xlane.xlu0 %2209
    %v2211 = vsub.f32 %v2205, %v2210
    %v2212 = vmul.f32 %v2211, 1.442695
    %v2213 = vpow.pop %v2212
    %v2214 = vsel %vm495, %v2213, 0.0
    %2215 = vadd.xlane.f32.xlu0 %v2214
    %v2216 = vpop.xlane.xlu0 %2215
    %v2217 = vrcp.pop %v2216
    %v2218 = vmul.f32 %v2213, %v2217
    %2219 = vrot.lane.b32.xlu0 %v1410, 40
    %v2220 = vpop.permute.xlu0 %2219
    %v2222 = vsel %vm509, %v2218, 0
    %v2224 = vsel %vm513, %v2220, 0
    %2226 = vmatprep.subr.mxu0 0.0
    %2227 = vmatpush1.msra.mxu0 0.0
    %2228 = vmatprep.subr.mxu0 0.0
    %2229 = vmatpush1.msra.mxu0 0.0
    %2230 = vmatprep.subr.mxu0 0.0
    %2231 = vmatpush1.msra.mxu0 0.0
    %2232 = vmatprep.subr.mxu0 0.0
    %2233 = vmatpush1.msra.mxu0 0.0
    %2234 = vmatprep.subr.mxu0 0.0
    %2235 = vmatpush1.msra.mxu0 0.0
    %2236 = vmatprep.subr.mxu0 0.0
    %2237 = vmatpush1.msra.mxu0 0.0
    %2238 = vmatprep.subr.mxu0 0.0
    %2239 = vmatpush1.msra.mxu0 0.0
    %2240 = vmatprep.subr.mxu0 0.0
    %2241 = vmatpush1.msra.mxu0 0.0
    %2242 = vmatprep.subr.mxu0 0.0
    %2243 = vmatpush1.msra.mxu0 0.0
    %2244 = vmatprep.subr.mxu0 0.0
    %2245 = vmatpush1.msra.mxu0 0.0
    %2246 = vmatprep.subr.mxu0 0.0
    %2247 = vmatpush1.msra.mxu0 0.0
    %2248 = vmatprep.subr.mxu0 0.0
    %2249 = vmatpush1.msra.mxu0 0.0
    %2250 = vmatprep.subr.mxu0 0.0
    %2251 = vmatpush1.msra.mxu0 0.0
    %2252 = vmatprep.subr.mxu0 0.0
    %2253 = vmatpush1.msra.mxu0 0.0
    %2254 = vmatprep.subr.mxu0 0.0
    %2255 = vmatpush1.msra.mxu0 0.0
    %2256 = vmatprep.subr.mxu0 0.0
    %2257 = vmatpush1.msra.mxu0 %v2224
    %2258 = vmatprep.subr.mxu0 0.0
    %2259 = vmatpush2.msra.mxu0 0.0
    %2260 = vmatprep.subr.mxu0 0.0
    %2261 = vmatpush2.msra.mxu0 0.0
    %2262 = vmatprep.subr.mxu0 0.0
    %2263 = vmatpush2.msra.mxu0 0.0
    %2264 = vmatprep.subr.mxu0 0.0
    %2265 = vmatpush2.msra.mxu0 0.0
    %2266 = vmatprep.subr.mxu0 0.0
    %2267 = vmatpush2.msra.mxu0 0.0
    %2268 = vmatprep.subr.mxu0 0.0
    %2269 = vmatpush2.msra.mxu0 0.0
    %2270 = vmatprep.subr.mxu0 0.0
    %2271 = vmatpush2.msra.mxu0 0.0
    %2272 = vmatprep.subr.mxu0 0.0
    %2273 = vmatpush2.msra.mxu0 0.0
    %2274 = vmatprep.subr.mxu0 0.0
    %2275 = vmatpush2.msra.mxu0 0.0
    %2276 = vmatprep.subr.mxu0 0.0
    %2277 = vmatpush2.msra.mxu0 0.0
    %2278 = vmatprep.subr.mxu0 0.0
    %2279 = vmatpush2.msra.mxu0 0.0
    %2280 = vmatprep.subr.mxu0 0.0
    %2281 = vmatpush2.msra.mxu0 0.0
    %2282 = vmatprep.subr.mxu0 0.0
    %2283 = vmatpush2.msra.mxu0 0.0
    %2284 = vmatprep.subr.mxu0 0.0
    %2285 = vmatpush2.msra.mxu0 0.0
    %2286 = vmatprep.subr.mxu0 0.0
    %2287 = vmatpush2.msra.mxu0 0.0
    %2288 = vmatprep.subr.mxu0 0.0
    %2289 = vmatpush2.msra.mxu0 0.0
    %2290 = vmatprep.mubr.f32.mxu0 0.0
    %2291 = vmatmul.mubr.f32.gmra.mxu0 %v2222
    %v2292 = vpop.f32.mrf.mxu0
    %v2293 = vadd.f32 0.0, %v2292
    %v2294 = vpop.f32.mrf.mxu0
    %2295 = vdwg.mxu0
    %v2296 = vld [vmem:[%s19 + $0x18] sm:$0xff]
    %v2298 = vsel %vm419, %v2293, 0
    %2300 = vmatprep.subr.mxu0 0.0
    %2301 = vmatpush1.msra.mxu0 0.0
    %2302 = vmatprep.subr.mxu0 0.0
    %2303 = vmatpush1.msra.mxu0 0.0
    %2304 = vmatprep.subr.mxu0 0.0
    %2305 = vmatpush1.msra.mxu0 0.0
    %2306 = vmatprep.subr.mxu0 0.0
    %2307 = vmatpush1.msra.mxu0 0.0
    %2308 = vmatprep.subr.mxu0 0.0
    %2309 = vmatpush1.msra.mxu0 0.0
    %2310 = vmatprep.subr.mxu0 0.0
    %2311 = vmatpush1.msra.mxu0 0.0
    %2312 = vmatprep.subr.mxu0 0.0
    %2313 = vmatpush1.msra.mxu0 0.0
    %2314 = vmatprep.subr.mxu0 0.0
    %2315 = vmatpush1.msra.mxu0 0.0
    %2316 = vmatprep.subr.mxu0 0.0
    %2317 = vmatpush1.msra.mxu0 0.0
    %2318 = vmatprep.subr.mxu0 0.0
    %2319 = vmatpush1.msra.mxu0 0.0
    %2320 = vmatprep.subr.mxu0 0.0
    %2321 = vmatpush1.msra.mxu0 0.0
    %2322 = vmatprep.subr.mxu0 0.0
    %2323 = vmatpush1.msra.mxu0 0.0
    %2324 = vmatprep.subr.mxu0 0.0
    %2325 = vmatpush1.msra.mxu0 0.0
    %2326 = vmatprep.subr.mxu0 0.0
    %2327 = vmatpush1.msra.mxu0 0.0
    %2328 = vmatprep.subr.mxu0 0.0
    %2329 = vmatpush1.msra.mxu0 0.0
    %2330 = vmatprep.subr.mxu0 0.0
    %2331 = vmatpush1.msra.mxu0 %v2296
    %2332 = vmatprep.subr.mxu0 0.0
    %2333 = vmatpush2.msra.mxu0 0.0
    %2334 = vmatprep.subr.mxu0 0.0
    %2335 = vmatpush2.msra.mxu0 0.0
    %2336 = vmatprep.subr.mxu0 0.0
    %2337 = vmatpush2.msra.mxu0 0.0
    %2338 = vmatprep.subr.mxu0 0.0
    %2339 = vmatpush2.msra.mxu0 0.0
    %2340 = vmatprep.subr.mxu0 0.0
    %2341 = vmatpush2.msra.mxu0 0.0
    %2342 = vmatprep.subr.mxu0 0.0
    %2343 = vmatpush2.msra.mxu0 0.0
    %2344 = vmatprep.subr.mxu0 0.0
    %2345 = vmatpush2.msra.mxu0 0.0
    %2346 = vmatprep.subr.mxu0 0.0
    %2347 = vmatpush2.msra.mxu0 0.0
    %2348 = vmatprep.subr.mxu0 0.0
    %2349 = vmatpush2.msra.mxu0 0.0
    %2350 = vmatprep.subr.mxu0 0.0
    %2351 = vmatpush2.msra.mxu0 0.0
    %2352 = vmatprep.subr.mxu0 0.0
    %2353 = vmatpush2.msra.mxu0 0.0
    %2354 = vmatprep.subr.mxu0 0.0
    %2355 = vmatpush2.msra.mxu0 0.0
    %2356 = vmatprep.subr.mxu0 0.0
    %2357 = vmatpush2.msra.mxu0 0.0
    %2358 = vmatprep.subr.mxu0 0.0
    %2359 = vmatpush2.msra.mxu0 0.0
    %2360 = vmatprep.subr.mxu0 0.0
    %2361 = vmatpush2.msra.mxu0 0.0
    %2362 = vmatprep.subr.mxu0 0.0
    %2363 = vmatpush2.msra.mxu0 0.0
    %2364 = vmatprep.mubr.f32.mxu0 0.0
    %2365 = vmatmul.mubr.f32.gmra.mxu0 %v2298
    %v2366 = vpop.f32.mrf.mxu0
    %v2367 = vadd.f32 0.0, %v2366
    %v2368 = vpop.f32.mrf.mxu0
    %2369 = vdwg.mxu0
    %v2370 = vadd.f32 %v2129, %v2367
    %v2371 = vld [vmem:[%s23] sm:$0x1]
    %v2372 = vld [vmem:[%s21] sm:$0x1]
    %v2374 = vlaneseq
    %v2375 = vshrl.u32 %v2374, 7
    %v2376 = vsub.s32 0, %v2375
    %v2377 = vrot.slane %v2372, %v2376
    %v2379 = vadd.f32 %v2370, %v2377
    %v2381 = vlaneseq
    %v2382 = vshrl.u32 %v2381, 7
    %v2383 = vsub.s32 0, %v2382
    %v2384 = vrot.slane %v2371, %v2383
    %v2386 = vmul.f32 %v2384, %v2379
    %v2388 = vrot.slane %v2386, 3
    %v2390 = vadd.f32 %v274, %v2388
    %v2391 = vadd.f32 %v275, %v2388
    %vm2392 = vcmask 261125
    %2393 = vst.msk [vmem:[#allocation2] sm:$0xe0] %vm2392, %v2390
    %2394 = vst.msk [vmem:[#allocation2 + $0x8] sm:$0x3] %vm282, %v2391
    %v2395 = vld [vmem:[#allocation2] sm:$0xff]
    %v2396 = vld [vmem:[#allocation2 + $0x8] sm:$0x3]
    %v2397 = vld [vmem:[%s25] sm:$0x1]
    %v2398 = vld [vmem:[%s27] sm:$0x1]
    %v2399 = vsel %vm278, %v2395, 0.0
    %2400 = vadd.xlane.f32.xlu0 %v2399
    %v2401 = vpop.xlane.xlu0 %2400
    %v2402 = vsel %vm282, %v2396, 0.0
    %2403 = vadd.xlane.f32.xlu0 %v2402
    %v2404 = vpop.xlane.xlu0 %2403
    %v2405 = vmul.f32 %v2401, %v286
    %v2406 = vmul.f32 %v2404, %v286
    %v2407 = vsub.f32 %v2395, %v2405
    %v2408 = vsub.f32 %v2396, %v2406
    %v2409 = vmul.f32 %v2407, %v2407
    %v2410 = vmul.f32 %v2408, %v2408
    %v2411 = vsel %vm278, %v2409, 0.0
    %2412 = vadd.xlane.f32.xlu0 %v2411
    %v2413 = vpop.xlane.xlu0 %2412
    %v2414 = vsel %vm282, %v2410, 0.0
    %2415 = vadd.xlane.f32.xlu0 %v2414
    %v2416 = vpop.xlane.xlu0 %2415
    %v2417 = vmul.f32 %v2413, %v286
    %v2418 = vmul.f32 %v2416, %v286
    %v2419 = vadd.f32 %v2417, 1e-06
    %v2420 = vadd.f32 %v2418, 1e-06
    %v2421 = vrsqrt.pop %v2419
    %v2422 = vrsqrt.pop %v2420
    %v2423 = vmul.f32 %v2407, %v2421
    %v2424 = vmul.f32 %v2408, %v2422
    %v2426 = vlaneseq
    %v2427 = vshrl.u32 %v2426, 7
    %v2428 = vsub.s32 0, %v2427
    %v2429 = vrot.slane %v2397, %v2428
    %v2431 = vmul.f32 %v2423, %v2429
    %v2432 = vmul.f32 %v2424, %v2429
    %v2434 = vlaneseq
    %v2435 = vshrl.u32 %v2434, 7
    %v2436 = vsub.s32 0, %v2435
    %v2437 = vrot.slane %v2398, %v2436
    %v2439 = vadd.f32 %v2431, %v2437
    %v2440 = vadd.f32 %v2432, %v2437
    %v2441 = vld [vmem:[%s29] sm:$0xff]
    %v2442 = vld [vmem:[%s29 + $0x8] sm:$0xff]
    %v2443 = vld [vmem:[%s29 + $0x10] sm:$0xff]
    %v2444 = vld [vmem:[%s29 + $0x18] sm:$0xff]
    %v2445 = vld [vmem:[%s31] sm:$0x1]
    %v2447 = vlaneseq
    %v2448 = vshrl.u32 %v2447, 7
    %v2449 = vsub.s32 0, %v2448
    %v2450 = vrot.slane %v2445, %v2449
    %v2453 = vsel %vm278, %v2439, 0
    %v2456 = vsel %vm278, %v2440, 0
    %2458 = vmatprep.subr.mxu0 0.0
    %2459 = vmatpush1.msra.mxu0 0.0
    %2460 = vmatprep.subr.mxu0 0.0
    %2461 = vmatpush1.msra.mxu0 0.0
    %2462 = vmatprep.subr.mxu0 0.0
    %2463 = vmatpush1.msra.mxu0 0.0
    %2464 = vmatprep.subr.mxu0 0.0
    %2465 = vmatpush1.msra.mxu0 0.0
    %2466 = vmatprep.subr.mxu0 0.0
    %2467 = vmatpush1.msra.mxu0 0.0
    %2468 = vmatprep.subr.mxu0 0.0
    %2469 = vmatpush1.msra.mxu0 0.0
    %2470 = vmatprep.subr.mxu0 0.0
    %2471 = vmatpush1.msra.mxu0 0.0
    %2472 = vmatprep.subr.mxu0 0.0
    %2473 = vmatpush1.msra.mxu0 0.0
    %2474 = vmatprep.subr.mxu0 0.0
    %2475 = vmatpush1.msra.mxu0 0.0
    %2476 = vmatprep.subr.mxu0 0.0
    %2477 = vmatpush1.msra.mxu0 0.0
    %2478 = vmatprep.subr.mxu0 0.0
    %2479 = vmatpush1.msra.mxu0 0.0
    %2480 = vmatprep.subr.mxu0 0.0
    %2481 = vmatpush1.msra.mxu0 0.0
    %2482 = vmatprep.subr.mxu0 0.0
    %2483 = vmatpush1.msra.mxu0 %v2444
    %2484 = vmatprep.subr.mxu0 0.0
    %2485 = vmatpush1.msra.mxu0 %v2443
    %2486 = vmatprep.subr.mxu0 0.0
    %2487 = vmatpush1.msra.mxu0 %v2442
    %2488 = vmatprep.subr.mxu0 0.0
    %2489 = vmatpush1.msra.mxu0 %v2441
    %2490 = vmatprep.subr.mxu0 0.0
    %2491 = vmatpush2.msra.mxu0 0.0
    %2492 = vmatprep.subr.mxu0 0.0
    %2493 = vmatpush2.msra.mxu0 0.0
    %2494 = vmatprep.subr.mxu0 0.0
    %2495 = vmatpush2.msra.mxu0 0.0
    %2496 = vmatprep.subr.mxu0 0.0
    %2497 = vmatpush2.msra.mxu0 0.0
    %2498 = vmatprep.subr.mxu0 0.0
    %2499 = vmatpush2.msra.mxu0 0.0
    %2500 = vmatprep.subr.mxu0 0.0
    %2501 = vmatpush2.msra.mxu0 0.0
    %2502 = vmatprep.subr.mxu0 0.0
    %2503 = vmatpush2.msra.mxu0 0.0
    %2504 = vmatprep.subr.mxu0 0.0
    %2505 = vmatpush2.msra.mxu0 0.0
    %2506 = vmatprep.subr.mxu0 0.0
    %2507 = vmatpush2.msra.mxu0 0.0
    %2508 = vmatprep.subr.mxu0 0.0
    %2509 = vmatpush2.msra.mxu0 0.0
    %2510 = vmatprep.subr.mxu0 0.0
    %2511 = vmatpush2.msra.mxu0 0.0
    %2512 = vmatprep.subr.mxu0 0.0
    %2513 = vmatpush2.msra.mxu0 0.0
    %2514 = vmatprep.subr.mxu0 0.0
    %2515 = vmatpush2.msra.mxu0 0.0
    %2516 = vmatprep.subr.mxu0 0.0
    %2517 = vmatpush2.msra.mxu0 0.0
    %2518 = vmatprep.subr.mxu0 0.0
    %2519 = vmatpush2.msra.mxu0 0.0
    %2520 = vmatprep.subr.mxu0 0.0
    %2521 = vmatpush2.msra.mxu0 0.0
    %2522 = vmatprep.mubr.f32.mxu0 0.0
    %2523 = vmatmul.mubr.f32.gmra.mxu0 %v2453
    %v2524 = vpop.f32.mrf.mxu0
    %v2525 = vadd.f32 %v2450, %v2524
    %v2526 = vpop.f32.mrf.mxu0
    %2527 = vmatprep.mubr.f32.mxu0 0.0
    %2528 = vmatmul.mubr.f32.gmra.mxu0 %v2456
    %v2529 = vpop.f32.mrf.mxu0
    %v2530 = vadd.f32 %v2450, %v2529
    %v2531 = vpop.f32.mrf.mxu0
    %2532 = vdwg.mxu0
    %v2533 = vmul.f32 %v2525, 0.5
    %v2534 = vmul.f32 %v2530, 0.5
    %v2535 = vmul.f32 %v2525, 0.70710677
    %v2536 = vmul.f32 %v2530, 0.70710677
    %v2537 = vand.u32 2147483647, %v2535
    %v2538 = vand.u32 2147483647, %v2536
    %v2539 = vmul.f32 %v2537, 0.3275911
    %v2540 = vmul.f32 %v2538, 0.3275911
    %v2541 = vadd.f32 %v2539, 1.0
    %v2542 = vadd.f32 %v2540, 1.0
    %v2543 = vrcp.pop %v2541
    %v2544 = vmul.f32 1.0, %v2543
    %v2545 = vrcp.pop %v2542
    %v2546 = vmul.f32 1.0, %v2545
    %v2547 = vmul.f32 %v2544, 1.0614054
    %v2548 = vmul.f32 %v2546, 1.0614054
    %v2549 = vadd.f32 %v2547, -1.4531521
    %v2550 = vadd.f32 %v2548, -1.4531521
    %v2551 = vmul.f32 %v2549, %v2544
    %v2552 = vmul.f32 %v2550, %v2546
    %v2553 = vadd.f32 %v2551, 1.4214138
    %v2554 = vadd.f32 %v2552, 1.4214138
    %v2555 = vmul.f32 %v2553, %v2544
    %v2556 = vmul.f32 %v2554, %v2546
    %v2557 = vadd.f32 %v2555, -0.28449672
    %v2558 = vadd.f32 %v2556, -0.28449672
    %v2559 = vmul.f32 %v2557, %v2544
    %v2560 = vmul.f32 %v2558, %v2546
    %v2561 = vadd.f32 %v2559, 0.2548296
    %v2562 = vadd.f32 %v2560, 0.2548296
    %v2563 = vmul.f32 %v2561, %v2544
    %v2564 = vmul.f32 %v2562, %v2546
    %v2565 = vsub.f32 0.0, %v2537
    %v2566 = vsub.f32 0.0, %v2538
    %v2567 = vmul.f32 %v2565, %v2537
    %v2568 = vmul.f32 %v2566, %v2538
    %v2569 = vmul.f32 %v2567, 1.442695
    %v2570 = vpow.pop %v2569
    %v2571 = vmul.f32 %v2568, 1.442695
    %v2572 = vpow.pop %v2571
    %v2573 = vmul.f32 %v2563, %v2570
    %v2574 = vmul.f32 %v2564, %v2572
    %v2575 = vsub.f32 1.0, %v2573
    %v2576 = vsub.f32 1.0, %v2574
    %vm2577 = vcmp.lt.f32.partialorder %v2535, 0.0
    %vm2578 = vcmp.lt.f32.partialorder %v2536, 0.0
    %v2579 = vsub.f32 0.0, %v2575
    %v2580 = vsub.f32 0.0, %v2576
    %v2581 = vsel %vm2577, %v2579, %v2575
    %v2582 = vsel %vm2578, %v2580, %v2576
    %v2583 = vadd.f32 %v2581, 1.0
    %v2584 = vadd.f32 %v2582, 1.0
    %v2585 = vmul.f32 %v2533, %v2583
    %v2586 = vmul.f32 %v2534, %v2584
    %v2587 = vld [vmem:[%s33] sm:$0xff]
    %v2588 = vld [vmem:[%s33 + $0x8] sm:$0xff]
    %v2589 = vld [vmem:[%s33 + $0x10] sm:$0xff]
    %v2590 = vld [vmem:[%s33 + $0x18] sm:$0xff]
    %v2591 = vld [vmem:[%s33 + $0x20] sm:$0xff]
    %v2592 = vld [vmem:[%s33 + $0x28] sm:$0xff]
    %v2593 = vld [vmem:[%s33 + $0x30] sm:$0xff]
    %v2594 = vld [vmem:[%s33 + $0x38] sm:$0xff]
    %v2595 = vld [vmem:[%s33 + $0x40] sm:$0xff]
    %v2596 = vld [vmem:[%s33 + $0x48] sm:$0xff]
    %v2597 = vld [vmem:[%s33 + $0x50] sm:$0xff]
    %v2598 = vld [vmem:[%s33 + $0x58] sm:$0xff]
    %v2599 = vld [vmem:[%s33 + $0x60] sm:$0xff]
    %v2600 = vld [vmem:[%s33 + $0x68] sm:$0xff]
    %v2601 = vld [vmem:[%s33 + $0x70] sm:$0xff]
    %v2602 = vld [vmem:[%s33 + $0x78] sm:$0xff]
    %v2603 = vld [vmem:[%s35] sm:$0x1]
    %v2605 = vlaneseq
    %v2606 = vshrl.u32 %v2605, 7
    %v2607 = vsub.s32 0, %v2606
    %v2608 = vrot.slane %v2603, %v2607
    %2610 = vmatprep.subr.mxu0 0.0
    %2611 = vmatpush1.msra.mxu0 %v2602
    %2612 = vmatprep.subr.mxu0 0.0
    %2613 = vmatpush1.msra.mxu0 %v2601
    %2614 = vmatprep.subr.mxu0 0.0
    %2615 = vmatpush1.msra.mxu0 %v2600
    %2616 = vmatprep.subr.mxu0 0.0
    %2617 = vmatpush1.msra.mxu0 %v2599
    %2618 = vmatprep.subr.mxu0 0.0
    %2619 = vmatpush1.msra.mxu0 %v2598
    %2620 = vmatprep.subr.mxu0 0.0
    %2621 = vmatpush1.msra.mxu0 %v2597
    %2622 = vmatprep.subr.mxu0 0.0
    %2623 = vmatpush1.msra.mxu0 %v2596
    %2624 = vmatprep.subr.mxu0 0.0
    %2625 = vmatpush1.msra.mxu0 %v2595
    %2626 = vmatprep.subr.mxu0 0.0
    %2627 = vmatpush1.msra.mxu0 %v2594
    %2628 = vmatprep.subr.mxu0 0.0
    %2629 = vmatpush1.msra.mxu0 %v2593
    %2630 = vmatprep.subr.mxu0 0.0
    %2631 = vmatpush1.msra.mxu0 %v2592
    %2632 = vmatprep.subr.mxu0 0.0
    %2633 = vmatpush1.msra.mxu0 %v2591
    %2634 = vmatprep.subr.mxu0 0.0
    %2635 = vmatpush1.msra.mxu0 %v2590
    %2636 = vmatprep.subr.mxu0 0.0
    %2637 = vmatpush1.msra.mxu0 %v2589
    %2638 = vmatprep.subr.mxu0 0.0
    %2639 = vmatpush1.msra.mxu0 %v2588
    %2640 = vmatprep.subr.mxu0 0.0
    %2641 = vmatpush1.msra.mxu0 %v2587
    %2642 = vmatprep.subr.mxu0 0.0
    %2643 = vmatpush2.msra.mxu0 0.0
    %2644 = vmatprep.subr.mxu0 0.0
    %2645 = vmatpush2.msra.mxu0 0.0
    %2646 = vmatprep.subr.mxu0 0.0
    %2647 = vmatpush2.msra.mxu0 0.0
    %2648 = vmatprep.subr.mxu0 0.0
    %2649 = vmatpush2.msra.mxu0 0.0
    %2650 = vmatprep.subr.mxu0 0.0
    %2651 = vmatpush2.msra.mxu0 0.0
    %2652 = vmatprep.subr.mxu0 0.0
    %2653 = vmatpush2.msra.mxu0 0.0
    %2654 = vmatprep.subr.mxu0 0.0
    %2655 = vmatpush2.msra.mxu0 0.0
    %2656 = vmatprep.subr.mxu0 0.0
    %2657 = vmatpush2.msra.mxu0 0.0
    %2658 = vmatprep.subr.mxu0 0.0
    %2659 = vmatpush2.msra.mxu0 0.0
    %2660 = vmatprep.subr.mxu0 0.0
    %2661 = vmatpush2.msra.mxu0 0.0
    %2662 = vmatprep.subr.mxu0 0.0
    %2663 = vmatpush2.msra.mxu0 0.0
    %2664 = vmatprep.subr.mxu0 0.0
    %2665 = vmatpush2.msra.mxu0 0.0
    %2666 = vmatprep.subr.mxu0 0.0
    %2667 = vmatpush2.msra.mxu0 0.0
    %2668 = vmatprep.subr.mxu0 0.0
    %2669 = vmatpush2.msra.mxu0 0.0
    %2670 = vmatprep.subr.mxu0 0.0
    %2671 = vmatpush2.msra.mxu0 0.0
    %2672 = vmatprep.subr.mxu0 0.0
    %2673 = vmatpush2.msra.mxu0 0.0
    %2674 = vmatprep.mubr.f32.mxu0 0.0
    %2675 = vmatmul.mubr.f32.gmra.mxu0 %v2585
    %v2676 = vpop.f32.mrf.mxu0
    %v2677 = vadd.f32 %v2608, %v2676
    %v2678 = vpop.f32.mrf.mxu0
    %2679 = vmatprep.mubr.f32.mxu0 0.0
    %2680 = vmatmul.mubr.f32.gmra.mxu0 %v2586
    %v2681 = vpop.f32.mrf.mxu0
    %v2682 = vadd.f32 %v2608, %v2681
    %v2683 = vpop.f32.mrf.mxu0
    %2684 = vdwg.mxu0
    %v2685 = vld [vmem:[%s37] sm:$0x1]
    %v2687 = vlaneseq
    %v2688 = vshrl.u32 %v2687, 7
    %v2689 = vsub.s32 0, %v2688
    %v2690 = vrot.slane %v2685, %v2689
    %v2692 = vmul.f32 %v2690, %v2677
    %v2693 = vmul.f32 %v2690, %v2682
    %v2694 = vadd.f32 %v2395, %v2692
    %v2695 = vadd.f32 %v2396, %v2693
    %2696 = vst.msk [vmem:[#allocation2] sm:$0xff] %vm278, %v2694
    %2697 = vst.msk [vmem:[#allocation2 + $0x8] sm:$0x3] %vm282, %v2695
    %v2698 = vld [vmem:[#allocation2] sm:$0xff]
    %v2699 = vld [vmem:[#allocation2 + $0x8] sm:$0x3]
    %v2700 = vld [vmem:[%s39] sm:$0x1]
    %v2701 = vld [vmem:[%s41] sm:$0x1]
    %v2702 = vsel %vm278, %v2698, 0.0
    %2703 = vadd.xlane.f32.xlu0 %v2702
    %v2704 = vpop.xlane.xlu0 %2703
    %v2705 = vsel %vm282, %v2699, 0.0
    %2706 = vadd.xlane.f32.xlu0 %v2705
    %v2707 = vpop.xlane.xlu0 %2706
    %v2708 = vmul.f32 %v2704, %v286
    %v2709 = vmul.f32 %v2707, %v286
    %v2710 = vsub.f32 %v2698, %v2708
    %v2711 = vsub.f32 %v2699, %v2709
    %v2712 = vmul.f32 %v2710, %v2710
    %v2713 = vmul.f32 %v2711, %v2711
    %v2714 = vsel %vm278, %v2712, 0.0
    %2715 = vadd.xlane.f32.xlu0 %v2714
    %v2716 = vpop.xlane.xlu0 %2715
    %v2717 = vsel %vm282, %v2713, 0.0
    %2718 = vadd.xlane.f32.xlu0 %v2717
    %v2719 = vpop.xlane.xlu0 %2718
    %v2720 = vmul.f32 %v2716, %v286
    %v2721 = vmul.f32 %v2719, %v286
    %v2722 = vadd.f32 %v2720, 1e-06
    %v2723 = vadd.f32 %v2721, 1e-06
    %v2724 = vrsqrt.pop %v2722
    %v2725 = vrsqrt.pop %v2723
    %v2726 = vmul.f32 %v2710, %v2724
    %v2727 = vmul.f32 %v2711, %v2725
    %v2729 = vlaneseq
    %v2730 = vshrl.u32 %v2729, 7
    %v2731 = vsub.s32 0, %v2730
    %v2732 = vrot.slane %v2700, %v2731
    %v2734 = vmul.f32 %v2726, %v2732
    %v2735 = vmul.f32 %v2727, %v2732
    %v2737 = vlaneseq
    %v2738 = vshrl.u32 %v2737, 7
    %v2739 = vsub.s32 0, %v2738
    %v2740 = vrot.slane %v2701, %v2739
    %v2742 = vadd.f32 %v2734, %v2740
    %v2743 = vadd.f32 %v2735, %v2740
    %v2744 = vld [vmem:[%s43] sm:$0xff]
    %v2745 = vld [vmem:[%s43 + $0x8] sm:$0xff]
    %v2746 = vld [vmem:[%s43 + $0x10] sm:$0xff]
    %v2747 = vld [vmem:[%s43 + $0x18] sm:$0xff]
    %v2748 = vld [vmem:[%s45] sm:$0x1]
    %v2750 = vlaneseq
    %v2751 = vshrl.u32 %v2750, 7
    %v2752 = vsub.s32 0, %v2751
    %v2753 = vrot.slane %v2748, %v2752
    %v2756 = vsel %vm278, %v2742, 0
    %v2759 = vsel %vm278, %v2743, 0
    %2761 = vmatprep.subr.mxu0 0.0
    %2762 = vmatpush1.msra.mxu0 0.0
    %2763 = vmatprep.subr.mxu0 0.0
    %2764 = vmatpush1.msra.mxu0 0.0
    %2765 = vmatprep.subr.mxu0 0.0
    %2766 = vmatpush1.msra.mxu0 0.0
    %2767 = vmatprep.subr.mxu0 0.0
    %2768 = vmatpush1.msra.mxu0 0.0
    %2769 = vmatprep.subr.mxu0 0.0
    %2770 = vmatpush1.msra.mxu0 0.0
    %2771 = vmatprep.subr.mxu0 0.0
    %2772 = vmatpush1.msra.mxu0 0.0
    %2773 = vmatprep.subr.mxu0 0.0
    %2774 = vmatpush1.msra.mxu0 0.0
    %2775 = vmatprep.subr.mxu0 0.0
    %2776 = vmatpush1.msra.mxu0 0.0
    %2777 = vmatprep.subr.mxu0 0.0
    %2778 = vmatpush1.msra.mxu0 0.0
    %2779 = vmatprep.subr.mxu0 0.0
    %2780 = vmatpush1.msra.mxu0 0.0
    %2781 = vmatprep.subr.mxu0 0.0
    %2782 = vmatpush1.msra.mxu0 0.0
    %2783 = vmatprep.subr.mxu0 0.0
    %2784 = vmatpush1.msra.mxu0 0.0
    %2785 = vmatprep.subr.mxu0 0.0
    %2786 = vmatpush1.msra.mxu0 %v2747
    %2787 = vmatprep.subr.mxu0 0.0
    %2788 = vmatpush1.msra.mxu0 %v2746
    %2789 = vmatprep.subr.mxu0 0.0
    %2790 = vmatpush1.msra.mxu0 %v2745
    %2791 = vmatprep.subr.mxu0 0.0
    %2792 = vmatpush1.msra.mxu0 %v2744
    %2793 = vmatprep.subr.mxu0 0.0
    %2794 = vmatpush2.msra.mxu0 0.0
    %2795 = vmatprep.subr.mxu0 0.0
    %2796 = vmatpush2.msra.mxu0 0.0
    %2797 = vmatprep.subr.mxu0 0.0
    %2798 = vmatpush2.msra.mxu0 0.0
    %2799 = vmatprep.subr.mxu0 0.0
    %2800 = vmatpush2.msra.mxu0 0.0
    %2801 = vmatprep.subr.mxu0 0.0
    %2802 = vmatpush2.msra.mxu0 0.0
    %2803 = vmatprep.subr.mxu0 0.0
    %2804 = vmatpush2.msra.mxu0 0.0
    %2805 = vmatprep.subr.mxu0 0.0
    %2806 = vmatpush2.msra.mxu0 0.0
    %2807 = vmatprep.subr.mxu0 0.0
    %2808 = vmatpush2.msra.mxu0 0.0
    %2809 = vmatprep.subr.mxu0 0.0
    %2810 = vmatpush2.msra.mxu0 0.0
    %2811 = vmatprep.subr.mxu0 0.0
    %2812 = vmatpush2.msra.mxu0 0.0
    %2813 = vmatprep.subr.mxu0 0.0
    %2814 = vmatpush2.msra.mxu0 0.0
    %2815 = vmatprep.subr.mxu0 0.0
    %2816 = vmatpush2.msra.mxu0 0.0
    %2817 = vmatprep.subr.mxu0 0.0
    %2818 = vmatpush2.msra.mxu0 0.0
    %2819 = vmatprep.subr.mxu0 0.0
    %2820 = vmatpush2.msra.mxu0 0.0
    %2821 = vmatprep.subr.mxu0 0.0
    %2822 = vmatpush2.msra.mxu0 0.0
    %2823 = vmatprep.subr.mxu0 0.0
    %2824 = vmatpush2.msra.mxu0 0.0
    %2825 = vmatprep.mubr.f32.mxu0 0.0
    %2826 = vmatmul.mubr.f32.gmra.mxu0 %v2756
    %v2827 = vpop.f32.mrf.mxu0
    %v2828 = vadd.f32 %v2753, %v2827
    %v2829 = vpop.f32.mrf.mxu0
    %2830 = vmatprep.mubr.f32.mxu0 0.0
    %2831 = vmatmul.mubr.f32.gmra.mxu0 %v2759
    %v2832 = vpop.f32.mrf.mxu0
    %v2833 = vadd.f32 %v2753, %v2832
    %v2834 = vpop.f32.mrf.mxu0
    %2835 = vdwg.mxu0
    %v2836 = vmul.f32 %v2828, 0.35355338
    %2838 = vrot.lane.b32.xlu0 %v2828, 96
    %v2839 = vpop.permute.xlu0 %2838
    %v2841 = vsel %vm419, %v2836, 0
    %v2843 = vsel %vm419, %v2839, 0
    %2845 = vmatprep.subr.mxu0 0.0
    %2846 = vmatpush1.xpose.msra.mxu0 0.0
    %2847 = vmatprep.subr.mxu0 0.0
    %2848 = vmatpush1.xpose.msra.mxu0 0.0
    %2849 = vmatprep.subr.mxu0 0.0
    %2850 = vmatpush1.xpose.msra.mxu0 0.0
    %2851 = vmatprep.subr.mxu0 0.0
    %2852 = vmatpush1.xpose.msra.mxu0 0.0
    %2853 = vmatprep.subr.mxu0 0.0
    %2854 = vmatpush1.xpose.msra.mxu0 0.0
    %2855 = vmatprep.subr.mxu0 0.0
    %2856 = vmatpush1.xpose.msra.mxu0 0.0
    %2857 = vmatprep.subr.mxu0 0.0
    %2858 = vmatpush1.xpose.msra.mxu0 0.0
    %2859 = vmatprep.subr.mxu0 0.0
    %2860 = vmatpush1.xpose.msra.mxu0 0.0
    %2861 = vmatprep.subr.mxu0 0.0
    %2862 = vmatpush1.xpose.msra.mxu0 0.0
    %2863 = vmatprep.subr.mxu0 0.0
    %2864 = vmatpush1.xpose.msra.mxu0 0.0
    %2865 = vmatprep.subr.mxu0 0.0
    %2866 = vmatpush1.xpose.msra.mxu0 0.0
    %2867 = vmatprep.subr.mxu0 0.0
    %2868 = vmatpush1.xpose.msra.mxu0 0.0
    %2869 = vmatprep.subr.mxu0 0.0
    %2870 = vmatpush1.xpose.msra.mxu0 0.0
    %2871 = vmatprep.subr.mxu0 0.0
    %2872 = vmatpush1.xpose.msra.mxu0 0.0
    %2873 = vmatprep.subr.mxu0 0.0
    %2874 = vmatpush1.xpose.msra.mxu0 0.0
    %2875 = vmatprep.subr.mxu0 0.0
    %2876 = vmatpush1.xpose.msra.mxu0 %v2843
    %2877 = vmatprep.subr.mxu0 0.0
    %2878 = vmatpush2.xpose.msra.mxu0 0.0
    %2879 = vmatprep.subr.mxu0 0.0
    %2880 = vmatpush2.xpose.msra.mxu0 0.0
    %2881 = vmatprep.subr.mxu0 0.0
    %2882 = vmatpush2.xpose.msra.mxu0 0.0
    %2883 = vmatprep.subr.mxu0 0.0
    %2884 = vmatpush2.xpose.msra.mxu0 0.0
    %2885 = vmatprep.subr.mxu0 0.0
    %2886 = vmatpush2.xpose.msra.mxu0 0.0
    %2887 = vmatprep.subr.mxu0 0.0
    %2888 = vmatpush2.xpose.msra.mxu0 0.0
    %2889 = vmatprep.subr.mxu0 0.0
    %2890 = vmatpush2.xpose.msra.mxu0 0.0
    %2891 = vmatprep.subr.mxu0 0.0
    %2892 = vmatpush2.xpose.msra.mxu0 0.0
    %2893 = vmatprep.subr.mxu0 0.0
    %2894 = vmatpush2.xpose.msra.mxu0 0.0
    %2895 = vmatprep.subr.mxu0 0.0
    %2896 = vmatpush2.xpose.msra.mxu0 0.0
    %2897 = vmatprep.subr.mxu0 0.0
    %2898 = vmatpush2.xpose.msra.mxu0 0.0
    %2899 = vmatprep.subr.mxu0 0.0
    %2900 = vmatpush2.xpose.msra.mxu0 0.0
    %2901 = vmatprep.subr.mxu0 0.0
    %2902 = vmatpush2.xpose.msra.mxu0 0.0
    %2903 = vmatprep.subr.mxu0 0.0
    %2904 = vmatpush2.xpose.msra.mxu0 0.0
    %2905 = vmatprep.subr.mxu0 0.0
    %2906 = vmatpush2.xpose.msra.mxu0 0.0
    %2907 = vmatprep.subr.mxu0 0.0
    %2908 = vmatpush2.xpose.msra.mxu0 0.0
    %2909 = vmatprep.mubr.f32.mxu0 0.0
    %2910 = vmatmul.mubr.f32.gmra.mxu0 %v2841
    %v2911 = vpop.f32.mrf.mxu0
    %v2912 = vadd.f32 0.0, %v2911
    %v2913 = vpop.f32.mrf.mxu0
    %2914 = vdwg.mxu0
    %v2915 = vsel %vm495, %v2912, -inf
    %2916 = vmax.xlane.f32.xlu0 %v2915
    %v2917 = vpop.xlane.xlu0 %2916
    %v2918 = vsub.f32 %v2912, %v2917
    %v2919 = vmul.f32 %v2918, 1.442695
    %v2920 = vpow.pop %v2919
    %v2921 = vsel %vm495, %v2920, 0.0
    %2922 = vadd.xlane.f32.xlu0 %v2921
    %v2923 = vpop.xlane.xlu0 %2922
    %v2924 = vrcp.pop %v2923
    %v2925 = vmul.f32 %v2920, %v2924
    %2926 = vrot.lane.b32.xlu0 %v2828, 64
    %v2927 = vpop.permute.xlu0 %2926
    %v2929 = vsel %vm509, %v2925, 0
    %v2931 = vsel %vm513, %v2927, 0
    %2933 = vmatprep.subr.mxu0 0.0
    %2934 = vmatpush1.msra.mxu0 0.0
    %2935 = vmatprep.subr.mxu0 0.0
    %2936 = vmatpush1.msra.mxu0 0.0
    %2937 = vmatprep.subr.mxu0 0.0
    %2938 = vmatpush1.msra.mxu0 0.0
    %2939 = vmatprep.subr.mxu0 0.0
    %2940 = vmatpush1.msra.mxu0 0.0
    %2941 = vmatprep.subr.mxu0 0.0
    %2942 = vmatpush1.msra.mxu0 0.0
    %2943 = vmatprep.subr.mxu0 0.0
    %2944 = vmatpush1.msra.mxu0 0.0
    %2945 = vmatprep.subr.mxu0 0.0
    %2946 = vmatpush1.msra.mxu0 0.0
    %2947 = vmatprep.subr.mxu0 0.0
    %2948 = vmatpush1.msra.mxu0 0.0
    %2949 = vmatprep.subr.mxu0 0.0
    %2950 = vmatpush1.msra.mxu0 0.0
    %2951 = vmatprep.subr.mxu0 0.0
    %2952 = vmatpush1.msra.mxu0 0.0
    %2953 = vmatprep.subr.mxu0 0.0
    %2954 = vmatpush1.msra.mxu0 0.0
    %2955 = vmatprep.subr.mxu0 0.0
    %2956 = vmatpush1.msra.mxu0 0.0
    %2957 = vmatprep.subr.mxu0 0.0
    %2958 = vmatpush1.msra.mxu0 0.0
    %2959 = vmatprep.subr.mxu0 0.0
    %2960 = vmatpush1.msra.mxu0 0.0
    %2961 = vmatprep.subr.mxu0 0.0
    %2962 = vmatpush1.msra.mxu0 0.0
    %2963 = vmatprep.subr.mxu0 0.0
    %2964 = vmatpush1.msra.mxu0 %v2931
    %2965 = vmatprep.subr.mxu0 0.0
    %2966 = vmatpush2.msra.mxu0 0.0
    %2967 = vmatprep.subr.mxu0 0.0
    %2968 = vmatpush2.msra.mxu0 0.0
    %2969 = vmatprep.subr.mxu0 0.0
    %2970 = vmatpush2.msra.mxu0 0.0
    %2971 = vmatprep.subr.mxu0 0.0
    %2972 = vmatpush2.msra.mxu0 0.0
    %2973 = vmatprep.subr.mxu0 0.0
    %2974 = vmatpush2.msra.mxu0 0.0
    %2975 = vmatprep.subr.mxu0 0.0
    %2976 = vmatpush2.msra.mxu0 0.0
    %2977 = vmatprep.subr.mxu0 0.0
    %2978 = vmatpush2.msra.mxu0 0.0
    %2979 = vmatprep.subr.mxu0 0.0
    %2980 = vmatpush2.msra.mxu0 0.0
    %2981 = vmatprep.subr.mxu0 0.0
    %2982 = vmatpush2.msra.mxu0 0.0
    %2983 = vmatprep.subr.mxu0 0.0
    %2984 = vmatpush2.msra.mxu0 0.0
    %2985 = vmatprep.subr.mxu0 0.0
    %2986 = vmatpush2.msra.mxu0 0.0
    %2987 = vmatprep.subr.mxu0 0.0
    %2988 = vmatpush2.msra.mxu0 0.0
    %2989 = vmatprep.subr.mxu0 0.0
    %2990 = vmatpush2.msra.mxu0 0.0
    %2991 = vmatprep.subr.mxu0 0.0
    %2992 = vmatpush2.msra.mxu0 0.0
    %2993 = vmatprep.subr.mxu0 0.0
    %2994 = vmatpush2.msra.mxu0 0.0
    %2995 = vmatprep.subr.mxu0 0.0
    %2996 = vmatpush2.msra.mxu0 0.0
    %2997 = vmatprep.mubr.f32.mxu0 0.0
    %2998 = vmatmul.mubr.f32.gmra.mxu0 %v2929
    %v2999 = vpop.f32.mrf.mxu0
    %v3000 = vadd.f32 0.0, %v2999
    %v3001 = vpop.f32.mrf.mxu0
    %3002 = vdwg.mxu0
    %v3003 = vld [vmem:[%s47] sm:$0xff]
    %3004 = vrot.lane.b32.xlu0 %v2836, 120
    %v3005 = vpop.permute.xlu0 %3004
    %3006 = vrot.lane.b32.xlu0 %v2828, 88
    %v3007 = vpop.permute.xlu0 %3006
    %v3008 = vsel %vm419, %v3005, 0
    %v3010 = vsel %vm419, %v3007, 0
    %3012 = vmatprep.subr.mxu0 0.0
    %3013 = vmatpush1.xpose.msra.mxu0 0.0
    %3014 = vmatprep.subr.mxu0 0.0
    %3015 = vmatpush1.xpose.msra.mxu0 0.0
    %3016 = vmatprep.subr.mxu0 0.0
    %3017 = vmatpush1.xpose.msra.mxu0 0.0
    %3018 = vmatprep.subr.mxu0 0.0
    %3019 = vmatpush1.xpose.msra.mxu0 0.0
    %3020 = vmatprep.subr.mxu0 0.0
    %3021 = vmatpush1.xpose.msra.mxu0 0.0
    %3022 = vmatprep.subr.mxu0 0.0
    %3023 = vmatpush1.xpose.msra.mxu0 0.0
    %3024 = vmatprep.subr.mxu0 0.0
    %3025 = vmatpush1.xpose.msra.mxu0 0.0
    %3026 = vmatprep.subr.mxu0 0.0
    %3027 = vmatpush1.xpose.msra.mxu0 0.0
    %3028 = vmatprep.subr.mxu0 0.0
    %3029 = vmatpush1.xpose.msra.mxu0 0.0
    %3030 = vmatprep.subr.mxu0 0.0
    %3031 = vmatpush1.xpose.msra.mxu0 0.0
    %3032 = vmatprep.subr.mxu0 0.0
    %3033 = vmatpush1.xpose.msra.mxu0 0.0
    %3034 = vmatprep.subr.mxu0 0.0
    %3035 = vmatpush1.xpose.msra.mxu0 0.0
    %3036 = vmatprep.subr.mxu0 0.0
    %3037 = vmatpush1.xpose.msra.mxu0 0.0
    %3038 = vmatprep.subr.mxu0 0.0
    %3039 = vmatpush1.xpose.msra.mxu0 0.0
    %3040 = vmatprep.subr.mxu0 0.0
    %3041 = vmatpush1.xpose.msra.mxu0 0.0
    %3042 = vmatprep.subr.mxu0 0.0
    %3043 = vmatpush1.xpose.msra.mxu0 %v3010
    %3044 = vmatprep.subr.mxu0 0.0
    %3045 = vmatpush2.xpose.msra.mxu0 0.0
    %3046 = vmatprep.subr.mxu0 0.0
    %3047 = vmatpush2.xpose.msra.mxu0 0.0
    %3048 = vmatprep.subr.mxu0 0.0
    %3049 = vmatpush2.xpose.msra.mxu0 0.0
    %3050 = vmatprep.subr.mxu0 0.0
    %3051 = vmatpush2.xpose.msra.mxu0 0.0
    %3052 = vmatprep.subr.mxu0 0.0
    %3053 = vmatpush2.xpose.msra.mxu0 0.0
    %3054 = vmatprep.subr.mxu0 0.0
    %3055 = vmatpush2.xpose.msra.mxu0 0.0
    %3056 = vmatprep.subr.mxu0 0.0
    %3057 = vmatpush2.xpose.msra.mxu0 0.0
    %3058 = vmatprep.subr.mxu0 0.0
    %3059 = vmatpush2.xpose.msra.mxu0 0.0
    %3060 = vmatprep.subr.mxu0 0.0
    %3061 = vmatpush2.xpose.msra.mxu0 0.0
    %3062 = vmatprep.subr.mxu0 0.0
    %3063 = vmatpush2.xpose.msra.mxu0 0.0
    %3064 = vmatprep.subr.mxu0 0.0
    %3065 = vmatpush2.xpose.msra.mxu0 0.0
    %3066 = vmatprep.subr.mxu0 0.0
    %3067 = vmatpush2.xpose.msra.mxu0 0.0
    %3068 = vmatprep.subr.mxu0 0.0
    %3069 = vmatpush2.xpose.msra.mxu0 0.0
    %3070 = vmatprep.subr.mxu0 0.0
    %3071 = vmatpush2.xpose.msra.mxu0 0.0
    %3072 = vmatprep.subr.mxu0 0.0
    %3073 = vmatpush2.xpose.msra.mxu0 0.0
    %3074 = vmatprep.subr.mxu0 0.0
    %3075 = vmatpush2.xpose.msra.mxu0 0.0
    %3076 = vmatprep.mubr.f32.mxu0 0.0
    %3077 = vmatmul.mubr.f32.gmra.mxu0 %v3008
    %v3078 = vpop.f32.mrf.mxu0
    %v3079 = vadd.f32 0.0, %v3078
    %v3080 = vpop.f32.mrf.mxu0
    %3081 = vdwg.mxu0
    %v3082 = vsel %vm495, %v3079, -inf
    %3083 = vmax.xlane.f32.xlu0 %v3082
    %v3084 = vpop.xlane.xlu0 %3083
    %v3085 = vsub.f32 %v3079, %v3084
    %v3086 = vmul.f32 %v3085, 1.442695
    %v3087 = vpow.pop %v3086
    %v3088 = vsel %vm495, %v3087, 0.0
    %3089 = vadd.xlane.f32.xlu0 %v3088
    %v3090 = vpop.xlane.xlu0 %3089
    %v3091 = vrcp.pop %v3090
    %v3092 = vmul.f32 %v3087, %v3091
    %3093 = vrot.lane.b32.xlu0 %v2828, 56
    %v3094 = vpop.permute.xlu0 %3093
    %v3096 = vsel %vm509, %v3092, 0
    %v3098 = vsel %vm513, %v3094, 0
    %3100 = vmatprep.subr.mxu0 0.0
    %3101 = vmatpush1.msra.mxu0 0.0
    %3102 = vmatprep.subr.mxu0 0.0
    %3103 = vmatpush1.msra.mxu0 0.0
    %3104 = vmatprep.subr.mxu0 0.0
    %3105 = vmatpush1.msra.mxu0 0.0
    %3106 = vmatprep.subr.mxu0 0.0
    %3107 = vmatpush1.msra.mxu0 0.0
    %3108 = vmatprep.subr.mxu0 0.0
    %3109 = vmatpush1.msra.mxu0 0.0
    %3110 = vmatprep.subr.mxu0 0.0
    %3111 = vmatpush1.msra.mxu0 0.0
    %3112 = vmatprep.subr.mxu0 0.0
    %3113 = vmatpush1.msra.mxu0 0.0
    %3114 = vmatprep.subr.mxu0 0.0
    %3115 = vmatpush1.msra.mxu0 0.0
    %3116 = vmatprep.subr.mxu0 0.0
    %3117 = vmatpush1.msra.mxu0 0.0
    %3118 = vmatprep.subr.mxu0 0.0
    %3119 = vmatpush1.msra.mxu0 0.0
    %3120 = vmatprep.subr.mxu0 0.0
    %3121 = vmatpush1.msra.mxu0 0.0
    %3122 = vmatprep.subr.mxu0 0.0
    %3123 = vmatpush1.msra.mxu0 0.0
    %3124 = vmatprep.subr.mxu0 0.0
    %3125 = vmatpush1.msra.mxu0 0.0
    %3126 = vmatprep.subr.mxu0 0.0
    %3127 = vmatpush1.msra.mxu0 0.0
    %3128 = vmatprep.subr.mxu0 0.0
    %3129 = vmatpush1.msra.mxu0 0.0
    %3130 = vmatprep.subr.mxu0 0.0
    %3131 = vmatpush1.msra.mxu0 %v3098
    %3132 = vmatprep.subr.mxu0 0.0
    %3133 = vmatpush2.msra.mxu0 0.0
    %3134 = vmatprep.subr.mxu0 0.0
    %3135 = vmatpush2.msra.mxu0 0.0
    %3136 = vmatprep.subr.mxu0 0.0
    %3137 = vmatpush2.msra.mxu0 0.0
    %3138 = vmatprep.subr.mxu0 0.0
    %3139 = vmatpush2.msra.mxu0 0.0
    %3140 = vmatprep.subr.mxu0 0.0
    %3141 = vmatpush2.msra.mxu0 0.0
    %3142 = vmatprep.subr.mxu0 0.0
    %3143 = vmatpush2.msra.mxu0 0.0
    %3144 = vmatprep.subr.mxu0 0.0
    %3145 = vmatpush2.msra.mxu0 0.0
    %3146 = vmatprep.subr.mxu0 0.0
    %3147 = vmatpush2.msra.mxu0 0.0
    %3148 = vmatprep.subr.mxu0 0.0
    %3149 = vmatpush2.msra.mxu0 0.0
    %3150 = vmatprep.subr.mxu0 0.0
    %3151 = vmatpush2.msra.mxu0 0.0
    %3152 = vmatprep.subr.mxu0 0.0
    %3153 = vmatpush2.msra.mxu0 0.0
    %3154 = vmatprep.subr.mxu0 0.0
    %3155 = vmatpush2.msra.mxu0 0.0
    %3156 = vmatprep.subr.mxu0 0.0
    %3157 = vmatpush2.msra.mxu0 0.0
    %3158 = vmatprep.subr.mxu0 0.0
    %3159 = vmatpush2.msra.mxu0 0.0
    %3160 = vmatprep.subr.mxu0 0.0
    %3161 = vmatpush2.msra.mxu0 0.0
    %3162 = vmatprep.subr.mxu0 0.0
    %3163 = vmatpush2.msra.mxu0 0.0
    %3164 = vmatprep.mubr.f32.mxu0 0.0
    %3165 = vmatmul.mubr.f32.gmra.mxu0 %v3096
    %v3166 = vpop.f32.mrf.mxu0
    %v3167 = vadd.f32 0.0, %v3166
    %v3168 = vpop.f32.mrf.mxu0
    %3169 = vdwg.mxu0
    %v3170 = vld [vmem:[%s47 + $0x8] sm:$0xff]
    %v3172 = vsel %vm419, %v3167, 0
    %3174 = vmatprep.subr.mxu0 0.0
    %3175 = vmatpush1.msra.mxu0 0.0
    %3176 = vmatprep.subr.mxu0 0.0
    %3177 = vmatpush1.msra.mxu0 0.0
    %3178 = vmatprep.subr.mxu0 0.0
    %3179 = vmatpush1.msra.mxu0 0.0
    %3180 = vmatprep.subr.mxu0 0.0
    %3181 = vmatpush1.msra.mxu0 0.0
    %3182 = vmatprep.subr.mxu0 0.0
    %3183 = vmatpush1.msra.mxu0 0.0
    %3184 = vmatprep.subr.mxu0 0.0
    %3185 = vmatpush1.msra.mxu0 0.0
    %3186 = vmatprep.subr.mxu0 0.0
    %3187 = vmatpush1.msra.mxu0 0.0
    %3188 = vmatprep.subr.mxu0 0.0
    %3189 = vmatpush1.msra.mxu0 0.0
    %3190 = vmatprep.subr.mxu0 0.0
    %3191 = vmatpush1.msra.mxu0 0.0
    %3192 = vmatprep.subr.mxu0 0.0
    %3193 = vmatpush1.msra.mxu0 0.0
    %3194 = vmatprep.subr.mxu0 0.0
    %3195 = vmatpush1.msra.mxu0 0.0
    %3196 = vmatprep.subr.mxu0 0.0
    %3197 = vmatpush1.msra.mxu0 0.0
    %3198 = vmatprep.subr.mxu0 0.0
    %3199 = vmatpush1.msra.mxu0 0.0
    %3200 = vmatprep.subr.mxu0 0.0
    %3201 = vmatpush1.msra.mxu0 0.0
    %3202 = vmatprep.subr.mxu0 0.0
    %3203 = vmatpush1.msra.mxu0 0.0
    %3204 = vmatprep.subr.mxu0 0.0
    %3205 = vmatpush1.msra.mxu0 %v3170
    %3206 = vmatprep.subr.mxu0 0.0
    %3207 = vmatpush2.msra.mxu0 0.0
    %3208 = vmatprep.subr.mxu0 0.0
    %3209 = vmatpush2.msra.mxu0 0.0
    %3210 = vmatprep.subr.mxu0 0.0
    %3211 = vmatpush2.msra.mxu0 0.0
    %3212 = vmatprep.subr.mxu0 0.0
    %3213 = vmatpush2.msra.mxu0 0.0
    %3214 = vmatprep.subr.mxu0 0.0
    %3215 = vmatpush2.msra.mxu0 0.0
    %3216 = vmatprep.subr.mxu0 0.0
    %3217 = vmatpush2.msra.mxu0 0.0
    %3218 = vmatprep.subr.mxu0 0.0
    %3219 = vmatpush2.msra.mxu0 0.0
    %3220 = vmatprep.subr.mxu0 0.0
    %3221 = vmatpush2.msra.mxu0 0.0
    %3222 = vmatprep.subr.mxu0 0.0
    %3223 = vmatpush2.msra.mxu0 0.0
    %3224 = vmatprep.subr.mxu0 0.0
    %3225 = vmatpush2.msra.mxu0 0.0
    %3226 = vmatprep.subr.mxu0 0.0
    %3227 = vmatpush2.msra.mxu0 0.0
    %3228 = vmatprep.subr.mxu0 0.0
    %3229 = vmatpush2.msra.mxu0 0.0
    %3230 = vmatprep.subr.mxu0 0.0
    %3231 = vmatpush2.msra.mxu0 0.0
    %3232 = vmatprep.subr.mxu0 0.0
    %3233 = vmatpush2.msra.mxu0 0.0
    %3234 = vmatprep.subr.mxu0 0.0
    %3235 = vmatpush2.msra.mxu0 0.0
    %3236 = vmatprep.subr.mxu0 0.0
    %3237 = vmatpush2.msra.mxu0 0.0
    %3238 = vmatprep.mubr.f32.mxu0 0.0
    %3239 = vmatmul.mubr.f32.gmra.mxu0 %v3172
    %v3240 = vpop.f32.mrf.mxu0
    %v3241 = vadd.f32 0.0, %v3240
    %v3242 = vpop.f32.mrf.mxu0
    %3243 = vdwg.mxu0
    %v3245 = vsel %vm419, %v3000, 0
    %3247 = vmatprep.subr.mxu0 0.0
    %3248 = vmatpush1.msra.mxu0 0.0
    %3249 = vmatprep.subr.mxu0 0.0
    %3250 = vmatpush1.msra.mxu0 0.0
    %3251 = vmatprep.subr.mxu0 0.0
    %3252 = vmatpush1.msra.mxu0 0.0
    %3253 = vmatprep.subr.mxu0 0.0
    %3254 = vmatpush1.msra.mxu0 0.0
    %3255 = vmatprep.subr.mxu0 0.0
    %3256 = vmatpush1.msra.mxu0 0.0
    %3257 = vmatprep.subr.mxu0 0.0
    %3258 = vmatpush1.msra.mxu0 0.0
    %3259 = vmatprep.subr.mxu0 0.0
    %3260 = vmatpush1.msra.mxu0 0.0
    %3261 = vmatprep.subr.mxu0 0.0
    %3262 = vmatpush1.msra.mxu0 0.0
    %3263 = vmatprep.subr.mxu0 0.0
    %3264 = vmatpush1.msra.mxu0 0.0
    %3265 = vmatprep.subr.mxu0 0.0
    %3266 = vmatpush1.msra.mxu0 0.0
    %3267 = vmatprep.subr.mxu0 0.0
    %3268 = vmatpush1.msra.mxu0 0.0
    %3269 = vmatprep.subr.mxu0 0.0
    %3270 = vmatpush1.msra.mxu0 0.0
    %3271 = vmatprep.subr.mxu0 0.0
    %3272 = vmatpush1.msra.mxu0 0.0
    %3273 = vmatprep.subr.mxu0 0.0
    %3274 = vmatpush1.msra.mxu0 0.0
    %3275 = vmatprep.subr.mxu0 0.0
    %3276 = vmatpush1.msra.mxu0 0.0
    %3277 = vmatprep.subr.mxu0 0.0
    %3278 = vmatpush1.msra.mxu0 %v3003
    %3279 = vmatprep.subr.mxu0 0.0
    %3280 = vmatpush2.msra.mxu0 0.0
    %3281 = vmatprep.subr.mxu0 0.0
    %3282 = vmatpush2.msra.mxu0 0.0
    %3283 = vmatprep.subr.mxu0 0.0
    %3284 = vmatpush2.msra.mxu0 0.0
    %3285 = vmatprep.subr.mxu0 0.0
    %3286 = vmatpush2.msra.mxu0 0.0
    %3287 = vmatprep.subr.mxu0 0.0
    %3288 = vmatpush2.msra.mxu0 0.0
    %3289 = vmatprep.subr.mxu0 0.0
    %3290 = vmatpush2.msra.mxu0 0.0
    %3291 = vmatprep.subr.mxu0 0.0
    %3292 = vmatpush2.msra.mxu0 0.0
    %3293 = vmatprep.subr.mxu0 0.0
    %3294 = vmatpush2.msra.mxu0 0.0
    %3295 = vmatprep.subr.mxu0 0.0
    %3296 = vmatpush2.msra.mxu0 0.0
    %3297 = vmatprep.subr.mxu0 0.0
    %3298 = vmatpush2.msra.mxu0 0.0
    %3299 = vmatprep.subr.mxu0 0.0
    %3300 = vmatpush2.msra.mxu0 0.0
    %3301 = vmatprep.subr.mxu0 0.0
    %3302 = vmatpush2.msra.mxu0 0.0
    %3303 = vmatprep.subr.mxu0 0.0
    %3304 = vmatpush2.msra.mxu0 0.0
    %3305 = vmatprep.subr.mxu0 0.0
    %3306 = vmatpush2.msra.mxu0 0.0
    %3307 = vmatprep.subr.mxu0 0.0
    %3308 = vmatpush2.msra.mxu0 0.0
    %3309 = vmatprep.subr.mxu0 0.0
    %3310 = vmatpush2.msra.mxu0 0.0
    %3311 = vmatprep.mubr.f32.mxu0 0.0
    %3312 = vmatmul.mubr.f32.gmra.mxu0 %v3245
    %v3313 = vpop.f32.mrf.mxu0
    %v3314 = vadd.f32 %v3241, %v3313
    %v3315 = vpop.f32.mrf.mxu0
    %3316 = vdwg.mxu0
    %3317 = vrot.lane.b32.xlu0 %v2836, 112
    %v3318 = vpop.permute.xlu0 %3317
    %3319 = vrot.lane.b32.xlu0 %v2828, 80
    %v3320 = vpop.permute.xlu0 %3319
    %v3321 = vsel %vm419, %v3318, 0
    %v3323 = vsel %vm419, %v3320, 0
    %3325 = vmatprep.subr.mxu0 0.0
    %3326 = vmatpush1.xpose.msra.mxu0 0.0
    %3327 = vmatprep.subr.mxu0 0.0
    %3328 = vmatpush1.xpose.msra.mxu0 0.0
    %3329 = vmatprep.subr.mxu0 0.0
    %3330 = vmatpush1.xpose.msra.mxu0 0.0
    %3331 = vmatprep.subr.mxu0 0.0
    %3332 = vmatpush1.xpose.msra.mxu0 0.0
    %3333 = vmatprep.subr.mxu0 0.0
    %3334 = vmatpush1.xpose.msra.mxu0 0.0
    %3335 = vmatprep.subr.mxu0 0.0
    %3336 = vmatpush1.xpose.msra.mxu0 0.0
    %3337 = vmatprep.subr.mxu0 0.0
    %3338 = vmatpush1.xpose.msra.mxu0 0.0
    %3339 = vmatprep.subr.mxu0 0.0
    %3340 = vmatpush1.xpose.msra.mxu0 0.0
    %3341 = vmatprep.subr.mxu0 0.0
    %3342 = vmatpush1.xpose.msra.mxu0 0.0
    %3343 = vmatprep.subr.mxu0 0.0
    %3344 = vmatpush1.xpose.msra.mxu0 0.0
    %3345 = vmatprep.subr.mxu0 0.0
    %3346 = vmatpush1.xpose.msra.mxu0 0.0
    %3347 = vmatprep.subr.mxu0 0.0
    %3348 = vmatpush1.xpose.msra.mxu0 0.0
    %3349 = vmatprep.subr.mxu0 0.0
    %3350 = vmatpush1.xpose.msra.mxu0 0.0
    %3351 = vmatprep.subr.mxu0 0.0
    %3352 = vmatpush1.xpose.msra.mxu0 0.0
    %3353 = vmatprep.subr.mxu0 0.0
    %3354 = vmatpush1.xpose.msra.mxu0 0.0
    %3355 = vmatprep.subr.mxu0 0.0
    %3356 = vmatpush1.xpose.msra.mxu0 %v3323
    %3357 = vmatprep.subr.mxu0 0.0
    %3358 = vmatpush2.xpose.msra.mxu0 0.0
    %3359 = vmatprep.subr.mxu0 0.0
    %3360 = vmatpush2.xpose.msra.mxu0 0.0
    %3361 = vmatprep.subr.mxu0 0.0
    %3362 = vmatpush2.xpose.msra.mxu0 0.0
    %3363 = vmatprep.subr.mxu0 0.0
    %3364 = vmatpush2.xpose.msra.mxu0 0.0
    %3365 = vmatprep.subr.mxu0 0.0
    %3366 = vmatpush2.xpose.msra.mxu0 0.0
    %3367 = vmatprep.subr.mxu0 0.0
    %3368 = vmatpush2.xpose.msra.mxu0 0.0
    %3369 = vmatprep.subr.mxu0 0.0
    %3370 = vmatpush2.xpose.msra.mxu0 0.0
    %3371 = vmatprep.subr.mxu0 0.0
    %3372 = vmatpush2.xpose.msra.mxu0 0.0
    %3373 = vmatprep.subr.mxu0 0.0
    %3374 = vmatpush2.xpose.msra.mxu0 0.0
    %3375 = vmatprep.subr.mxu0 0.0
    %3376 = vmatpush2.xpose.msra.mxu0 0.0
    %3377 = vmatprep.subr.mxu0 0.0
    %3378 = vmatpush2.xpose.msra.mxu0 0.0
    %3379 = vmatprep.subr.mxu0 0.0
    %3380 = vmatpush2.xpose.msra.mxu0 0.0
    %3381 = vmatprep.subr.mxu0 0.0
    %3382 = vmatpush2.xpose.msra.mxu0 0.0
    %3383 = vmatprep.subr.mxu0 0.0
    %3384 = vmatpush2.xpose.msra.mxu0 0.0
    %3385 = vmatprep.subr.mxu0 0.0
    %3386 = vmatpush2.xpose.msra.mxu0 0.0
    %3387 = vmatprep.subr.mxu0 0.0
    %3388 = vmatpush2.xpose.msra.mxu0 0.0
    %3389 = vmatprep.mubr.f32.mxu0 0.0
    %3390 = vmatmul.mubr.f32.gmra.mxu0 %v3321
    %v3391 = vpop.f32.mrf.mxu0
    %v3392 = vadd.f32 0.0, %v3391
    %v3393 = vpop.f32.mrf.mxu0
    %3394 = vdwg.mxu0
    %v3395 = vsel %vm495, %v3392, -inf
    %3396 = vmax.xlane.f32.xlu0 %v3395
    %v3397 = vpop.xlane.xlu0 %3396
    %v3398 = vsub.f32 %v3392, %v3397
    %v3399 = vmul.f32 %v3398, 1.442695
    %v3400 = vpow.pop %v3399
    %v3401 = vsel %vm495, %v3400, 0.0
    %3402 = vadd.xlane.f32.xlu0 %v3401
    %v3403 = vpop.xlane.xlu0 %3402
    %v3404 = vrcp.pop %v3403
    %v3405 = vmul.f32 %v3400, %v3404
    %3406 = vrot.lane.b32.xlu0 %v2828, 48
    %v3407 = vpop.permute.xlu0 %3406
    %v3409 = vsel %vm509, %v3405, 0
    %v3411 = vsel %vm513, %v3407, 0
    %3413 = vmatprep.subr.mxu0 0.0
    %3414 = vmatpush1.msra.mxu0 0.0
    %3415 = vmatprep.subr.mxu0 0.0
    %3416 = vmatpush1.msra.mxu0 0.0
    %3417 = vmatprep.subr.mxu0 0.0
    %3418 = vmatpush1.msra.mxu0 0.0
    %3419 = vmatprep.subr.mxu0 0.0
    %3420 = vmatpush1.msra.mxu0 0.0
    %3421 = vmatprep.subr.mxu0 0.0
    %3422 = vmatpush1.msra.mxu0 0.0
    %3423 = vmatprep.subr.mxu0 0.0
    %3424 = vmatpush1.msra.mxu0 0.0
    %3425 = vmatprep.subr.mxu0 0.0
    %3426 = vmatpush1.msra.mxu0 0.0
    %3427 = vmatprep.subr.mxu0 0.0
    %3428 = vmatpush1.msra.mxu0 0.0
    %3429 = vmatprep.subr.mxu0 0.0
    %3430 = vmatpush1.msra.mxu0 0.0
    %3431 = vmatprep.subr.mxu0 0.0
    %3432 = vmatpush1.msra.mxu0 0.0
    %3433 = vmatprep.subr.mxu0 0.0
    %3434 = vmatpush1.msra.mxu0 0.0
    %3435 = vmatprep.subr.mxu0 0.0
    %3436 = vmatpush1.msra.mxu0 0.0
    %3437 = vmatprep.subr.mxu0 0.0
    %3438 = vmatpush1.msra.mxu0 0.0
    %3439 = vmatprep.subr.mxu0 0.0
    %3440 = vmatpush1.msra.mxu0 0.0
    %3441 = vmatprep.subr.mxu0 0.0
    %3442 = vmatpush1.msra.mxu0 0.0
    %3443 = vmatprep.subr.mxu0 0.0
    %3444 = vmatpush1.msra.mxu0 %v3411
    %3445 = vmatprep.subr.mxu0 0.0
    %3446 = vmatpush2.msra.mxu0 0.0
    %3447 = vmatprep.subr.mxu0 0.0
    %3448 = vmatpush2.msra.mxu0 0.0
    %3449 = vmatprep.subr.mxu0 0.0
    %3450 = vmatpush2.msra.mxu0 0.0
    %3451 = vmatprep.subr.mxu0 0.0
    %3452 = vmatpush2.msra.mxu0 0.0
    %3453 = vmatprep.subr.mxu0 0.0
    %3454 = vmatpush2.msra.mxu0 0.0
    %3455 = vmatprep.subr.mxu0 0.0
    %3456 = vmatpush2.msra.mxu0 0.0
    %3457 = vmatprep.subr.mxu0 0.0
    %3458 = vmatpush2.msra.mxu0 0.0
    %3459 = vmatprep.subr.mxu0 0.0
    %3460 = vmatpush2.msra.mxu0 0.0
    %3461 = vmatprep.subr.mxu0 0.0
    %3462 = vmatpush2.msra.mxu0 0.0
    %3463 = vmatprep.subr.mxu0 0.0
    %3464 = vmatpush2.msra.mxu0 0.0
    %3465 = vmatprep.subr.mxu0 0.0
    %3466 = vmatpush2.msra.mxu0 0.0
    %3467 = vmatprep.subr.mxu0 0.0
    %3468 = vmatpush2.msra.mxu0 0.0
    %3469 = vmatprep.subr.mxu0 0.0
    %3470 = vmatpush2.msra.mxu0 0.0
    %3471 = vmatprep.subr.mxu0 0.0
    %3472 = vmatpush2.msra.mxu0 0.0
    %3473 = vmatprep.subr.mxu0 0.0
    %3474 = vmatpush2.msra.mxu0 0.0
    %3475 = vmatprep.subr.mxu0 0.0
    %3476 = vmatpush2.msra.mxu0 0.0
    %3477 = vmatprep.mubr.f32.mxu0 0.0
    %3478 = vmatmul.mubr.f32.gmra.mxu0 %v3409
    %v3479 = vpop.f32.mrf.mxu0
    %v3480 = vadd.f32 0.0, %v3479
    %v3481 = vpop.f32.mrf.mxu0
    %3482 = vdwg.mxu0
    %v3483 = vld [vmem:[%s47 + $0x10] sm:$0xff]
    %v3485 = vsel %vm419, %v3480, 0
    %3487 = vmatprep.subr.mxu0 0.0
    %3488 = vmatpush1.msra.mxu0 0.0
    %3489 = vmatprep.subr.mxu0 0.0
    %3490 = vmatpush1.msra.mxu0 0.0
    %3491 = vmatprep.subr.mxu0 0.0
    %3492 = vmatpush1.msra.mxu0 0.0
    %3493 = vmatprep.subr.mxu0 0.0
    %3494 = vmatpush1.msra.mxu0 0.0
    %3495 = vmatprep.subr.mxu0 0.0
    %3496 = vmatpush1.msra.mxu0 0.0
    %3497 = vmatprep.subr.mxu0 0.0
    %3498 = vmatpush1.msra.mxu0 0.0
    %3499 = vmatprep.subr.mxu0 0.0
    %3500 = vmatpush1.msra.mxu0 0.0
    %3501 = vmatprep.subr.mxu0 0.0
    %3502 = vmatpush1.msra.mxu0 0.0
    %3503 = vmatprep.subr.mxu0 0.0
    %3504 = vmatpush1.msra.mxu0 0.0
    %3505 = vmatprep.subr.mxu0 0.0
    %3506 = vmatpush1.msra.mxu0 0.0
    %3507 = vmatprep.subr.mxu0 0.0
    %3508 = vmatpush1.msra.mxu0 0.0
    %3509 = vmatprep.subr.mxu0 0.0
    %3510 = vmatpush1.msra.mxu0 0.0
    %3511 = vmatprep.subr.mxu0 0.0
    %3512 = vmatpush1.msra.mxu0 0.0
    %3513 = vmatprep.subr.mxu0 0.0
    %3514 = vmatpush1.msra.mxu0 0.0
    %3515 = vmatprep.subr.mxu0 0.0
    %3516 = vmatpush1.msra.mxu0 0.0
    %3517 = vmatprep.subr.mxu0 0.0
    %3518 = vmatpush1.msra.mxu0 %v3483
    %3519 = vmatprep.subr.mxu0 0.0
    %3520 = vmatpush2.msra.mxu0 0.0
    %3521 = vmatprep.subr.mxu0 0.0
    %3522 = vmatpush2.msra.mxu0 0.0
    %3523 = vmatprep.subr.mxu0 0.0
    %3524 = vmatpush2.msra.mxu0 0.0
    %3525 = vmatprep.subr.mxu0 0.0
    %3526 = vmatpush2.msra.mxu0 0.0
    %3527 = vmatprep.subr.mxu0 0.0
    %3528 = vmatpush2.msra.mxu0 0.0
    %3529 = vmatprep.subr.mxu0 0.0
    %3530 = vmatpush2.msra.mxu0 0.0
    %3531 = vmatprep.subr.mxu0 0.0
    %3532 = vmatpush2.msra.mxu0 0.0
    %3533 = vmatprep.subr.mxu0 0.0
    %3534 = vmatpush2.msra.mxu0 0.0
    %3535 = vmatprep.subr.mxu0 0.0
    %3536 = vmatpush2.msra.mxu0 0.0
    %3537 = vmatprep.subr.mxu0 0.0
    %3538 = vmatpush2.msra.mxu0 0.0
    %3539 = vmatprep.subr.mxu0 0.0
    %3540 = vmatpush2.msra.mxu0 0.0
    %3541 = vmatprep.subr.mxu0 0.0
    %3542 = vmatpush2.msra.mxu0 0.0
    %3543 = vmatprep.subr.mxu0 0.0
    %3544 = vmatpush2.msra.mxu0 0.0
    %3545 = vmatprep.subr.mxu0 0.0
    %3546 = vmatpush2.msra.mxu0 0.0
    %3547 = vmatprep.subr.mxu0 0.0
    %3548 = vmatpush2.msra.mxu0 0.0
    %3549 = vmatprep.subr.mxu0 0.0
    %3550 = vmatpush2.msra.mxu0 0.0
    %3551 = vmatprep.mubr.f32.mxu0 0.0
    %3552 = vmatmul.mubr.f32.gmra.mxu0 %v3485
    %v3553 = vpop.f32.mrf.mxu0
    %v3554 = vadd.f32 0.0, %v3553
    %v3555 = vpop.f32.mrf.mxu0
    %3556 = vdwg.mxu0
    %v3557 = vadd.f32 %v3314, %v3554
    %3558 = vrot.lane.b32.xlu0 %v2836, 104
    %v3559 = vpop.permute.xlu0 %3558
    %3560 = vrot.lane.b32.xlu0 %v2828, 72
    %v3561 = vpop.permute.xlu0 %3560
    %v3562 = vsel %vm419, %v3559, 0
    %v3564 = vsel %vm419, %v3561, 0
    %3566 = vmatprep.subr.mxu0 0.0
    %3567 = vmatpush1.xpose.msra.mxu0 0.0
    %3568 = vmatprep.subr.mxu0 0.0
    %3569 = vmatpush1.xpose.msra.mxu0 0.0
    %3570 = vmatprep.subr.mxu0 0.0
    %3571 = vmatpush1.xpose.msra.mxu0 0.0
    %3572 = vmatprep.subr.mxu0 0.0
    %3573 = vmatpush1.xpose.msra.mxu0 0.0
    %3574 = vmatprep.subr.mxu0 0.0
    %3575 = vmatpush1.xpose.msra.mxu0 0.0
    %3576 = vmatprep.subr.mxu0 0.0
    %3577 = vmatpush1.xpose.msra.mxu0 0.0
    %3578 = vmatprep.subr.mxu0 0.0
    %3579 = vmatpush1.xpose.msra.mxu0 0.0
    %3580 = vmatprep.subr.mxu0 0.0
    %3581 = vmatpush1.xpose.msra.mxu0 0.0
    %3582 = vmatprep.subr.mxu0 0.0
    %3583 = vmatpush1.xpose.msra.mxu0 0.0
    %3584 = vmatprep.subr.mxu0 0.0
    %3585 = vmatpush1.xpose.msra.mxu0 0.0
    %3586 = vmatprep.subr.mxu0 0.0
    %3587 = vmatpush1.xpose.msra.mxu0 0.0
    %3588 = vmatprep.subr.mxu0 0.0
    %3589 = vmatpush1.xpose.msra.mxu0 0.0
    %3590 = vmatprep.subr.mxu0 0.0
    %3591 = vmatpush1.xpose.msra.mxu0 0.0
    %3592 = vmatprep.subr.mxu0 0.0
    %3593 = vmatpush1.xpose.msra.mxu0 0.0
    %3594 = vmatprep.subr.mxu0 0.0
    %3595 = vmatpush1.xpose.msra.mxu0 0.0
    %3596 = vmatprep.subr.mxu0 0.0
    %3597 = vmatpush1.xpose.msra.mxu0 %v3564
    %3598 = vmatprep.subr.mxu0 0.0
    %3599 = vmatpush2.xpose.msra.mxu0 0.0
    %3600 = vmatprep.subr.mxu0 0.0
    %3601 = vmatpush2.xpose.msra.mxu0 0.0
    %3602 = vmatprep.subr.mxu0 0.0
    %3603 = vmatpush2.xpose.msra.mxu0 0.0
    %3604 = vmatprep.subr.mxu0 0.0
    %3605 = vmatpush2.xpose.msra.mxu0 0.0
    %3606 = vmatprep.subr.mxu0 0.0
    %3607 = vmatpush2.xpose.msra.mxu0 0.0
    %3608 = vmatprep.subr.mxu0 0.0
    %3609 = vmatpush2.xpose.msra.mxu0 0.0
    %3610 = vmatprep.subr.mxu0 0.0
    %3611 = vmatpush2.xpose.msra.mxu0 0.0
    %3612 = vmatprep.subr.mxu0 0.0
    %3613 = vmatpush2.xpose.msra.mxu0 0.0
    %3614 = vmatprep.subr.mxu0 0.0
    %3615 = vmatpush2.xpose.msra.mxu0 0.0
    %3616 = vmatprep.subr.mxu0 0.0
    %3617 = vmatpush2.xpose.msra.mxu0 0.0
    %3618 = vmatprep.subr.mxu0 0.0
    %3619 = vmatpush2.xpose.msra.mxu0 0.0
    %3620 = vmatprep.subr.mxu0 0.0
    %3621 = vmatpush2.xpose.msra.mxu0 0.0
    %3622 = vmatprep.subr.mxu0 0.0
    %3623 = vmatpush2.xpose.msra.mxu0 0.0
    %3624 = vmatprep.subr.mxu0 0.0
    %3625 = vmatpush2.xpose.msra.mxu0 0.0
    %3626 = vmatprep.subr.mxu0 0.0
    %3627 = vmatpush2.xpose.msra.mxu0 0.0
    %3628 = vmatprep.subr.mxu0 0.0
    %3629 = vmatpush2.xpose.msra.mxu0 0.0
    %3630 = vmatprep.mubr.f32.mxu0 0.0
    %3631 = vmatmul.mubr.f32.gmra.mxu0 %v3562
    %v3632 = vpop.f32.mrf.mxu0
    %v3633 = vadd.f32 0.0, %v3632
    %v3634 = vpop.f32.mrf.mxu0
    %3635 = vdwg.mxu0
    %v3636 = vsel %vm495, %v3633, -inf
    %3637 = vmax.xlane.f32.xlu0 %v3636
    %v3638 = vpop.xlane.xlu0 %3637
    %v3639 = vsub.f32 %v3633, %v3638
    %v3640 = vmul.f32 %v3639, 1.442695
    %v3641 = vpow.pop %v3640
    %v3642 = vsel %vm495, %v3641, 0.0
    %3643 = vadd.xlane.f32.xlu0 %v3642
    %v3644 = vpop.xlane.xlu0 %3643
    %v3645 = vrcp.pop %v3644
    %v3646 = vmul.f32 %v3641, %v3645
    %3647 = vrot.lane.b32.xlu0 %v2828, 40
    %v3648 = vpop.permute.xlu0 %3647
    %v3650 = vsel %vm509, %v3646, 0
    %v3652 = vsel %vm513, %v3648, 0
    %3654 = vmatprep.subr.mxu0 0.0
    %3655 = vmatpush1.msra.mxu0 0.0
    %3656 = vmatprep.subr.mxu0 0.0
    %3657 = vmatpush1.msra.mxu0 0.0
    %3658 = vmatprep.subr.mxu0 0.0
    %3659 = vmatpush1.msra.mxu0 0.0
    %3660 = vmatprep.subr.mxu0 0.0
    %3661 = vmatpush1.msra.mxu0 0.0
    %3662 = vmatprep.subr.mxu0 0.0
    %3663 = vmatpush1.msra.mxu0 0.0
    %3664 = vmatprep.subr.mxu0 0.0
    %3665 = vmatpush1.msra.mxu0 0.0
    %3666 = vmatprep.subr.mxu0 0.0
    %3667 = vmatpush1.msra.mxu0 0.0
    %3668 = vmatprep.subr.mxu0 0.0
    %3669 = vmatpush1.msra.mxu0 0.0
    %3670 = vmatprep.subr.mxu0 0.0
    %3671 = vmatpush1.msra.mxu0 0.0
    %3672 = vmatprep.subr.mxu0 0.0
    %3673 = vmatpush1.msra.mxu0 0.0
    %3674 = vmatprep.subr.mxu0 0.0
    %3675 = vmatpush1.msra.mxu0 0.0
    %3676 = vmatprep.subr.mxu0 0.0
    %3677 = vmatpush1.msra.mxu0 0.0
    %3678 = vmatprep.subr.mxu0 0.0
    %3679 = vmatpush1.msra.mxu0 0.0
    %3680 = vmatprep.subr.mxu0 0.0
    %3681 = vmatpush1.msra.mxu0 0.0
    %3682 = vmatprep.subr.mxu0 0.0
    %3683 = vmatpush1.msra.mxu0 0.0
    %3684 = vmatprep.subr.mxu0 0.0
    %3685 = vmatpush1.msra.mxu0 %v3652
    %3686 = vmatprep.subr.mxu0 0.0
    %3687 = vmatpush2.msra.mxu0 0.0
    %3688 = vmatprep.subr.mxu0 0.0
    %3689 = vmatpush2.msra.mxu0 0.0
    %3690 = vmatprep.subr.mxu0 0.0
    %3691 = vmatpush2.msra.mxu0 0.0
    %3692 = vmatprep.subr.mxu0 0.0
    %3693 = vmatpush2.msra.mxu0 0.0
    %3694 = vmatprep.subr.mxu0 0.0
    %3695 = vmatpush2.msra.mxu0 0.0
    %3696 = vmatprep.subr.mxu0 0.0
    %3697 = vmatpush2.msra.mxu0 0.0
    %3698 = vmatprep.subr.mxu0 0.0
    %3699 = vmatpush2.msra.mxu0 0.0
    %3700 = vmatprep.subr.mxu0 0.0
    %3701 = vmatpush2.msra.mxu0 0.0
    %3702 = vmatprep.subr.mxu0 0.0
    %3703 = vmatpush2.msra.mxu0 0.0
    %3704 = vmatprep.subr.mxu0 0.0
    %3705 = vmatpush2.msra.mxu0 0.0
    %3706 = vmatprep.subr.mxu0 0.0
    %3707 = vmatpush2.msra.mxu0 0.0
    %3708 = vmatprep.subr.mxu0 0.0
    %3709 = vmatpush2.msra.mxu0 0.0
    %3710 = vmatprep.subr.mxu0 0.0
    %3711 = vmatpush2.msra.mxu0 0.0
    %3712 = vmatprep.subr.mxu0 0.0
    %3713 = vmatpush2.msra.mxu0 0.0
    %3714 = vmatprep.subr.mxu0 0.0
    %3715 = vmatpush2.msra.mxu0 0.0
    %3716 = vmatprep.subr.mxu0 0.0
    %3717 = vmatpush2.msra.mxu0 0.0
    %3718 = vmatprep.mubr.f32.mxu0 0.0
    %3719 = vmatmul.mubr.f32.gmra.mxu0 %v3650
    %v3720 = vpop.f32.mrf.mxu0
    %v3721 = vadd.f32 0.0, %v3720
    %v3722 = vpop.f32.mrf.mxu0
    %3723 = vdwg.mxu0
    %v3724 = vld [vmem:[%s47 + $0x18] sm:$0xff]
    %v3726 = vsel %vm419, %v3721, 0
    %3728 = vmatprep.subr.mxu0 0.0
    %3729 = vmatpush1.msra.mxu0 0.0
    %3730 = vmatprep.subr.mxu0 0.0
    %3731 = vmatpush1.msra.mxu0 0.0
    %3732 = vmatprep.subr.mxu0 0.0
    %3733 = vmatpush1.msra.mxu0 0.0
    %3734 = vmatprep.subr.mxu0 0.0
    %3735 = vmatpush1.msra.mxu0 0.0
    %3736 = vmatprep.subr.mxu0 0.0
    %3737 = vmatpush1.msra.mxu0 0.0
    %3738 = vmatprep.subr.mxu0 0.0
    %3739 = vmatpush1.msra.mxu0 0.0
    %3740 = vmatprep.subr.mxu0 0.0
    %3741 = vmatpush1.msra.mxu0 0.0
    %3742 = vmatprep.subr.mxu0 0.0
    %3743 = vmatpush1.msra.mxu0 0.0
    %3744 = vmatprep.subr.mxu0 0.0
    %3745 = vmatpush1.msra.mxu0 0.0
    %3746 = vmatprep.subr.mxu0 0.0
    %3747 = vmatpush1.msra.mxu0 0.0
    %3748 = vmatprep.subr.mxu0 0.0
    %3749 = vmatpush1.msra.mxu0 0.0
    %3750 = vmatprep.subr.mxu0 0.0
    %3751 = vmatpush1.msra.mxu0 0.0
    %3752 = vmatprep.subr.mxu0 0.0
    %3753 = vmatpush1.msra.mxu0 0.0
    %3754 = vmatprep.subr.mxu0 0.0
    %3755 = vmatpush1.msra.mxu0 0.0
    %3756 = vmatprep.subr.mxu0 0.0
    %3757 = vmatpush1.msra.mxu0 0.0
    %3758 = vmatprep.subr.mxu0 0.0
    %3759 = vmatpush1.msra.mxu0 %v3724
    %3760 = vmatprep.subr.mxu0 0.0
    %3761 = vmatpush2.msra.mxu0 0.0
    %3762 = vmatprep.subr.mxu0 0.0
    %3763 = vmatpush2.msra.mxu0 0.0
    %3764 = vmatprep.subr.mxu0 0.0
    %3765 = vmatpush2.msra.mxu0 0.0
    %3766 = vmatprep.subr.mxu0 0.0
    %3767 = vmatpush2.msra.mxu0 0.0
    %3768 = vmatprep.subr.mxu0 0.0
    %3769 = vmatpush2.msra.mxu0 0.0
    %3770 = vmatprep.subr.mxu0 0.0
    %3771 = vmatpush2.msra.mxu0 0.0
    %3772 = vmatprep.subr.mxu0 0.0
    %3773 = vmatpush2.msra.mxu0 0.0
    %3774 = vmatprep.subr.mxu0 0.0
    %3775 = vmatpush2.msra.mxu0 0.0
    %3776 = vmatprep.subr.mxu0 0.0
    %3777 = vmatpush2.msra.mxu0 0.0
    %3778 = vmatprep.subr.mxu0 0.0
    %3779 = vmatpush2.msra.mxu0 0.0
    %3780 = vmatprep.subr.mxu0 0.0
    %3781 = vmatpush2.msra.mxu0 0.0
    %3782 = vmatprep.subr.mxu0 0.0
    %3783 = vmatpush2.msra.mxu0 0.0
    %3784 = vmatprep.subr.mxu0 0.0
    %3785 = vmatpush2.msra.mxu0 0.0
    %3786 = vmatprep.subr.mxu0 0.0
    %3787 = vmatpush2.msra.mxu0 0.0
    %3788 = vmatprep.subr.mxu0 0.0
    %3789 = vmatpush2.msra.mxu0 0.0
    %3790 = vmatprep.subr.mxu0 0.0
    %3791 = vmatpush2.msra.mxu0 0.0
    %3792 = vmatprep.mubr.f32.mxu0 0.0
    %3793 = vmatmul.mubr.f32.gmra.mxu0 %v3726
    %v3794 = vpop.f32.mrf.mxu0
    %v3795 = vadd.f32 0.0, %v3794
    %v3796 = vpop.f32.mrf.mxu0
    %3797 = vdwg.mxu0
    %v3798 = vadd.f32 %v3557, %v3795
    %v3799 = vld [vmem:[%s51] sm:$0x1]
    %v3800 = vld [vmem:[%s49] sm:$0x1]
    %v3802 = vlaneseq
    %v3803 = vshrl.u32 %v3802, 7
    %v3804 = vsub.s32 0, %v3803
    %v3805 = vrot.slane %v3800, %v3804
    %v3807 = vadd.f32 %v3798, %v3805
    %v3809 = vlaneseq
    %v3810 = vshrl.u32 %v3809, 7
    %v3811 = vsub.s32 0, %v3810
    %v3812 = vrot.slane %v3799, %v3811
    %v3814 = vmul.f32 %v3812, %v3807
    %v3815 = vadd.f32 %v2698, %v3814
    %3816 = vst.msk [vmem:[#allocation2] sm:$0x1f] %vm1399, %v3815
    %v3817 = vmul.f32 %v2833, 0.35355338
    %v3819 = vrot.slane %v2836, 5
    %v3820 = vrot.slane %v3817, 5
    %v3821 = vsel %vm1403, %v3819, %v3820
    %v3823 = vrot.slane %v2828, 5
    %v3824 = vrot.slane %v2833, 5
    %v3825 = vsel %vm1403, %v3823, %v3824
    %3826 = vrot.lane.b32.xlu0 %v3825, 96
    %v3827 = vpop.permute.xlu0 %3826
    %v3828 = vsel %vm419, %v3821, 0
    %v3830 = vsel %vm419, %v3827, 0
    %3832 = vmatprep.subr.mxu0 0.0
    %3833 = vmatpush1.xpose.msra.mxu0 0.0
    %3834 = vmatprep.subr.mxu0 0.0
    %3835 = vmatpush1.xpose.msra.mxu0 0.0
    %3836 = vmatprep.subr.mxu0 0.0
    %3837 = vmatpush1.xpose.msra.mxu0 0.0
    %3838 = vmatprep.subr.mxu0 0.0
    %3839 = vmatpush1.xpose.msra.mxu0 0.0
    %3840 = vmatprep.subr.mxu0 0.0
    %3841 = vmatpush1.xpose.msra.mxu0 0.0
    %3842 = vmatprep.subr.mxu0 0.0
    %3843 = vmatpush1.xpose.msra.mxu0 0.0
    %3844 = vmatprep.subr.mxu0 0.0
    %3845 = vmatpush1.xpose.msra.mxu0 0.0
    %3846 = vmatprep.subr.mxu0 0.0
    %3847 = vmatpush1.xpose.msra.mxu0 0.0
    %3848 = vmatprep.subr.mxu0 0.0
    %3849 = vmatpush1.xpose.msra.mxu0 0.0
    %3850 = vmatprep.subr.mxu0 0.0
    %3851 = vmatpush1.xpose.msra.mxu0 0.0
    %3852 = vmatprep.subr.mxu0 0.0
    %3853 = vmatpush1.xpose.msra.mxu0 0.0
    %3854 = vmatprep.subr.mxu0 0.0
    %3855 = vmatpush1.xpose.msra.mxu0 0.0
    %3856 = vmatprep.subr.mxu0 0.0
    %3857 = vmatpush1.xpose.msra.mxu0 0.0
    %3858 = vmatprep.subr.mxu0 0.0
    %3859 = vmatpush1.xpose.msra.mxu0 0.0
    %3860 = vmatprep.subr.mxu0 0.0
    %3861 = vmatpush1.xpose.msra.mxu0 0.0
    %3862 = vmatprep.subr.mxu0 0.0
    %3863 = vmatpush1.xpose.msra.mxu0 %v3830
    %3864 = vmatprep.subr.mxu0 0.0
    %3865 = vmatpush2.xpose.msra.mxu0 0.0
    %3866 = vmatprep.subr.mxu0 0.0
    %3867 = vmatpush2.xpose.msra.mxu0 0.0
    %3868 = vmatprep.subr.mxu0 0.0
    %3869 = vmatpush2.xpose.msra.mxu0 0.0
    %3870 = vmatprep.subr.mxu0 0.0
    %3871 = vmatpush2.xpose.msra.mxu0 0.0
    %3872 = vmatprep.subr.mxu0 0.0
    %3873 = vmatpush2.xpose.msra.mxu0 0.0
    %3874 = vmatprep.subr.mxu0 0.0
    %3875 = vmatpush2.xpose.msra.mxu0 0.0
    %3876 = vmatprep.subr.mxu0 0.0
    %3877 = vmatpush2.xpose.msra.mxu0 0.0
    %3878 = vmatprep.subr.mxu0 0.0
    %3879 = vmatpush2.xpose.msra.mxu0 0.0
    %3880 = vmatprep.subr.mxu0 0.0
    %3881 = vmatpush2.xpose.msra.mxu0 0.0
    %3882 = vmatprep.subr.mxu0 0.0
    %3883 = vmatpush2.xpose.msra.mxu0 0.0
    %3884 = vmatprep.subr.mxu0 0.0
    %3885 = vmatpush2.xpose.msra.mxu0 0.0
    %3886 = vmatprep.subr.mxu0 0.0
    %3887 = vmatpush2.xpose.msra.mxu0 0.0
    %3888 = vmatprep.subr.mxu0 0.0
    %3889 = vmatpush2.xpose.msra.mxu0 0.0
    %3890 = vmatprep.subr.mxu0 0.0
    %3891 = vmatpush2.xpose.msra.mxu0 0.0
    %3892 = vmatprep.subr.mxu0 0.0
    %3893 = vmatpush2.xpose.msra.mxu0 0.0
    %3894 = vmatprep.subr.mxu0 0.0
    %3895 = vmatpush2.xpose.msra.mxu0 0.0
    %3896 = vmatprep.mubr.f32.mxu0 0.0
    %3897 = vmatmul.mubr.f32.gmra.mxu0 %v3828
    %v3898 = vpop.f32.mrf.mxu0
    %v3899 = vadd.f32 0.0, %v3898
    %v3900 = vpop.f32.mrf.mxu0
    %3901 = vdwg.mxu0
    %v3902 = vsel %vm495, %v3899, -inf
    %3903 = vmax.xlane.f32.xlu0 %v3902
    %v3904 = vpop.xlane.xlu0 %3903
    %v3905 = vsub.f32 %v3899, %v3904
    %v3906 = vmul.f32 %v3905, 1.442695
    %v3907 = vpow.pop %v3906
    %v3908 = vsel %vm495, %v3907, 0.0
    %3909 = vadd.xlane.f32.xlu0 %v3908
    %v3910 = vpop.xlane.xlu0 %3909
    %v3911 = vrcp.pop %v3910
    %v3912 = vmul.f32 %v3907, %v3911
    %3913 = vrot.lane.b32.xlu0 %v3825, 64
    %v3914 = vpop.permute.xlu0 %3913
    %v3916 = vsel %vm509, %v3912, 0
    %v3918 = vsel %vm513, %v3914, 0
    %3920 = vmatprep.subr.mxu0 0.0
    %3921 = vmatpush1.msra.mxu0 0.0
    %3922 = vmatprep.subr.mxu0 0.0
    %3923 = vmatpush1.msra.mxu0 0.0
    %3924 = vmatprep.subr.mxu0 0.0
    %3925 = vmatpush1.msra.mxu0 0.0
    %3926 = vmatprep.subr.mxu0 0.0
    %3927 = vmatpush1.msra.mxu0 0.0
    %3928 = vmatprep.subr.mxu0 0.0
    %3929 = vmatpush1.msra.mxu0 0.0
    %3930 = vmatprep.subr.mxu0 0.0
    %3931 = vmatpush1.msra.mxu0 0.0
    %3932 = vmatprep.subr.mxu0 0.0
    %3933 = vmatpush1.msra.mxu0 0.0
    %3934 = vmatprep.subr.mxu0 0.0
    %3935 = vmatpush1.msra.mxu0 0.0
    %3936 = vmatprep.subr.mxu0 0.0
    %3937 = vmatpush1.msra.mxu0 0.0
    %3938 = vmatprep.subr.mxu0 0.0
    %3939 = vmatpush1.msra.mxu0 0.0
    %3940 = vmatprep.subr.mxu0 0.0
    %3941 = vmatpush1.msra.mxu0 0.0
    %3942 = vmatprep.subr.mxu0 0.0
    %3943 = vmatpush1.msra.mxu0 0.0
    %3944 = vmatprep.subr.mxu0 0.0
    %3945 = vmatpush1.msra.mxu0 0.0
    %3946 = vmatprep.subr.mxu0 0.0
    %3947 = vmatpush1.msra.mxu0 0.0
    %3948 = vmatprep.subr.mxu0 0.0
    %3949 = vmatpush1.msra.mxu0 0.0
    %3950 = vmatprep.subr.mxu0 0.0
    %3951 = vmatpush1.msra.mxu0 %v3918
    %3952 = vmatprep.subr.mxu0 0.0
    %3953 = vmatpush2.msra.mxu0 0.0
    %3954 = vmatprep.subr.mxu0 0.0
    %3955 = vmatpush2.msra.mxu0 0.0
    %3956 = vmatprep.subr.mxu0 0.0
    %3957 = vmatpush2.msra.mxu0 0.0
    %3958 = vmatprep.subr.mxu0 0.0
    %3959 = vmatpush2.msra.mxu0 0.0
    %3960 = vmatprep.subr.mxu0 0.0
    %3961 = vmatpush2.msra.mxu0 0.0
    %3962 = vmatprep.subr.mxu0 0.0
    %3963 = vmatpush2.msra.mxu0 0.0
    %3964 = vmatprep.subr.mxu0 0.0
    %3965 = vmatpush2.msra.mxu0 0.0
    %3966 = vmatprep.subr.mxu0 0.0
    %3967 = vmatpush2.msra.mxu0 0.0
    %3968 = vmatprep.subr.mxu0 0.0
    %3969 = vmatpush2.msra.mxu0 0.0
    %3970 = vmatprep.subr.mxu0 0.0
    %3971 = vmatpush2.msra.mxu0 0.0
    %3972 = vmatprep.subr.mxu0 0.0
    %3973 = vmatpush2.msra.mxu0 0.0
    %3974 = vmatprep.subr.mxu0 0.0
    %3975 = vmatpush2.msra.mxu0 0.0
    %3976 = vmatprep.subr.mxu0 0.0
    %3977 = vmatpush2.msra.mxu0 0.0
    %3978 = vmatprep.subr.mxu0 0.0
    %3979 = vmatpush2.msra.mxu0 0.0
    %3980 = vmatprep.subr.mxu0 0.0
    %3981 = vmatpush2.msra.mxu0 0.0
    %3982 = vmatprep.subr.mxu0 0.0
    %3983 = vmatpush2.msra.mxu0 0.0
    %3984 = vmatprep.mubr.f32.mxu0 0.0
    %3985 = vmatmul.mubr.f32.gmra.mxu0 %v3916
    %v3986 = vpop.f32.mrf.mxu0
    %v3987 = vadd.f32 0.0, %v3986
    %v3988 = vpop.f32.mrf.mxu0
    %3989 = vdwg.mxu0
    %v3990 = vld [vmem:[%s47] sm:$0xff]
    %3991 = vrot.lane.b32.xlu0 %v3821, 120
    %v3992 = vpop.permute.xlu0 %3991
    %3993 = vrot.lane.b32.xlu0 %v3825, 88
    %v3994 = vpop.permute.xlu0 %3993
    %v3995 = vsel %vm419, %v3992, 0
    %v3997 = vsel %vm419, %v3994, 0
    %3999 = vmatprep.subr.mxu0 0.0
    %4000 = vmatpush1.xpose.msra.mxu0 0.0
    %4001 = vmatprep.subr.mxu0 0.0
    %4002 = vmatpush1.xpose.msra.mxu0 0.0
    %4003 = vmatprep.subr.mxu0 0.0
    %4004 = vmatpush1.xpose.msra.mxu0 0.0
    %4005 = vmatprep.subr.mxu0 0.0
    %4006 = vmatpush1.xpose.msra.mxu0 0.0
    %4007 = vmatprep.subr.mxu0 0.0
    %4008 = vmatpush1.xpose.msra.mxu0 0.0
    %4009 = vmatprep.subr.mxu0 0.0
    %4010 = vmatpush1.xpose.msra.mxu0 0.0
    %4011 = vmatprep.subr.mxu0 0.0
    %4012 = vmatpush1.xpose.msra.mxu0 0.0
    %4013 = vmatprep.subr.mxu0 0.0
    %4014 = vmatpush1.xpose.msra.mxu0 0.0
    %4015 = vmatprep.subr.mxu0 0.0
    %4016 = vmatpush1.xpose.msra.mxu0 0.0
    %4017 = vmatprep.subr.mxu0 0.0
    %4018 = vmatpush1.xpose.msra.mxu0 0.0
    %4019 = vmatprep.subr.mxu0 0.0
    %4020 = vmatpush1.xpose.msra.mxu0 0.0
    %4021 = vmatprep.subr.mxu0 0.0
    %4022 = vmatpush1.xpose.msra.mxu0 0.0
    %4023 = vmatprep.subr.mxu0 0.0
    %4024 = vmatpush1.xpose.msra.mxu0 0.0
    %4025 = vmatprep.subr.mxu0 0.0
    %4026 = vmatpush1.xpose.msra.mxu0 0.0
    %4027 = vmatprep.subr.mxu0 0.0
    %4028 = vmatpush1.xpose.msra.mxu0 0.0
    %4029 = vmatprep.subr.mxu0 0.0
    %4030 = vmatpush1.xpose.msra.mxu0 %v3997
    %4031 = vmatprep.subr.mxu0 0.0
    %4032 = vmatpush2.xpose.msra.mxu0 0.0
    %4033 = vmatprep.subr.mxu0 0.0
    %4034 = vmatpush2.xpose.msra.mxu0 0.0
    %4035 = vmatprep.subr.mxu0 0.0
    %4036 = vmatpush2.xpose.msra.mxu0 0.0
    %4037 = vmatprep.subr.mxu0 0.0
    %4038 = vmatpush2.xpose.msra.mxu0 0.0
    %4039 = vmatprep.subr.mxu0 0.0
    %4040 = vmatpush2.xpose.msra.mxu0 0.0
    %4041 = vmatprep.subr.mxu0 0.0
    %4042 = vmatpush2.xpose.msra.mxu0 0.0
    %4043 = vmatprep.subr.mxu0 0.0
    %4044 = vmatpush2.xpose.msra.mxu0 0.0
    %4045 = vmatprep.subr.mxu0 0.0
    %4046 = vmatpush2.xpose.msra.mxu0 0.0
    %4047 = vmatprep.subr.mxu0 0.0
    %4048 = vmatpush2.xpose.msra.mxu0 0.0
    %4049 = vmatprep.subr.mxu0 0.0
    %4050 = vmatpush2.xpose.msra.mxu0 0.0
    %4051 = vmatprep.subr.mxu0 0.0
    %4052 = vmatpush2.xpose.msra.mxu0 0.0
    %4053 = vmatprep.subr.mxu0 0.0
    %4054 = vmatpush2.xpose.msra.mxu0 0.0
    %4055 = vmatprep.subr.mxu0 0.0
    %4056 = vmatpush2.xpose.msra.mxu0 0.0
    %4057 = vmatprep.subr.mxu0 0.0
    %4058 = vmatpush2.xpose.msra.mxu0 0.0
    %4059 = vmatprep.subr.mxu0 0.0
    %4060 = vmatpush2.xpose.msra.mxu0 0.0
    %4061 = vmatprep.subr.mxu0 0.0
    %4062 = vmatpush2.xpose.msra.mxu0 0.0
    %4063 = vmatprep.mubr.f32.mxu0 0.0
    %4064 = vmatmul.mubr.f32.gmra.mxu0 %v3995
    %v4065 = vpop.f32.mrf.mxu0
    %v4066 = vadd.f32 0.0, %v4065
    %v4067 = vpop.f32.mrf.mxu0
    %4068 = vdwg.mxu0
    %v4069 = vsel %vm495, %v4066, -inf
    %4070 = vmax.xlane.f32.xlu0 %v4069
    %v4071 = vpop.xlane.xlu0 %4070
    %v4072 = vsub.f32 %v4066, %v4071
    %v4073 = vmul.f32 %v4072, 1.442695
    %v4074 = vpow.pop %v4073
    %v4075 = vsel %vm495, %v4074, 0.0
    %4076 = vadd.xlane.f32.xlu0 %v4075
    %v4077 = vpop.xlane.xlu0 %4076
    %v4078 = vrcp.pop %v4077
    %v4079 = vmul.f32 %v4074, %v4078
    %4080 = vrot.lane.b32.xlu0 %v3825, 56
    %v4081 = vpop.permute.xlu0 %4080
    %v4083 = vsel %vm509, %v4079, 0
    %v4085 = vsel %vm513, %v4081, 0
    %4087 = vmatprep.subr.mxu0 0.0
    %4088 = vmatpush1.msra.mxu0 0.0
    %4089 = vmatprep.subr.mxu0 0.0
    %4090 = vmatpush1.msra.mxu0 0.0
    %4091 = vmatprep.subr.mxu0 0.0
    %4092 = vmatpush1.msra.mxu0 0.0
    %4093 = vmatprep.subr.mxu0 0.0
    %4094 = vmatpush1.msra.mxu0 0.0
    %4095 = vmatprep.subr.mxu0 0.0
    %4096 = vmatpush1.msra.mxu0 0.0
    %4097 = vmatprep.subr.mxu0 0.0
    %4098 = vmatpush1.msra.mxu0 0.0
    %4099 = vmatprep.subr.mxu0 0.0
    %4100 = vmatpush1.msra.mxu0 0.0
    %4101 = vmatprep.subr.mxu0 0.0
    %4102 = vmatpush1.msra.mxu0 0.0
    %4103 = vmatprep.subr.mxu0 0.0
    %4104 = vmatpush1.msra.mxu0 0.0
    %4105 = vmatprep.subr.mxu0 0.0
    %4106 = vmatpush1.msra.mxu0 0.0
    %4107 = vmatprep.subr.mxu0 0.0
    %4108 = vmatpush1.msra.mxu0 0.0
    %4109 = vmatprep.subr.mxu0 0.0
    %4110 = vmatpush1.msra.mxu0 0.0
    %4111 = vmatprep.subr.mxu0 0.0
    %4112 = vmatpush1.msra.mxu0 0.0
    %4113 = vmatprep.subr.mxu0 0.0
    %4114 = vmatpush1.msra.mxu0 0.0
    %4115 = vmatprep.subr.mxu0 0.0
    %4116 = vmatpush1.msra.mxu0 0.0
    %4117 = vmatprep.subr.mxu0 0.0
    %4118 = vmatpush1.msra.mxu0 %v4085
    %4119 = vmatprep.subr.mxu0 0.0
    %4120 = vmatpush2.msra.mxu0 0.0
    %4121 = vmatprep.subr.mxu0 0.0
    %4122 = vmatpush2.msra.mxu0 0.0
    %4123 = vmatprep.subr.mxu0 0.0
    %4124 = vmatpush2.msra.mxu0 0.0
    %4125 = vmatprep.subr.mxu0 0.0
    %4126 = vmatpush2.msra.mxu0 0.0
    %4127 = vmatprep.subr.mxu0 0.0
    %4128 = vmatpush2.msra.mxu0 0.0
    %4129 = vmatprep.subr.mxu0 0.0
    %4130 = vmatpush2.msra.mxu0 0.0
    %4131 = vmatprep.subr.mxu0 0.0
    %4132 = vmatpush2.msra.mxu0 0.0
    %4133 = vmatprep.subr.mxu0 0.0
    %4134 = vmatpush2.msra.mxu0 0.0
    %4135 = vmatprep.subr.mxu0 0.0
    %4136 = vmatpush2.msra.mxu0 0.0
    %4137 = vmatprep.subr.mxu0 0.0
    %4138 = vmatpush2.msra.mxu0 0.0
    %4139 = vmatprep.subr.mxu0 0.0
    %4140 = vmatpush2.msra.mxu0 0.0
    %4141 = vmatprep.subr.mxu0 0.0
    %4142 = vmatpush2.msra.mxu0 0.0
    %4143 = vmatprep.subr.mxu0 0.0
    %4144 = vmatpush2.msra.mxu0 0.0
    %4145 = vmatprep.subr.mxu0 0.0
    %4146 = vmatpush2.msra.mxu0 0.0
    %4147 = vmatprep.subr.mxu0 0.0
    %4148 = vmatpush2.msra.mxu0 0.0
    %4149 = vmatprep.subr.mxu0 0.0
    %4150 = vmatpush2.msra.mxu0 0.0
    %4151 = vmatprep.mubr.f32.mxu0 0.0
    %4152 = vmatmul.mubr.f32.gmra.mxu0 %v4083
    %v4153 = vpop.f32.mrf.mxu0
    %v4154 = vadd.f32 0.0, %v4153
    %v4155 = vpop.f32.mrf.mxu0
    %4156 = vdwg.mxu0
    %v4157 = vld [vmem:[%s47 + $0x8] sm:$0xff]
    %v4159 = vsel %vm419, %v4154, 0
    %4161 = vmatprep.subr.mxu0 0.0
    %4162 = vmatpush1.msra.mxu0 0.0
    %4163 = vmatprep.subr.mxu0 0.0
    %4164 = vmatpush1.msra.mxu0 0.0
    %4165 = vmatprep.subr.mxu0 0.0
    %4166 = vmatpush1.msra.mxu0 0.0
    %4167 = vmatprep.subr.mxu0 0.0
    %4168 = vmatpush1.msra.mxu0 0.0
    %4169 = vmatprep.subr.mxu0 0.0
    %4170 = vmatpush1.msra.mxu0 0.0
    %4171 = vmatprep.subr.mxu0 0.0
    %4172 = vmatpush1.msra.mxu0 0.0
    %4173 = vmatprep.subr.mxu0 0.0
    %4174 = vmatpush1.msra.mxu0 0.0
    %4175 = vmatprep.subr.mxu0 0.0
    %4176 = vmatpush1.msra.mxu0 0.0
    %4177 = vmatprep.subr.mxu0 0.0
    %4178 = vmatpush1.msra.mxu0 0.0
    %4179 = vmatprep.subr.mxu0 0.0
    %4180 = vmatpush1.msra.mxu0 0.0
    %4181 = vmatprep.subr.mxu0 0.0
    %4182 = vmatpush1.msra.mxu0 0.0
    %4183 = vmatprep.subr.mxu0 0.0
    %4184 = vmatpush1.msra.mxu0 0.0
    %4185 = vmatprep.subr.mxu0 0.0
    %4186 = vmatpush1.msra.mxu0 0.0
    %4187 = vmatprep.subr.mxu0 0.0
    %4188 = vmatpush1.msra.mxu0 0.0
    %4189 = vmatprep.subr.mxu0 0.0
    %4190 = vmatpush1.msra.mxu0 0.0
    %4191 = vmatprep.subr.mxu0 0.0
    %4192 = vmatpush1.msra.mxu0 %v4157
    %4193 = vmatprep.subr.mxu0 0.0
    %4194 = vmatpush2.msra.mxu0 0.0
    %4195 = vmatprep.subr.mxu0 0.0
    %4196 = vmatpush2.msra.mxu0 0.0
    %4197 = vmatprep.subr.mxu0 0.0
    %4198 = vmatpush2.msra.mxu0 0.0
    %4199 = vmatprep.subr.mxu0 0.0
    %4200 = vmatpush2.msra.mxu0 0.0
    %4201 = vmatprep.subr.mxu0 0.0
    %4202 = vmatpush2.msra.mxu0 0.0
    %4203 = vmatprep.subr.mxu0 0.0
    %4204 = vmatpush2.msra.mxu0 0.0
    %4205 = vmatprep.subr.mxu0 0.0
    %4206 = vmatpush2.msra.mxu0 0.0
    %4207 = vmatprep.subr.mxu0 0.0
    %4208 = vmatpush2.msra.mxu0 0.0
    %4209 = vmatprep.subr.mxu0 0.0
    %4210 = vmatpush2.msra.mxu0 0.0
    %4211 = vmatprep.subr.mxu0 0.0
    %4212 = vmatpush2.msra.mxu0 0.0
    %4213 = vmatprep.subr.mxu0 0.0
    %4214 = vmatpush2.msra.mxu0 0.0
    %4215 = vmatprep.subr.mxu0 0.0
    %4216 = vmatpush2.msra.mxu0 0.0
    %4217 = vmatprep.subr.mxu0 0.0
    %4218 = vmatpush2.msra.mxu0 0.0
    %4219 = vmatprep.subr.mxu0 0.0
    %4220 = vmatpush2.msra.mxu0 0.0
    %4221 = vmatprep.subr.mxu0 0.0
    %4222 = vmatpush2.msra.mxu0 0.0
    %4223 = vmatprep.subr.mxu0 0.0
    %4224 = vmatpush2.msra.mxu0 0.0
    %4225 = vmatprep.mubr.f32.mxu0 0.0
    %4226 = vmatmul.mubr.f32.gmra.mxu0 %v4159
    %v4227 = vpop.f32.mrf.mxu0
    %v4228 = vadd.f32 0.0, %v4227
    %v4229 = vpop.f32.mrf.mxu0
    %4230 = vdwg.mxu0
    %v4232 = vsel %vm419, %v3987, 0
    %4234 = vmatprep.subr.mxu0 0.0
    %4235 = vmatpush1.msra.mxu0 0.0
    %4236 = vmatprep.subr.mxu0 0.0
    %4237 = vmatpush1.msra.mxu0 0.0
    %4238 = vmatprep.subr.mxu0 0.0
    %4239 = vmatpush1.msra.mxu0 0.0
    %4240 = vmatprep.subr.mxu0 0.0
    %4241 = vmatpush1.msra.mxu0 0.0
    %4242 = vmatprep.subr.mxu0 0.0
    %4243 = vmatpush1.msra.mxu0 0.0
    %4244 = vmatprep.subr.mxu0 0.0
    %4245 = vmatpush1.msra.mxu0 0.0
    %4246 = vmatprep.subr.mxu0 0.0
    %4247 = vmatpush1.msra.mxu0 0.0
    %4248 = vmatprep.subr.mxu0 0.0
    %4249 = vmatpush1.msra.mxu0 0.0
    %4250 = vmatprep.subr.mxu0 0.0
    %4251 = vmatpush1.msra.mxu0 0.0
    %4252 = vmatprep.subr.mxu0 0.0
    %4253 = vmatpush1.msra.mxu0 0.0
    %4254 = vmatprep.subr.mxu0 0.0
    %4255 = vmatpush1.msra.mxu0 0.0
    %4256 = vmatprep.subr.mxu0 0.0
    %4257 = vmatpush1.msra.mxu0 0.0
    %4258 = vmatprep.subr.mxu0 0.0
    %4259 = vmatpush1.msra.mxu0 0.0
    %4260 = vmatprep.subr.mxu0 0.0
    %4261 = vmatpush1.msra.mxu0 0.0
    %4262 = vmatprep.subr.mxu0 0.0
    %4263 = vmatpush1.msra.mxu0 0.0
    %4264 = vmatprep.subr.mxu0 0.0
    %4265 = vmatpush1.msra.mxu0 %v3990
    %4266 = vmatprep.subr.mxu0 0.0
    %4267 = vmatpush2.msra.mxu0 0.0
    %4268 = vmatprep.subr.mxu0 0.0
    %4269 = vmatpush2.msra.mxu0 0.0
    %4270 = vmatprep.subr.mxu0 0.0
    %4271 = vmatpush2.msra.mxu0 0.0
    %4272 = vmatprep.subr.mxu0 0.0
    %4273 = vmatpush2.msra.mxu0 0.0
    %4274 = vmatprep.subr.mxu0 0.0
    %4275 = vmatpush2.msra.mxu0 0.0
    %4276 = vmatprep.subr.mxu0 0.0
    %4277 = vmatpush2.msra.mxu0 0.0
    %4278 = vmatprep.subr.mxu0 0.0
    %4279 = vmatpush2.msra.mxu0 0.0
    %4280 = vmatprep.subr.mxu0 0.0
    %4281 = vmatpush2.msra.mxu0 0.0
    %4282 = vmatprep.subr.mxu0 0.0
    %4283 = vmatpush2.msra.mxu0 0.0
    %4284 = vmatprep.subr.mxu0 0.0
    %4285 = vmatpush2.msra.mxu0 0.0
    %4286 = vmatprep.subr.mxu0 0.0
    %4287 = vmatpush2.msra.mxu0 0.0
    %4288 = vmatprep.subr.mxu0 0.0
    %4289 = vmatpush2.msra.mxu0 0.0
    %4290 = vmatprep.subr.mxu0 0.0
    %4291 = vmatpush2.msra.mxu0 0.0
    %4292 = vmatprep.subr.mxu0 0.0
    %4293 = vmatpush2.msra.mxu0 0.0
    %4294 = vmatprep.subr.mxu0 0.0
    %4295 = vmatpush2.msra.mxu0 0.0
    %4296 = vmatprep.subr.mxu0 0.0
    %4297 = vmatpush2.msra.mxu0 0.0
    %4298 = vmatprep.mubr.f32.mxu0 0.0
    %4299 = vmatmul.mubr.f32.gmra.mxu0 %v4232
    %v4300 = vpop.f32.mrf.mxu0
    %v4301 = vadd.f32 %v4228, %v4300
    %v4302 = vpop.f32.mrf.mxu0
    %4303 = vdwg.mxu0
    %4304 = vrot.lane.b32.xlu0 %v3821, 112
    %v4305 = vpop.permute.xlu0 %4304
    %4306 = vrot.lane.b32.xlu0 %v3825, 80
    %v4307 = vpop.permute.xlu0 %4306
    %v4308 = vsel %vm419, %v4305, 0
    %v4310 = vsel %vm419, %v4307, 0
    %4312 = vmatprep.subr.mxu0 0.0
    %4313 = vmatpush1.xpose.msra.mxu0 0.0
    %4314 = vmatprep.subr.mxu0 0.0
    %4315 = vmatpush1.xpose.msra.mxu0 0.0
    %4316 = vmatprep.subr.mxu0 0.0
    %4317 = vmatpush1.xpose.msra.mxu0 0.0
    %4318 = vmatprep.subr.mxu0 0.0
    %4319 = vmatpush1.xpose.msra.mxu0 0.0
    %4320 = vmatprep.subr.mxu0 0.0
    %4321 = vmatpush1.xpose.msra.mxu0 0.0
    %4322 = vmatprep.subr.mxu0 0.0
    %4323 = vmatpush1.xpose.msra.mxu0 0.0
    %4324 = vmatprep.subr.mxu0 0.0
    %4325 = vmatpush1.xpose.msra.mxu0 0.0
    %4326 = vmatprep.subr.mxu0 0.0
    %4327 = vmatpush1.xpose.msra.mxu0 0.0
    %4328 = vmatprep.subr.mxu0 0.0
    %4329 = vmatpush1.xpose.msra.mxu0 0.0
    %4330 = vmatprep.subr.mxu0 0.0
    %4331 = vmatpush1.xpose.msra.mxu0 0.0
    %4332 = vmatprep.subr.mxu0 0.0
    %4333 = vmatpush1.xpose.msra.mxu0 0.0
    %4334 = vmatprep.subr.mxu0 0.0
    %4335 = vmatpush1.xpose.msra.mxu0 0.0
    %4336 = vmatprep.subr.mxu0 0.0
    %4337 = vmatpush1.xpose.msra.mxu0 0.0
    %4338 = vmatprep.subr.mxu0 0.0
    %4339 = vmatpush1.xpose.msra.mxu0 0.0
    %4340 = vmatprep.subr.mxu0 0.0
    %4341 = vmatpush1.xpose.msra.mxu0 0.0
    %4342 = vmatprep.subr.mxu0 0.0
    %4343 = vmatpush1.xpose.msra.mxu0 %v4310
    %4344 = vmatprep.subr.mxu0 0.0
    %4345 = vmatpush2.xpose.msra.mxu0 0.0
    %4346 = vmatprep.subr.mxu0 0.0
    %4347 = vmatpush2.xpose.msra.mxu0 0.0
    %4348 = vmatprep.subr.mxu0 0.0
    %4349 = vmatpush2.xpose.msra.mxu0 0.0
    %4350 = vmatprep.subr.mxu0 0.0
    %4351 = vmatpush2.xpose.msra.mxu0 0.0
    %4352 = vmatprep.subr.mxu0 0.0
    %4353 = vmatpush2.xpose.msra.mxu0 0.0
    %4354 = vmatprep.subr.mxu0 0.0
    %4355 = vmatpush2.xpose.msra.mxu0 0.0
    %4356 = vmatprep.subr.mxu0 0.0
    %4357 = vmatpush2.xpose.msra.mxu0 0.0
    %4358 = vmatprep.subr.mxu0 0.0
    %4359 = vmatpush2.xpose.msra.mxu0 0.0
    %4360 = vmatprep.subr.mxu0 0.0
    %4361 = vmatpush2.xpose.msra.mxu0 0.0
    %4362 = vmatprep.subr.mxu0 0.0
    %4363 = vmatpush2.xpose.msra.mxu0 0.0
    %4364 = vmatprep.subr.mxu0 0.0
    %4365 = vmatpush2.xpose.msra.mxu0 0.0
    %4366 = vmatprep.subr.mxu0 0.0
    %4367 = vmatpush2.xpose.msra.mxu0 0.0
    %4368 = vmatprep.subr.mxu0 0.0
    %4369 = vmatpush2.xpose.msra.mxu0 0.0
    %4370 = vmatprep.subr.mxu0 0.0
    %4371 = vmatpush2.xpose.msra.mxu0 0.0
    %4372 = vmatprep.subr.mxu0 0.0
    %4373 = vmatpush2.xpose.msra.mxu0 0.0
    %4374 = vmatprep.subr.mxu0 0.0
    %4375 = vmatpush2.xpose.msra.mxu0 0.0
    %4376 = vmatprep.mubr.f32.mxu0 0.0
    %4377 = vmatmul.mubr.f32.gmra.mxu0 %v4308
    %v4378 = vpop.f32.mrf.mxu0
    %v4379 = vadd.f32 0.0, %v4378
    %v4380 = vpop.f32.mrf.mxu0
    %4381 = vdwg.mxu0
    %v4382 = vsel %vm495, %v4379, -inf
    %4383 = vmax.xlane.f32.xlu0 %v4382
    %v4384 = vpop.xlane.xlu0 %4383
    %v4385 = vsub.f32 %v4379, %v4384
    %v4386 = vmul.f32 %v4385, 1.442695
    %v4387 = vpow.pop %v4386
    %v4388 = vsel %vm495, %v4387, 0.0
    %4389 = vadd.xlane.f32.xlu0 %v4388
    %v4390 = vpop.xlane.xlu0 %4389
    %v4391 = vrcp.pop %v4390
    %v4392 = vmul.f32 %v4387, %v4391
    %4393 = vrot.lane.b32.xlu0 %v3825, 48
    %v4394 = vpop.permute.xlu0 %4393
    %v4396 = vsel %vm509, %v4392, 0
    %v4398 = vsel %vm513, %v4394, 0
    %4400 = vmatprep.subr.mxu0 0.0
    %4401 = vmatpush1.msra.mxu0 0.0
    %4402 = vmatprep.subr.mxu0 0.0
    %4403 = vmatpush1.msra.mxu0 0.0
    %4404 = vmatprep.subr.mxu0 0.0
    %4405 = vmatpush1.msra.mxu0 0.0
    %4406 = vmatprep.subr.mxu0 0.0
    %4407 = vmatpush1.msra.mxu0 0.0
    %4408 = vmatprep.subr.mxu0 0.0
    %4409 = vmatpush1.msra.mxu0 0.0
    %4410 = vmatprep.subr.mxu0 0.0
    %4411 = vmatpush1.msra.mxu0 0.0
    %4412 = vmatprep.subr.mxu0 0.0
    %4413 = vmatpush1.msra.mxu0 0.0
    %4414 = vmatprep.subr.mxu0 0.0
    %4415 = vmatpush1.msra.mxu0 0.0
    %4416 = vmatprep.subr.mxu0 0.0
    %4417 = vmatpush1.msra.mxu0 0.0
    %4418 = vmatprep.subr.mxu0 0.0
    %4419 = vmatpush1.msra.mxu0 0.0
    %4420 = vmatprep.subr.mxu0 0.0
    %4421 = vmatpush1.msra.mxu0 0.0
    %4422 = vmatprep.subr.mxu0 0.0
    %4423 = vmatpush1.msra.mxu0 0.0
    %4424 = vmatprep.subr.mxu0 0.0
    %4425 = vmatpush1.msra.mxu0 0.0
    %4426 = vmatprep.subr.mxu0 0.0
    %4427 = vmatpush1.msra.mxu0 0.0
    %4428 = vmatprep.subr.mxu0 0.0
    %4429 = vmatpush1.msra.mxu0 0.0
    %4430 = vmatprep.subr.mxu0 0.0
    %4431 = vmatpush1.msra.mxu0 %v4398
    %4432 = vmatprep.subr.mxu0 0.0
    %4433 = vmatpush2.msra.mxu0 0.0
    %4434 = vmatprep.subr.mxu0 0.0
    %4435 = vmatpush2.msra.mxu0 0.0
    %4436 = vmatprep.subr.mxu0 0.0
    %4437 = vmatpush2.msra.mxu0 0.0
    %4438 = vmatprep.subr.mxu0 0.0
    %4439 = vmatpush2.msra.mxu0 0.0
    %4440 = vmatprep.subr.mxu0 0.0
    %4441 = vmatpush2.msra.mxu0 0.0
    %4442 = vmatprep.subr.mxu0 0.0
    %4443 = vmatpush2.msra.mxu0 0.0
    %4444 = vmatprep.subr.mxu0 0.0
    %4445 = vmatpush2.msra.mxu0 0.0
    %4446 = vmatprep.subr.mxu0 0.0
    %4447 = vmatpush2.msra.mxu0 0.0
    %4448 = vmatprep.subr.mxu0 0.0
    %4449 = vmatpush2.msra.mxu0 0.0
    %4450 = vmatprep.subr.mxu0 0.0
    %4451 = vmatpush2.msra.mxu0 0.0
    %4452 = vmatprep.subr.mxu0 0.0
    %4453 = vmatpush2.msra.mxu0 0.0
    %4454 = vmatprep.subr.mxu0 0.0
    %4455 = vmatpush2.msra.mxu0 0.0
    %4456 = vmatprep.subr.mxu0 0.0
    %4457 = vmatpush2.msra.mxu0 0.0
    %4458 = vmatprep.subr.mxu0 0.0
    %4459 = vmatpush2.msra.mxu0 0.0
    %4460 = vmatprep.subr.mxu0 0.0
    %4461 = vmatpush2.msra.mxu0 0.0
    %4462 = vmatprep.subr.mxu0 0.0
    %4463 = vmatpush2.msra.mxu0 0.0
    %4464 = vmatprep.mubr.f32.mxu0 0.0
    %4465 = vmatmul.mubr.f32.gmra.mxu0 %v4396
    %v4466 = vpop.f32.mrf.mxu0
    %v4467 = vadd.f32 0.0, %v4466
    %v4468 = vpop.f32.mrf.mxu0
    %4469 = vdwg.mxu0
    %v4470 = vld [vmem:[%s47 + $0x10] sm:$0xff]
    %v4472 = vsel %vm419, %v4467, 0
    %4474 = vmatprep.subr.mxu0 0.0
    %4475 = vmatpush1.msra.mxu0 0.0
    %4476 = vmatprep.subr.mxu0 0.0
    %4477 = vmatpush1.msra.mxu0 0.0
    %4478 = vmatprep.subr.mxu0 0.0
    %4479 = vmatpush1.msra.mxu0 0.0
    %4480 = vmatprep.subr.mxu0 0.0
    %4481 = vmatpush1.msra.mxu0 0.0
    %4482 = vmatprep.subr.mxu0 0.0
    %4483 = vmatpush1.msra.mxu0 0.0
    %4484 = vmatprep.subr.mxu0 0.0
    %4485 = vmatpush1.msra.mxu0 0.0
    %4486 = vmatprep.subr.mxu0 0.0
    %4487 = vmatpush1.msra.mxu0 0.0
    %4488 = vmatprep.subr.mxu0 0.0
    %4489 = vmatpush1.msra.mxu0 0.0
    %4490 = vmatprep.subr.mxu0 0.0
    %4491 = vmatpush1.msra.mxu0 0.0
    %4492 = vmatprep.subr.mxu0 0.0
    %4493 = vmatpush1.msra.mxu0 0.0
    %4494 = vmatprep.subr.mxu0 0.0
    %4495 = vmatpush1.msra.mxu0 0.0
    %4496 = vmatprep.subr.mxu0 0.0
    %4497 = vmatpush1.msra.mxu0 0.0
    %4498 = vmatprep.subr.mxu0 0.0
    %4499 = vmatpush1.msra.mxu0 0.0
    %4500 = vmatprep.subr.mxu0 0.0
    %4501 = vmatpush1.msra.mxu0 0.0
    %4502 = vmatprep.subr.mxu0 0.0
    %4503 = vmatpush1.msra.mxu0 0.0
    %4504 = vmatprep.subr.mxu0 0.0
    %4505 = vmatpush1.msra.mxu0 %v4470
    %4506 = vmatprep.subr.mxu0 0.0
    %4507 = vmatpush2.msra.mxu0 0.0
    %4508 = vmatprep.subr.mxu0 0.0
    %4509 = vmatpush2.msra.mxu0 0.0
    %4510 = vmatprep.subr.mxu0 0.0
    %4511 = vmatpush2.msra.mxu0 0.0
    %4512 = vmatprep.subr.mxu0 0.0
    %4513 = vmatpush2.msra.mxu0 0.0
    %4514 = vmatprep.subr.mxu0 0.0
    %4515 = vmatpush2.msra.mxu0 0.0
    %4516 = vmatprep.subr.mxu0 0.0
    %4517 = vmatpush2.msra.mxu0 0.0
    %4518 = vmatprep.subr.mxu0 0.0
    %4519 = vmatpush2.msra.mxu0 0.0
    %4520 = vmatprep.subr.mxu0 0.0
    %4521 = vmatpush2.msra.mxu0 0.0
    %4522 = vmatprep.subr.mxu0 0.0
    %4523 = vmatpush2.msra.mxu0 0.0
    %4524 = vmatprep.subr.mxu0 0.0
    %4525 = vmatpush2.msra.mxu0 0.0
    %4526 = vmatprep.subr.mxu0 0.0
    %4527 = vmatpush2.msra.mxu0 0.0
    %4528 = vmatprep.subr.mxu0 0.0
    %4529 = vmatpush2.msra.mxu0 0.0
    %4530 = vmatprep.subr.mxu0 0.0
    %4531 = vmatpush2.msra.mxu0 0.0
    %4532 = vmatprep.subr.mxu0 0.0
    %4533 = vmatpush2.msra.mxu0 0.0
    %4534 = vmatprep.subr.mxu0 0.0
    %4535 = vmatpush2.msra.mxu0 0.0
    %4536 = vmatprep.subr.mxu0 0.0
    %4537 = vmatpush2.msra.mxu0 0.0
    %4538 = vmatprep.mubr.f32.mxu0 0.0
    %4539 = vmatmul.mubr.f32.gmra.mxu0 %v4472
    %v4540 = vpop.f32.mrf.mxu0
    %v4541 = vadd.f32 0.0, %v4540
    %v4542 = vpop.f32.mrf.mxu0
    %4543 = vdwg.mxu0
    %v4544 = vadd.f32 %v4301, %v4541
    %4545 = vrot.lane.b32.xlu0 %v3821, 104
    %v4546 = vpop.permute.xlu0 %4545
    %4547 = vrot.lane.b32.xlu0 %v3825, 72
    %v4548 = vpop.permute.xlu0 %4547
    %v4549 = vsel %vm419, %v4546, 0
    %v4551 = vsel %vm419, %v4548, 0
    %4553 = vmatprep.subr.mxu0 0.0
    %4554 = vmatpush1.xpose.msra.mxu0 0.0
    %4555 = vmatprep.subr.mxu0 0.0
    %4556 = vmatpush1.xpose.msra.mxu0 0.0
    %4557 = vmatprep.subr.mxu0 0.0
    %4558 = vmatpush1.xpose.msra.mxu0 0.0
    %4559 = vmatprep.subr.mxu0 0.0
    %4560 = vmatpush1.xpose.msra.mxu0 0.0
    %4561 = vmatprep.subr.mxu0 0.0
    %4562 = vmatpush1.xpose.msra.mxu0 0.0
    %4563 = vmatprep.subr.mxu0 0.0
    %4564 = vmatpush1.xpose.msra.mxu0 0.0
    %4565 = vmatprep.subr.mxu0 0.0
    %4566 = vmatpush1.xpose.msra.mxu0 0.0
    %4567 = vmatprep.subr.mxu0 0.0
    %4568 = vmatpush1.xpose.msra.mxu0 0.0
    %4569 = vmatprep.subr.mxu0 0.0
    %4570 = vmatpush1.xpose.msra.mxu0 0.0
    %4571 = vmatprep.subr.mxu0 0.0
    %4572 = vmatpush1.xpose.msra.mxu0 0.0
    %4573 = vmatprep.subr.mxu0 0.0
    %4574 = vmatpush1.xpose.msra.mxu0 0.0
    %4575 = vmatprep.subr.mxu0 0.0
    %4576 = vmatpush1.xpose.msra.mxu0 0.0
    %4577 = vmatprep.subr.mxu0 0.0
    %4578 = vmatpush1.xpose.msra.mxu0 0.0
    %4579 = vmatprep.subr.mxu0 0.0
    %4580 = vmatpush1.xpose.msra.mxu0 0.0
    %4581 = vmatprep.subr.mxu0 0.0
    %4582 = vmatpush1.xpose.msra.mxu0 0.0
    %4583 = vmatprep.subr.mxu0 0.0
    %4584 = vmatpush1.xpose.msra.mxu0 %v4551
    %4585 = vmatprep.subr.mxu0 0.0
    %4586 = vmatpush2.xpose.msra.mxu0 0.0
    %4587 = vmatprep.subr.mxu0 0.0
    %4588 = vmatpush2.xpose.msra.mxu0 0.0
    %4589 = vmatprep.subr.mxu0 0.0
    %4590 = vmatpush2.xpose.msra.mxu0 0.0
    %4591 = vmatprep.subr.mxu0 0.0
    %4592 = vmatpush2.xpose.msra.mxu0 0.0
    %4593 = vmatprep.subr.mxu0 0.0
    %4594 = vmatpush2.xpose.msra.mxu0 0.0
    %4595 = vmatprep.subr.mxu0 0.0
    %4596 = vmatpush2.xpose.msra.mxu0 0.0
    %4597 = vmatprep.subr.mxu0 0.0
    %4598 = vmatpush2.xpose.msra.mxu0 0.0
    %4599 = vmatprep.subr.mxu0 0.0
    %4600 = vmatpush2.xpose.msra.mxu0 0.0
    %4601 = vmatprep.subr.mxu0 0.0
    %4602 = vmatpush2.xpose.msra.mxu0 0.0
    %4603 = vmatprep.subr.mxu0 0.0
    %4604 = vmatpush2.xpose.msra.mxu0 0.0
    %4605 = vmatprep.subr.mxu0 0.0
    %4606 = vmatpush2.xpose.msra.mxu0 0.0
    %4607 = vmatprep.subr.mxu0 0.0
    %4608 = vmatpush2.xpose.msra.mxu0 0.0
    %4609 = vmatprep.subr.mxu0 0.0
    %4610 = vmatpush2.xpose.msra.mxu0 0.0
    %4611 = vmatprep.subr.mxu0 0.0
    %4612 = vmatpush2.xpose.msra.mxu0 0.0
    %4613 = vmatprep.subr.mxu0 0.0
    %4614 = vmatpush2.xpose.msra.mxu0 0.0
    %4615 = vmatprep.subr.mxu0 0.0
    %4616 = vmatpush2.xpose.msra.mxu0 0.0
    %4617 = vmatprep.mubr.f32.mxu0 0.0
    %4618 = vmatmul.mubr.f32.gmra.mxu0 %v4549
    %v4619 = vpop.f32.mrf.mxu0
    %v4620 = vadd.f32 0.0, %v4619
    %v4621 = vpop.f32.mrf.mxu0
    %4622 = vdwg.mxu0
    %v4623 = vsel %vm495, %v4620, -inf
    %4624 = vmax.xlane.f32.xlu0 %v4623
    %v4625 = vpop.xlane.xlu0 %4624
    %v4626 = vsub.f32 %v4620, %v4625
    %v4627 = vmul.f32 %v4626, 1.442695
    %v4628 = vpow.pop %v4627
    %v4629 = vsel %vm495, %v4628, 0.0
    %4630 = vadd.xlane.f32.xlu0 %v4629
    %v4631 = vpop.xlane.xlu0 %4630
    %v4632 = vrcp.pop %v4631
    %v4633 = vmul.f32 %v4628, %v4632
    %4634 = vrot.lane.b32.xlu0 %v3825, 40
    %v4635 = vpop.permute.xlu0 %4634
    %v4637 = vsel %vm509, %v4633, 0
    %v4639 = vsel %vm513, %v4635, 0
    %4641 = vmatprep.subr.mxu0 0.0
    %4642 = vmatpush1.msra.mxu0 0.0
    %4643 = vmatprep.subr.mxu0 0.0
    %4644 = vmatpush1.msra.mxu0 0.0
    %4645 = vmatprep.subr.mxu0 0.0
    %4646 = vmatpush1.msra.mxu0 0.0
    %4647 = vmatprep.subr.mxu0 0.0
    %4648 = vmatpush1.msra.mxu0 0.0
    %4649 = vmatprep.subr.mxu0 0.0
    %4650 = vmatpush1.msra.mxu0 0.0
    %4651 = vmatprep.subr.mxu0 0.0
    %4652 = vmatpush1.msra.mxu0 0.0
    %4653 = vmatprep.subr.mxu0 0.0
    %4654 = vmatpush1.msra.mxu0 0.0
    %4655 = vmatprep.subr.mxu0 0.0
    %4656 = vmatpush1.msra.mxu0 0.0
    %4657 = vmatprep.subr.mxu0 0.0
    %4658 = vmatpush1.msra.mxu0 0.0
    %4659 = vmatprep.subr.mxu0 0.0
    %4660 = vmatpush1.msra.mxu0 0.0
    %4661 = vmatprep.subr.mxu0 0.0
    %4662 = vmatpush1.msra.mxu0 0.0
    %4663 = vmatprep.subr.mxu0 0.0
    %4664 = vmatpush1.msra.mxu0 0.0
    %4665 = vmatprep.subr.mxu0 0.0
    %4666 = vmatpush1.msra.mxu0 0.0
    %4667 = vmatprep.subr.mxu0 0.0
    %4668 = vmatpush1.msra.mxu0 0.0
    %4669 = vmatprep.subr.mxu0 0.0
    %4670 = vmatpush1.msra.mxu0 0.0
    %4671 = vmatprep.subr.mxu0 0.0
    %4672 = vmatpush1.msra.mxu0 %v4639
    %4673 = vmatprep.subr.mxu0 0.0
    %4674 = vmatpush2.msra.mxu0 0.0
    %4675 = vmatprep.subr.mxu0 0.0
    %4676 = vmatpush2.msra.mxu0 0.0
    %4677 = vmatprep.subr.mxu0 0.0
    %4678 = vmatpush2.msra.mxu0 0.0
    %4679 = vmatprep.subr.mxu0 0.0
    %4680 = vmatpush2.msra.mxu0 0.0
    %4681 = vmatprep.subr.mxu0 0.0
    %4682 = vmatpush2.msra.mxu0 0.0
    %4683 = vmatprep.subr.mxu0 0.0
    %4684 = vmatpush2.msra.mxu0 0.0
    %4685 = vmatprep.subr.mxu0 0.0
    %4686 = vmatpush2.msra.mxu0 0.0
    %4687 = vmatprep.subr.mxu0 0.0
    %4688 = vmatpush2.msra.mxu0 0.0
    %4689 = vmatprep.subr.mxu0 0.0
    %4690 = vmatpush2.msra.mxu0 0.0
    %4691 = vmatprep.subr.mxu0 0.0
    %4692 = vmatpush2.msra.mxu0 0.0
    %4693 = vmatprep.subr.mxu0 0.0
    %4694 = vmatpush2.msra.mxu0 0.0
    %4695 = vmatprep.subr.mxu0 0.0
    %4696 = vmatpush2.msra.mxu0 0.0
    %4697 = vmatprep.subr.mxu0 0.0
    %4698 = vmatpush2.msra.mxu0 0.0
    %4699 = vmatprep.subr.mxu0 0.0
    %4700 = vmatpush2.msra.mxu0 0.0
    %4701 = vmatprep.subr.mxu0 0.0
    %4702 = vmatpush2.msra.mxu0 0.0
    %4703 = vmatprep.subr.mxu0 0.0
    %4704 = vmatpush2.msra.mxu0 0.0
    %4705 = vmatprep.mubr.f32.mxu0 0.0
    %4706 = vmatmul.mubr.f32.gmra.mxu0 %v4637
    %v4707 = vpop.f32.mrf.mxu0
    %v4708 = vadd.f32 0.0, %v4707
    %v4709 = vpop.f32.mrf.mxu0
    %4710 = vdwg.mxu0
    %v4711 = vld [vmem:[%s47 + $0x18] sm:$0xff]
    %v4713 = vsel %vm419, %v4708, 0
    %4715 = vmatprep.subr.mxu0 0.0
    %4716 = vmatpush1.msra.mxu0 0.0
    %4717 = vmatprep.subr.mxu0 0.0
    %4718 = vmatpush1.msra.mxu0 0.0
    %4719 = vmatprep.subr.mxu0 0.0
    %4720 = vmatpush1.msra.mxu0 0.0
    %4721 = vmatprep.subr.mxu0 0.0
    %4722 = vmatpush1.msra.mxu0 0.0
    %4723 = vmatprep.subr.mxu0 0.0
    %4724 = vmatpush1.msra.mxu0 0.0
    %4725 = vmatprep.subr.mxu0 0.0
    %4726 = vmatpush1.msra.mxu0 0.0
    %4727 = vmatprep.subr.mxu0 0.0
    %4728 = vmatpush1.msra.mxu0 0.0
    %4729 = vmatprep.subr.mxu0 0.0
    %4730 = vmatpush1.msra.mxu0 0.0
    %4731 = vmatprep.subr.mxu0 0.0
    %4732 = vmatpush1.msra.mxu0 0.0
    %4733 = vmatprep.subr.mxu0 0.0
    %4734 = vmatpush1.msra.mxu0 0.0
    %4735 = vmatprep.subr.mxu0 0.0
    %4736 = vmatpush1.msra.mxu0 0.0
    %4737 = vmatprep.subr.mxu0 0.0
    %4738 = vmatpush1.msra.mxu0 0.0
    %4739 = vmatprep.subr.mxu0 0.0
    %4740 = vmatpush1.msra.mxu0 0.0
    %4741 = vmatprep.subr.mxu0 0.0
    %4742 = vmatpush1.msra.mxu0 0.0
    %4743 = vmatprep.subr.mxu0 0.0
    %4744 = vmatpush1.msra.mxu0 0.0
    %4745 = vmatprep.subr.mxu0 0.0
    %4746 = vmatpush1.msra.mxu0 %v4711
    %4747 = vmatprep.subr.mxu0 0.0
    %4748 = vmatpush2.msra.mxu0 0.0
    %4749 = vmatprep.subr.mxu0 0.0
    %4750 = vmatpush2.msra.mxu0 0.0
    %4751 = vmatprep.subr.mxu0 0.0
    %4752 = vmatpush2.msra.mxu0 0.0
    %4753 = vmatprep.subr.mxu0 0.0
    %4754 = vmatpush2.msra.mxu0 0.0
    %4755 = vmatprep.subr.mxu0 0.0
    %4756 = vmatpush2.msra.mxu0 0.0
    %4757 = vmatprep.subr.mxu0 0.0
    %4758 = vmatpush2.msra.mxu0 0.0
    %4759 = vmatprep.subr.mxu0 0.0
    %4760 = vmatpush2.msra.mxu0 0.0
    %4761 = vmatprep.subr.mxu0 0.0
    %4762 = vmatpush2.msra.mxu0 0.0
    %4763 = vmatprep.subr.mxu0 0.0
    %4764 = vmatpush2.msra.mxu0 0.0
    %4765 = vmatprep.subr.mxu0 0.0
    %4766 = vmatpush2.msra.mxu0 0.0
    %4767 = vmatprep.subr.mxu0 0.0
    %4768 = vmatpush2.msra.mxu0 0.0
    %4769 = vmatprep.subr.mxu0 0.0
    %4770 = vmatpush2.msra.mxu0 0.0
    %4771 = vmatprep.subr.mxu0 0.0
    %4772 = vmatpush2.msra.mxu0 0.0
    %4773 = vmatprep.subr.mxu0 0.0
    %4774 = vmatpush2.msra.mxu0 0.0
    %4775 = vmatprep.subr.mxu0 0.0
    %4776 = vmatpush2.msra.mxu0 0.0
    %4777 = vmatprep.subr.mxu0 0.0
    %4778 = vmatpush2.msra.mxu0 0.0
    %4779 = vmatprep.mubr.f32.mxu0 0.0
    %4780 = vmatmul.mubr.f32.gmra.mxu0 %v4713
    %v4781 = vpop.f32.mrf.mxu0
    %v4782 = vadd.f32 0.0, %v4781
    %v4783 = vpop.f32.mrf.mxu0
    %4784 = vdwg.mxu0
    %v4785 = vadd.f32 %v4544, %v4782
    %v4786 = vld [vmem:[%s51] sm:$0x1]
    %v4787 = vld [vmem:[%s49] sm:$0x1]
    %v4789 = vlaneseq
    %v4790 = vshrl.u32 %v4789, 7
    %v4791 = vsub.s32 0, %v4790
    %v4792 = vrot.slane %v4787, %v4791
    %v4794 = vadd.f32 %v4785, %v4792
    %v4796 = vlaneseq
    %v4797 = vshrl.u32 %v4796, 7
    %v4798 = vsub.s32 0, %v4797
    %v4799 = vrot.slane %v4786, %v4798
    %v4801 = vmul.f32 %v4799, %v4794
    %v4803 = vrot.slane %v4801, 3
    %v4805 = vadd.f32 %v2698, %v4803
    %v4806 = vadd.f32 %v2699, %v4803
    %4807 = vst.msk [vmem:[#allocation2] sm:$0xe0] %vm2392, %v4805
    %4808 = vst.msk [vmem:[#allocation2 + $0x8] sm:$0x3] %vm282, %v4806
    %v4809 = vld [vmem:[#allocation2] sm:$0xff]
    %v4810 = vld [vmem:[#allocation2 + $0x8] sm:$0x3]
    %v4811 = vld [vmem:[%s53] sm:$0x1]
    %v4812 = vld [vmem:[%s55] sm:$0x1]
    %v4813 = vsel %vm278, %v4809, 0.0
    %4814 = vadd.xlane.f32.xlu0 %v4813
    %v4815 = vpop.xlane.xlu0 %4814
    %v4816 = vsel %vm282, %v4810, 0.0
    %4817 = vadd.xlane.f32.xlu0 %v4816
    %v4818 = vpop.xlane.xlu0 %4817
    %v4819 = vmul.f32 %v4815, %v286
    %v4820 = vmul.f32 %v4818, %v286
    %v4821 = vsub.f32 %v4809, %v4819
    %v4822 = vsub.f32 %v4810, %v4820
    %v4823 = vmul.f32 %v4821, %v4821
    %v4824 = vmul.f32 %v4822, %v4822
    %v4825 = vsel %vm278, %v4823, 0.0
    %4826 = vadd.xlane.f32.xlu0 %v4825
    %v4827 = vpop.xlane.xlu0 %4826
    %v4828 = vsel %vm282, %v4824, 0.0
    %4829 = vadd.xlane.f32.xlu0 %v4828
    %v4830 = vpop.xlane.xlu0 %4829
    %v4831 = vmul.f32 %v4827, %v286
    %v4832 = vmul.f32 %v4830, %v286
    %v4833 = vadd.f32 %v4831, 1e-06
    %v4834 = vadd.f32 %v4832, 1e-06
    %v4835 = vrsqrt.pop %v4833
    %v4836 = vrsqrt.pop %v4834
    %v4837 = vmul.f32 %v4821, %v4835
    %v4838 = vmul.f32 %v4822, %v4836
    %v4840 = vlaneseq
    %v4841 = vshrl.u32 %v4840, 7
    %v4842 = vsub.s32 0, %v4841
    %v4843 = vrot.slane %v4811, %v4842
    %v4845 = vmul.f32 %v4837, %v4843
    %v4846 = vmul.f32 %v4838, %v4843
    %v4848 = vlaneseq
    %v4849 = vshrl.u32 %v4848, 7
    %v4850 = vsub.s32 0, %v4849
    %v4851 = vrot.slane %v4812, %v4850
    %v4853 = vadd.f32 %v4845, %v4851
    %v4854 = vadd.f32 %v4846, %v4851
    %v4855 = vld [vmem:[%s57] sm:$0xff]
    %v4856 = vld [vmem:[%s57 + $0x8] sm:$0xff]
    %v4857 = vld [vmem:[%s57 + $0x10] sm:$0xff]
    %v4858 = vld [vmem:[%s57 + $0x18] sm:$0xff]
    %v4859 = vld [vmem:[%s59] sm:$0x1]
    %v4861 = vlaneseq
    %v4862 = vshrl.u32 %v4861, 7
    %v4863 = vsub.s32 0, %v4862
    %v4864 = vrot.slane %v4859, %v4863
    %v4867 = vsel %vm278, %v4853, 0
    %v4870 = vsel %vm278, %v4854, 0
    %4872 = vmatprep.subr.mxu0 0.0
    %4873 = vmatpush1.msra.mxu0 0.0
    %4874 = vmatprep.subr.mxu0 0.0
    %4875 = vmatpush1.msra.mxu0 0.0
    %4876 = vmatprep.subr.mxu0 0.0
    %4877 = vmatpush1.msra.mxu0 0.0
    %4878 = vmatprep.subr.mxu0 0.0
    %4879 = vmatpush1.msra.mxu0 0.0
    %4880 = vmatprep.subr.mxu0 0.0
    %4881 = vmatpush1.msra.mxu0 0.0
    %4882 = vmatprep.subr.mxu0 0.0
    %4883 = vmatpush1.msra.mxu0 0.0
    %4884 = vmatprep.subr.mxu0 0.0
    %4885 = vmatpush1.msra.mxu0 0.0
    %4886 = vmatprep.subr.mxu0 0.0
    %4887 = vmatpush1.msra.mxu0 0.0
    %4888 = vmatprep.subr.mxu0 0.0
    %4889 = vmatpush1.msra.mxu0 0.0
    %4890 = vmatprep.subr.mxu0 0.0
    %4891 = vmatpush1.msra.mxu0 0.0
    %4892 = vmatprep.subr.mxu0 0.0
    %4893 = vmatpush1.msra.mxu0 0.0
    %4894 = vmatprep.subr.mxu0 0.0
    %4895 = vmatpush1.msra.mxu0 0.0
    %4896 = vmatprep.subr.mxu0 0.0
    %4897 = vmatpush1.msra.mxu0 %v4858
    %4898 = vmatprep.subr.mxu0 0.0
    %4899 = vmatpush1.msra.mxu0 %v4857
    %4900 = vmatprep.subr.mxu0 0.0
    %4901 = vmatpush1.msra.mxu0 %v4856
    %4902 = vmatprep.subr.mxu0 0.0
    %4903 = vmatpush1.msra.mxu0 %v4855
    %4904 = vmatprep.subr.mxu0 0.0
    %4905 = vmatpush2.msra.mxu0 0.0
    %4906 = vmatprep.subr.mxu0 0.0
    %4907 = vmatpush2.msra.mxu0 0.0
    %4908 = vmatprep.subr.mxu0 0.0
    %4909 = vmatpush2.msra.mxu0 0.0
    %4910 = vmatprep.subr.mxu0 0.0
    %4911 = vmatpush2.msra.mxu0 0.0
    %4912 = vmatprep.subr.mxu0 0.0
    %4913 = vmatpush2.msra.mxu0 0.0
    %4914 = vmatprep.subr.mxu0 0.0
    %4915 = vmatpush2.msra.mxu0 0.0
    %4916 = vmatprep.subr.mxu0 0.0
    %4917 = vmatpush2.msra.mxu0 0.0
    %4918 = vmatprep.subr.mxu0 0.0
    %4919 = vmatpush2.msra.mxu0 0.0
    %4920 = vmatprep.subr.mxu0 0.0
    %4921 = vmatpush2.msra.mxu0 0.0
    %4922 = vmatprep.subr.mxu0 0.0
    %4923 = vmatpush2.msra.mxu0 0.0
    %4924 = vmatprep.subr.mxu0 0.0
    %4925 = vmatpush2.msra.mxu0 0.0
    %4926 = vmatprep.subr.mxu0 0.0
    %4927 = vmatpush2.msra.mxu0 0.0
    %4928 = vmatprep.subr.mxu0 0.0
    %4929 = vmatpush2.msra.mxu0 0.0
    %4930 = vmatprep.subr.mxu0 0.0
    %4931 = vmatpush2.msra.mxu0 0.0
    %4932 = vmatprep.subr.mxu0 0.0
    %4933 = vmatpush2.msra.mxu0 0.0
    %4934 = vmatprep.subr.mxu0 0.0
    %4935 = vmatpush2.msra.mxu0 0.0
    %4936 = vmatprep.mubr.f32.mxu0 0.0
    %4937 = vmatmul.mubr.f32.gmra.mxu0 %v4867
    %v4938 = vpop.f32.mrf.mxu0
    %v4939 = vadd.f32 %v4864, %v4938
    %v4940 = vpop.f32.mrf.mxu0
    %4941 = vmatprep.mubr.f32.mxu0 0.0
    %4942 = vmatmul.mubr.f32.gmra.mxu0 %v4870
    %v4943 = vpop.f32.mrf.mxu0
    %v4944 = vadd.f32 %v4864, %v4943
    %v4945 = vpop.f32.mrf.mxu0
    %4946 = vdwg.mxu0
    %v4947 = vmul.f32 %v4939, 0.5
    %v4948 = vmul.f32 %v4944, 0.5
    %v4949 = vmul.f32 %v4939, 0.70710677
    %v4950 = vmul.f32 %v4944, 0.70710677
    %v4951 = vand.u32 2147483647, %v4949
    %v4952 = vand.u32 2147483647, %v4950
    %v4953 = vmul.f32 %v4951, 0.3275911
    %v4954 = vmul.f32 %v4952, 0.3275911
    %v4955 = vadd.f32 %v4953, 1.0
    %v4956 = vadd.f32 %v4954, 1.0
    %v4957 = vrcp.pop %v4955
    %v4958 = vmul.f32 1.0, %v4957
    %v4959 = vrcp.pop %v4956
    %v4960 = vmul.f32 1.0, %v4959
    %v4961 = vmul.f32 %v4958, 1.0614054
    %v4962 = vmul.f32 %v4960, 1.0614054
    %v4963 = vadd.f32 %v4961, -1.4531521
    %v4964 = vadd.f32 %v4962, -1.4531521
    %v4965 = vmul.f32 %v4963, %v4958
    %v4966 = vmul.f32 %v4964, %v4960
    %v4967 = vadd.f32 %v4965, 1.4214138
    %v4968 = vadd.f32 %v4966, 1.4214138
    %v4969 = vmul.f32 %v4967, %v4958
    %v4970 = vmul.f32 %v4968, %v4960
    %v4971 = vadd.f32 %v4969, -0.28449672
    %v4972 = vadd.f32 %v4970, -0.28449672
    %v4973 = vmul.f32 %v4971, %v4958
    %v4974 = vmul.f32 %v4972, %v4960
    %v4975 = vadd.f32 %v4973, 0.2548296
    %v4976 = vadd.f32 %v4974, 0.2548296
    %v4977 = vmul.f32 %v4975, %v4958
    %v4978 = vmul.f32 %v4976, %v4960
    %v4979 = vsub.f32 0.0, %v4951
    %v4980 = vsub.f32 0.0, %v4952
    %v4981 = vmul.f32 %v4979, %v4951
    %v4982 = vmul.f32 %v4980, %v4952
    %v4983 = vmul.f32 %v4981, 1.442695
    %v4984 = vpow.pop %v4983
    %v4985 = vmul.f32 %v4982, 1.442695
    %v4986 = vpow.pop %v4985
    %v4987 = vmul.f32 %v4977, %v4984
    %v4988 = vmul.f32 %v4978, %v4986
    %v4989 = vsub.f32 1.0, %v4987
    %v4990 = vsub.f32 1.0, %v4988
    %vm4991 = vcmp.lt.f32.partialorder %v4949, 0.0
    %vm4992 = vcmp.lt.f32.partialorder %v4950, 0.0
    %v4993 = vsub.f32 0.0, %v4989
    %v4994 = vsub.f32 0.0, %v4990
    %v4995 = vsel %vm4991, %v4993, %v4989
    %v4996 = vsel %vm4992, %v4994, %v4990
    %v4997 = vadd.f32 %v4995, 1.0
    %v4998 = vadd.f32 %v4996, 1.0
    %v4999 = vmul.f32 %v4947, %v4997
    %v5000 = vmul.f32 %v4948, %v4998
    %v5001 = vld [vmem:[%s61] sm:$0xff]
    %v5002 = vld [vmem:[%s61 + $0x8] sm:$0xff]
    %v5003 = vld [vmem:[%s61 + $0x10] sm:$0xff]
    %v5004 = vld [vmem:[%s61 + $0x18] sm:$0xff]
    %v5005 = vld [vmem:[%s61 + $0x20] sm:$0xff]
    %v5006 = vld [vmem:[%s61 + $0x28] sm:$0xff]
    %v5007 = vld [vmem:[%s61 + $0x30] sm:$0xff]
    %v5008 = vld [vmem:[%s61 + $0x38] sm:$0xff]
    %v5009 = vld [vmem:[%s61 + $0x40] sm:$0xff]
    %v5010 = vld [vmem:[%s61 + $0x48] sm:$0xff]
    %v5011 = vld [vmem:[%s61 + $0x50] sm:$0xff]
    %v5012 = vld [vmem:[%s61 + $0x58] sm:$0xff]
    %v5013 = vld [vmem:[%s61 + $0x60] sm:$0xff]
    %v5014 = vld [vmem:[%s61 + $0x68] sm:$0xff]
    %v5015 = vld [vmem:[%s61 + $0x70] sm:$0xff]
    %v5016 = vld [vmem:[%s61 + $0x78] sm:$0xff]
    %v5017 = vld [vmem:[%s63] sm:$0x1]
    %v5019 = vlaneseq
    %v5020 = vshrl.u32 %v5019, 7
    %v5021 = vsub.s32 0, %v5020
    %v5022 = vrot.slane %v5017, %v5021
    %5024 = vmatprep.subr.mxu0 0.0
    %5025 = vmatpush1.msra.mxu0 %v5016
    %5026 = vmatprep.subr.mxu0 0.0
    %5027 = vmatpush1.msra.mxu0 %v5015
    %5028 = vmatprep.subr.mxu0 0.0
    %5029 = vmatpush1.msra.mxu0 %v5014
    %5030 = vmatprep.subr.mxu0 0.0
    %5031 = vmatpush1.msra.mxu0 %v5013
    %5032 = vmatprep.subr.mxu0 0.0
    %5033 = vmatpush1.msra.mxu0 %v5012
    %5034 = vmatprep.subr.mxu0 0.0
    %5035 = vmatpush1.msra.mxu0 %v5011
    %5036 = vmatprep.subr.mxu0 0.0
    %5037 = vmatpush1.msra.mxu0 %v5010
    %5038 = vmatprep.subr.mxu0 0.0
    %5039 = vmatpush1.msra.mxu0 %v5009
    %5040 = vmatprep.subr.mxu0 0.0
    %5041 = vmatpush1.msra.mxu0 %v5008
    %5042 = vmatprep.subr.mxu0 0.0
    %5043 = vmatpush1.msra.mxu0 %v5007
    %5044 = vmatprep.subr.mxu0 0.0
    %5045 = vmatpush1.msra.mxu0 %v5006
    %5046 = vmatprep.subr.mxu0 0.0
    %5047 = vmatpush1.msra.mxu0 %v5005
    %5048 = vmatprep.subr.mxu0 0.0
    %5049 = vmatpush1.msra.mxu0 %v5004
    %5050 = vmatprep.subr.mxu0 0.0
    %5051 = vmatpush1.msra.mxu0 %v5003
    %5052 = vmatprep.subr.mxu0 0.0
    %5053 = vmatpush1.msra.mxu0 %v5002
    %5054 = vmatprep.subr.mxu0 0.0
    %5055 = vmatpush1.msra.mxu0 %v5001
    %5056 = vmatprep.subr.mxu0 0.0
    %5057 = vmatpush2.msra.mxu0 0.0
    %5058 = vmatprep.subr.mxu0 0.0
    %5059 = vmatpush2.msra.mxu0 0.0
    %5060 = vmatprep.subr.mxu0 0.0
    %5061 = vmatpush2.msra.mxu0 0.0
    %5062 = vmatprep.subr.mxu0 0.0
    %5063 = vmatpush2.msra.mxu0 0.0
    %5064 = vmatprep.subr.mxu0 0.0
    %5065 = vmatpush2.msra.mxu0 0.0
    %5066 = vmatprep.subr.mxu0 0.0
    %5067 = vmatpush2.msra.mxu0 0.0
    %5068 = vmatprep.subr.mxu0 0.0
    %5069 = vmatpush2.msra.mxu0 0.0
    %5070 = vmatprep.subr.mxu0 0.0
    %5071 = vmatpush2.msra.mxu0 0.0
    %5072 = vmatprep.subr.mxu0 0.0
    %5073 = vmatpush2.msra.mxu0 0.0
    %5074 = vmatprep.subr.mxu0 0.0
    %5075 = vmatpush2.msra.mxu0 0.0
    %5076 = vmatprep.subr.mxu0 0.0
    %5077 = vmatpush2.msra.mxu0 0.0
    %5078 = vmatprep.subr.mxu0 0.0
    %5079 = vmatpush2.msra.mxu0 0.0
    %5080 = vmatprep.subr.mxu0 0.0
    %5081 = vmatpush2.msra.mxu0 0.0
    %5082 = vmatprep.subr.mxu0 0.0
    %5083 = vmatpush2.msra.mxu0 0.0
    %5084 = vmatprep.subr.mxu0 0.0
    %5085 = vmatpush2.msra.mxu0 0.0
    %5086 = vmatprep.subr.mxu0 0.0
    %5087 = vmatpush2.msra.mxu0 0.0
    %5088 = vmatprep.mubr.f32.mxu0 0.0
    %5089 = vmatmul.mubr.f32.gmra.mxu0 %v4999
    %v5090 = vpop.f32.mrf.mxu0
    %v5091 = vadd.f32 %v5022, %v5090
    %v5092 = vpop.f32.mrf.mxu0
    %5093 = vmatprep.mubr.f32.mxu0 0.0
    %5094 = vmatmul.mubr.f32.gmra.mxu0 %v5000
    %v5095 = vpop.f32.mrf.mxu0
    %v5096 = vadd.f32 %v5022, %v5095
    %v5097 = vpop.f32.mrf.mxu0
    %5098 = vdwg.mxu0
    %v5099 = vld [vmem:[%s65] sm:$0x1]
    %v5101 = vlaneseq
    %v5102 = vshrl.u32 %v5101, 7
    %v5103 = vsub.s32 0, %v5102
    %v5104 = vrot.slane %v5099, %v5103
    %v5106 = vmul.f32 %v5104, %v5091
    %v5107 = vmul.f32 %v5104, %v5096
    %v5108 = vadd.f32 %v4809, %v5106
    %v5109 = vadd.f32 %v4810, %v5107
    %5110 = vst.msk [vmem:[#allocation2] sm:$0xff] %vm278, %v5108
    %5111 = vst.msk [vmem:[#allocation2 + $0x8] sm:$0x3] %vm282, %v5109
    %v5112 = vld [vmem:[#allocation2] sm:$0xff]
    %v5113 = vld [vmem:[%s67] sm:$0x1]
    %v5114 = vld [vmem:[%s69] sm:$0x1]
    %v5115 = vsel %vm257, %v5112, 0.0
    %5116 = vadd.xlane.f32.xlu0 %v5115
    %v5117 = vpop.xlane.xlu0 %5116
    %v5118 = vmul.f32 %v5117, %v286
    %v5119 = vsub.f32 %v5112, %v5118
    %v5120 = vmul.f32 %v5119, %v5119
    %v5121 = vsel %vm257, %v5120, 0.0
    %5122 = vadd.xlane.f32.xlu0 %v5121
    %v5123 = vpop.xlane.xlu0 %5122
    %v5124 = vmul.f32 %v5123, %v286
    %v5125 = vadd.f32 %v5124, 1e-06
    %v5126 = vrsqrt.pop %v5125
    %v5127 = vmul.f32 %v5119, %v5126
    %v5128 = vmul.f32 %v5127, %v5113
    %v5129 = vadd.f32 %v5128, %v5114
    %5130 = vst.msk [vmem:[#allocation3] sm:$0x1] %vm257, %v5129
    %v5131 = vld [vmem:[%s67] sm:$0x1]
    %v5132 = vld [vmem:[%s69] sm:$0x1]
    %vm5133 = vcmask 259077
    %v5134 = vsel %vm5133, %v5112, 0.0
    %5135 = vadd.xlane.f32.xlu0 %v5134
    %v5136 = vpop.xlane.xlu0 %5135
    %v5137 = vmul.f32 %v5136, %v286
    %v5138 = vsub.f32 %v5112, %v5137
    %v5139 = vmul.f32 %v5138, %v5138
    %v5140 = vsel %vm5133, %v5139, 0.0
    %5141 = vadd.xlane.f32.xlu0 %v5140
    %v5142 = vpop.xlane.xlu0 %5141
    %v5143 = vmul.f32 %v5142, %v286
    %v5144 = vadd.f32 %v5143, 1e-06
    %v5145 = vrsqrt.pop %v5144
    %v5146 = vmul.f32 %v5138, %v5145
    %v5148 = vlaneseq
    %v5149 = vshrl.u32 %v5148, 7
    %v5150 = vsub.s32 0, %v5149
    %v5151 = vrot.slane %v5131, %v5150
    %v5153 = vmul.f32 %v5146, %v5151
    %v5155 = vlaneseq
    %v5156 = vshrl.u32 %v5155, 7
    %v5157 = vsub.s32 0, %v5156
    %v5158 = vrot.slane %v5132, %v5157
    %v5160 = vadd.f32 %v5153, %v5158
    %5161 = vst.msk [vmem:[#allocation3 - $0x4] sm:$0x20] %vm5133, %v5160
    // Predicated region
    $region142: #{dino_v2_forward.1} parent=1 // pred_check
      _
    $region143: #{dino_v2_forward.1} parent=1 // pred_check_branch
      %5163 = sbr.rel (0) target = $region145
    $region144: #{dino_v2_forward.1} parent=1 // pred_region
      %s5165 = ssub.s32 32, 32
      %5166 = vsyncadd [#allocation4], %s5165
      %s5168 = sshll.u32 [#allocation3], 4
      %s5169 = int_to_ptr.vmem [resolvable:$true] %s5168
      %5171 = dma.vmem_to_hbm [thread:$0]  %s5169, 32, %s71, [#allocation4]
    $region145: #{dino_v2_forward.1} parent=1 // pred_fallthru
      _
    // Predicated region
    $region146: #{dino_v2_forward.1} parent=1 // pred_check
      _
    $region147: #{dino_v2_forward.1} parent=1 // pred_check_branch
      %5173 = sbr.rel (0) target = $region149
    $region148: #{dino_v2_forward.1} parent=1 // pred_region
      %5174 = dma.done [#allocation4], 32
    $region149: #{dino_v2_forward.1} parent=1 // pred_fallthru
      _
    %5175 = vsyncpa [#allocation4], 1

</llo_original>
